<compile_context>
chip_gen: v7x
topology: tpu7x:2x2x1
jax: 0.10.0
libtpu: 0.0.40
codegen_flags: <defaults>
</compile_context>

<pallas_src>
import functools
import numpy as np

import jax
import jax.numpy as jnp
from jax import lax
from jax.experimental import pallas as pl
from jax.experimental.pallas import tpu as pltpu


# ----------------------------- Pallas kernel ------------------------------- #

def _bottleneck_refine_kernel(last_relu,
                              x_ref, m_ref, w1_ref, b1_ref, w2_ref, b2_ref,
                              w3_ref, b3_ref, out_ref, r1p_ref):
    H, W, C = x_ref.shape[1], x_ref.shape[2], x_ref.shape[3]
    TH = out_ref.shape[1]                      # output rows per stripe
    Hp, Wp, mid = r1p_ref.shape                # padded conv1-output scratch
    midp = b2_ref.shape[1]                     # lane-aligned per-tap width
    r = pl.program_id(1)

    # --- Stage 1 (once per image): conv1 (1x1) + folded BN1 + ReLU + mask ----
    # The 0/1 mask commutes with the per-pixel channel matmul, so it is applied
    # once here, after bias+ReLU (exactly equivalent for a 0/1 mask).  Result
    # is written zero-padded by 1 into a VMEM scratch persisting across the
    # row-stripe axis; its zero border is conv2's implicit zero padding.
    @pl.when(r == 0)
    def _():
        x = x_ref[0].reshape(H * W, C)                                 # bf16
        t1 = jnp.dot(x, w1_ref[...], preferred_element_type=jnp.float32)
        r1 = jnp.maximum(t1 + b1_ref[...], 0.0) * m_ref[0].reshape(H * W, 1)
        r1p_ref[...] = jnp.zeros((Hp, Wp, mid), jnp.float32)
        r1p_ref[1:H + 1, 1:W + 1, :] = r1.reshape(H, W, mid)

    # --- Stage 2 (per row stripe): conv2 (3x3) as ONE wide MXU matmul --------
    row0 = pl.multiple_of(r * TH, TH)
    r1s = r1p_ref[pl.ds(row0, TH + 2), :, :].astype(jnp.bfloat16)      # (TH+2,Wp,mid)
    p = jnp.dot(r1s.reshape((TH + 2) * Wp, mid), w2_ref[...],
                preferred_element_type=jnp.float32)                    # (rows, 9*midp)
    p = p.reshape(TH + 2, Wp, 9 * midp)

    # 9 shifted slice-accumulates; each tap's channel block is 128-lane
    # aligned so the lane slice is a whole-vreg select.  Tap 0 inits acc.
    acc = p[0:TH, 0:W, 0:midp]
    for t in range(1, 9):
        dy, dx = t // 3, t % 3
        acc = acc + p[dy:dy + TH, dx:dx + W, t * midp:(t + 1) * midp]

    # BN2 shift + ReLU, then mask2 on the conv2 output (all f32).
    m_s = m_ref[0, pl.ds(row0, TH), :, :]                              # (TH, W, 1)
    o2 = jnp.maximum(acc + b2_ref[...], 0.0) * m_s

    # --- conv3 (1x1) + folded BN3, residual add, final ReLU ------------------
    o3 = jnp.dot(o2.reshape(TH * W, midp).astype(jnp.bfloat16), w3_ref[...],
                 preferred_element_type=jnp.float32)
    o3 = o3 + b3_ref[...]
    y = o3.reshape(TH, W, -1) + x_ref[0, pl.ds(row0, TH), :, :].astype(jnp.float32)
    if last_relu:
        y = jnp.maximum(y, 0.0)
    out_ref[0] = y.astype(out_ref.dtype)


# ------------------------------ parameter glue ----------------------------- #

def make_bottleneck_params(key, *, inplanes, planes, expansion=4):
    """Deterministic synthetic parameters matching Bottleneck_refine.__init__."""
    mid = planes // expansion
    ks = jax.random.split(key, 15)

    def bn(k1, k2, k3, k4, n):
        return (1.0 + 0.1 * jax.random.normal(k1, (n,), jnp.float32),
                0.1 * jax.random.normal(k2, (n,), jnp.float32),
                0.1 * jax.random.normal(k3, (n,), jnp.float32),
                jnp.abs(1.0 + 0.1 * jax.random.normal(k4, (n,), jnp.float32)))

    g1, b1, m1, v1 = bn(ks[0], ks[1], ks[2], ks[3], mid)
    g2, b2, m2, v2 = bn(ks[4], ks[5], ks[6], ks[7], mid)
    g3, b3, m3, v3 = bn(ks[8], ks[9], ks[10], ks[11], planes)
    conv1_w = 0.1 * jax.random.normal(ks[12], (mid, inplanes, 1, 1), jnp.float32)
    conv2_w = 0.1 * jax.random.normal(ks[13], (mid, mid, 3, 3), jnp.float32)
    conv3_w = 0.1 * jax.random.normal(ks[14], (planes, mid, 1, 1), jnp.float32)
    return dict(conv1_w=conv1_w, conv2_w=conv2_w, conv3_w=conv3_w,
                bn1_gamma=g1, bn1_beta=b1, bn1_mean=m1, bn1_var=v1,
                bn2_gamma=g2, bn2_beta=b2, bn2_mean=m2, bn2_var=v2,
                bn3_gamma=g3, bn3_beta=b3, bn3_mean=m3, bn3_var=v3)


def _pack_params(params, bn_eps=1e-5):
    """Fold BN (inference) into the conv weights; tap-pack conv2 with each
    tap's channel block padded to a 128-lane multiple; bf16 MXU operands."""
    conv1_w = np.asarray(params["conv1_w"], np.float32)   # (mid, C, 1, 1)
    conv2_w = np.asarray(params["conv2_w"], np.float32)   # (mid, mid, 3, 3)
    conv3_w = np.asarray(params["conv3_w"], np.float32)   # (planes, mid, 1, 1)
    mid = conv1_w.shape[0]
    planes = conv3_w.shape[0]
    midp = -(-mid // 128) * 128                            # lane-aligned tap width

    def bn_fold(prefix):
        g = np.asarray(params[prefix + "_gamma"], np.float32)
        b = np.asarray(params[prefix + "_beta"], np.float32)
        m = np.asarray(params[prefix + "_mean"], np.float32)
        v = np.asarray(params[prefix + "_var"], np.float32)
        s = g / np.sqrt(v + bn_eps)
        return s, b - m * s

    s1, sh1 = bn_fold("bn1")
    s2, sh2 = bn_fold("bn2")
    s3, sh3 = bn_fold("bn3")

    # conv1: (mid, C, 1, 1) -> (C, mid) with BN1 scale folded per column.
    w1 = (conv1_w[:, :, 0, 0] * s1[:, None]).T
    # conv2: (co, ci, 3, 3) -> tap-packed (ci, 9*midp); column = tap*midp + co,
    # columns [mid:midp) of every tap are zero (lane padding).
    w2 = np.transpose(conv2_w * s2[:, None, None, None], (1, 2, 3, 0))  # ci,ky,kx,co
    w2p = np.zeros((mid, 3, 3, midp), np.float32)
    w2p[..., :mid] = w2
    w2p = w2p.reshape(mid, 9 * midp)
    # BN2 shift, zero in the padded channels (ReLU keeps them at exactly 0).
    b2 = np.zeros((1, midp), np.float32)
    b2[0, :mid] = sh2
    # conv3: (planes, mid, 1, 1) -> (midp, planes), zero rows for pad channels.
    w3 = np.zeros((midp, planes), np.float32)
    w3[:mid, :] = (conv3_w[:, :, 0, 0] * s3[:, None]).T

    return (jnp.asarray(w1, jnp.bfloat16),
            jnp.asarray(sh1[None, :], jnp.float32),
            jnp.asarray(w2p, jnp.bfloat16),
            jnp.asarray(b2, jnp.float32),
            jnp.asarray(w3, jnp.bfloat16),
            jnp.asarray(sh3[None, :], jnp.float32))


# ------------------------------ JAX wrapper -------------------------------- #

def bottleneck_refine_forward(x, mask, params, *, last_relu=True, row_tile=None):
    """x: (B, C, H, W) f32 NCHW; mask: (B, 1, m_h, m_w) 0/1.
    Returns (B, planes, H, W) bf16."""
    B, C, H, W = x.shape
    if mask.shape[1] != 1:
        raise NotImplementedError("patch_groups > 1 not supported")  # TODO(synk)
    m_h, m_w = mask.shape[2], mask.shape[3]
    assert H % m_h == 0 and W % m_w == 0

    w1, b1, w2, b2, w3, b3 = _pack_params(params)
    mid, midp, planes = w1.shape[1], b2.shape[1], w3.shape[1]
    assert planes == C, "identity residual requires inplanes == planes (downsample=None)"

    if row_tile is None:
        row_tile = 8 if H % 8 == 0 else H
    assert H % row_tile == 0
    TH, R = row_tile, H // row_tile

    # Glue: NCHW -> NHWC (channels on the lane axis) and nearest-upsample the
    # mask.  No padded copy of x — padding happens in-kernel on the small
    # conv1 output.  TODO(synk): NHWC end-to-end would drop the transposes.
    xh = jnp.transpose(x, (0, 2, 3, 1)).astype(jnp.bfloat16)
    m_up = jnp.repeat(jnp.repeat(mask, H // m_h, axis=2), W // m_w, axis=3)
    m_nhwc = jnp.transpose(m_up, (0, 2, 3, 1)).astype(jnp.float32)

    out_nhwc = pl.pallas_call(
        functools.partial(_bottleneck_refine_kernel, bool(last_relu)),
        out_shape=jax.ShapeDtypeStruct((B, H, W, planes), jnp.bfloat16),
        grid_spec=pltpu.PrefetchScalarGridSpec(
            num_scalar_prefetch=0,
            grid=(B, R),                                    # image x row-stripe
            in_specs=[
                pl.BlockSpec((1, H, W, C), lambda b, r: (b, 0, 0, 0)),   # x (unpadded)
                pl.BlockSpec((1, H, W, 1), lambda b, r: (b, 0, 0, 0)),   # mask (upsampled)
                pl.BlockSpec((C, mid), lambda b, r: (0, 0)),             # w1 (BN1 folded)
                pl.BlockSpec((1, mid), lambda b, r: (0, 0)),             # BN1 shift
                pl.BlockSpec((mid, 9 * midp), lambda b, r: (0, 0)),      # w2 tap-packed
                pl.BlockSpec((1, midp), lambda b, r: (0, 0)),            # BN2 shift
                pl.BlockSpec((midp, planes), lambda b, r: (0, 0)),       # w3 (BN3 folded)
                pl.BlockSpec((1, planes), lambda b, r: (0, 0)),          # BN3 shift
            ],
            out_specs=pl.BlockSpec((1, TH, W, planes), lambda b, r: (b, r, 0, 0)),
            scratch_shapes=[pltpu.VMEM((H + 2, W + 2, mid), jnp.float32)],
        ),
        compiler_params=pltpu.CompilerParams(
            dimension_semantics=("parallel", "arbitrary"),
            # Default scoped VMEM is 16/32 MiB; keep the limit below v7x's
            # 64 MiB physical so the same setting is valid on all chips.
            vmem_limit_bytes=48 * 1024 * 1024),
    )(xh, m_nhwc, w1, b1, w2, b2, w3, b3)

    return jnp.transpose(out_nhwc, (0, 3, 1, 2))


# ------------------------- pure-JAX reference check ------------------------ #

def _reference_forward(x, mask, params, *, last_relu=True, bn_eps=1e-5):
    dn = ("NCHW", "OIHW", "NCHW")

    def bn(v, p):
        s = params[p + "_gamma"] / jnp.sqrt(params[p + "_var"] + bn_eps)
        sh = params[p + "_beta"] - params[p + "_mean"] * s
        return v * s[None, :, None, None] + sh[None, :, None, None]

    B, C, H, W = x.shape
    m1 = jnp.repeat(jnp.repeat(mask, H // mask.shape[2], axis=2),
                    W // mask.shape[3], axis=3)
    out = x * m1
    out = lax.conv_general_dilated(out, params["conv1_w"], (1, 1), "VALID",
                                   dimension_numbers=dn)
    out = jax.nn.relu(bn(out, "bn1"))
    out = out * m1
    out = lax.conv_general_dilated(out, params["conv2_w"], (1, 1),
                                   ((1, 1), (1, 1)), dimension_numbers=dn)
    out = jax.nn.relu(bn(out, "bn2"))
    out = out * m1
    out = lax.conv_general_dilated(out, params["conv3_w"], (1, 1), "VALID",
                                   dimension_numbers=dn)
    out = bn(out, "bn3")
    out = out + x
    if last_relu:
        out = jax.nn.relu(out)
    return out


# --------------------------------- main ------------------------------------ #

if __name__ == "__main__":
    B, C, H, W = 2, 32, 16, 16      # inplanes == planes -> identity residual
    planes, mask_hw = 32, 8         # mid = planes // 4 = 8, mask 8x8 (inter = 2)

    root = jax.random.PRNGKey(0)
    kp, kx, km = jax.random.split(root, 3)

    params = make_bottleneck_params(kp, inplanes=C, planes=planes)
    x = jax.random.normal(kx, (B, C, H, W), jnp.float32)
    mask = (jax.random.uniform(km, (B, 1, mask_hw, mask_hw)) > 0.5).astype(jnp.float32)

    out = bottleneck_refine_forward(x, mask, params, last_relu=True, row_tile=8)
    out = jax.block_until_ready(out)
    assert out.shape == (B, planes, H, W), out.shape

    ref = _reference_forward(x, mask, params, last_relu=True)
    err = float(jnp.max(jnp.abs(out.astype(jnp.float32) - ref)))
    assert err < 2e-1, f"max abs error vs reference = {err}"   # bf16 operands + bf16 output
    print("KERNEL_OK")
</pallas_src>

<mosaic_0001>
module attributes {stable_mosaic.version = 11 : i64} {
  func.func @_bottleneck_refine_kernel(%arg0: i32, %arg1: i32, %arg2: memref<1x16x16x32xbf16, #tpu.memory_space<vmem>>, %arg3: memref<1x16x16x1xf32, #tpu.memory_space<vmem>>, %arg4: memref<32x8xbf16, #tpu.memory_space<vmem>>, %arg5: memref<1x8xf32, #tpu.memory_space<vmem>>, %arg6: memref<8x1152xbf16, #tpu.memory_space<vmem>>, %arg7: memref<1x128xf32, #tpu.memory_space<vmem>>, %arg8: memref<128x32xbf16, #tpu.memory_space<vmem>>, %arg9: memref<1x32xf32, #tpu.memory_space<vmem>>, %arg10: memref<1x8x16x32xbf16, #tpu.memory_space<vmem>>, %arg11: memref<18x18x8xf32, #tpu.memory_space<vmem>>) attributes {dimension_semantics = [#tpu.dimension_semantics<parallel>, #tpu.dimension_semantics<arbitrary>], iteration_bounds = array<i64: 2, 2>, scalar_prefetch = 0 : i64, scratch_operands = 1 : i64, tpu.core_type = #tpu.core_type<tc>, window_params = [{transform_indices = @transform_0, window_bounds = array<i64: 1, 16, 16, 32>}, {transform_indices = @transform_1, window_bounds = array<i64: 1, 16, 16, 1>}, {pipeline_mode = #tpu.pipeline_mode<synchronous>, transform_indices = @transform_2, window_bounds = array<i64: 32, 8>}, {pipeline_mode = #tpu.pipeline_mode<synchronous>, transform_indices = @transform_3, window_bounds = array<i64: 1, 8>}, {pipeline_mode = #tpu.pipeline_mode<synchronous>, transform_indices = @transform_4, window_bounds = array<i64: 8, 1152>}, {pipeline_mode = #tpu.pipeline_mode<synchronous>, transform_indices = @transform_5, window_bounds = array<i64: 1, 128>}, {pipeline_mode = #tpu.pipeline_mode<synchronous>, transform_indices = @transform_6, window_bounds = array<i64: 128, 32>}, {pipeline_mode = #tpu.pipeline_mode<synchronous>, transform_indices = @transform_7, window_bounds = array<i64: 1, 32>}, {transform_indices = @transform_8, window_bounds = array<i64: 1, 8, 16, 32>}]} {
    %c0_i32 = arith.constant 0 : i32
    %0 = arith.cmpi eq, %arg1, %c0_i32 : i32
    %1 = arith.extui %0 : i1 to i32
    %c0_i32_0 = arith.constant 0 : i32
    %2 = arith.cmpi ne, %1, %c0_i32_0 : i32
    scf.if %2 {
      %c0_23 = arith.constant 0 : index
      %c0_24 = arith.constant 0 : index
      %c0_25 = arith.constant 0 : index
      %c0_26 = arith.constant 0 : index
      %59 = vector.load %arg2[%c0_23, %c0_24, %c0_25, %c0_26] : memref<1x16x16x32xbf16, #tpu.memory_space<vmem>>, vector<1x16x16x32xbf16>
      %60 = vector.shape_cast %59 : vector<1x16x16x32xbf16> to vector<16x16x32xbf16>
      %61 = vector.shape_cast %60 : vector<16x16x32xbf16> to vector<256x32xbf16>
      %c0_27 = arith.constant 0 : index
      %c0_28 = arith.constant 0 : index
      %62 = vector.load %arg4[%c0_27, %c0_28] : memref<32x8xbf16, #tpu.memory_space<vmem>>, vector<32x8xbf16>
      %cst_29 = arith.constant dense<0.000000e+00> : vector<256x8xf32>
      %63 = tpu.matmul %61, %62, %cst_29 {dimension_numbers = #tpu.dot_dimension_numbers<[1], [0], [0], [1], [0, 0, 1, 1], [], []>} : vector<256x32xbf16>, vector<32x8xbf16>, vector<256x8xf32> -> vector<256x8xf32>
      %c0_30 = arith.constant 0 : index
      %c0_31 = arith.constant 0 : index
      %64 = vector.load %arg5[%c0_30, %c0_31] : memref<1x8xf32, #tpu.memory_space<vmem>>, vector<1x8xf32>
      %65 = vector.broadcast %64 : vector<1x8xf32> to vector<256x8xf32>
      %66 = arith.addf %63, %65 : vector<256x8xf32>
      %cst_32 = arith.constant 0.000000e+00 : f32
      %67 = vector.broadcast %cst_32 : f32 to vector<256x8xf32>
      %68 = arith.maximumf %66, %67 : vector<256x8xf32>
      %c0_33 = arith.constant 0 : index
      %c0_34 = arith.constant 0 : index
      %c0_35 = arith.constant 0 : index
      %c0_36 = arith.constant 0 : index
      %69 = vector.load %arg3[%c0_33, %c0_34, %c0_35, %c0_36] : memref<1x16x16x1xf32, #tpu.memory_space<vmem>>, vector<1x16x16x1xf32>
      %70 = vector.shape_cast %69 : vector<1x16x16x1xf32> to vector<16x16x1xf32>
      %71 = vector.shape_cast %70 : vector<16x16x1xf32> to vector<256x1xf32>
      %72 = vector.broadcast %71 : vector<256x1xf32> to vector<256x8xf32>
      %73 = arith.mulf %68, %72 : vector<256x8xf32>
      %cst_37 = arith.constant 0.000000e+00 : f32
      %74 = vector.broadcast %cst_37 : f32 to vector<18x18x8xf32>
      %c0_38 = arith.constant 0 : index
      %c0_39 = arith.constant 0 : index
      %c0_40 = arith.constant 0 : index
      %75 = vector.load %arg11[%c0_38, %c0_39, %c0_40] : memref<18x18x8xf32, #tpu.memory_space<vmem>>, vector<18x18x8xf32>
      tpu.vector_store %arg11[%c0_38, %c0_39, %c0_40], %74 {strides = array<i32>} : memref<18x18x8xf32, #tpu.memory_space<vmem>>, vector<18x18x8xf32>,
      %76 = vector.shape_cast %73 : vector<256x8xf32> to vector<16x16x8xf32>
      %c1 = arith.constant 1 : index
      %c1_41 = arith.constant 1 : index
      %c0_42 = arith.constant 0 : index
      %77 = vector.load %arg11[%c1, %c1_41, %c0_42] : memref<18x18x8xf32, #tpu.memory_space<vmem>>, vector<16x16x8xf32>
      tpu.vector_store %arg11[%c1, %c1_41, %c0_42], %76 {strides = array<i32>} : memref<18x18x8xf32, #tpu.memory_space<vmem>>, vector<16x16x8xf32>,
    } else {
    }
    %c8_i32 = arith.constant 8 : i32
    %3 = arith.muli %arg1, %c8_i32 : i32
    %4 = tpu.assume_multiple %3, 8 : i32
    %5 = arith.index_cast %4 : i32 to index
    %c0 = arith.constant 0 : index
    %c0_1 = arith.constant 0 : index
    %6 = vector.load %arg11[%5, %c0, %c0_1] : memref<18x18x8xf32, #tpu.memory_space<vmem>>, vector<10x18x8xf32>
    %7 = arith.truncf %6 : vector<10x18x8xf32> to vector<10x18x8xbf16>
    %8 = vector.shape_cast %7 : vector<10x18x8xbf16> to vector<180x8xbf16>
    %c0_2 = arith.constant 0 : index
    %c0_3 = arith.constant 0 : index
    %9 = vector.load %arg6[%c0_2, %c0_3] : memref<8x1152xbf16, #tpu.memory_space<vmem>>, vector<8x1152xbf16>
    %cst = arith.constant dense<0.000000e+00> : vector<180x1152xf32>
    %10 = tpu.matmul %8, %9, %cst {dimension_numbers = #tpu.dot_dimension_numbers<[1], [0], [0], [1], [0, 0, 1, 1], [], []>} : vector<180x8xbf16>, vector<8x1152xbf16>, vector<180x1152xf32> -> vector<180x1152xf32>
    %11 = vector.shape_cast %10 : vector<180x1152xf32> to vector<10x18x1152xf32>
    %12 = vector.extract_strided_slice %11 {offsets = [0, 0, 0], sizes = [8, 16, 128], strides = [1, 1, 1]} : vector<10x18x1152xf32> to vector<8x16x128xf32>
    %13 = vector.extract_strided_slice %11 {offsets = [0, 1, 128], sizes = [8, 16, 128], strides = [1, 1, 1]} : vector<10x18x1152xf32> to vector<8x16x128xf32>
    %14 = arith.addf %12, %13 : vector<8x16x128xf32>
    %15 = vector.extract_strided_slice %11 {offsets = [0, 2, 256], sizes = [8, 16, 128], strides = [1, 1, 1]} : vector<10x18x1152xf32> to vector<8x16x128xf32>
    %16 = arith.addf %14, %15 : vector<8x16x128xf32>
    %17 = vector.extract_strided_slice %11 {offsets = [1, 0, 384], sizes = [8, 16, 128], strides = [1, 1, 1]} : vector<10x18x1152xf32> to vector<8x16x128xf32>
    %18 = arith.addf %16, %17 : vector<8x16x128xf32>
    %19 = vector.extract_strided_slice %11 {offsets = [1, 1, 512], sizes = [8, 16, 128], strides = [1, 1, 1]} : vector<10x18x1152xf32> to vector<8x16x128xf32>
    %20 = arith.addf %18, %19 : vector<8x16x128xf32>
    %21 = vector.extract_strided_slice %11 {offsets = [1, 2, 640], sizes = [8, 16, 128], strides = [1, 1, 1]} : vector<10x18x1152xf32> to vector<8x16x128xf32>
    %22 = arith.addf %20, %21 : vector<8x16x128xf32>
    %23 = vector.extract_strided_slice %11 {offsets = [2, 0, 768], sizes = [8, 16, 128], strides = [1, 1, 1]} : vector<10x18x1152xf32> to vector<8x16x128xf32>
    %24 = arith.addf %22, %23 : vector<8x16x128xf32>
    %25 = vector.extract_strided_slice %11 {offsets = [2, 1, 896], sizes = [8, 16, 128], strides = [1, 1, 1]} : vector<10x18x1152xf32> to vector<8x16x128xf32>
    %26 = arith.addf %24, %25 : vector<8x16x128xf32>
    %27 = vector.extract_strided_slice %11 {offsets = [2, 2, 1024], sizes = [8, 16, 128], strides = [1, 1, 1]} : vector<10x18x1152xf32> to vector<8x16x128xf32>
    %28 = arith.addf %26, %27 : vector<8x16x128xf32>
    %c0_4 = arith.constant 0 : index
    %29 = arith.index_cast %4 : i32 to index
    %c0_5 = arith.constant 0 : index
    %c0_6 = arith.constant 0 : index
    %30 = vector.load %arg3[%c0_4, %29, %c0_5, %c0_6] : memref<1x16x16x1xf32, #tpu.memory_space<vmem>>, vector<1x8x16x1xf32>
    %31 = vector.shape_cast %30 : vector<1x8x16x1xf32> to vector<8x16x1xf32>
    %c0_7 = arith.constant 0 : index
    %c0_8 = arith.constant 0 : index
    %32 = vector.load %arg7[%c0_7, %c0_8] : memref<1x128xf32, #tpu.memory_space<vmem>>, vector<1x128xf32>
    %33 = vector.shape_cast %32 : vector<1x128xf32> to vector<1x1x128xf32>
    %34 = vector.broadcast %33 : vector<1x1x128xf32> to vector<8x16x128xf32>
    %35 = arith.addf %28, %34 : vector<8x16x128xf32>
    %cst_9 = arith.constant 0.000000e+00 : f32
    %36 = vector.broadcast %cst_9 : f32 to vector<8x16x128xf32>
    %37 = arith.maximumf %35, %36 : vector<8x16x128xf32>
    %38 = vector.broadcast %31 : vector<8x16x1xf32> to vector<8x16x128xf32>
    %39 = arith.mulf %37, %38 : vector<8x16x128xf32>
    %40 = vector.shape_cast %39 : vector<8x16x128xf32> to vector<128x128xf32>
    %41 = arith.truncf %40 : vector<128x128xf32> to vector<128x128xbf16>
    %c0_10 = arith.constant 0 : index
    %c0_11 = arith.constant 0 : index
    %42 = vector.load %arg8[%c0_10, %c0_11] : memref<128x32xbf16, #tpu.memory_space<vmem>>, vector<128x32xbf16>
    %cst_12 = arith.constant dense<0.000000e+00> : vector<128x32xf32>
    %43 = tpu.matmul %41, %42, %cst_12 {dimension_numbers = #tpu.dot_dimension_numbers<[1], [0], [0], [1], [0, 0, 1, 1], [], []>} : vector<128x128xbf16>, vector<128x32xbf16>, vector<128x32xf32> -> vector<128x32xf32>
    %c0_13 = arith.constant 0 : index
    %c0_14 = arith.constant 0 : index
    %44 = vector.load %arg9[%c0_13, %c0_14] : memref<1x32xf32, #tpu.memory_space<vmem>>, vector<1x32xf32>
    %45 = vector.broadcast %44 : vector<1x32xf32> to vector<128x32xf32>
    %46 = arith.addf %43, %45 : vector<128x32xf32>
    %47 = vector.shape_cast %46 : vector<128x32xf32> to vector<8x16x32xf32>
    %c0_15 = arith.constant 0 : index
    %48 = arith.index_cast %4 : i32 to index
    %c0_16 = arith.constant 0 : index
    %c0_17 = arith.constant 0 : index
    %49 = vector.load %arg2[%c0_15, %48, %c0_16, %c0_17] : memref<1x16x16x32xbf16, #tpu.memory_space<vmem>>, vector<1x8x16x32xbf16>
    %50 = vector.shape_cast %49 : vector<1x8x16x32xbf16> to vector<8x16x32xbf16>
    %51 = arith.extf %50 : vector<8x16x32xbf16> to vector<8x16x32xf32>
    %52 = arith.addf %47, %51 : vector<8x16x32xf32>
    %cst_18 = arith.constant 0.000000e+00 : f32
    %53 = vector.broadcast %cst_18 : f32 to vector<8x16x32xf32>
    %54 = arith.maximumf %52, %53 : vector<8x16x32xf32>
    %55 = arith.truncf %54 : vector<8x16x32xf32> to vector<8x16x32xbf16>
    %c0_19 = arith.constant 0 : index
    %c0_20 = arith.constant 0 : index
    %c0_21 = arith.constant 0 : index
    %c0_22 = arith.constant 0 : index
    %56 = vector.load %arg10[%c0_19, %c0_20, %c0_21, %c0_22] : memref<1x8x16x32xbf16, #tpu.memory_space<vmem>>, vector<1x8x16x32xbf16>
    %57 = vector.shape_cast %56 : vector<1x8x16x32xbf16> to vector<8x16x32xbf16>
    %58 = vector.shape_cast %55 : vector<8x16x32xbf16> to vector<1x8x16x32xbf16>
    tpu.vector_store %arg10[%c0_19, %c0_20, %c0_21, %c0_22], %58 {strides = array<i32>} : memref<1x8x16x32xbf16, #tpu.memory_space<vmem>>, vector<1x8x16x32xbf16>,
    return
  }
  func.func @transform_0(%arg0: i32, %arg1: i32) -> (i32, i32, i32, i32) {
    %c0_i32 = arith.constant 0 : i32
    %c0_i32_0 = arith.constant 0 : i32
    %c0_i32_1 = arith.constant 0 : i32
    %c0_i32_2 = arith.constant 0 : i32
    return %arg0, %c0_i32, %c0_i32_0, %c0_i32_1 : i32, i32, i32, i32
  }
  func.func @transform_1(%arg0: i32, %arg1: i32) -> (i32, i32, i32, i32) {
    %c0_i32 = arith.constant 0 : i32
    %c0_i32_0 = arith.constant 0 : i32
    %c0_i32_1 = arith.constant 0 : i32
    %c0_i32_2 = arith.constant 0 : i32
    return %arg0, %c0_i32, %c0_i32_0, %c0_i32_1 : i32, i32, i32, i32
  }
  func.func @transform_2(%arg0: i32, %arg1: i32) -> (i32, i32) {
    %c0_i32 = arith.constant 0 : i32
    %c0_i32_0 = arith.constant 0 : i32
    %c0_i32_1 = arith.constant 0 : i32
    return %c0_i32, %c0_i32_0 : i32, i32
  }
  func.func @transform_3(%arg0: i32, %arg1: i32) -> (i32, i32) {
    %c0_i32 = arith.constant 0 : i32
    %c0_i32_0 = arith.constant 0 : i32
    %c0_i32_1 = arith.constant 0 : i32
    return %c0_i32, %c0_i32_0 : i32, i32
  }
  func.func @transform_4(%arg0: i32, %arg1: i32) -> (i32, i32) {
    %c0_i32 = arith.constant 0 : i32
    %c0_i32_0 = arith.constant 0 : i32
    %c0_i32_1 = arith.constant 0 : i32
    return %c0_i32, %c0_i32_0 : i32, i32
  }
  func.func @transform_5(%arg0: i32, %arg1: i32) -> (i32, i32) {
    %c0_i32 = arith.constant 0 : i32
    %c0_i32_0 = arith.constant 0 : i32
    %c0_i32_1 = arith.constant 0 : i32
    return %c0_i32, %c0_i32_0 : i32, i32
  }
  func.func @transform_6(%arg0: i32, %arg1: i32) -> (i32, i32) {
    %c0_i32 = arith.constant 0 : i32
    %c0_i32_0 = arith.constant 0 : i32
    %c0_i32_1 = arith.constant 0 : i32
    return %c0_i32, %c0_i32_0 : i32, i32
  }
  func.func @transform_7(%arg0: i32, %arg1: i32) -> (i32, i32) {
    %c0_i32 = arith.constant 0 : i32
    %c0_i32_0 = arith.constant 0 : i32
    %c0_i32_1 = arith.constant 0 : i32
    return %c0_i32, %c0_i32_0 : i32, i32
  }
  func.func @transform_8(%arg0: i32, %arg1: i32) -> (i32, i32, i32, i32) {
    %c0_i32 = arith.constant 0 : i32
    %c0_i32_0 = arith.constant 0 : i32
    %c0_i32_1 = arith.constant 0 : i32
    return %arg0, %arg1, %c0_i32, %c0_i32_0 : i32, i32, i32, i32
  }
}

</mosaic_0001>

<llo_original>
// kernel: tpu_custom_call.1
$region0: #{tpu_custom_call.1}
  #allocation0 [shape = 'u32[]', space=smem, size = 0x4, offset = 0x4, fixed_abs, tag = 'smem constant byte address 0x4 - core index']
  #allocation1 [shape = 'u32[144,128]{1,0:T(1,128)}', space=vmem, size = 0x12000, scoped, tag = 'internal scratch']
  #allocation2 [shape = 'f32[18,18,8]{2,1,0:T(8,128)}', space=vmem, size = 0x36000, scoped, tag = 'scratch operand']
  %s0 = inlined_call_operand.vmem [shape: bf16[2,16,16,32], index: 0, kind: input, shape index: {}]
  %s1 = inlined_call_operand.vmem [shape: f32[2,16,16,1], index: 1, kind: input, shape index: {}]
  %s2 = inlined_call_operand.vmem [shape: bf16[32,8], index: 2, kind: input, shape index: {}]
  %s3 = inlined_call_operand.vmem [shape: f32[1,8], index: 3, kind: input, shape index: {}]
  %s4 = inlined_call_operand.vmem [shape: bf16[8,1152], index: 4, kind: input, shape index: {}]
  %s5 = inlined_call_operand.vmem [shape: f32[1,128], index: 5, kind: input, shape index: {}]
  %s6 = inlined_call_operand.vmem [shape: bf16[128,32], index: 6, kind: input, shape index: {}]
  %s7 = inlined_call_operand.vmem [shape: f32[1,32], index: 7, kind: input, shape index: {}]
  %s8 = inlined_call_operand.hbm [shape: bf16[2,16,16,32], index: 8, kind: output, shape index: {}]
  %s9 = sld [smem:[#allocation0]]
  $region69: #{tpu_custom_call.1} parent=0
    _
  %s11 = ssub.s32 1, %s9
  %s12 = scalar_select 0, %s11, %s9
  $region1: #{tpu_custom_call.1} parent=0
    #allocation3 [shape = 'u8[65536]{0}', space=vmem, size = 0x10000, scoped, tag = 'output window, operand 0']
    #allocation4 [shape = 's32[2]{0}', space=sflag, size = 0x8, scoped, tag = 'scoped memory for tpu_custom_call.1']
    %13 = vsyncpa [#allocation4], 0
    %s14 = scalar_lea.sflag [#allocation4], 1
    %15 = vsyncpa %s14, 0
    loop: start=0, step=1, limit=6
    $region2: #{tpu_custom_call.1} parent=1 // loop_pre_header
      _
    $region3: #{tpu_custom_call.1} parent=1 // loop_header
      %s17 = sphi 0, %s21
      %p18 = scmp.ge.s32.totalorder %s17, 6
      %s24 = sphi 0, %s36
      %s25 = sphi 0, %s32
      %s26 = sphi 0, %s24
      %s27 = sphi 0, %s25
      %s28 = sphi 0, %s26
      %s29 = sphi 0, %s27
      %s39 = sphi 0, %s41
      %s42 = sphi 0, %s39
      %s43 = sphi 0, %s42
      %s59 = sphi 0, %s43
      %s65 = sphi 0, %s67
      %s68 = sphi 0, %s65
      %s69 = sphi 0, %s68
      %s85 = sphi 0, %s69
      %s89 = sphi 0, %s89
      %s91 = sphi 0, %s89
      %s92 = sphi 0, %s91
      %s106 = sphi 0, %s92
      %s110 = sphi 0, %s110
      %s112 = sphi 0, %s110
      %s113 = sphi 0, %s112
      %s127 = sphi 0, %s113
      %s131 = sphi 0, %s131
      %s133 = sphi 0, %s131
      %s134 = sphi 0, %s133
      %s148 = sphi 0, %s134
      %s152 = sphi 0, %s152
      %s154 = sphi 0, %s152
      %s155 = sphi 0, %s154
      %s169 = sphi 0, %s155
      %s173 = sphi 0, %s173
      %s175 = sphi 0, %s173
      %s176 = sphi 0, %s175
      %s190 = sphi 0, %s176
      %s194 = sphi 0, %s194
      %s196 = sphi 0, %s194
      %s197 = sphi 0, %s196
      %s211 = sphi 0, %s197
      %s219 = sphi 0, %s221
      %s222 = sphi 0, %s219
      %s223 = sphi 0, %s222
      %s239 = sphi 0, %s223
    $region4: #{tpu_custom_call.1} parent=1 // loop_header_branch
      %20 = sbr.rel (%p18) target = $region8
    $region5: #{tpu_custom_call.1} parent=1 // loop_body
      %s22 = ssub.s32 %s17, 1
      %s23 = ssub.s32 %s17, 2
      %s30 = sadd.s32 1, %s25
      %p31 = scmp.ge.s32.totalorder %s30, 2
      %s32 = scalar_select %p31, 0, %s30
      %s33 = sadd.s32 1, %s24
      %s34 = scalar_select %p31, %s33, %s24
      %p35 = scmp.ge.s32.totalorder %s34, 2
      %s36 = scalar_select %p35, 0, %s34
      %s37 = ssub.s32 %s24, %s36
      %p38 = scmp.eq.s32.totalorder %s37, 0
      %s40 = sadd.s32 %s39, 1
      %s41 = scalar_select %p38, %s39, %s40
      %p44 = pneg %p38
      %p45 = scmp.eq.s32.totalorder %s17, 3
      %p46 = por %p44, %p45
      %p47 = scmp.ne.s32.totalorder %s39, %s42
      %p48 = scmp.eq.s32.totalorder %s17, 0
      %p49 = por %p47, %p48
      %p50 = scmp.ne.s32.totalorder %s39, %s42
      %p51 = scmp.eq.s32.totalorder %s22, 3
      %p52 = por %p50, %p51
      %p53 = scmp.ne.s32.totalorder %s42, %s43
      %p54 = scmp.eq.s32.totalorder %s22, 0
      %p55 = por %p53, %p54
      %p56 = scmp.ne.s32.totalorder %s42, %s43
      %p57 = scmp.eq.s32.totalorder %s23, 3
      %p58 = por %p56, %p57
      %p60 = scmp.ne.s32.totalorder %s43, %s59
      %p61 = scmp.eq.s32.totalorder %s23, 0
      %p62 = por %p60, %p61
      %s63 = ssub.s32 %s24, %s36
      %p64 = scmp.eq.s32.totalorder %s63, 0
      %s66 = sadd.s32 %s65, 1
      %s67 = scalar_select %p64, %s65, %s66
      %p70 = pneg %p64
      %p71 = scmp.eq.s32.totalorder %s17, 3
      %p72 = por %p70, %p71
      %p73 = scmp.ne.s32.totalorder %s65, %s68
      %p74 = scmp.eq.s32.totalorder %s17, 0
      %p75 = por %p73, %p74
      %p76 = scmp.ne.s32.totalorder %s65, %s68
      %p77 = scmp.eq.s32.totalorder %s22, 3
      %p78 = por %p76, %p77
      %p79 = scmp.ne.s32.totalorder %s68, %s69
      %p80 = scmp.eq.s32.totalorder %s22, 0
      %p81 = por %p79, %p80
      %p82 = scmp.ne.s32.totalorder %s68, %s69
      %p83 = scmp.eq.s32.totalorder %s23, 3
      %p84 = por %p82, %p83
      %p86 = scmp.ne.s32.totalorder %s69, %s85
      %p87 = scmp.eq.s32.totalorder %s23, 0
      %p88 = por %p86, %p87
      %s90 = sadd.s32 %s89, 1
      %p93 = scmp.eq.s32.totalorder %s17, 3
      %p94 = scmp.ne.s32.totalorder %s89, %s91
      %p95 = scmp.eq.s32.totalorder %s17, 0
      %p96 = por %p94, %p95
      %p97 = scmp.ne.s32.totalorder %s89, %s91
      %p98 = scmp.eq.s32.totalorder %s22, 3
      %p99 = por %p97, %p98
      %p100 = scmp.ne.s32.totalorder %s91, %s92
      %p101 = scmp.eq.s32.totalorder %s22, 0
      %p102 = por %p100, %p101
      %p103 = scmp.ne.s32.totalorder %s91, %s92
      %p104 = scmp.eq.s32.totalorder %s23, 3
      %p105 = por %p103, %p104
      %p107 = scmp.ne.s32.totalorder %s92, %s106
      %p108 = scmp.eq.s32.totalorder %s23, 0
      %p109 = por %p107, %p108
      %s111 = sadd.s32 %s110, 1
      %p114 = scmp.eq.s32.totalorder %s17, 3
      %p115 = scmp.ne.s32.totalorder %s110, %s112
      %p116 = scmp.eq.s32.totalorder %s17, 0
      %p117 = por %p115, %p116
      %p118 = scmp.ne.s32.totalorder %s110, %s112
      %p119 = scmp.eq.s32.totalorder %s22, 3
      %p120 = por %p118, %p119
      %p121 = scmp.ne.s32.totalorder %s112, %s113
      %p122 = scmp.eq.s32.totalorder %s22, 0
      %p123 = por %p121, %p122
      %p124 = scmp.ne.s32.totalorder %s112, %s113
      %p125 = scmp.eq.s32.totalorder %s23, 3
      %p126 = por %p124, %p125
      %p128 = scmp.ne.s32.totalorder %s113, %s127
      %p129 = scmp.eq.s32.totalorder %s23, 0
      %p130 = por %p128, %p129
      %s132 = sadd.s32 %s131, 1
      %p135 = scmp.eq.s32.totalorder %s17, 3
      %p136 = scmp.ne.s32.totalorder %s131, %s133
      %p137 = scmp.eq.s32.totalorder %s17, 0
      %p138 = por %p136, %p137
      %p139 = scmp.ne.s32.totalorder %s131, %s133
      %p140 = scmp.eq.s32.totalorder %s22, 3
      %p141 = por %p139, %p140
      %p142 = scmp.ne.s32.totalorder %s133, %s134
      %p143 = scmp.eq.s32.totalorder %s22, 0
      %p144 = por %p142, %p143
      %p145 = scmp.ne.s32.totalorder %s133, %s134
      %p146 = scmp.eq.s32.totalorder %s23, 3
      %p147 = por %p145, %p146
      %p149 = scmp.ne.s32.totalorder %s134, %s148
      %p150 = scmp.eq.s32.totalorder %s23, 0
      %p151 = por %p149, %p150
      %s153 = sadd.s32 %s152, 1
      %p156 = scmp.eq.s32.totalorder %s17, 3
      %p157 = scmp.ne.s32.totalorder %s152, %s154
      %p158 = scmp.eq.s32.totalorder %s17, 0
      %p159 = por %p157, %p158
      %p160 = scmp.ne.s32.totalorder %s152, %s154
      %p161 = scmp.eq.s32.totalorder %s22, 3
      %p162 = por %p160, %p161
      %p163 = scmp.ne.s32.totalorder %s154, %s155
      %p164 = scmp.eq.s32.totalorder %s22, 0
      %p165 = por %p163, %p164
      %p166 = scmp.ne.s32.totalorder %s154, %s155
      %p167 = scmp.eq.s32.totalorder %s23, 3
      %p168 = por %p166, %p167
      %p170 = scmp.ne.s32.totalorder %s155, %s169
      %p171 = scmp.eq.s32.totalorder %s23, 0
      %p172 = por %p170, %p171
      %s174 = sadd.s32 %s173, 1
      %p177 = scmp.eq.s32.totalorder %s17, 3
      %p178 = scmp.ne.s32.totalorder %s173, %s175
      %p179 = scmp.eq.s32.totalorder %s17, 0
      %p180 = por %p178, %p179
      %p181 = scmp.ne.s32.totalorder %s173, %s175
      %p182 = scmp.eq.s32.totalorder %s22, 3
      %p183 = por %p181, %p182
      %p184 = scmp.ne.s32.totalorder %s175, %s176
      %p185 = scmp.eq.s32.totalorder %s22, 0
      %p186 = por %p184, %p185
      %p187 = scmp.ne.s32.totalorder %s175, %s176
      %p188 = scmp.eq.s32.totalorder %s23, 3
      %p189 = por %p187, %p188
      %p191 = scmp.ne.s32.totalorder %s176, %s190
      %p192 = scmp.eq.s32.totalorder %s23, 0
      %p193 = por %p191, %p192
      %s195 = sadd.s32 %s194, 1
      %p198 = scmp.eq.s32.totalorder %s17, 3
      %p199 = scmp.ne.s32.totalorder %s194, %s196
      %p200 = scmp.eq.s32.totalorder %s17, 0
      %p201 = por %p199, %p200
      %p202 = scmp.ne.s32.totalorder %s194, %s196
      %p203 = scmp.eq.s32.totalorder %s22, 3
      %p204 = por %p202, %p203
      %p205 = scmp.ne.s32.totalorder %s196, %s197
      %p206 = scmp.eq.s32.totalorder %s22, 0
      %p207 = por %p205, %p206
      %p208 = scmp.ne.s32.totalorder %s196, %s197
      %p209 = scmp.eq.s32.totalorder %s23, 3
      %p210 = por %p208, %p209
      %p212 = scmp.ne.s32.totalorder %s197, %s211
      %p213 = scmp.eq.s32.totalorder %s23, 0
      %p214 = por %p212, %p213
      %s215 = ssub.s32 %s24, %s36
      %s216 = ssub.s32 %s25, %s32
      %s217 = sor.u32 %s215, %s216
      %p218 = scmp.eq.s32.totalorder %s217, 0
      %s220 = sadd.s32 %s219, 1
      %s221 = scalar_select %p218, %s219, %s220
      %p224 = pneg %p218
      %p225 = scmp.eq.s32.totalorder %s17, 3
      %p226 = por %p224, %p225
      %p227 = scmp.ne.s32.totalorder %s219, %s222
      %p228 = scmp.eq.s32.totalorder %s17, 0
      %p229 = por %p227, %p228
      %p230 = scmp.ne.s32.totalorder %s219, %s222
      %p231 = scmp.eq.s32.totalorder %s22, 3
      %p232 = por %p230, %p231
      %p233 = scmp.ne.s32.totalorder %s222, %s223
      %p234 = scmp.eq.s32.totalorder %s22, 0
      %p235 = por %p233, %p234
      %p236 = scmp.ne.s32.totalorder %s222, %s223
      %p237 = scmp.eq.s32.totalorder %s23, 3
      %p238 = por %p236, %p237
      %p240 = scmp.ne.s32.totalorder %s223, %s239
      %p241 = scmp.eq.s32.totalorder %s23, 0
      %p242 = por %p240, %p241
      %p243 = scmp.le.s32.totalorder 1, %s17
      %p244 = scmp.lt.s32.totalorder %s17, 5
      %p245 = pnand %p243, %p244
      %p246 = pneg %p245
      // Predicated region
      $region9: #{tpu_custom_call.1} parent=5 // pred_check
        _
      $region10: #{tpu_custom_call.1} parent=5 // pred_check_branch
        %248 = sbr.rel (%p245) target = $region12
      $region11: #{tpu_custom_call.1} parent=5 // pred_region
        %s249 = ssub.s32 %s17, 1
        // Predicated region
        $region13: #{tpu_custom_call.1} parent=11 // pred_check
          %p250 = pneg %p102
        $region14: #{tpu_custom_call.1} parent=11 // pred_check_branch
          %252 = sbr.rel (%p250) target = $region16
        $region15: #{tpu_custom_call.1} parent=11 // pred_region
          _
        $region16: #{tpu_custom_call.1} parent=11 // pred_fallthru
          _
        // Predicated region
        $region17: #{tpu_custom_call.1} parent=11 // pred_check
          %p253 = pneg %p123
        $region18: #{tpu_custom_call.1} parent=11 // pred_check_branch
          %255 = sbr.rel (%p253) target = $region20
        $region19: #{tpu_custom_call.1} parent=11 // pred_region
          _
        $region20: #{tpu_custom_call.1} parent=11 // pred_fallthru
          _
        // Predicated region
        $region21: #{tpu_custom_call.1} parent=11 // pred_check
          %p256 = pneg %p144
        $region22: #{tpu_custom_call.1} parent=11 // pred_check_branch
          %258 = sbr.rel (%p256) target = $region24
        $region23: #{tpu_custom_call.1} parent=11 // pred_region
          _
        $region24: #{tpu_custom_call.1} parent=11 // pred_fallthru
          _
        // Predicated region
        $region25: #{tpu_custom_call.1} parent=11 // pred_check
          %p259 = pneg %p165
        $region26: #{tpu_custom_call.1} parent=11 // pred_check_branch
          %261 = sbr.rel (%p259) target = $region28
        $region27: #{tpu_custom_call.1} parent=11 // pred_region
          _
        $region28: #{tpu_custom_call.1} parent=11 // pred_fallthru
          _
        // Predicated region
        $region29: #{tpu_custom_call.1} parent=11 // pred_check
          %p262 = pneg %p186
        $region30: #{tpu_custom_call.1} parent=11 // pred_check_branch
          %264 = sbr.rel (%p262) target = $region32
        $region31: #{tpu_custom_call.1} parent=11 // pred_region
          _
        $region32: #{tpu_custom_call.1} parent=11 // pred_fallthru
          _
        // Predicated region
        $region33: #{tpu_custom_call.1} parent=11 // pred_check
          %p265 = pneg %p207
        $region34: #{tpu_custom_call.1} parent=11 // pred_check_branch
          %267 = sbr.rel (%p265) target = $region36
        $region35: #{tpu_custom_call.1} parent=11 // pred_region
          _
        $region36: #{tpu_custom_call.1} parent=11 // pred_fallthru
          _
      $region12: #{tpu_custom_call.1} parent=5 // pred_fallthru
        _
      %p268 = scmp.lt.s32.totalorder %s17, 4
      // Predicated region
      $region37: #{tpu_custom_call.1} parent=5 // pred_check
        %p269 = pneg %p268
      $region38: #{tpu_custom_call.1} parent=5 // pred_check_branch
        %271 = sbr.rel (%p269) target = $region40
      $region39: #{tpu_custom_call.1} parent=5 // pred_region
        // Predicated region
        $region41: #{tpu_custom_call.1} parent=39 // pred_check
          %p272 = pneg %p49
        $region42: #{tpu_custom_call.1} parent=39 // pred_check_branch
          %274 = sbr.rel (%p272) target = $region44
        $region43: #{tpu_custom_call.1} parent=39 // pred_region
          %p275 = scmp.lt.s32.totalorder %s24, 1
          %s276 = scalar_select %p275, %s24, 1
          %s277 = smul.addr %s276, 32
          %s278 = smul.addr %s277, 4
          %s279 = scalar_lea.vmem %s0, %s278
        $region44: #{tpu_custom_call.1} parent=39 // pred_fallthru
          _
        // Predicated region
        $region45: #{tpu_custom_call.1} parent=39 // pred_check
          %p280 = pneg %p75
        $region46: #{tpu_custom_call.1} parent=39 // pred_check_branch
          %282 = sbr.rel (%p280) target = $region48
        $region47: #{tpu_custom_call.1} parent=39 // pred_region
          %p283 = scmp.lt.s32.totalorder %s24, 1
          %s284 = scalar_select %p283, %s24, 1
          %s285 = smul.addr %s284, 32
          %s286 = smul.addr %s285, 8
          %s287 = scalar_lea.vmem %s1, %s286
        $region48: #{tpu_custom_call.1} parent=39 // pred_fallthru
          _
      $region40: #{tpu_custom_call.1} parent=5 // pred_fallthru
        _
      %p288 = scmp.le.s32.totalorder 1, %s17
      %p289 = scmp.lt.s32.totalorder %s17, 5
      %p290 = pnand %p288, %p289
      %p291 = pneg %p290
      // Predicated region
      $region49: #{tpu_custom_call.1} parent=5 // pred_check
        _
      $region50: #{tpu_custom_call.1} parent=5 // pred_check_branch
        %293 = sbr.rel (%p290) target = $region52
      $region51: #{tpu_custom_call.1} parent=5 // pred_region
        %s294 = ssub.s32 %s17, 1
        %p295 = scmp.lt.s32.totalorder %s26, 1
        %s296 = scalar_select %p295, %s26, 1
        %s297 = smul.addr %s296, 32
        %s298 = smul.addr %s297, 4
        %s299 = scalar_lea.vmem %s0, %s298
        %p300 = pneg %p55
        %p301 = pneg %p52
        %p302 = scmp.lt.s32.totalorder %s26, 1
        %s303 = scalar_select %p302, %s26, 1
        %s304 = smul.addr %s303, 32
        %s305 = smul.addr %s304, 8
        %s306 = scalar_lea.vmem %s1, %s305
        %p307 = pneg %p81
        %p308 = pneg %p78
        %p309 = pneg %p102
        %p310 = pneg %p99
        %p311 = pneg %p123
        %p312 = pneg %p120
        %p313 = pneg %p144
        %p314 = pneg %p141
        %p315 = pneg %p165
        %p316 = pneg %p162
        %p317 = pneg %p186
        %p318 = pneg %p183
        %p319 = pneg %p207
        %p320 = pneg %p204
        %p321 = pneg %p235
        %p322 = pneg %p232
        %s323 = sand.u32 %s222, 1
        %s324 = scalar_lea.sflag [#allocation4], %s323
        %s325 = sand.u32 %s222, 1
        %s326 = smul.addr %s325, 64
        %s327 = scalar_lea.vmem [#allocation3], %s326
        %p328 = scmp.lt.s32.totalorder %s26, 1
        %s329 = scalar_select %p328, %s26, 1
        %s330 = smul.addr %s329, 32
        %s331 = smul.addr %s330, 4
        %s332 = scalar_lea.vmem %s0, %s331
        %p333 = scmp.lt.s32.totalorder %s26, 1
        %s334 = scalar_select %p333, %s26, 1
        %s335 = smul.addr %s334, 32
        %s336 = smul.addr %s335, 8
        %s337 = scalar_lea.vmem %s1, %s336
        %s338 = smul.u32 8, %s27
        %p340 = scmp.eq.s32.totalorder %s27, 0
        // Predicated region
        $region53: #{tpu_custom_call.1} parent=51 // pred_check
          %p341 = pneg %p340
        $region54: #{tpu_custom_call.1} parent=51 // pred_check_branch
          %343 = sbr.rel (%p341) target = $region56
        $region55: #{tpu_custom_call.1} parent=51 // pred_region
          %v344 = vld [vmem:[%s332] sm:$0xf]
          %v345 = vld [vmem:[%s332 + $0x4] sm:$0xf]
          %v346 = vld [vmem:[%s332 + $0x8] sm:$0xf]
          %v347 = vld [vmem:[%s332 + $0xc] sm:$0xf]
          %v348 = vld [vmem:[%s332 + $0x10] sm:$0xf]
          %v349 = vld [vmem:[%s332 + $0x14] sm:$0xf]
          %v350 = vld [vmem:[%s332 + $0x18] sm:$0xf]
          %v351 = vld [vmem:[%s332 + $0x1c] sm:$0xf]
          %v352 = vld [vmem:[%s332 + $0x20] sm:$0xf]
          %v353 = vld [vmem:[%s332 + $0x24] sm:$0xf]
          %v354 = vld [vmem:[%s332 + $0x28] sm:$0xf]
          %v355 = vld [vmem:[%s332 + $0x2c] sm:$0xf]
          %v356 = vld [vmem:[%s332 + $0x30] sm:$0xf]
          %v357 = vld [vmem:[%s332 + $0x34] sm:$0xf]
          %v358 = vld [vmem:[%s332 + $0x38] sm:$0xf]
          %v359 = vld [vmem:[%s332 + $0x3c] sm:$0xf]
          %v360 = vld [vmem:[%s332 + $0x40] sm:$0xf]
          %v361 = vld [vmem:[%s332 + $0x44] sm:$0xf]
          %v362 = vld [vmem:[%s332 + $0x48] sm:$0xf]
          %v363 = vld [vmem:[%s332 + $0x4c] sm:$0xf]
          %v364 = vld [vmem:[%s332 + $0x50] sm:$0xf]
          %v365 = vld [vmem:[%s332 + $0x54] sm:$0xf]
          %v366 = vld [vmem:[%s332 + $0x58] sm:$0xf]
          %v367 = vld [vmem:[%s332 + $0x5c] sm:$0xf]
          %v368 = vld [vmem:[%s332 + $0x60] sm:$0xf]
          %v369 = vld [vmem:[%s332 + $0x64] sm:$0xf]
          %v370 = vld [vmem:[%s332 + $0x68] sm:$0xf]
          %v371 = vld [vmem:[%s332 + $0x6c] sm:$0xf]
          %v372 = vld [vmem:[%s332 + $0x70] sm:$0xf]
          %v373 = vld [vmem:[%s332 + $0x74] sm:$0xf]
          %v374 = vld [vmem:[%s332 + $0x78] sm:$0xf]
          %v375 = vld [vmem:[%s332 + $0x7c] sm:$0xf]
          %v376 = vld [vmem:[%s2] sm:$0xf]
          %v377 = vld [vmem:[%s2 + $0x4] sm:$0xf]
          %v378 = vld [vmem:[%s2 + $0x8] sm:$0xf]
          %v379 = vld [vmem:[%s2 + $0xc] sm:$0xf]
          %v380 = vld [vmem:[%s3] sm:$0x1]
          %v382 = vlaneseq
          %v383 = vshrl.u32 %v382, 7
          %v384 = vsub.s32 0, %v383
          %v385 = vrot.slane %v380, %v384
          %v419 = vunpack.c.l.b16 %v344
          %v420 = vunpack.c.l.b16 %v345
          %v421 = vunpack.c.l.b16 %v346
          %v422 = vunpack.c.l.b16 %v347
          %v423 = vunpack.c.l.b16 %v348
          %v424 = vunpack.c.l.b16 %v349
          %v425 = vunpack.c.l.b16 %v350
          %v426 = vunpack.c.l.b16 %v351
          %v427 = vunpack.c.l.b16 %v352
          %v428 = vunpack.c.l.b16 %v353
          %v429 = vunpack.c.l.b16 %v354
          %v430 = vunpack.c.l.b16 %v355
          %v431 = vunpack.c.l.b16 %v356
          %v432 = vunpack.c.l.b16 %v357
          %v433 = vunpack.c.l.b16 %v358
          %v434 = vunpack.c.l.b16 %v359
          %v435 = vunpack.c.l.b16 %v360
          %v436 = vunpack.c.l.b16 %v361
          %v437 = vunpack.c.l.b16 %v362
          %v438 = vunpack.c.l.b16 %v363
          %v439 = vunpack.c.l.b16 %v364
          %v440 = vunpack.c.l.b16 %v365
          %v441 = vunpack.c.l.b16 %v366
          %v442 = vunpack.c.l.b16 %v367
          %v443 = vunpack.c.l.b16 %v368
          %v444 = vunpack.c.l.b16 %v369
          %v445 = vunpack.c.l.b16 %v370
          %v446 = vunpack.c.l.b16 %v371
          %v447 = vunpack.c.l.b16 %v372
          %v448 = vunpack.c.l.b16 %v373
          %v449 = vunpack.c.l.b16 %v374
          %v450 = vunpack.c.l.b16 %v375
          %v451 = vpack.c.b16 %v420, %v419
          %v452 = vpack.c.b16 %v422, %v421
          %v453 = vpack.c.b16 %v424, %v423
          %v454 = vpack.c.b16 %v426, %v425
          %v455 = vpack.c.b16 %v428, %v427
          %v456 = vpack.c.b16 %v430, %v429
          %v457 = vpack.c.b16 %v432, %v431
          %v458 = vpack.c.b16 %v434, %v433
          %v459 = vpack.c.b16 %v436, %v435
          %v460 = vpack.c.b16 %v438, %v437
          %v461 = vpack.c.b16 %v440, %v439
          %v462 = vpack.c.b16 %v442, %v441
          %v463 = vpack.c.b16 %v444, %v443
          %v464 = vpack.c.b16 %v446, %v445
          %v465 = vpack.c.b16 %v448, %v447
          %v466 = vpack.c.b16 %v450, %v449
          %v471 = vunpack.c.l.b16 %v376
          %v472 = vunpack.c.l.b16 %v377
          %v473 = vunpack.c.l.b16 %v378
          %v474 = vunpack.c.l.b16 %v379
          %v475 = vpack.c.b16 %v472, %v471
          %v476 = vpack.c.b16 %v474, %v473
          %vm479 = vcmask 261120
          %v481 = vsel %vm479, %v451, 0
          %v484 = vsel %vm479, %v452, 0
          %v487 = vsel %vm479, %v453, 0
          %v490 = vsel %vm479, %v454, 0
          %v493 = vsel %vm479, %v455, 0
          %v496 = vsel %vm479, %v456, 0
          %v499 = vsel %vm479, %v457, 0
          %v502 = vsel %vm479, %v458, 0
          %v505 = vsel %vm479, %v459, 0
          %v508 = vsel %vm479, %v460, 0
          %v511 = vsel %vm479, %v461, 0
          %v514 = vsel %vm479, %v462, 0
          %v517 = vsel %vm479, %v463, 0
          %v520 = vsel %vm479, %v464, 0
          %v523 = vsel %vm479, %v465, 0
          %v526 = vsel %vm479, %v466, 0
          %528 = vmatprep.subr.bf16.mxu0 0
          %529 = vmatpush1.bf16.msra.mxu0 %v475
          %530 = vmatprep.subr.bf16.mxu0 0
          %531 = vmatpush1.bf16.msra.mxu0 %v476
          %532 = vmatprep.subr.bf16.mxu0 0
          %533 = vmatpush1.bf16.msra.mxu0 0
          %534 = vmatprep.subr.bf16.mxu0 0
          %535 = vmatpush1.bf16.msra.mxu0 0
          %536 = vmatprep.subr.bf16.mxu0 0
          %537 = vmatpush1.bf16.msra.mxu0 0
          %538 = vmatprep.subr.bf16.mxu0 0
          %539 = vmatpush1.bf16.msra.mxu0 0
          %540 = vmatprep.subr.bf16.mxu0 0
          %541 = vmatpush1.bf16.msra.mxu0 0
          %542 = vmatprep.subr.bf16.mxu0 0
          %543 = vmatpush1.bf16.msra.mxu0 0
          %544 = vmatprep.subr.bf16.mxu0 0
          %545 = vmatpush1.bf16.msra.mxu0 0
          %546 = vmatprep.subr.bf16.mxu0 0
          %547 = vmatpush1.bf16.msra.mxu0 0
          %548 = vmatprep.subr.bf16.mxu0 0
          %549 = vmatpush1.bf16.msra.mxu0 0
          %550 = vmatprep.subr.bf16.mxu0 0
          %551 = vmatpush1.bf16.msra.mxu0 0
          %552 = vmatprep.subr.bf16.mxu0 0
          %553 = vmatpush1.bf16.msra.mxu0 0
          %554 = vmatprep.subr.bf16.mxu0 0
          %555 = vmatpush1.bf16.msra.mxu0 0
          %556 = vmatprep.subr.bf16.mxu0 0
          %557 = vmatpush1.bf16.msra.mxu0 0
          %558 = vmatprep.subr.bf16.mxu0 0
          %559 = vmatpush1.bf16.msra.mxu0 0
          %560 = vmatprep.mubr.bf16.mxu0 0
          %561 = vmatmul.mubr.bf16.gmra.mrb[0].mxu0 %v481
          %v562 = vpop.f32.mrb[0].mxu0
          %v563 = vadd.f32 %v385, %v562
          %v564 = vpop.f32.mrb[0].mxu0
          %v565 = vpop.f32.mrb[0].mxu0
          %v566 = vadd.f32 %v385, %v565
          %v567 = vpop.f32.mrb[0].mxu0
          %568 = vmatprep.mubr.bf16.mxu0 0
          %569 = vmatmul.mubr.bf16.gmra.mrb[0].mxu0 %v484
          %v570 = vpop.f32.mrb[0].mxu0
          %v571 = vadd.f32 %v385, %v570
          %v572 = vpop.f32.mrb[0].mxu0
          %v573 = vpop.f32.mrb[0].mxu0
          %v574 = vadd.f32 %v385, %v573
          %v575 = vpop.f32.mrb[0].mxu0
          %576 = vmatprep.mubr.bf16.mxu0 0
          %577 = vmatmul.mubr.bf16.gmra.mrb[0].mxu0 %v487
          %v578 = vpop.f32.mrb[0].mxu0
          %v579 = vadd.f32 %v385, %v578
          %v580 = vpop.f32.mrb[0].mxu0
          %v581 = vpop.f32.mrb[0].mxu0
          %v582 = vadd.f32 %v385, %v581
          %v583 = vpop.f32.mrb[0].mxu0
          %584 = vmatprep.mubr.bf16.mxu0 0
          %585 = vmatmul.mubr.bf16.gmra.mrb[0].mxu0 %v490
          %v586 = vpop.f32.mrb[0].mxu0
          %v587 = vadd.f32 %v385, %v586
          %v588 = vpop.f32.mrb[0].mxu0
          %v589 = vpop.f32.mrb[0].mxu0
          %v590 = vadd.f32 %v385, %v589
          %v591 = vpop.f32.mrb[0].mxu0
          %592 = vmatprep.mubr.bf16.mxu0 0
          %593 = vmatmul.mubr.bf16.gmra.mrb[0].mxu0 %v493
          %v594 = vpop.f32.mrb[0].mxu0
          %v595 = vadd.f32 %v385, %v594
          %v596 = vpop.f32.mrb[0].mxu0
          %v597 = vpop.f32.mrb[0].mxu0
          %v598 = vadd.f32 %v385, %v597
          %v599 = vpop.f32.mrb[0].mxu0
          %600 = vmatprep.mubr.bf16.mxu0 0
          %601 = vmatmul.mubr.bf16.gmra.mrb[0].mxu0 %v496
          %v602 = vpop.f32.mrb[0].mxu0
          %v603 = vadd.f32 %v385, %v602
          %v604 = vpop.f32.mrb[0].mxu0
          %v605 = vpop.f32.mrb[0].mxu0
          %v606 = vadd.f32 %v385, %v605
          %v607 = vpop.f32.mrb[0].mxu0
          %608 = vmatprep.mubr.bf16.mxu0 0
          %609 = vmatmul.mubr.bf16.gmra.mrb[0].mxu0 %v499
          %v610 = vpop.f32.mrb[0].mxu0
          %v611 = vadd.f32 %v385, %v610
          %v612 = vpop.f32.mrb[0].mxu0
          %v613 = vpop.f32.mrb[0].mxu0
          %v614 = vadd.f32 %v385, %v613
          %v615 = vpop.f32.mrb[0].mxu0
          %616 = vmatprep.mubr.bf16.mxu0 0
          %617 = vmatmul.mubr.bf16.gmra.mrb[0].mxu0 %v502
          %v618 = vpop.f32.mrb[0].mxu0
          %v619 = vadd.f32 %v385, %v618
          %v620 = vpop.f32.mrb[0].mxu0
          %v621 = vpop.f32.mrb[0].mxu0
          %v622 = vadd.f32 %v385, %v621
          %v623 = vpop.f32.mrb[0].mxu0
          %624 = vmatprep.mubr.bf16.mxu0 0
          %625 = vmatmul.mubr.bf16.gmra.mrb[0].mxu0 %v505
          %v626 = vpop.f32.mrb[0].mxu0
          %v627 = vadd.f32 %v385, %v626
          %v628 = vpop.f32.mrb[0].mxu0
          %v629 = vpop.f32.mrb[0].mxu0
          %v630 = vadd.f32 %v385, %v629
          %v631 = vpop.f32.mrb[0].mxu0
          %632 = vmatprep.mubr.bf16.mxu0 0
          %633 = vmatmul.mubr.bf16.gmra.mrb[0].mxu0 %v508
          %v634 = vpop.f32.mrb[0].mxu0
          %v635 = vadd.f32 %v385, %v634
          %v636 = vpop.f32.mrb[0].mxu0
          %v637 = vpop.f32.mrb[0].mxu0
          %v638 = vadd.f32 %v385, %v637
          %v639 = vpop.f32.mrb[0].mxu0
          %640 = vmatprep.mubr.bf16.mxu0 0
          %641 = vmatmul.mubr.bf16.gmra.mrb[0].mxu0 %v511
          %v642 = vpop.f32.mrb[0].mxu0
          %v643 = vadd.f32 %v385, %v642
          %v644 = vpop.f32.mrb[0].mxu0
          %v645 = vpop.f32.mrb[0].mxu0
          %v646 = vadd.f32 %v385, %v645
          %v647 = vpop.f32.mrb[0].mxu0
          %648 = vmatprep.mubr.bf16.mxu0 0
          %649 = vmatmul.mubr.bf16.gmra.mrb[0].mxu0 %v514
          %v650 = vpop.f32.mrb[0].mxu0
          %v651 = vadd.f32 %v385, %v650
          %v652 = vpop.f32.mrb[0].mxu0
          %v653 = vpop.f32.mrb[0].mxu0
          %v654 = vadd.f32 %v385, %v653
          %v655 = vpop.f32.mrb[0].mxu0
          %656 = vmatprep.mubr.bf16.mxu0 0
          %657 = vmatmul.mubr.bf16.gmra.mrb[0].mxu0 %v517
          %v658 = vpop.f32.mrb[0].mxu0
          %v659 = vadd.f32 %v385, %v658
          %v660 = vpop.f32.mrb[0].mxu0
          %v661 = vpop.f32.mrb[0].mxu0
          %v662 = vadd.f32 %v385, %v661
          %v663 = vpop.f32.mrb[0].mxu0
          %664 = vmatprep.mubr.bf16.mxu0 0
          %665 = vmatmul.mubr.bf16.gmra.mrb[0].mxu0 %v520
          %v666 = vpop.f32.mrb[0].mxu0
          %v667 = vadd.f32 %v385, %v666
          %v668 = vpop.f32.mrb[0].mxu0
          %v669 = vpop.f32.mrb[0].mxu0
          %v670 = vadd.f32 %v385, %v669
          %v671 = vpop.f32.mrb[0].mxu0
          %672 = vmatprep.mubr.bf16.mxu0 0
          %673 = vmatmul.mubr.bf16.gmra.mrb[0].mxu0 %v523
          %v674 = vpop.f32.mrb[0].mxu0
          %v675 = vadd.f32 %v385, %v674
          %v676 = vpop.f32.mrb[0].mxu0
          %v677 = vpop.f32.mrb[0].mxu0
          %v678 = vadd.f32 %v385, %v677
          %v679 = vpop.f32.mrb[0].mxu0
          %680 = vmatprep.mubr.bf16.mxu0 0
          %681 = vmatmul.mubr.bf16.gmra.mrb[0].mxu0 %v526
          %v682 = vpop.f32.mrb[0].mxu0
          %v683 = vadd.f32 %v385, %v682
          %v684 = vpop.f32.mrb[0].mxu0
          %v685 = vpop.f32.mrb[0].mxu0
          %v686 = vadd.f32 %v385, %v685
          %v687 = vpop.f32.mrb[0].mxu0
          %688 = vdwg.mxu0
          %v689 = vmax.f32 %v563, 0.0
          %v690 = vmax.f32 %v566, 0.0
          %v691 = vmax.f32 %v571, 0.0
          %v692 = vmax.f32 %v574, 0.0
          %v693 = vmax.f32 %v579, 0.0
          %v694 = vmax.f32 %v582, 0.0
          %v695 = vmax.f32 %v587, 0.0
          %v696 = vmax.f32 %v590, 0.0
          %v697 = vmax.f32 %v595, 0.0
          %v698 = vmax.f32 %v598, 0.0
          %v699 = vmax.f32 %v603, 0.0
          %v700 = vmax.f32 %v606, 0.0
          %v701 = vmax.f32 %v611, 0.0
          %v702 = vmax.f32 %v614, 0.0
          %v703 = vmax.f32 %v619, 0.0
          %v704 = vmax.f32 %v622, 0.0
          %v705 = vmax.f32 %v627, 0.0
          %v706 = vmax.f32 %v630, 0.0
          %v707 = vmax.f32 %v635, 0.0
          %v708 = vmax.f32 %v638, 0.0
          %v709 = vmax.f32 %v643, 0.0
          %v710 = vmax.f32 %v646, 0.0
          %v711 = vmax.f32 %v651, 0.0
          %v712 = vmax.f32 %v654, 0.0
          %v713 = vmax.f32 %v659, 0.0
          %v714 = vmax.f32 %v662, 0.0
          %v715 = vmax.f32 %v667, 0.0
          %v716 = vmax.f32 %v670, 0.0
          %v717 = vmax.f32 %v675, 0.0
          %v718 = vmax.f32 %v678, 0.0
          %v719 = vmax.f32 %v683, 0.0
          %v720 = vmax.f32 %v686, 0.0
          %v721 = vld [vmem:[%s337] sm:$0xff]
          %v722 = vld [vmem:[%s337 + $0x8] sm:$0xff]
          %v723 = vld [vmem:[%s337 + $0x10] sm:$0xff]
          %v724 = vld [vmem:[%s337 + $0x18] sm:$0xff]
          %v725 = vld [vmem:[%s337 + $0x20] sm:$0xff]
          %v726 = vld [vmem:[%s337 + $0x28] sm:$0xff]
          %v727 = vld [vmem:[%s337 + $0x30] sm:$0xff]
          %v728 = vld [vmem:[%s337 + $0x38] sm:$0xff]
          %v729 = vld [vmem:[%s337 + $0x40] sm:$0xff]
          %v730 = vld [vmem:[%s337 + $0x48] sm:$0xff]
          %v731 = vld [vmem:[%s337 + $0x50] sm:$0xff]
          %v732 = vld [vmem:[%s337 + $0x58] sm:$0xff]
          %v733 = vld [vmem:[%s337 + $0x60] sm:$0xff]
          %v734 = vld [vmem:[%s337 + $0x68] sm:$0xff]
          %v735 = vld [vmem:[%s337 + $0x70] sm:$0xff]
          %v736 = vld [vmem:[%s337 + $0x78] sm:$0xff]
          %v737 = vld [vmem:[%s337 + $0x80] sm:$0xff]
          %v738 = vld [vmem:[%s337 + $0x88] sm:$0xff]
          %v739 = vld [vmem:[%s337 + $0x90] sm:$0xff]
          %v740 = vld [vmem:[%s337 + $0x98] sm:$0xff]
          %v741 = vld [vmem:[%s337 + $0xa0] sm:$0xff]
          %v742 = vld [vmem:[%s337 + $0xa8] sm:$0xff]
          %v743 = vld [vmem:[%s337 + $0xb0] sm:$0xff]
          %v744 = vld [vmem:[%s337 + $0xb8] sm:$0xff]
          %v745 = vld [vmem:[%s337 + $0xc0] sm:$0xff]
          %v746 = vld [vmem:[%s337 + $0xc8] sm:$0xff]
          %v747 = vld [vmem:[%s337 + $0xd0] sm:$0xff]
          %v748 = vld [vmem:[%s337 + $0xd8] sm:$0xff]
          %v749 = vld [vmem:[%s337 + $0xe0] sm:$0xff]
          %v750 = vld [vmem:[%s337 + $0xe8] sm:$0xff]
          %v751 = vld [vmem:[%s337 + $0xf0] sm:$0xff]
          %v752 = vld [vmem:[%s337 + $0xf8] sm:$0xff]
          %754 = vset.pattern.permute.xlu0 0
          %755 = vperm.xlu0 %754, %v721
          %v756 = vpop.permute.xlu0 %755
          %759 = vset.pattern.permute.xlu0 0
          %760 = vperm.xlu0 %759, %v722
          %v761 = vpop.permute.xlu0 %760
          %764 = vset.pattern.permute.xlu0 0
          %765 = vperm.xlu0 %764, %v723
          %v766 = vpop.permute.xlu0 %765
          %769 = vset.pattern.permute.xlu0 0
          %770 = vperm.xlu0 %769, %v724
          %v771 = vpop.permute.xlu0 %770
          %774 = vset.pattern.permute.xlu0 0
          %775 = vperm.xlu0 %774, %v725
          %v776 = vpop.permute.xlu0 %775
          %779 = vset.pattern.permute.xlu0 0
          %780 = vperm.xlu0 %779, %v726
          %v781 = vpop.permute.xlu0 %780
          %784 = vset.pattern.permute.xlu0 0
          %785 = vperm.xlu0 %784, %v727
          %v786 = vpop.permute.xlu0 %785
          %789 = vset.pattern.permute.xlu0 0
          %790 = vperm.xlu0 %789, %v728
          %v791 = vpop.permute.xlu0 %790
          %794 = vset.pattern.permute.xlu0 0
          %795 = vperm.xlu0 %794, %v729
          %v796 = vpop.permute.xlu0 %795
          %799 = vset.pattern.permute.xlu0 0
          %800 = vperm.xlu0 %799, %v730
          %v801 = vpop.permute.xlu0 %800
          %804 = vset.pattern.permute.xlu0 0
          %805 = vperm.xlu0 %804, %v731
          %v806 = vpop.permute.xlu0 %805
          %809 = vset.pattern.permute.xlu0 0
          %810 = vperm.xlu0 %809, %v732
          %v811 = vpop.permute.xlu0 %810
          %814 = vset.pattern.permute.xlu0 0
          %815 = vperm.xlu0 %814, %v733
          %v816 = vpop.permute.xlu0 %815
          %819 = vset.pattern.permute.xlu0 0
          %820 = vperm.xlu0 %819, %v734
          %v821 = vpop.permute.xlu0 %820
          %824 = vset.pattern.permute.xlu0 0
          %825 = vperm.xlu0 %824, %v735
          %v826 = vpop.permute.xlu0 %825
          %829 = vset.pattern.permute.xlu0 0
          %830 = vperm.xlu0 %829, %v736
          %v831 = vpop.permute.xlu0 %830
          %834 = vset.pattern.permute.xlu0 0
          %835 = vperm.xlu0 %834, %v737
          %v836 = vpop.permute.xlu0 %835
          %839 = vset.pattern.permute.xlu0 0
          %840 = vperm.xlu0 %839, %v738
          %v841 = vpop.permute.xlu0 %840
          %844 = vset.pattern.permute.xlu0 0
          %845 = vperm.xlu0 %844, %v739
          %v846 = vpop.permute.xlu0 %845
          %849 = vset.pattern.permute.xlu0 0
          %850 = vperm.xlu0 %849, %v740
          %v851 = vpop.permute.xlu0 %850
          %854 = vset.pattern.permute.xlu0 0
          %855 = vperm.xlu0 %854, %v741
          %v856 = vpop.permute.xlu0 %855
          %859 = vset.pattern.permute.xlu0 0
          %860 = vperm.xlu0 %859, %v742
          %v861 = vpop.permute.xlu0 %860
          %864 = vset.pattern.permute.xlu0 0
          %865 = vperm.xlu0 %864, %v743
          %v866 = vpop.permute.xlu0 %865
          %869 = vset.pattern.permute.xlu0 0
          %870 = vperm.xlu0 %869, %v744
          %v871 = vpop.permute.xlu0 %870
          %874 = vset.pattern.permute.xlu0 0
          %875 = vperm.xlu0 %874, %v745
          %v876 = vpop.permute.xlu0 %875
          %879 = vset.pattern.permute.xlu0 0
          %880 = vperm.xlu0 %879, %v746
          %v881 = vpop.permute.xlu0 %880
          %884 = vset.pattern.permute.xlu0 0
          %885 = vperm.xlu0 %884, %v747
          %v886 = vpop.permute.xlu0 %885
          %889 = vset.pattern.permute.xlu0 0
          %890 = vperm.xlu0 %889, %v748
          %v891 = vpop.permute.xlu0 %890
          %894 = vset.pattern.permute.xlu0 0
          %895 = vperm.xlu0 %894, %v749
          %v896 = vpop.permute.xlu0 %895
          %899 = vset.pattern.permute.xlu0 0
          %900 = vperm.xlu0 %899, %v750
          %v901 = vpop.permute.xlu0 %900
          %904 = vset.pattern.permute.xlu0 0
          %905 = vperm.xlu0 %904, %v751
          %v906 = vpop.permute.xlu0 %905
          %909 = vset.pattern.permute.xlu0 0
          %910 = vperm.xlu0 %909, %v752
          %v911 = vpop.permute.xlu0 %910
          %v913 = vmul.f32 %v689, %v756
          %v914 = vmul.f32 %v690, %v761
          %v915 = vmul.f32 %v691, %v766
          %v916 = vmul.f32 %v692, %v771
          %v917 = vmul.f32 %v693, %v776
          %v918 = vmul.f32 %v694, %v781
          %v919 = vmul.f32 %v695, %v786
          %v920 = vmul.f32 %v696, %v791
          %v921 = vmul.f32 %v697, %v796
          %v922 = vmul.f32 %v698, %v801
          %v923 = vmul.f32 %v699, %v806
          %v924 = vmul.f32 %v700, %v811
          %v925 = vmul.f32 %v701, %v816
          %v926 = vmul.f32 %v702, %v821
          %v927 = vmul.f32 %v703, %v826
          %v928 = vmul.f32 %v704, %v831
          %v929 = vmul.f32 %v705, %v836
          %v930 = vmul.f32 %v706, %v841
          %v931 = vmul.f32 %v707, %v846
          %v932 = vmul.f32 %v708, %v851
          %v933 = vmul.f32 %v709, %v856
          %v934 = vmul.f32 %v710, %v861
          %v935 = vmul.f32 %v711, %v866
          %v936 = vmul.f32 %v712, %v871
          %v937 = vmul.f32 %v713, %v876
          %v938 = vmul.f32 %v714, %v881
          %v939 = vmul.f32 %v715, %v886
          %v940 = vmul.f32 %v716, %v891
          %v941 = vmul.f32 %v717, %v896
          %v942 = vmul.f32 %v718, %v901
          %v943 = vmul.f32 %v719, %v906
          %v944 = vmul.f32 %v720, %v911
          %vm945 = vcmask 64512
          %946 = vst.msk [vmem:[#allocation2] sm:$0xff] %vm945, 0.0
          %947 = vst.msk [vmem:[#allocation2 + $0x8] sm:$0xff] %vm945, 0.0
          %vm948 = vcmask 58368
          %949 = vst.msk [vmem:[#allocation2 + $0x10] sm:$0x3] %vm948, 0.0
          %950 = vst.msk [vmem:[#allocation2 + $0x18] sm:$0xff] %vm945, 0.0
          %951 = vst.msk [vmem:[#allocation2 + $0x20] sm:$0xff] %vm945, 0.0
          %952 = vst.msk [vmem:[#allocation2 + $0x28] sm:$0x3] %vm948, 0.0
          %953 = vst.msk [vmem:[#allocation2 + $0x30] sm:$0xff] %vm945, 0.0
          %954 = vst.msk [vmem:[#allocation2 + $0x38] sm:$0xff] %vm945, 0.0
          %955 = vst.msk [vmem:[#allocation2 + $0x40] sm:$0x3] %vm948, 0.0
          %956 = vst.msk [vmem:[#allocation2 + $0x48] sm:$0xff] %vm945, 0.0
          %957 = vst.msk [vmem:[#allocation2 + $0x50] sm:$0xff] %vm945, 0.0
          %958 = vst.msk [vmem:[#allocation2 + $0x58] sm:$0x3] %vm948, 0.0
          %959 = vst.msk [vmem:[#allocation2 + $0x60] sm:$0xff] %vm945, 0.0
          %960 = vst.msk [vmem:[#allocation2 + $0x68] sm:$0xff] %vm945, 0.0
          %961 = vst.msk [vmem:[#allocation2 + $0x70] sm:$0x3] %vm948, 0.0
          %962 = vst.msk [vmem:[#allocation2 + $0x78] sm:$0xff] %vm945, 0.0
          %963 = vst.msk [vmem:[#allocation2 + $0x80] sm:$0xff] %vm945, 0.0
          %964 = vst.msk [vmem:[#allocation2 + $0x88] sm:$0x3] %vm948, 0.0
          %965 = vst.msk [vmem:[#allocation2 + $0x90] sm:$0xff] %vm945, 0.0
          %966 = vst.msk [vmem:[#allocation2 + $0x98] sm:$0xff] %vm945, 0.0
          %967 = vst.msk [vmem:[#allocation2 + $0xa0] sm:$0x3] %vm948, 0.0
          %968 = vst.msk [vmem:[#allocation2 + $0xa8] sm:$0xff] %vm945, 0.0
          %969 = vst.msk [vmem:[#allocation2 + $0xb0] sm:$0xff] %vm945, 0.0
          %970 = vst.msk [vmem:[#allocation2 + $0xb8] sm:$0x3] %vm948, 0.0
          %971 = vst.msk [vmem:[#allocation2 + $0xc0] sm:$0xff] %vm945, 0.0
          %972 = vst.msk [vmem:[#allocation2 + $0xc8] sm:$0xff] %vm945, 0.0
          %973 = vst.msk [vmem:[#allocation2 + $0xd0] sm:$0x3] %vm948, 0.0
          %974 = vst.msk [vmem:[#allocation2 + $0xd8] sm:$0xff] %vm945, 0.0
          %975 = vst.msk [vmem:[#allocation2 + $0xe0] sm:$0xff] %vm945, 0.0
          %976 = vst.msk [vmem:[#allocation2 + $0xe8] sm:$0x3] %vm948, 0.0
          %977 = vst.msk [vmem:[#allocation2 + $0xf0] sm:$0xff] %vm945, 0.0
          %978 = vst.msk [vmem:[#allocation2 + $0xf8] sm:$0xff] %vm945, 0.0
          %979 = vst.msk [vmem:[#allocation2 + $0x100] sm:$0x3] %vm948, 0.0
          %980 = vst.msk [vmem:[#allocation2 + $0x108] sm:$0xff] %vm945, 0.0
          %981 = vst.msk [vmem:[#allocation2 + $0x110] sm:$0xff] %vm945, 0.0
          %982 = vst.msk [vmem:[#allocation2 + $0x118] sm:$0x3] %vm948, 0.0
          %983 = vst.msk [vmem:[#allocation2 + $0x120] sm:$0xff] %vm945, 0.0
          %984 = vst.msk [vmem:[#allocation2 + $0x128] sm:$0xff] %vm945, 0.0
          %985 = vst.msk [vmem:[#allocation2 + $0x130] sm:$0x3] %vm948, 0.0
          %986 = vst.msk [vmem:[#allocation2 + $0x138] sm:$0xff] %vm945, 0.0
          %987 = vst.msk [vmem:[#allocation2 + $0x140] sm:$0xff] %vm945, 0.0
          %988 = vst.msk [vmem:[#allocation2 + $0x148] sm:$0x3] %vm948, 0.0
          %989 = vst.msk [vmem:[#allocation2 + $0x150] sm:$0xff] %vm945, 0.0
          %990 = vst.msk [vmem:[#allocation2 + $0x158] sm:$0xff] %vm945, 0.0
          %991 = vst.msk [vmem:[#allocation2 + $0x160] sm:$0x3] %vm948, 0.0
          %992 = vst.msk [vmem:[#allocation2 + $0x168] sm:$0xff] %vm945, 0.0
          %993 = vst.msk [vmem:[#allocation2 + $0x170] sm:$0xff] %vm945, 0.0
          %994 = vst.msk [vmem:[#allocation2 + $0x178] sm:$0x3] %vm948, 0.0
          %995 = vst.msk [vmem:[#allocation2 + $0x180] sm:$0xff] %vm945, 0.0
          %996 = vst.msk [vmem:[#allocation2 + $0x188] sm:$0xff] %vm945, 0.0
          %997 = vst.msk [vmem:[#allocation2 + $0x190] sm:$0x3] %vm948, 0.0
          %998 = vst.msk [vmem:[#allocation2 + $0x198] sm:$0xff] %vm945, 0.0
          %999 = vst.msk [vmem:[#allocation2 + $0x1a0] sm:$0xff] %vm945, 0.0
          %1000 = vst.msk [vmem:[#allocation2 + $0x1a8] sm:$0x3] %vm948, 0.0
          %s1001 = scalar_lea.vmem [#allocation2], 24
          %1002 = vst.msk [vmem:[%s1001 + $0x1] sm:$0xff] %vm945, %v913
          %1003 = vst.msk [vmem:[%s1001 + $0x9] sm:$0xff] %vm945, %v914
          %1004 = vst.msk [vmem:[%s1001 + $0x19] sm:$0xff] %vm945, %v915
          %1005 = vst.msk [vmem:[%s1001 + $0x21] sm:$0xff] %vm945, %v916
          %1006 = vst.msk [vmem:[%s1001 + $0x31] sm:$0xff] %vm945, %v917
          %1007 = vst.msk [vmem:[%s1001 + $0x39] sm:$0xff] %vm945, %v918
          %1008 = vst.msk [vmem:[%s1001 + $0x49] sm:$0xff] %vm945, %v919
          %1009 = vst.msk [vmem:[%s1001 + $0x51] sm:$0xff] %vm945, %v920
          %1010 = vst.msk [vmem:[%s1001 + $0x61] sm:$0xff] %vm945, %v921
          %1011 = vst.msk [vmem:[%s1001 + $0x69] sm:$0xff] %vm945, %v922
          %1012 = vst.msk [vmem:[%s1001 + $0x79] sm:$0xff] %vm945, %v923
          %1013 = vst.msk [vmem:[%s1001 + $0x81] sm:$0xff] %vm945, %v924
          %1014 = vst.msk [vmem:[%s1001 + $0x91] sm:$0xff] %vm945, %v925
          %1015 = vst.msk [vmem:[%s1001 + $0x99] sm:$0xff] %vm945, %v926
          %1016 = vst.msk [vmem:[%s1001 + $0xa9] sm:$0xff] %vm945, %v927
          %1017 = vst.msk [vmem:[%s1001 + $0xb1] sm:$0xff] %vm945, %v928
          %1018 = vst.msk [vmem:[%s1001 + $0xc1] sm:$0xff] %vm945, %v929
          %1019 = vst.msk [vmem:[%s1001 + $0xc9] sm:$0xff] %vm945, %v930
          %1020 = vst.msk [vmem:[%s1001 + $0xd9] sm:$0xff] %vm945, %v931
          %1021 = vst.msk [vmem:[%s1001 + $0xe1] sm:$0xff] %vm945, %v932
          %1022 = vst.msk [vmem:[%s1001 + $0xf1] sm:$0xff] %vm945, %v933
          %1023 = vst.msk [vmem:[%s1001 + $0xf9] sm:$0xff] %vm945, %v934
          %1024 = vst.msk [vmem:[%s1001 + $0x109] sm:$0xff] %vm945, %v935
          %1025 = vst.msk [vmem:[%s1001 + $0x111] sm:$0xff] %vm945, %v936
          %1026 = vst.msk [vmem:[%s1001 + $0x121] sm:$0xff] %vm945, %v937
          %1027 = vst.msk [vmem:[%s1001 + $0x129] sm:$0xff] %vm945, %v938
          %1028 = vst.msk [vmem:[%s1001 + $0x139] sm:$0xff] %vm945, %v939
          %1029 = vst.msk [vmem:[%s1001 + $0x141] sm:$0xff] %vm945, %v940
          %1030 = vst.msk [vmem:[%s1001 + $0x151] sm:$0xff] %vm945, %v941
          %1031 = vst.msk [vmem:[%s1001 + $0x159] sm:$0xff] %vm945, %v942
          %1032 = vst.msk [vmem:[%s1001 + $0x169] sm:$0xff] %vm945, %v943
          %1033 = vst.msk [vmem:[%s1001 + $0x171] sm:$0xff] %vm945, %v944
        $region56: #{tpu_custom_call.1} parent=51 // pred_fallthru
          _
        %s1034 = smul.u32 %s27, 8
        %s1035 = smul.u32 %s1034, 24
        %s1036 = scalar_lea.vmem [#allocation2], %s1035
        %v1037 = vld [vmem:[%s1036] sm:$0xff]
        %v1038 = vld [vmem:[%s1036 + $0x8] sm:$0xff]
        %v1039 = vld [vmem:[%s1036 + $0x10] sm:$0x3]
        %v1040 = vld [vmem:[%s1036 + $0x18] sm:$0xff]
        %v1041 = vld [vmem:[%s1036 + $0x20] sm:$0xff]
        %v1042 = vld [vmem:[%s1036 + $0x28] sm:$0x3]
        %v1043 = vld [vmem:[%s1036 + $0x30] sm:$0xff]
        %v1044 = vld [vmem:[%s1036 + $0x38] sm:$0xff]
        %v1045 = vld [vmem:[%s1036 + $0x40] sm:$0x3]
        %v1046 = vld [vmem:[%s1036 + $0x48] sm:$0xff]
        %v1047 = vld [vmem:[%s1036 + $0x50] sm:$0xff]
        %v1048 = vld [vmem:[%s1036 + $0x58] sm:$0x3]
        %v1049 = vld [vmem:[%s1036 + $0x60] sm:$0xff]
        %v1050 = vld [vmem:[%s1036 + $0x68] sm:$0xff]
        %v1051 = vld [vmem:[%s1036 + $0x70] sm:$0x3]
        %v1052 = vld [vmem:[%s1036 + $0x78] sm:$0xff]
        %v1053 = vld [vmem:[%s1036 + $0x80] sm:$0xff]
        %v1054 = vld [vmem:[%s1036 + $0x88] sm:$0x3]
        %v1055 = vld [vmem:[%s1036 + $0x90] sm:$0xff]
        %v1056 = vld [vmem:[%s1036 + $0x98] sm:$0xff]
        %v1057 = vld [vmem:[%s1036 + $0xa0] sm:$0x3]
        %v1058 = vld [vmem:[%s1036 + $0xa8] sm:$0xff]
        %v1059 = vld [vmem:[%s1036 + $0xb0] sm:$0xff]
        %v1060 = vld [vmem:[%s1036 + $0xb8] sm:$0x3]
        %v1061 = vld [vmem:[%s1036 + $0xc0] sm:$0xff]
        %v1062 = vld [vmem:[%s1036 + $0xc8] sm:$0xff]
        %v1063 = vld [vmem:[%s1036 + $0xd0] sm:$0x3]
        %v1064 = vld [vmem:[%s1036 + $0xd8] sm:$0xff]
        %v1065 = vld [vmem:[%s1036 + $0xe0] sm:$0xff]
        %v1066 = vld [vmem:[%s1036 + $0xe8] sm:$0x3]
        %v1067 = vpack.c.bf16 %v1038, %v1037
        %v1068 = vpack.c.bf16 %v1039, %v1039
        %v1069 = vpack.c.bf16 %v1041, %v1040
        %v1070 = vpack.c.bf16 %v1042, %v1042
        %v1071 = vpack.c.bf16 %v1044, %v1043
        %v1072 = vpack.c.bf16 %v1045, %v1045
        %v1073 = vpack.c.bf16 %v1047, %v1046
        %v1074 = vpack.c.bf16 %v1048, %v1048
        %v1075 = vpack.c.bf16 %v1050, %v1049
        %v1076 = vpack.c.bf16 %v1051, %v1051
        %v1077 = vpack.c.bf16 %v1053, %v1052
        %v1078 = vpack.c.bf16 %v1054, %v1054
        %v1079 = vpack.c.bf16 %v1056, %v1055
        %v1080 = vpack.c.bf16 %v1057, %v1057
        %v1081 = vpack.c.bf16 %v1059, %v1058
        %v1082 = vpack.c.bf16 %v1060, %v1060
        %v1083 = vpack.c.bf16 %v1062, %v1061
        %v1084 = vpack.c.bf16 %v1063, %v1063
        %v1085 = vpack.c.bf16 %v1065, %v1064
        %v1086 = vpack.c.bf16 %v1066, %v1066
        %v1107 = vcombine.high %v1067, %v1067
        %v1109 = vunpack.c.l.s4 1966171168
        %v1110 = vunpack.c.0.s8 %v1109
        %v1111 = vlaneseq
        %v1112 = vshrl.u32 %v1111, 7
        %v1113 = vsub.s32 %v1110, %v1112
        %v1114 = vrot.slane %v1067, %v1113
        %v1116 = vunpack.c.l.s4 1966171168
        %v1117 = vunpack.c.0.s8 %v1116
        %v1118 = vlaneseq
        %v1119 = vshrl.u32 %v1118, 7
        %v1120 = vsub.s32 %v1117, %v1119
        %v1121 = vrot.slane %v1107, %v1120
        %v1122 = vcombine.high %v1114, %v1114
        %v1123 = vcombine.high %v1121, %v1121
        %v1125 = vunpack.c.l.s4 1966171168
        %v1126 = vunpack.c.0.s8 %v1125
        %v1127 = vlaneseq
        %v1128 = vshrl.u32 %v1127, 7
        %v1129 = vsub.s32 %v1126, %v1128
        %v1130 = vrot.slane %v1114, %v1129
        %v1132 = vunpack.c.l.s4 1966171168
        %v1133 = vunpack.c.0.s8 %v1132
        %v1134 = vlaneseq
        %v1135 = vshrl.u32 %v1134, 7
        %v1136 = vsub.s32 %v1133, %v1135
        %v1137 = vrot.slane %v1121, %v1136
        %v1139 = vunpack.c.l.s4 1966171168
        %v1140 = vunpack.c.0.s8 %v1139
        %v1141 = vlaneseq
        %v1142 = vshrl.u32 %v1141, 7
        %v1143 = vsub.s32 %v1140, %v1142
        %v1144 = vrot.slane %v1122, %v1143
        %v1146 = vunpack.c.l.s4 1966171168
        %v1147 = vunpack.c.0.s8 %v1146
        %v1148 = vlaneseq
        %v1149 = vshrl.u32 %v1148, 7
        %v1150 = vsub.s32 %v1147, %v1149
        %v1151 = vrot.slane %v1123, %v1150
        %v1152 = vcombine.high %v1130, %v1130
        %v1153 = vcombine.high %v1137, %v1137
        %v1154 = vcombine.high %v1144, %v1144
        %v1155 = vcombine.high %v1151, %v1151
        %v1157 = vunpack.c.l.s4 1966171168
        %v1158 = vunpack.c.0.s8 %v1157
        %v1159 = vlaneseq
        %v1160 = vshrl.u32 %v1159, 7
        %v1161 = vsub.s32 %v1158, %v1160
        %v1162 = vrot.slane %v1068, %v1161
        %v1164 = vunpack.c.l.s4 1966171168
        %v1165 = vunpack.c.0.s8 %v1164
        %v1166 = vlaneseq
        %v1167 = vshrl.u32 %v1166, 7
        %v1168 = vsub.s32 %v1165, %v1167
        %v1169 = vrot.slane %v1162, %v1168
        %v1170 = vcombine.high %v1069, %v1069
        %v1172 = vunpack.c.l.s4 1966171168
        %v1173 = vunpack.c.0.s8 %v1172
        %v1174 = vlaneseq
        %v1175 = vshrl.u32 %v1174, 7
        %v1176 = vsub.s32 %v1173, %v1175
        %v1177 = vrot.slane %v1069, %v1176
        %v1179 = vunpack.c.l.s4 1966171168
        %v1180 = vunpack.c.0.s8 %v1179
        %v1181 = vlaneseq
        %v1182 = vshrl.u32 %v1181, 7
        %v1183 = vsub.s32 %v1180, %v1182
        %v1184 = vrot.slane %v1170, %v1183
        %v1185 = vcombine.high %v1177, %v1177
        %v1186 = vcombine.high %v1184, %v1184
        %v1188 = vunpack.c.l.s4 1966171168
        %v1189 = vunpack.c.0.s8 %v1188
        %v1190 = vlaneseq
        %v1191 = vshrl.u32 %v1190, 7
        %v1192 = vsub.s32 %v1189, %v1191
        %v1193 = vrot.slane %v1177, %v1192
        %v1195 = vunpack.c.l.s4 1966171168
        %v1196 = vunpack.c.0.s8 %v1195
        %v1197 = vlaneseq
        %v1198 = vshrl.u32 %v1197, 7
        %v1199 = vsub.s32 %v1196, %v1198
        %v1200 = vrot.slane %v1184, %v1199
        %v1202 = vunpack.c.l.s4 1966171168
        %v1203 = vunpack.c.0.s8 %v1202
        %v1204 = vlaneseq
        %v1205 = vshrl.u32 %v1204, 7
        %v1206 = vsub.s32 %v1203, %v1205
        %v1207 = vrot.slane %v1185, %v1206
        %v1209 = vunpack.c.l.s4 1966171168
        %v1210 = vunpack.c.0.s8 %v1209
        %v1211 = vlaneseq
        %v1212 = vshrl.u32 %v1211, 7
        %v1213 = vsub.s32 %v1210, %v1212
        %v1214 = vrot.slane %v1186, %v1213
        %v1215 = vcombine.high %v1193, %v1193
        %v1216 = vcombine.high %v1200, %v1200
        %v1217 = vcombine.high %v1207, %v1207
        %v1218 = vcombine.high %v1214, %v1214
        %v1220 = vunpack.c.l.s4 1966171168
        %v1221 = vunpack.c.0.s8 %v1220
        %v1222 = vlaneseq
        %v1223 = vshrl.u32 %v1222, 7
        %v1224 = vsub.s32 %v1221, %v1223
        %v1225 = vrot.slane %v1070, %v1224
        %v1227 = vunpack.c.l.s4 1966171168
        %v1228 = vunpack.c.0.s8 %v1227
        %v1229 = vlaneseq
        %v1230 = vshrl.u32 %v1229, 7
        %v1231 = vsub.s32 %v1228, %v1230
        %v1232 = vrot.slane %v1225, %v1231
        %v1233 = vcombine.high %v1071, %v1071
        %v1235 = vunpack.c.l.s4 1966171168
        %v1236 = vunpack.c.0.s8 %v1235
        %v1237 = vlaneseq
        %v1238 = vshrl.u32 %v1237, 7
        %v1239 = vsub.s32 %v1236, %v1238
        %v1240 = vrot.slane %v1071, %v1239
        %v1242 = vunpack.c.l.s4 1966171168
        %v1243 = vunpack.c.0.s8 %v1242
        %v1244 = vlaneseq
        %v1245 = vshrl.u32 %v1244, 7
        %v1246 = vsub.s32 %v1243, %v1245
        %v1247 = vrot.slane %v1233, %v1246
        %v1248 = vcombine.high %v1240, %v1240
        %v1249 = vcombine.high %v1247, %v1247
        %v1251 = vunpack.c.l.s4 1966171168
        %v1252 = vunpack.c.0.s8 %v1251
        %v1253 = vlaneseq
        %v1254 = vshrl.u32 %v1253, 7
        %v1255 = vsub.s32 %v1252, %v1254
        %v1256 = vrot.slane %v1240, %v1255
        %v1258 = vunpack.c.l.s4 1966171168
        %v1259 = vunpack.c.0.s8 %v1258
        %v1260 = vlaneseq
        %v1261 = vshrl.u32 %v1260, 7
        %v1262 = vsub.s32 %v1259, %v1261
        %v1263 = vrot.slane %v1247, %v1262
        %v1265 = vunpack.c.l.s4 1966171168
        %v1266 = vunpack.c.0.s8 %v1265
        %v1267 = vlaneseq
        %v1268 = vshrl.u32 %v1267, 7
        %v1269 = vsub.s32 %v1266, %v1268
        %v1270 = vrot.slane %v1248, %v1269
        %v1272 = vunpack.c.l.s4 1966171168
        %v1273 = vunpack.c.0.s8 %v1272
        %v1274 = vlaneseq
        %v1275 = vshrl.u32 %v1274, 7
        %v1276 = vsub.s32 %v1273, %v1275
        %v1277 = vrot.slane %v1249, %v1276
        %v1278 = vcombine.high %v1256, %v1256
        %v1279 = vcombine.high %v1263, %v1263
        %v1280 = vcombine.high %v1270, %v1270
        %v1281 = vcombine.high %v1277, %v1277
        %v1283 = vunpack.c.l.s4 1966171168
        %v1284 = vunpack.c.0.s8 %v1283
        %v1285 = vlaneseq
        %v1286 = vshrl.u32 %v1285, 7
        %v1287 = vsub.s32 %v1284, %v1286
        %v1288 = vrot.slane %v1072, %v1287
        %v1290 = vunpack.c.l.s4 1966171168
        %v1291 = vunpack.c.0.s8 %v1290
        %v1292 = vlaneseq
        %v1293 = vshrl.u32 %v1292, 7
        %v1294 = vsub.s32 %v1291, %v1293
        %v1295 = vrot.slane %v1288, %v1294
        %v1296 = vcombine.high %v1073, %v1073
        %v1298 = vunpack.c.l.s4 1966171168
        %v1299 = vunpack.c.0.s8 %v1298
        %v1300 = vlaneseq
        %v1301 = vshrl.u32 %v1300, 7
        %v1302 = vsub.s32 %v1299, %v1301
        %v1303 = vrot.slane %v1073, %v1302
        %v1305 = vunpack.c.l.s4 1966171168
        %v1306 = vunpack.c.0.s8 %v1305
        %v1307 = vlaneseq
        %v1308 = vshrl.u32 %v1307, 7
        %v1309 = vsub.s32 %v1306, %v1308
        %v1310 = vrot.slane %v1296, %v1309
        %v1311 = vcombine.high %v1303, %v1303
        %v1312 = vcombine.high %v1310, %v1310
        %v1314 = vunpack.c.l.s4 1966171168
        %v1315 = vunpack.c.0.s8 %v1314
        %v1316 = vlaneseq
        %v1317 = vshrl.u32 %v1316, 7
        %v1318 = vsub.s32 %v1315, %v1317
        %v1319 = vrot.slane %v1303, %v1318
        %v1321 = vunpack.c.l.s4 1966171168
        %v1322 = vunpack.c.0.s8 %v1321
        %v1323 = vlaneseq
        %v1324 = vshrl.u32 %v1323, 7
        %v1325 = vsub.s32 %v1322, %v1324
        %v1326 = vrot.slane %v1310, %v1325
        %v1328 = vunpack.c.l.s4 1966171168
        %v1329 = vunpack.c.0.s8 %v1328
        %v1330 = vlaneseq
        %v1331 = vshrl.u32 %v1330, 7
        %v1332 = vsub.s32 %v1329, %v1331
        %v1333 = vrot.slane %v1311, %v1332
        %v1335 = vunpack.c.l.s4 1966171168
        %v1336 = vunpack.c.0.s8 %v1335
        %v1337 = vlaneseq
        %v1338 = vshrl.u32 %v1337, 7
        %v1339 = vsub.s32 %v1336, %v1338
        %v1340 = vrot.slane %v1312, %v1339
        %v1341 = vcombine.high %v1319, %v1319
        %v1342 = vcombine.high %v1326, %v1326
        %v1343 = vcombine.high %v1333, %v1333
        %v1344 = vcombine.high %v1340, %v1340
        %v1346 = vunpack.c.l.s4 1966171168
        %v1347 = vunpack.c.0.s8 %v1346
        %v1348 = vlaneseq
        %v1349 = vshrl.u32 %v1348, 7
        %v1350 = vsub.s32 %v1347, %v1349
        %v1351 = vrot.slane %v1074, %v1350
        %v1353 = vunpack.c.l.s4 1966171168
        %v1354 = vunpack.c.0.s8 %v1353
        %v1355 = vlaneseq
        %v1356 = vshrl.u32 %v1355, 7
        %v1357 = vsub.s32 %v1354, %v1356
        %v1358 = vrot.slane %v1351, %v1357
        %v1359 = vcombine.high %v1075, %v1075
        %v1361 = vunpack.c.l.s4 1966171168
        %v1362 = vunpack.c.0.s8 %v1361
        %v1363 = vlaneseq
        %v1364 = vshrl.u32 %v1363, 7
        %v1365 = vsub.s32 %v1362, %v1364
        %v1366 = vrot.slane %v1075, %v1365
        %v1368 = vunpack.c.l.s4 1966171168
        %v1369 = vunpack.c.0.s8 %v1368
        %v1370 = vlaneseq
        %v1371 = vshrl.u32 %v1370, 7
        %v1372 = vsub.s32 %v1369, %v1371
        %v1373 = vrot.slane %v1359, %v1372
        %v1374 = vcombine.high %v1366, %v1366
        %v1375 = vcombine.high %v1373, %v1373
        %v1377 = vunpack.c.l.s4 1966171168
        %v1378 = vunpack.c.0.s8 %v1377
        %v1379 = vlaneseq
        %v1380 = vshrl.u32 %v1379, 7
        %v1381 = vsub.s32 %v1378, %v1380
        %v1382 = vrot.slane %v1366, %v1381
        %v1384 = vunpack.c.l.s4 1966171168
        %v1385 = vunpack.c.0.s8 %v1384
        %v1386 = vlaneseq
        %v1387 = vshrl.u32 %v1386, 7
        %v1388 = vsub.s32 %v1385, %v1387
        %v1389 = vrot.slane %v1373, %v1388
        %v1391 = vunpack.c.l.s4 1966171168
        %v1392 = vunpack.c.0.s8 %v1391
        %v1393 = vlaneseq
        %v1394 = vshrl.u32 %v1393, 7
        %v1395 = vsub.s32 %v1392, %v1394
        %v1396 = vrot.slane %v1374, %v1395
        %v1398 = vunpack.c.l.s4 1966171168
        %v1399 = vunpack.c.0.s8 %v1398
        %v1400 = vlaneseq
        %v1401 = vshrl.u32 %v1400, 7
        %v1402 = vsub.s32 %v1399, %v1401
        %v1403 = vrot.slane %v1375, %v1402
        %v1404 = vcombine.high %v1382, %v1382
        %v1405 = vcombine.high %v1389, %v1389
        %v1406 = vcombine.high %v1396, %v1396
        %v1407 = vcombine.high %v1403, %v1403
        %v1409 = vunpack.c.l.s4 1966171168
        %v1410 = vunpack.c.0.s8 %v1409
        %v1411 = vlaneseq
        %v1412 = vshrl.u32 %v1411, 7
        %v1413 = vsub.s32 %v1410, %v1412
        %v1414 = vrot.slane %v1076, %v1413
        %v1416 = vunpack.c.l.s4 1966171168
        %v1417 = vunpack.c.0.s8 %v1416
        %v1418 = vlaneseq
        %v1419 = vshrl.u32 %v1418, 7
        %v1420 = vsub.s32 %v1417, %v1419
        %v1421 = vrot.slane %v1414, %v1420
        %v1422 = vcombine.high %v1077, %v1077
        %v1424 = vunpack.c.l.s4 1966171168
        %v1425 = vunpack.c.0.s8 %v1424
        %v1426 = vlaneseq
        %v1427 = vshrl.u32 %v1426, 7
        %v1428 = vsub.s32 %v1425, %v1427
        %v1429 = vrot.slane %v1077, %v1428
        %v1431 = vunpack.c.l.s4 1966171168
        %v1432 = vunpack.c.0.s8 %v1431
        %v1433 = vlaneseq
        %v1434 = vshrl.u32 %v1433, 7
        %v1435 = vsub.s32 %v1432, %v1434
        %v1436 = vrot.slane %v1422, %v1435
        %v1437 = vcombine.high %v1429, %v1429
        %v1438 = vcombine.high %v1436, %v1436
        %v1440 = vunpack.c.l.s4 1966171168
        %v1441 = vunpack.c.0.s8 %v1440
        %v1442 = vlaneseq
        %v1443 = vshrl.u32 %v1442, 7
        %v1444 = vsub.s32 %v1441, %v1443
        %v1445 = vrot.slane %v1429, %v1444
        %v1447 = vunpack.c.l.s4 1966171168
        %v1448 = vunpack.c.0.s8 %v1447
        %v1449 = vlaneseq
        %v1450 = vshrl.u32 %v1449, 7
        %v1451 = vsub.s32 %v1448, %v1450
        %v1452 = vrot.slane %v1436, %v1451
        %v1454 = vunpack.c.l.s4 1966171168
        %v1455 = vunpack.c.0.s8 %v1454
        %v1456 = vlaneseq
        %v1457 = vshrl.u32 %v1456, 7
        %v1458 = vsub.s32 %v1455, %v1457
        %v1459 = vrot.slane %v1437, %v1458
        %v1461 = vunpack.c.l.s4 1966171168
        %v1462 = vunpack.c.0.s8 %v1461
        %v1463 = vlaneseq
        %v1464 = vshrl.u32 %v1463, 7
        %v1465 = vsub.s32 %v1462, %v1464
        %v1466 = vrot.slane %v1438, %v1465
        %v1467 = vcombine.high %v1445, %v1445
        %v1468 = vcombine.high %v1452, %v1452
        %v1469 = vcombine.high %v1459, %v1459
        %v1470 = vcombine.high %v1466, %v1466
        %v1472 = vunpack.c.l.s4 1966171168
        %v1473 = vunpack.c.0.s8 %v1472
        %v1474 = vlaneseq
        %v1475 = vshrl.u32 %v1474, 7
        %v1476 = vsub.s32 %v1473, %v1475
        %v1477 = vrot.slane %v1078, %v1476
        %v1479 = vunpack.c.l.s4 1966171168
        %v1480 = vunpack.c.0.s8 %v1479
        %v1481 = vlaneseq
        %v1482 = vshrl.u32 %v1481, 7
        %v1483 = vsub.s32 %v1480, %v1482
        %v1484 = vrot.slane %v1477, %v1483
        %v1485 = vcombine.high %v1079, %v1079
        %v1487 = vunpack.c.l.s4 1966171168
        %v1488 = vunpack.c.0.s8 %v1487
        %v1489 = vlaneseq
        %v1490 = vshrl.u32 %v1489, 7
        %v1491 = vsub.s32 %v1488, %v1490
        %v1492 = vrot.slane %v1079, %v1491
        %v1494 = vunpack.c.l.s4 1966171168
        %v1495 = vunpack.c.0.s8 %v1494
        %v1496 = vlaneseq
        %v1497 = vshrl.u32 %v1496, 7
        %v1498 = vsub.s32 %v1495, %v1497
        %v1499 = vrot.slane %v1485, %v1498
        %v1500 = vcombine.high %v1492, %v1492
        %v1501 = vcombine.high %v1499, %v1499
        %v1503 = vunpack.c.l.s4 1966171168
        %v1504 = vunpack.c.0.s8 %v1503
        %v1505 = vlaneseq
        %v1506 = vshrl.u32 %v1505, 7
        %v1507 = vsub.s32 %v1504, %v1506
        %v1508 = vrot.slane %v1492, %v1507
        %v1510 = vunpack.c.l.s4 1966171168
        %v1511 = vunpack.c.0.s8 %v1510
        %v1512 = vlaneseq
        %v1513 = vshrl.u32 %v1512, 7
        %v1514 = vsub.s32 %v1511, %v1513
        %v1515 = vrot.slane %v1499, %v1514
        %v1517 = vunpack.c.l.s4 1966171168
        %v1518 = vunpack.c.0.s8 %v1517
        %v1519 = vlaneseq
        %v1520 = vshrl.u32 %v1519, 7
        %v1521 = vsub.s32 %v1518, %v1520
        %v1522 = vrot.slane %v1500, %v1521
        %v1524 = vunpack.c.l.s4 1966171168
        %v1525 = vunpack.c.0.s8 %v1524
        %v1526 = vlaneseq
        %v1527 = vshrl.u32 %v1526, 7
        %v1528 = vsub.s32 %v1525, %v1527
        %v1529 = vrot.slane %v1501, %v1528
        %v1530 = vcombine.high %v1508, %v1508
        %v1531 = vcombine.high %v1515, %v1515
        %v1532 = vcombine.high %v1522, %v1522
        %v1533 = vcombine.high %v1529, %v1529
        %v1535 = vunpack.c.l.s4 1966171168
        %v1536 = vunpack.c.0.s8 %v1535
        %v1537 = vlaneseq
        %v1538 = vshrl.u32 %v1537, 7
        %v1539 = vsub.s32 %v1536, %v1538
        %v1540 = vrot.slane %v1080, %v1539
        %v1542 = vunpack.c.l.s4 1966171168
        %v1543 = vunpack.c.0.s8 %v1542
        %v1544 = vlaneseq
        %v1545 = vshrl.u32 %v1544, 7
        %v1546 = vsub.s32 %v1543, %v1545
        %v1547 = vrot.slane %v1540, %v1546
        %v1548 = vcombine.high %v1081, %v1081
        %v1550 = vunpack.c.l.s4 1966171168
        %v1551 = vunpack.c.0.s8 %v1550
        %v1552 = vlaneseq
        %v1553 = vshrl.u32 %v1552, 7
        %v1554 = vsub.s32 %v1551, %v1553
        %v1555 = vrot.slane %v1081, %v1554
        %v1557 = vunpack.c.l.s4 1966171168
        %v1558 = vunpack.c.0.s8 %v1557
        %v1559 = vlaneseq
        %v1560 = vshrl.u32 %v1559, 7
        %v1561 = vsub.s32 %v1558, %v1560
        %v1562 = vrot.slane %v1548, %v1561
        %v1563 = vcombine.high %v1555, %v1555
        %v1564 = vcombine.high %v1562, %v1562
        %v1566 = vunpack.c.l.s4 1966171168
        %v1567 = vunpack.c.0.s8 %v1566
        %v1568 = vlaneseq
        %v1569 = vshrl.u32 %v1568, 7
        %v1570 = vsub.s32 %v1567, %v1569
        %v1571 = vrot.slane %v1555, %v1570
        %v1573 = vunpack.c.l.s4 1966171168
        %v1574 = vunpack.c.0.s8 %v1573
        %v1575 = vlaneseq
        %v1576 = vshrl.u32 %v1575, 7
        %v1577 = vsub.s32 %v1574, %v1576
        %v1578 = vrot.slane %v1562, %v1577
        %v1580 = vunpack.c.l.s4 1966171168
        %v1581 = vunpack.c.0.s8 %v1580
        %v1582 = vlaneseq
        %v1583 = vshrl.u32 %v1582, 7
        %v1584 = vsub.s32 %v1581, %v1583
        %v1585 = vrot.slane %v1563, %v1584
        %v1587 = vunpack.c.l.s4 1966171168
        %v1588 = vunpack.c.0.s8 %v1587
        %v1589 = vlaneseq
        %v1590 = vshrl.u32 %v1589, 7
        %v1591 = vsub.s32 %v1588, %v1590
        %v1592 = vrot.slane %v1564, %v1591
        %v1593 = vcombine.high %v1571, %v1571
        %v1594 = vcombine.high %v1578, %v1578
        %v1595 = vcombine.high %v1585, %v1585
        %v1596 = vcombine.high %v1592, %v1592
        %v1598 = vunpack.c.l.s4 1966171168
        %v1599 = vunpack.c.0.s8 %v1598
        %v1600 = vlaneseq
        %v1601 = vshrl.u32 %v1600, 7
        %v1602 = vsub.s32 %v1599, %v1601
        %v1603 = vrot.slane %v1082, %v1602
        %v1605 = vunpack.c.l.s4 1966171168
        %v1606 = vunpack.c.0.s8 %v1605
        %v1607 = vlaneseq
        %v1608 = vshrl.u32 %v1607, 7
        %v1609 = vsub.s32 %v1606, %v1608
        %v1610 = vrot.slane %v1603, %v1609
        %v1611 = vcombine.high %v1083, %v1083
        %v1613 = vunpack.c.l.s4 1966171168
        %v1614 = vunpack.c.0.s8 %v1613
        %v1615 = vlaneseq
        %v1616 = vshrl.u32 %v1615, 7
        %v1617 = vsub.s32 %v1614, %v1616
        %v1618 = vrot.slane %v1083, %v1617
        %v1620 = vunpack.c.l.s4 1966171168
        %v1621 = vunpack.c.0.s8 %v1620
        %v1622 = vlaneseq
        %v1623 = vshrl.u32 %v1622, 7
        %v1624 = vsub.s32 %v1621, %v1623
        %v1625 = vrot.slane %v1611, %v1624
        %v1626 = vcombine.high %v1618, %v1618
        %v1627 = vcombine.high %v1625, %v1625
        %v1629 = vunpack.c.l.s4 1966171168
        %v1630 = vunpack.c.0.s8 %v1629
        %v1631 = vlaneseq
        %v1632 = vshrl.u32 %v1631, 7
        %v1633 = vsub.s32 %v1630, %v1632
        %v1634 = vrot.slane %v1618, %v1633
        %v1636 = vunpack.c.l.s4 1966171168
        %v1637 = vunpack.c.0.s8 %v1636
        %v1638 = vlaneseq
        %v1639 = vshrl.u32 %v1638, 7
        %v1640 = vsub.s32 %v1637, %v1639
        %v1641 = vrot.slane %v1625, %v1640
        %v1643 = vunpack.c.l.s4 1966171168
        %v1644 = vunpack.c.0.s8 %v1643
        %v1645 = vlaneseq
        %v1646 = vshrl.u32 %v1645, 7
        %v1647 = vsub.s32 %v1644, %v1646
        %v1648 = vrot.slane %v1626, %v1647
        %v1650 = vunpack.c.l.s4 1966171168
        %v1651 = vunpack.c.0.s8 %v1650
        %v1652 = vlaneseq
        %v1653 = vshrl.u32 %v1652, 7
        %v1654 = vsub.s32 %v1651, %v1653
        %v1655 = vrot.slane %v1627, %v1654
        %v1656 = vcombine.high %v1634, %v1634
        %v1657 = vcombine.high %v1641, %v1641
        %v1658 = vcombine.high %v1648, %v1648
        %v1659 = vcombine.high %v1655, %v1655
        %v1661 = vunpack.c.l.s4 1966171168
        %v1662 = vunpack.c.0.s8 %v1661
        %v1663 = vlaneseq
        %v1664 = vshrl.u32 %v1663, 7
        %v1665 = vsub.s32 %v1662, %v1664
        %v1666 = vrot.slane %v1084, %v1665
        %v1668 = vunpack.c.l.s4 1966171168
        %v1669 = vunpack.c.0.s8 %v1668
        %v1670 = vlaneseq
        %v1671 = vshrl.u32 %v1670, 7
        %v1672 = vsub.s32 %v1669, %v1671
        %v1673 = vrot.slane %v1666, %v1672
        %v1674 = vcombine.high %v1085, %v1085
        %v1676 = vunpack.c.l.s4 1966171168
        %v1677 = vunpack.c.0.s8 %v1676
        %v1678 = vlaneseq
        %v1679 = vshrl.u32 %v1678, 7
        %v1680 = vsub.s32 %v1677, %v1679
        %v1681 = vrot.slane %v1085, %v1680
        %v1683 = vunpack.c.l.s4 1966171168
        %v1684 = vunpack.c.0.s8 %v1683
        %v1685 = vlaneseq
        %v1686 = vshrl.u32 %v1685, 7
        %v1687 = vsub.s32 %v1684, %v1686
        %v1688 = vrot.slane %v1674, %v1687
        %v1689 = vcombine.high %v1681, %v1681
        %v1690 = vcombine.high %v1688, %v1688
        %v1692 = vunpack.c.l.s4 1966171168
        %v1693 = vunpack.c.0.s8 %v1692
        %v1694 = vlaneseq
        %v1695 = vshrl.u32 %v1694, 7
        %v1696 = vsub.s32 %v1693, %v1695
        %v1697 = vrot.slane %v1681, %v1696
        %v1699 = vunpack.c.l.s4 1966171168
        %v1700 = vunpack.c.0.s8 %v1699
        %v1701 = vlaneseq
        %v1702 = vshrl.u32 %v1701, 7
        %v1703 = vsub.s32 %v1700, %v1702
        %v1704 = vrot.slane %v1688, %v1703
        %v1706 = vunpack.c.l.s4 1966171168
        %v1707 = vunpack.c.0.s8 %v1706
        %v1708 = vlaneseq
        %v1709 = vshrl.u32 %v1708, 7
        %v1710 = vsub.s32 %v1707, %v1709
        %v1711 = vrot.slane %v1689, %v1710
        %v1713 = vunpack.c.l.s4 1966171168
        %v1714 = vunpack.c.0.s8 %v1713
        %v1715 = vlaneseq
        %v1716 = vshrl.u32 %v1715, 7
        %v1717 = vsub.s32 %v1714, %v1716
        %v1718 = vrot.slane %v1690, %v1717
        %v1719 = vcombine.high %v1697, %v1697
        %v1720 = vcombine.high %v1704, %v1704
        %v1721 = vcombine.high %v1711, %v1711
        %v1722 = vcombine.high %v1718, %v1718
        %v1724 = vunpack.c.l.s4 1966171168
        %v1725 = vunpack.c.0.s8 %v1724
        %v1726 = vlaneseq
        %v1727 = vshrl.u32 %v1726, 7
        %v1728 = vsub.s32 %v1725, %v1727
        %v1729 = vrot.slane %v1086, %v1728
        %v1731 = vunpack.c.l.s4 1966171168
        %v1732 = vunpack.c.0.s8 %v1731
        %v1733 = vlaneseq
        %v1734 = vshrl.u32 %v1733, 7
        %v1735 = vsub.s32 %v1732, %v1734
        %v1736 = vrot.slane %v1729, %v1735
        %v1737 = vld [vmem:[%s4] sm:$0xff]
        %v1738 = vld [vmem:[%s4 + $0x8] sm:$0xff]
        %v1739 = vld [vmem:[%s4 + $0x10] sm:$0xff]
        %v1740 = vld [vmem:[%s4 + $0x18] sm:$0xff]
        %v1741 = vld [vmem:[%s4 + $0x20] sm:$0xf]
        %v1742 = vcombine.low %v1130, %v1144
        %v1743 = vcombine.low %v1152, %v1154
        %v1744 = vcombine.low %v1137, %v1151
        %v1745 = vcombine.low %v1153, %v1155
        %v1747 = vunpack.c.l.s4 1966171168
        %v1748 = vunpack.c.0.s8 %v1747
        %v1749 = vlaneseq
        %v1750 = vshrl.u32 %v1749, 7
        %v1751 = vsub.s32 %v1748, %v1750
        %v1752 = vrot.slane %v1742, %v1751
        %v1754 = vunpack.c.l.s4 1966171168
        %v1755 = vunpack.c.0.s8 %v1754
        %v1756 = vlaneseq
        %v1757 = vshrl.u32 %v1756, 7
        %v1758 = vsub.s32 %v1755, %v1757
        %v1759 = vrot.slane %v1743, %v1758
        %v1761 = vunpack.c.l.s4 1966171168
        %v1762 = vunpack.c.0.s8 %v1761
        %v1763 = vlaneseq
        %v1764 = vshrl.u32 %v1763, 7
        %v1765 = vsub.s32 %v1762, %v1764
        %v1766 = vrot.slane %v1744, %v1765
        %v1768 = vunpack.c.l.s4 1966171168
        %v1769 = vunpack.c.0.s8 %v1768
        %v1770 = vlaneseq
        %v1771 = vshrl.u32 %v1770, 7
        %v1772 = vsub.s32 %v1769, %v1771
        %v1773 = vrot.slane %v1745, %v1772
        %v1774 = vcombine.low %v1752, %v1759
        %v1775 = vcombine.low %v1766, %v1773
        %v1777 = vunpack.c.l.s4 1966171168
        %v1778 = vunpack.c.0.s8 %v1777
        %v1779 = vlaneseq
        %v1780 = vshrl.u32 %v1779, 7
        %v1781 = vsub.s32 %v1778, %v1780
        %v1782 = vrot.slane %v1774, %v1781
        %v1784 = vunpack.c.l.s4 1966171168
        %v1785 = vunpack.c.0.s8 %v1784
        %v1786 = vlaneseq
        %v1787 = vshrl.u32 %v1786, 7
        %v1788 = vsub.s32 %v1785, %v1787
        %v1789 = vrot.slane %v1775, %v1788
        %v1790 = vcombine.low %v1782, %v1789
        %v1791 = vcombine.low %v1169, %v1193
        %v1792 = vcombine.low %v1207, %v1215
        %v1793 = vcombine.low %v1217, %v1200
        %v1794 = vcombine.low %v1214, %v1216
        %v1796 = vunpack.c.l.s4 1966171168
        %v1797 = vunpack.c.0.s8 %v1796
        %v1798 = vlaneseq
        %v1799 = vshrl.u32 %v1798, 7
        %v1800 = vsub.s32 %v1797, %v1799
        %v1801 = vrot.slane %v1791, %v1800
        %v1803 = vunpack.c.l.s4 1966171168
        %v1804 = vunpack.c.0.s8 %v1803
        %v1805 = vlaneseq
        %v1806 = vshrl.u32 %v1805, 7
        %v1807 = vsub.s32 %v1804, %v1806
        %v1808 = vrot.slane %v1792, %v1807
        %v1810 = vunpack.c.l.s4 1966171168
        %v1811 = vunpack.c.0.s8 %v1810
        %v1812 = vlaneseq
        %v1813 = vshrl.u32 %v1812, 7
        %v1814 = vsub.s32 %v1811, %v1813
        %v1815 = vrot.slane %v1793, %v1814
        %v1817 = vunpack.c.l.s4 1966171168
        %v1818 = vunpack.c.0.s8 %v1817
        %v1819 = vlaneseq
        %v1820 = vshrl.u32 %v1819, 7
        %v1821 = vsub.s32 %v1818, %v1820
        %v1822 = vrot.slane %v1794, %v1821
        %v1823 = vcombine.low %v1801, %v1808
        %v1824 = vcombine.low %v1815, %v1822
        %v1826 = vunpack.c.l.s4 1966171168
        %v1827 = vunpack.c.0.s8 %v1826
        %v1828 = vlaneseq
        %v1829 = vshrl.u32 %v1828, 7
        %v1830 = vsub.s32 %v1827, %v1829
        %v1831 = vrot.slane %v1823, %v1830
        %v1833 = vunpack.c.l.s4 1966171168
        %v1834 = vunpack.c.0.s8 %v1833
        %v1835 = vlaneseq
        %v1836 = vshrl.u32 %v1835, 7
        %v1837 = vsub.s32 %v1834, %v1836
        %v1838 = vrot.slane %v1824, %v1837
        %v1839 = vcombine.low %v1831, %v1838
        %v1840 = vcombine.low %v1218, %v1232
        %v1841 = vcombine.low %v1256, %v1270
        %v1842 = vcombine.low %v1278, %v1280
        %v1843 = vcombine.low %v1263, %v1277
        %v1845 = vunpack.c.l.s4 1966171168
        %v1846 = vunpack.c.0.s8 %v1845
        %v1847 = vlaneseq
        %v1848 = vshrl.u32 %v1847, 7
        %v1849 = vsub.s32 %v1846, %v1848
        %v1850 = vrot.slane %v1840, %v1849
        %v1852 = vunpack.c.l.s4 1966171168
        %v1853 = vunpack.c.0.s8 %v1852
        %v1854 = vlaneseq
        %v1855 = vshrl.u32 %v1854, 7
        %v1856 = vsub.s32 %v1853, %v1855
        %v1857 = vrot.slane %v1841, %v1856
        %v1859 = vunpack.c.l.s4 1966171168
        %v1860 = vunpack.c.0.s8 %v1859
        %v1861 = vlaneseq
        %v1862 = vshrl.u32 %v1861, 7
        %v1863 = vsub.s32 %v1860, %v1862
        %v1864 = vrot.slane %v1842, %v1863
        %v1866 = vunpack.c.l.s4 1966171168
        %v1867 = vunpack.c.0.s8 %v1866
        %v1868 = vlaneseq
        %v1869 = vshrl.u32 %v1868, 7
        %v1870 = vsub.s32 %v1867, %v1869
        %v1871 = vrot.slane %v1843, %v1870
        %v1872 = vcombine.low %v1850, %v1857
        %v1873 = vcombine.low %v1864, %v1871
        %v1875 = vunpack.c.l.s4 1966171168
        %v1876 = vunpack.c.0.s8 %v1875
        %v1877 = vlaneseq
        %v1878 = vshrl.u32 %v1877, 7
        %v1879 = vsub.s32 %v1876, %v1878
        %v1880 = vrot.slane %v1872, %v1879
        %v1882 = vunpack.c.l.s4 1966171168
        %v1883 = vunpack.c.0.s8 %v1882
        %v1884 = vlaneseq
        %v1885 = vshrl.u32 %v1884, 7
        %v1886 = vsub.s32 %v1883, %v1885
        %v1887 = vrot.slane %v1873, %v1886
        %v1888 = vcombine.low %v1880, %v1887
        %v1889 = vcombine.low %v1279, %v1281
        %v1890 = vcombine.low %v1295, %v1319
        %v1891 = vcombine.low %v1333, %v1341
        %v1892 = vcombine.low %v1343, %v1326
        %v1894 = vunpack.c.l.s4 1966171168
        %v1895 = vunpack.c.0.s8 %v1894
        %v1896 = vlaneseq
        %v1897 = vshrl.u32 %v1896, 7
        %v1898 = vsub.s32 %v1895, %v1897
        %v1899 = vrot.slane %v1889, %v1898
        %v1901 = vunpack.c.l.s4 1966171168
        %v1902 = vunpack.c.0.s8 %v1901
        %v1903 = vlaneseq
        %v1904 = vshrl.u32 %v1903, 7
        %v1905 = vsub.s32 %v1902, %v1904
        %v1906 = vrot.slane %v1890, %v1905
        %v1908 = vunpack.c.l.s4 1966171168
        %v1909 = vunpack.c.0.s8 %v1908
        %v1910 = vlaneseq
        %v1911 = vshrl.u32 %v1910, 7
        %v1912 = vsub.s32 %v1909, %v1911
        %v1913 = vrot.slane %v1891, %v1912
        %v1915 = vunpack.c.l.s4 1966171168
        %v1916 = vunpack.c.0.s8 %v1915
        %v1917 = vlaneseq
        %v1918 = vshrl.u32 %v1917, 7
        %v1919 = vsub.s32 %v1916, %v1918
        %v1920 = vrot.slane %v1892, %v1919
        %v1921 = vcombine.low %v1899, %v1906
        %v1922 = vcombine.low %v1913, %v1920
        %v1924 = vunpack.c.l.s4 1966171168
        %v1925 = vunpack.c.0.s8 %v1924
        %v1926 = vlaneseq
        %v1927 = vshrl.u32 %v1926, 7
        %v1928 = vsub.s32 %v1925, %v1927
        %v1929 = vrot.slane %v1921, %v1928
        %v1931 = vunpack.c.l.s4 1966171168
        %v1932 = vunpack.c.0.s8 %v1931
        %v1933 = vlaneseq
        %v1934 = vshrl.u32 %v1933, 7
        %v1935 = vsub.s32 %v1932, %v1934
        %v1936 = vrot.slane %v1922, %v1935
        %v1937 = vcombine.low %v1929, %v1936
        %v1938 = vcombine.low %v1340, %v1342
        %v1939 = vcombine.low %v1344, %v1358
        %v1940 = vcombine.low %v1382, %v1396
        %v1941 = vcombine.low %v1404, %v1406
        %v1943 = vunpack.c.l.s4 1966171168
        %v1944 = vunpack.c.0.s8 %v1943
        %v1945 = vlaneseq
        %v1946 = vshrl.u32 %v1945, 7
        %v1947 = vsub.s32 %v1944, %v1946
        %v1948 = vrot.slane %v1938, %v1947
        %v1950 = vunpack.c.l.s4 1966171168
        %v1951 = vunpack.c.0.s8 %v1950
        %v1952 = vlaneseq
        %v1953 = vshrl.u32 %v1952, 7
        %v1954 = vsub.s32 %v1951, %v1953
        %v1955 = vrot.slane %v1939, %v1954
        %v1957 = vunpack.c.l.s4 1966171168
        %v1958 = vunpack.c.0.s8 %v1957
        %v1959 = vlaneseq
        %v1960 = vshrl.u32 %v1959, 7
        %v1961 = vsub.s32 %v1958, %v1960
        %v1962 = vrot.slane %v1940, %v1961
        %v1964 = vunpack.c.l.s4 1966171168
        %v1965 = vunpack.c.0.s8 %v1964
        %v1966 = vlaneseq
        %v1967 = vshrl.u32 %v1966, 7
        %v1968 = vsub.s32 %v1965, %v1967
        %v1969 = vrot.slane %v1941, %v1968
        %v1970 = vcombine.low %v1948, %v1955
        %v1971 = vcombine.low %v1962, %v1969
        %v1973 = vunpack.c.l.s4 1966171168
        %v1974 = vunpack.c.0.s8 %v1973
        %v1975 = vlaneseq
        %v1976 = vshrl.u32 %v1975, 7
        %v1977 = vsub.s32 %v1974, %v1976
        %v1978 = vrot.slane %v1970, %v1977
        %v1980 = vunpack.c.l.s4 1966171168
        %v1981 = vunpack.c.0.s8 %v1980
        %v1982 = vlaneseq
        %v1983 = vshrl.u32 %v1982, 7
        %v1984 = vsub.s32 %v1981, %v1983
        %v1985 = vrot.slane %v1971, %v1984
        %v1986 = vcombine.low %v1978, %v1985
        %v1987 = vcombine.low %v1389, %v1403
        %v1988 = vcombine.low %v1405, %v1407
        %v1989 = vcombine.low %v1421, %v1445
        %v1990 = vcombine.low %v1459, %v1467
        %v1992 = vunpack.c.l.s4 1966171168
        %v1993 = vunpack.c.0.s8 %v1992
        %v1994 = vlaneseq
        %v1995 = vshrl.u32 %v1994, 7
        %v1996 = vsub.s32 %v1993, %v1995
        %v1997 = vrot.slane %v1987, %v1996
        %v1999 = vunpack.c.l.s4 1966171168
        %v2000 = vunpack.c.0.s8 %v1999
        %v2001 = vlaneseq
        %v2002 = vshrl.u32 %v2001, 7
        %v2003 = vsub.s32 %v2000, %v2002
        %v2004 = vrot.slane %v1988, %v2003
        %v2006 = vunpack.c.l.s4 1966171168
        %v2007 = vunpack.c.0.s8 %v2006
        %v2008 = vlaneseq
        %v2009 = vshrl.u32 %v2008, 7
        %v2010 = vsub.s32 %v2007, %v2009
        %v2011 = vrot.slane %v1989, %v2010
        %v2013 = vunpack.c.l.s4 1966171168
        %v2014 = vunpack.c.0.s8 %v2013
        %v2015 = vlaneseq
        %v2016 = vshrl.u32 %v2015, 7
        %v2017 = vsub.s32 %v2014, %v2016
        %v2018 = vrot.slane %v1990, %v2017
        %v2019 = vcombine.low %v1997, %v2004
        %v2020 = vcombine.low %v2011, %v2018
        %v2022 = vunpack.c.l.s4 1966171168
        %v2023 = vunpack.c.0.s8 %v2022
        %v2024 = vlaneseq
        %v2025 = vshrl.u32 %v2024, 7
        %v2026 = vsub.s32 %v2023, %v2025
        %v2027 = vrot.slane %v2019, %v2026
        %v2029 = vunpack.c.l.s4 1966171168
        %v2030 = vunpack.c.0.s8 %v2029
        %v2031 = vlaneseq
        %v2032 = vshrl.u32 %v2031, 7
        %v2033 = vsub.s32 %v2030, %v2032
        %v2034 = vrot.slane %v2020, %v2033
        %v2035 = vcombine.low %v2027, %v2034
        %v2036 = vcombine.low %v1469, %v1452
        %v2037 = vcombine.low %v1466, %v1468
        %v2038 = vcombine.low %v1470, %v1484
        %v2039 = vcombine.low %v1508, %v1522
        %v2041 = vunpack.c.l.s4 1966171168
        %v2042 = vunpack.c.0.s8 %v2041
        %v2043 = vlaneseq
        %v2044 = vshrl.u32 %v2043, 7
        %v2045 = vsub.s32 %v2042, %v2044
        %v2046 = vrot.slane %v2036, %v2045
        %v2048 = vunpack.c.l.s4 1966171168
        %v2049 = vunpack.c.0.s8 %v2048
        %v2050 = vlaneseq
        %v2051 = vshrl.u32 %v2050, 7
        %v2052 = vsub.s32 %v2049, %v2051
        %v2053 = vrot.slane %v2037, %v2052
        %v2055 = vunpack.c.l.s4 1966171168
        %v2056 = vunpack.c.0.s8 %v2055
        %v2057 = vlaneseq
        %v2058 = vshrl.u32 %v2057, 7
        %v2059 = vsub.s32 %v2056, %v2058
        %v2060 = vrot.slane %v2038, %v2059
        %v2062 = vunpack.c.l.s4 1966171168
        %v2063 = vunpack.c.0.s8 %v2062
        %v2064 = vlaneseq
        %v2065 = vshrl.u32 %v2064, 7
        %v2066 = vsub.s32 %v2063, %v2065
        %v2067 = vrot.slane %v2039, %v2066
        %v2068 = vcombine.low %v2046, %v2053
        %v2069 = vcombine.low %v2060, %v2067
        %v2071 = vunpack.c.l.s4 1966171168
        %v2072 = vunpack.c.0.s8 %v2071
        %v2073 = vlaneseq
        %v2074 = vshrl.u32 %v2073, 7
        %v2075 = vsub.s32 %v2072, %v2074
        %v2076 = vrot.slane %v2068, %v2075
        %v2078 = vunpack.c.l.s4 1966171168
        %v2079 = vunpack.c.0.s8 %v2078
        %v2080 = vlaneseq
        %v2081 = vshrl.u32 %v2080, 7
        %v2082 = vsub.s32 %v2079, %v2081
        %v2083 = vrot.slane %v2069, %v2082
        %v2084 = vcombine.low %v2076, %v2083
        %v2085 = vcombine.low %v1530, %v1532
        %v2086 = vcombine.low %v1515, %v1529
        %v2087 = vcombine.low %v1531, %v1533
        %v2088 = vcombine.low %v1547, %v1571
        %v2090 = vunpack.c.l.s4 1966171168
        %v2091 = vunpack.c.0.s8 %v2090
        %v2092 = vlaneseq
        %v2093 = vshrl.u32 %v2092, 7
        %v2094 = vsub.s32 %v2091, %v2093
        %v2095 = vrot.slane %v2085, %v2094
        %v2097 = vunpack.c.l.s4 1966171168
        %v2098 = vunpack.c.0.s8 %v2097
        %v2099 = vlaneseq
        %v2100 = vshrl.u32 %v2099, 7
        %v2101 = vsub.s32 %v2098, %v2100
        %v2102 = vrot.slane %v2086, %v2101
        %v2104 = vunpack.c.l.s4 1966171168
        %v2105 = vunpack.c.0.s8 %v2104
        %v2106 = vlaneseq
        %v2107 = vshrl.u32 %v2106, 7
        %v2108 = vsub.s32 %v2105, %v2107
        %v2109 = vrot.slane %v2087, %v2108
        %v2111 = vunpack.c.l.s4 1966171168
        %v2112 = vunpack.c.0.s8 %v2111
        %v2113 = vlaneseq
        %v2114 = vshrl.u32 %v2113, 7
        %v2115 = vsub.s32 %v2112, %v2114
        %v2116 = vrot.slane %v2088, %v2115
        %v2117 = vcombine.low %v2095, %v2102
        %v2118 = vcombine.low %v2109, %v2116
        %v2120 = vunpack.c.l.s4 1966171168
        %v2121 = vunpack.c.0.s8 %v2120
        %v2122 = vlaneseq
        %v2123 = vshrl.u32 %v2122, 7
        %v2124 = vsub.s32 %v2121, %v2123
        %v2125 = vrot.slane %v2117, %v2124
        %v2127 = vunpack.c.l.s4 1966171168
        %v2128 = vunpack.c.0.s8 %v2127
        %v2129 = vlaneseq
        %v2130 = vshrl.u32 %v2129, 7
        %v2131 = vsub.s32 %v2128, %v2130
        %v2132 = vrot.slane %v2118, %v2131
        %v2133 = vcombine.low %v2125, %v2132
        %v2134 = vcombine.low %v1585, %v1593
        %v2135 = vcombine.low %v1595, %v1578
        %v2136 = vcombine.low %v1592, %v1594
        %v2137 = vcombine.low %v1596, %v1610
        %v2139 = vunpack.c.l.s4 1966171168
        %v2140 = vunpack.c.0.s8 %v2139
        %v2141 = vlaneseq
        %v2142 = vshrl.u32 %v2141, 7
        %v2143 = vsub.s32 %v2140, %v2142
        %v2144 = vrot.slane %v2134, %v2143
        %v2146 = vunpack.c.l.s4 1966171168
        %v2147 = vunpack.c.0.s8 %v2146
        %v2148 = vlaneseq
        %v2149 = vshrl.u32 %v2148, 7
        %v2150 = vsub.s32 %v2147, %v2149
        %v2151 = vrot.slane %v2135, %v2150
        %v2153 = vunpack.c.l.s4 1966171168
        %v2154 = vunpack.c.0.s8 %v2153
        %v2155 = vlaneseq
        %v2156 = vshrl.u32 %v2155, 7
        %v2157 = vsub.s32 %v2154, %v2156
        %v2158 = vrot.slane %v2136, %v2157
        %v2160 = vunpack.c.l.s4 1966171168
        %v2161 = vunpack.c.0.s8 %v2160
        %v2162 = vlaneseq
        %v2163 = vshrl.u32 %v2162, 7
        %v2164 = vsub.s32 %v2161, %v2163
        %v2165 = vrot.slane %v2137, %v2164
        %v2166 = vcombine.low %v2144, %v2151
        %v2167 = vcombine.low %v2158, %v2165
        %v2169 = vunpack.c.l.s4 1966171168
        %v2170 = vunpack.c.0.s8 %v2169
        %v2171 = vlaneseq
        %v2172 = vshrl.u32 %v2171, 7
        %v2173 = vsub.s32 %v2170, %v2172
        %v2174 = vrot.slane %v2166, %v2173
        %v2176 = vunpack.c.l.s4 1966171168
        %v2177 = vunpack.c.0.s8 %v2176
        %v2178 = vlaneseq
        %v2179 = vshrl.u32 %v2178, 7
        %v2180 = vsub.s32 %v2177, %v2179
        %v2181 = vrot.slane %v2167, %v2180
        %v2182 = vcombine.low %v2174, %v2181
        %v2183 = vcombine.low %v1634, %v1648
        %v2184 = vcombine.low %v1656, %v1658
        %v2185 = vcombine.low %v1641, %v1655
        %v2186 = vcombine.low %v1657, %v1659
        %v2188 = vunpack.c.l.s4 1966171168
        %v2189 = vunpack.c.0.s8 %v2188
        %v2190 = vlaneseq
        %v2191 = vshrl.u32 %v2190, 7
        %v2192 = vsub.s32 %v2189, %v2191
        %v2193 = vrot.slane %v2183, %v2192
        %v2195 = vunpack.c.l.s4 1966171168
        %v2196 = vunpack.c.0.s8 %v2195
        %v2197 = vlaneseq
        %v2198 = vshrl.u32 %v2197, 7
        %v2199 = vsub.s32 %v2196, %v2198
        %v2200 = vrot.slane %v2184, %v2199
        %v2202 = vunpack.c.l.s4 1966171168
        %v2203 = vunpack.c.0.s8 %v2202
        %v2204 = vlaneseq
        %v2205 = vshrl.u32 %v2204, 7
        %v2206 = vsub.s32 %v2203, %v2205
        %v2207 = vrot.slane %v2185, %v2206
        %v2209 = vunpack.c.l.s4 1966171168
        %v2210 = vunpack.c.0.s8 %v2209
        %v2211 = vlaneseq
        %v2212 = vshrl.u32 %v2211, 7
        %v2213 = vsub.s32 %v2210, %v2212
        %v2214 = vrot.slane %v2186, %v2213
        %v2215 = vcombine.low %v2193, %v2200
        %v2216 = vcombine.low %v2207, %v2214
        %v2218 = vunpack.c.l.s4 1966171168
        %v2219 = vunpack.c.0.s8 %v2218
        %v2220 = vlaneseq
        %v2221 = vshrl.u32 %v2220, 7
        %v2222 = vsub.s32 %v2219, %v2221
        %v2223 = vrot.slane %v2215, %v2222
        %v2225 = vunpack.c.l.s4 1966171168
        %v2226 = vunpack.c.0.s8 %v2225
        %v2227 = vlaneseq
        %v2228 = vshrl.u32 %v2227, 7
        %v2229 = vsub.s32 %v2226, %v2228
        %v2230 = vrot.slane %v2216, %v2229
        %v2231 = vcombine.low %v2223, %v2230
        %v2232 = vcombine.low %v1673, %v1697
        %v2233 = vcombine.low %v1711, %v1719
        %v2234 = vcombine.low %v1721, %v1704
        %v2235 = vcombine.low %v1718, %v1720
        %v2237 = vunpack.c.l.s4 1966171168
        %v2238 = vunpack.c.0.s8 %v2237
        %v2239 = vlaneseq
        %v2240 = vshrl.u32 %v2239, 7
        %v2241 = vsub.s32 %v2238, %v2240
        %v2242 = vrot.slane %v2232, %v2241
        %v2244 = vunpack.c.l.s4 1966171168
        %v2245 = vunpack.c.0.s8 %v2244
        %v2246 = vlaneseq
        %v2247 = vshrl.u32 %v2246, 7
        %v2248 = vsub.s32 %v2245, %v2247
        %v2249 = vrot.slane %v2233, %v2248
        %v2251 = vunpack.c.l.s4 1966171168
        %v2252 = vunpack.c.0.s8 %v2251
        %v2253 = vlaneseq
        %v2254 = vshrl.u32 %v2253, 7
        %v2255 = vsub.s32 %v2252, %v2254
        %v2256 = vrot.slane %v2234, %v2255
        %v2258 = vunpack.c.l.s4 1966171168
        %v2259 = vunpack.c.0.s8 %v2258
        %v2260 = vlaneseq
        %v2261 = vshrl.u32 %v2260, 7
        %v2262 = vsub.s32 %v2259, %v2261
        %v2263 = vrot.slane %v2235, %v2262
        %v2264 = vcombine.low %v2242, %v2249
        %v2265 = vcombine.low %v2256, %v2263
        %v2267 = vunpack.c.l.s4 1966171168
        %v2268 = vunpack.c.0.s8 %v2267
        %v2269 = vlaneseq
        %v2270 = vshrl.u32 %v2269, 7
        %v2271 = vsub.s32 %v2268, %v2270
        %v2272 = vrot.slane %v2264, %v2271
        %v2274 = vunpack.c.l.s4 1966171168
        %v2275 = vunpack.c.0.s8 %v2274
        %v2276 = vlaneseq
        %v2277 = vshrl.u32 %v2276, 7
        %v2278 = vsub.s32 %v2275, %v2277
        %v2279 = vrot.slane %v2265, %v2278
        %v2280 = vcombine.low %v2272, %v2279
        %v2281 = vcombine.low %v1722, %v1736
        %v2283 = vunpack.c.l.s4 1966171168
        %v2284 = vunpack.c.0.s8 %v2283
        %v2285 = vlaneseq
        %v2286 = vshrl.u32 %v2285, 7
        %v2287 = vsub.s32 %v2284, %v2286
        %v2288 = vrot.slane %v2281, %v2287
        %v2290 = vunpack.c.l.s4 1966171168
        %v2291 = vunpack.c.0.s8 %v2290
        %v2292 = vlaneseq
        %v2293 = vshrl.u32 %v2292, 7
        %v2294 = vsub.s32 %v2291, %v2293
        %v2295 = vrot.slane %v2288, %v2294
        %v2301 = vunpack.c.l.b16 %v1737
        %v2302 = vunpack.c.h.b16 %v1737
        %v2303 = vunpack.c.l.b16 %v1738
        %v2304 = vunpack.c.h.b16 %v1738
        %v2305 = vunpack.c.l.b16 %v1739
        %v2306 = vunpack.c.h.b16 %v1739
        %v2307 = vunpack.c.l.b16 %v1740
        %v2308 = vunpack.c.h.b16 %v1740
        %v2309 = vunpack.c.l.b16 %v1741
        %v2310 = vpack.c.b16 %v2301, %v2301
        %v2311 = vpack.c.b16 %v2302, %v2302
        %v2312 = vpack.c.b16 %v2303, %v2303
        %v2313 = vpack.c.b16 %v2304, %v2304
        %v2314 = vpack.c.b16 %v2305, %v2305
        %v2315 = vpack.c.b16 %v2306, %v2306
        %v2316 = vpack.c.b16 %v2307, %v2307
        %v2317 = vpack.c.b16 %v2308, %v2308
        %v2318 = vpack.c.b16 %v2309, %v2309
        %vm2319 = vcmask 64512
        %v2321 = vsel %vm2319, %v1790, 0
        %v2324 = vsel %vm2319, %v1839, 0
        %v2327 = vsel %vm2319, %v1888, 0
        %v2330 = vsel %vm2319, %v1937, 0
        %v2333 = vsel %vm2319, %v1986, 0
        %v2336 = vsel %vm2319, %v2035, 0
        %v2339 = vsel %vm2319, %v2084, 0
        %v2342 = vsel %vm2319, %v2133, 0
        %v2345 = vsel %vm2319, %v2182, 0
        %v2348 = vsel %vm2319, %v2231, 0
        %v2351 = vsel %vm2319, %v2280, 0
        %v2354 = vsel %vm2319, %v2295, 0
        %vm2356 = vcmask 1043456
        %v2358 = vsel %vm2356, %v2310, 0
        %v2361 = vsel %vm2356, %v2311, 0
        %v2364 = vsel %vm2356, %v2312, 0
        %v2367 = vsel %vm2356, %v2313, 0
        %v2370 = vsel %vm2356, %v2314, 0
        %v2373 = vsel %vm2356, %v2315, 0
        %v2376 = vsel %vm2356, %v2316, 0
        %v2379 = vsel %vm2356, %v2317, 0
        %v2382 = vsel %vm2356, %v2318, 0
        %2384 = vmatprep.subr.bf16.mxu0 %v2361
        %2385 = vmatpush1.bf16.msra.mxu0 %v2358
        %2386 = vmatprep.subr.bf16.mxu0 0
        %2387 = vmatpush1.bf16.msra.mxu0 0
        %2388 = vmatprep.subr.bf16.mxu0 0
        %2389 = vmatpush1.bf16.msra.mxu0 0
        %2390 = vmatprep.subr.bf16.mxu0 0
        %2391 = vmatpush1.bf16.msra.mxu0 0
        %2392 = vmatprep.subr.bf16.mxu0 0
        %2393 = vmatpush1.bf16.msra.mxu0 0
        %2394 = vmatprep.subr.bf16.mxu0 0
        %2395 = vmatpush1.bf16.msra.mxu0 0
        %2396 = vmatprep.subr.bf16.mxu0 0
        %2397 = vmatpush1.bf16.msra.mxu0 0
        %2398 = vmatprep.subr.bf16.mxu0 0
        %2399 = vmatpush1.bf16.msra.mxu0 0
        %2400 = vmatprep.subr.bf16.mxu0 0
        %2401 = vmatpush1.bf16.msra.mxu0 0
        %2402 = vmatprep.subr.bf16.mxu0 0
        %2403 = vmatpush1.bf16.msra.mxu0 0
        %2404 = vmatprep.subr.bf16.mxu0 0
        %2405 = vmatpush1.bf16.msra.mxu0 0
        %2406 = vmatprep.subr.bf16.mxu0 0
        %2407 = vmatpush1.bf16.msra.mxu0 0
        %2408 = vmatprep.subr.bf16.mxu0 0
        %2409 = vmatpush1.bf16.msra.mxu0 0
        %2410 = vmatprep.subr.bf16.mxu0 0
        %2411 = vmatpush1.bf16.msra.mxu0 0
        %2412 = vmatprep.subr.bf16.mxu0 0
        %2413 = vmatpush1.bf16.msra.mxu0 0
        %2414 = vmatprep.subr.bf16.mxu0 0
        %2415 = vmatpush1.bf16.msra.mxu0 0
        %2416 = vmatprep.mubr.bf16.mxu0 0
        %2417 = vmatmul.mubr.bf16.gmra.mrb[0].mxu0 %v2321
        %v2418 = vpop.f32.mrb[0].mxu0
        %v2419 = vadd.f32 0.0, %v2418
        %v2420 = vpop.f32.mrb[0].mxu0
        %v2421 = vadd.f32 0.0, %v2420
        %v2422 = vpop.f32.mrb[0].mxu0
        %v2423 = vadd.f32 0.0, %v2422
        %v2424 = vpop.f32.mrb[0].mxu0
        %v2425 = vadd.f32 0.0, %v2424
        %2426 = vmatprep.mubr.bf16.mxu0 0
        %2427 = vmatmul.mubr.bf16.gmra.mrb[0].mxu0 %v2324
        %v2428 = vpop.f32.mrb[0].mxu0
        %v2429 = vadd.f32 0.0, %v2428
        %v2430 = vpop.f32.mrb[0].mxu0
        %v2431 = vadd.f32 0.0, %v2430
        %v2432 = vpop.f32.mrb[0].mxu0
        %v2433 = vadd.f32 0.0, %v2432
        %v2434 = vpop.f32.mrb[0].mxu0
        %v2435 = vadd.f32 0.0, %v2434
        %2436 = vmatprep.mubr.bf16.mxu0 0
        %2437 = vmatmul.mubr.bf16.gmra.mrb[0].mxu0 %v2327
        %v2438 = vpop.f32.mrb[0].mxu0
        %v2439 = vadd.f32 0.0, %v2438
        %v2440 = vpop.f32.mrb[0].mxu0
        %v2441 = vadd.f32 0.0, %v2440
        %v2442 = vpop.f32.mrb[0].mxu0
        %v2443 = vadd.f32 0.0, %v2442
        %v2444 = vpop.f32.mrb[0].mxu0
        %v2445 = vadd.f32 0.0, %v2444
        %2446 = vmatprep.mubr.bf16.mxu0 0
        %2447 = vmatmul.mubr.bf16.gmra.mrb[0].mxu0 %v2330
        %v2448 = vpop.f32.mrb[0].mxu0
        %v2449 = vadd.f32 0.0, %v2448
        %v2450 = vpop.f32.mrb[0].mxu0
        %v2451 = vadd.f32 0.0, %v2450
        %v2452 = vpop.f32.mrb[0].mxu0
        %v2453 = vadd.f32 0.0, %v2452
        %v2454 = vpop.f32.mrb[0].mxu0
        %v2455 = vadd.f32 0.0, %v2454
        %2456 = vmatprep.mubr.bf16.mxu0 0
        %2457 = vmatmul.mubr.bf16.gmra.mrb[0].mxu0 %v2333
        %v2458 = vpop.f32.mrb[0].mxu0
        %v2459 = vadd.f32 0.0, %v2458
        %v2460 = vpop.f32.mrb[0].mxu0
        %v2461 = vadd.f32 0.0, %v2460
        %v2462 = vpop.f32.mrb[0].mxu0
        %v2463 = vadd.f32 0.0, %v2462
        %v2464 = vpop.f32.mrb[0].mxu0
        %v2465 = vadd.f32 0.0, %v2464
        %2466 = vmatprep.mubr.bf16.mxu0 0
        %2467 = vmatmul.mubr.bf16.gmra.mrb[0].mxu0 %v2336
        %v2468 = vpop.f32.mrb[0].mxu0
        %v2469 = vadd.f32 0.0, %v2468
        %v2470 = vpop.f32.mrb[0].mxu0
        %v2471 = vadd.f32 0.0, %v2470
        %v2472 = vpop.f32.mrb[0].mxu0
        %v2473 = vadd.f32 0.0, %v2472
        %v2474 = vpop.f32.mrb[0].mxu0
        %v2475 = vadd.f32 0.0, %v2474
        %2476 = vmatprep.mubr.bf16.mxu0 0
        %2477 = vmatmul.mubr.bf16.gmra.mrb[0].mxu0 %v2339
        %v2478 = vpop.f32.mrb[0].mxu0
        %v2479 = vadd.f32 0.0, %v2478
        %v2480 = vpop.f32.mrb[0].mxu0
        %v2481 = vadd.f32 0.0, %v2480
        %v2482 = vpop.f32.mrb[0].mxu0
        %v2483 = vadd.f32 0.0, %v2482
        %v2484 = vpop.f32.mrb[0].mxu0
        %v2485 = vadd.f32 0.0, %v2484
        %2486 = vmatprep.mubr.bf16.mxu0 0
        %2487 = vmatmul.mubr.bf16.gmra.mrb[0].mxu0 %v2342
        %v2488 = vpop.f32.mrb[0].mxu0
        %v2489 = vadd.f32 0.0, %v2488
        %v2490 = vpop.f32.mrb[0].mxu0
        %v2491 = vadd.f32 0.0, %v2490
        %v2492 = vpop.f32.mrb[0].mxu0
        %v2493 = vadd.f32 0.0, %v2492
        %v2494 = vpop.f32.mrb[0].mxu0
        %v2495 = vadd.f32 0.0, %v2494
        %2496 = vmatprep.mubr.bf16.mxu0 0
        %2497 = vmatmul.mubr.bf16.gmra.mrb[0].mxu0 %v2345
        %v2498 = vpop.f32.mrb[0].mxu0
        %v2499 = vadd.f32 0.0, %v2498
        %v2500 = vpop.f32.mrb[0].mxu0
        %v2501 = vadd.f32 0.0, %v2500
        %v2502 = vpop.f32.mrb[0].mxu0
        %v2503 = vadd.f32 0.0, %v2502
        %v2504 = vpop.f32.mrb[0].mxu0
        %v2505 = vadd.f32 0.0, %v2504
        %2506 = vmatprep.mubr.bf16.mxu0 0
        %2507 = vmatmul.mubr.bf16.gmra.mrb[0].mxu0 %v2348
        %v2508 = vpop.f32.mrb[0].mxu0
        %v2509 = vadd.f32 0.0, %v2508
        %v2510 = vpop.f32.mrb[0].mxu0
        %v2511 = vadd.f32 0.0, %v2510
        %v2512 = vpop.f32.mrb[0].mxu0
        %v2513 = vadd.f32 0.0, %v2512
        %v2514 = vpop.f32.mrb[0].mxu0
        %v2515 = vadd.f32 0.0, %v2514
        %2516 = vmatprep.mubr.bf16.mxu0 0
        %2517 = vmatmul.mubr.bf16.gmra.mrb[0].mxu0 %v2351
        %v2518 = vpop.f32.mrb[0].mxu0
        %v2519 = vpop.f32.mrb[0].mxu0
        %v2520 = vpop.f32.mrb[0].mxu0
        %v2521 = vpop.f32.mrb[0].mxu0
        %2522 = vmatprep.mubr.bf16.mxu0 0
        %2523 = vmatmul.mubr.bf16.gmra.mrb[0].mxu0 %v2354
        %v2524 = vpop.f32.mrb[0].mxu0
        %v2525 = vpop.f32.mrb[0].mxu0
        %v2526 = vpop.f32.mrb[0].mxu0
        %v2527 = vpop.f32.mrb[0].mxu0
        %2528 = vdwg.mxu0
        %2529 = vmatprep.subr.bf16.mxu0 %v2367
        %2530 = vmatpush1.bf16.msra.mxu0 %v2364
        %2531 = vmatprep.subr.bf16.mxu0 0
        %2532 = vmatpush1.bf16.msra.mxu0 0
        %2533 = vmatprep.subr.bf16.mxu0 0
        %2534 = vmatpush1.bf16.msra.mxu0 0
        %2535 = vmatprep.subr.bf16.mxu0 0
        %2536 = vmatpush1.bf16.msra.mxu0 0
        %2537 = vmatprep.subr.bf16.mxu0 0
        %2538 = vmatpush1.bf16.msra.mxu0 0
        %2539 = vmatprep.subr.bf16.mxu0 0
        %2540 = vmatpush1.bf16.msra.mxu0 0
        %2541 = vmatprep.subr.bf16.mxu0 0
        %2542 = vmatpush1.bf16.msra.mxu0 0
        %2543 = vmatprep.subr.bf16.mxu0 0
        %2544 = vmatpush1.bf16.msra.mxu0 0
        %2545 = vmatprep.subr.bf16.mxu0 0
        %2546 = vmatpush1.bf16.msra.mxu0 0
        %2547 = vmatprep.subr.bf16.mxu0 0
        %2548 = vmatpush1.bf16.msra.mxu0 0
        %2549 = vmatprep.subr.bf16.mxu0 0
        %2550 = vmatpush1.bf16.msra.mxu0 0
        %2551 = vmatprep.subr.bf16.mxu0 0
        %2552 = vmatpush1.bf16.msra.mxu0 0
        %2553 = vmatprep.subr.bf16.mxu0 0
        %2554 = vmatpush1.bf16.msra.mxu0 0
        %2555 = vmatprep.subr.bf16.mxu0 0
        %2556 = vmatpush1.bf16.msra.mxu0 0
        %2557 = vmatprep.subr.bf16.mxu0 0
        %2558 = vmatpush1.bf16.msra.mxu0 0
        %2559 = vmatprep.subr.bf16.mxu0 0
        %2560 = vmatpush1.bf16.msra.mxu0 0
        %2561 = vmatprep.mubr.bf16.mxu0 0
        %2562 = vmatmul.mubr.bf16.gmra.mrb[0].mxu0 %v2321
        %v2563 = vpop.f32.mrb[0].mxu0
        %v2564 = vadd.f32 0.0, %v2563
        %v2565 = vpop.f32.mrb[0].mxu0
        %v2566 = vadd.f32 0.0, %v2565
        %v2567 = vpop.f32.mrb[0].mxu0
        %v2568 = vadd.f32 0.0, %v2567
        %v2569 = vpop.f32.mrb[0].mxu0
        %v2570 = vadd.f32 0.0, %v2569
        %2571 = vmatprep.mubr.bf16.mxu0 0
        %2572 = vmatmul.mubr.bf16.gmra.mrb[0].mxu0 %v2324
        %v2573 = vpop.f32.mrb[0].mxu0
        %v2574 = vadd.f32 0.0, %v2573
        %v2575 = vpop.f32.mrb[0].mxu0
        %v2576 = vadd.f32 0.0, %v2575
        %v2577 = vpop.f32.mrb[0].mxu0
        %v2578 = vadd.f32 0.0, %v2577
        %v2579 = vpop.f32.mrb[0].mxu0
        %v2580 = vadd.f32 0.0, %v2579
        %2581 = vmatprep.mubr.bf16.mxu0 0
        %2582 = vmatmul.mubr.bf16.gmra.mrb[0].mxu0 %v2327
        %v2583 = vpop.f32.mrb[0].mxu0
        %v2584 = vadd.f32 0.0, %v2583
        %v2585 = vpop.f32.mrb[0].mxu0
        %v2586 = vadd.f32 0.0, %v2585
        %v2587 = vpop.f32.mrb[0].mxu0
        %v2588 = vadd.f32 0.0, %v2587
        %v2589 = vpop.f32.mrb[0].mxu0
        %v2590 = vadd.f32 0.0, %v2589
        %2591 = vmatprep.mubr.bf16.mxu0 0
        %2592 = vmatmul.mubr.bf16.gmra.mrb[0].mxu0 %v2330
        %v2593 = vpop.f32.mrb[0].mxu0
        %v2594 = vadd.f32 0.0, %v2593
        %v2595 = vpop.f32.mrb[0].mxu0
        %v2596 = vadd.f32 0.0, %v2595
        %v2597 = vpop.f32.mrb[0].mxu0
        %v2598 = vadd.f32 0.0, %v2597
        %v2599 = vpop.f32.mrb[0].mxu0
        %v2600 = vadd.f32 0.0, %v2599
        %2601 = vmatprep.mubr.bf16.mxu0 0
        %2602 = vmatmul.mubr.bf16.gmra.mrb[0].mxu0 %v2333
        %v2603 = vpop.f32.mrb[0].mxu0
        %v2604 = vadd.f32 0.0, %v2603
        %v2605 = vpop.f32.mrb[0].mxu0
        %v2606 = vadd.f32 0.0, %v2605
        %v2607 = vpop.f32.mrb[0].mxu0
        %v2608 = vadd.f32 0.0, %v2607
        %v2609 = vpop.f32.mrb[0].mxu0
        %v2610 = vadd.f32 0.0, %v2609
        %2611 = vmatprep.mubr.bf16.mxu0 0
        %2612 = vmatmul.mubr.bf16.gmra.mrb[0].mxu0 %v2336
        %v2613 = vpop.f32.mrb[0].mxu0
        %v2614 = vadd.f32 0.0, %v2613
        %v2615 = vpop.f32.mrb[0].mxu0
        %v2616 = vadd.f32 0.0, %v2615
        %v2617 = vpop.f32.mrb[0].mxu0
        %v2618 = vadd.f32 0.0, %v2617
        %v2619 = vpop.f32.mrb[0].mxu0
        %v2620 = vadd.f32 0.0, %v2619
        %2621 = vmatprep.mubr.bf16.mxu0 0
        %2622 = vmatmul.mubr.bf16.gmra.mrb[0].mxu0 %v2339
        %v2623 = vpop.f32.mrb[0].mxu0
        %v2624 = vadd.f32 0.0, %v2623
        %v2625 = vpop.f32.mrb[0].mxu0
        %v2626 = vadd.f32 0.0, %v2625
        %v2627 = vpop.f32.mrb[0].mxu0
        %v2628 = vadd.f32 0.0, %v2627
        %v2629 = vpop.f32.mrb[0].mxu0
        %v2630 = vadd.f32 0.0, %v2629
        %2631 = vmatprep.mubr.bf16.mxu0 0
        %2632 = vmatmul.mubr.bf16.gmra.mrb[0].mxu0 %v2342
        %v2633 = vpop.f32.mrb[0].mxu0
        %v2634 = vadd.f32 0.0, %v2633
        %v2635 = vpop.f32.mrb[0].mxu0
        %v2636 = vadd.f32 0.0, %v2635
        %v2637 = vpop.f32.mrb[0].mxu0
        %v2638 = vadd.f32 0.0, %v2637
        %v2639 = vpop.f32.mrb[0].mxu0
        %v2640 = vadd.f32 0.0, %v2639
        %2641 = vmatprep.mubr.bf16.mxu0 0
        %2642 = vmatmul.mubr.bf16.gmra.mrb[0].mxu0 %v2345
        %v2643 = vpop.f32.mrb[0].mxu0
        %v2644 = vadd.f32 0.0, %v2643
        %v2645 = vpop.f32.mrb[0].mxu0
        %v2646 = vadd.f32 0.0, %v2645
        %v2647 = vpop.f32.mrb[0].mxu0
        %v2648 = vadd.f32 0.0, %v2647
        %v2649 = vpop.f32.mrb[0].mxu0
        %v2650 = vadd.f32 0.0, %v2649
        %2651 = vmatprep.mubr.bf16.mxu0 0
        %2652 = vmatmul.mubr.bf16.gmra.mrb[0].mxu0 %v2348
        %v2653 = vpop.f32.mrb[0].mxu0
        %v2654 = vadd.f32 0.0, %v2653
        %v2655 = vpop.f32.mrb[0].mxu0
        %v2656 = vadd.f32 0.0, %v2655
        %v2657 = vpop.f32.mrb[0].mxu0
        %v2658 = vadd.f32 0.0, %v2657
        %v2659 = vpop.f32.mrb[0].mxu0
        %v2660 = vadd.f32 0.0, %v2659
        %2661 = vmatprep.mubr.bf16.mxu0 0
        %2662 = vmatmul.mubr.bf16.gmra.mrb[0].mxu0 %v2351
        %v2663 = vpop.f32.mrb[0].mxu0
        %v2664 = vpop.f32.mrb[0].mxu0
        %v2665 = vpop.f32.mrb[0].mxu0
        %v2666 = vpop.f32.mrb[0].mxu0
        %2667 = vmatprep.mubr.bf16.mxu0 0
        %2668 = vmatmul.mubr.bf16.gmra.mrb[0].mxu0 %v2354
        %v2669 = vpop.f32.mrb[0].mxu0
        %v2670 = vpop.f32.mrb[0].mxu0
        %v2671 = vpop.f32.mrb[0].mxu0
        %v2672 = vpop.f32.mrb[0].mxu0
        %2673 = vdwg.mxu0
        %2674 = vmatprep.subr.bf16.mxu0 %v2373
        %2675 = vmatpush1.bf16.msra.mxu0 %v2370
        %2676 = vmatprep.subr.bf16.mxu0 0
        %2677 = vmatpush1.bf16.msra.mxu0 0
        %2678 = vmatprep.subr.bf16.mxu0 0
        %2679 = vmatpush1.bf16.msra.mxu0 0
        %2680 = vmatprep.subr.bf16.mxu0 0
        %2681 = vmatpush1.bf16.msra.mxu0 0
        %2682 = vmatprep.subr.bf16.mxu0 0
        %2683 = vmatpush1.bf16.msra.mxu0 0
        %2684 = vmatprep.subr.bf16.mxu0 0
        %2685 = vmatpush1.bf16.msra.mxu0 0
        %2686 = vmatprep.subr.bf16.mxu0 0
        %2687 = vmatpush1.bf16.msra.mxu0 0
        %2688 = vmatprep.subr.bf16.mxu0 0
        %2689 = vmatpush1.bf16.msra.mxu0 0
        %2690 = vmatprep.subr.bf16.mxu0 0
        %2691 = vmatpush1.bf16.msra.mxu0 0
        %2692 = vmatprep.subr.bf16.mxu0 0
        %2693 = vmatpush1.bf16.msra.mxu0 0
        %2694 = vmatprep.subr.bf16.mxu0 0
        %2695 = vmatpush1.bf16.msra.mxu0 0
        %2696 = vmatprep.subr.bf16.mxu0 0
        %2697 = vmatpush1.bf16.msra.mxu0 0
        %2698 = vmatprep.subr.bf16.mxu0 0
        %2699 = vmatpush1.bf16.msra.mxu0 0
        %2700 = vmatprep.subr.bf16.mxu0 0
        %2701 = vmatpush1.bf16.msra.mxu0 0
        %2702 = vmatprep.subr.bf16.mxu0 0
        %2703 = vmatpush1.bf16.msra.mxu0 0
        %2704 = vmatprep.subr.bf16.mxu0 0
        %2705 = vmatpush1.bf16.msra.mxu0 0
        %2706 = vmatprep.mubr.bf16.mxu0 0
        %2707 = vmatmul.mubr.bf16.gmra.mrb[0].mxu0 %v2321
        %v2708 = vpop.f32.mrb[0].mxu0
        %v2709 = vpop.f32.mrb[0].mxu0
        %v2710 = vpop.f32.mrb[0].mxu0
        %v2711 = vpop.f32.mrb[0].mxu0
        %2712 = vmatprep.mubr.bf16.mxu0 0
        %2713 = vmatmul.mubr.bf16.gmra.mrb[0].mxu0 %v2324
        %v2714 = vpop.f32.mrb[0].mxu0
        %v2715 = vadd.f32 0.0, %v2714
        %v2716 = vpop.f32.mrb[0].mxu0
        %v2717 = vadd.f32 0.0, %v2716
        %v2718 = vpop.f32.mrb[0].mxu0
        %v2719 = vadd.f32 0.0, %v2718
        %v2720 = vpop.f32.mrb[0].mxu0
        %v2721 = vadd.f32 0.0, %v2720
        %2722 = vmatprep.mubr.bf16.mxu0 0
        %2723 = vmatmul.mubr.bf16.gmra.mrb[0].mxu0 %v2327
        %v2724 = vpop.f32.mrb[0].mxu0
        %v2725 = vadd.f32 0.0, %v2724
        %v2726 = vpop.f32.mrb[0].mxu0
        %v2727 = vadd.f32 0.0, %v2726
        %v2728 = vpop.f32.mrb[0].mxu0
        %v2729 = vadd.f32 0.0, %v2728
        %v2730 = vpop.f32.mrb[0].mxu0
        %v2731 = vadd.f32 0.0, %v2730
        %2732 = vmatprep.mubr.bf16.mxu0 0
        %2733 = vmatmul.mubr.bf16.gmra.mrb[0].mxu0 %v2330
        %v2734 = vpop.f32.mrb[0].mxu0
        %v2735 = vadd.f32 0.0, %v2734
        %v2736 = vpop.f32.mrb[0].mxu0
        %v2737 = vadd.f32 0.0, %v2736
        %v2738 = vpop.f32.mrb[0].mxu0
        %v2739 = vadd.f32 0.0, %v2738
        %v2740 = vpop.f32.mrb[0].mxu0
        %v2741 = vadd.f32 0.0, %v2740
        %2742 = vmatprep.mubr.bf16.mxu0 0
        %2743 = vmatmul.mubr.bf16.gmra.mrb[0].mxu0 %v2333
        %v2744 = vpop.f32.mrb[0].mxu0
        %v2745 = vadd.f32 0.0, %v2744
        %v2746 = vpop.f32.mrb[0].mxu0
        %v2747 = vadd.f32 0.0, %v2746
        %v2748 = vpop.f32.mrb[0].mxu0
        %v2749 = vadd.f32 0.0, %v2748
        %v2750 = vpop.f32.mrb[0].mxu0
        %v2751 = vadd.f32 0.0, %v2750
        %2752 = vmatprep.mubr.bf16.mxu0 0
        %2753 = vmatmul.mubr.bf16.gmra.mrb[0].mxu0 %v2336
        %v2754 = vpop.f32.mrb[0].mxu0
        %v2755 = vadd.f32 0.0, %v2754
        %v2756 = vpop.f32.mrb[0].mxu0
        %v2757 = vadd.f32 0.0, %v2756
        %v2758 = vpop.f32.mrb[0].mxu0
        %v2759 = vadd.f32 0.0, %v2758
        %v2760 = vpop.f32.mrb[0].mxu0
        %v2761 = vadd.f32 0.0, %v2760
        %2762 = vmatprep.mubr.bf16.mxu0 0
        %2763 = vmatmul.mubr.bf16.gmra.mrb[0].mxu0 %v2339
        %v2764 = vpop.f32.mrb[0].mxu0
        %v2765 = vadd.f32 0.0, %v2764
        %v2766 = vpop.f32.mrb[0].mxu0
        %v2767 = vadd.f32 0.0, %v2766
        %v2768 = vpop.f32.mrb[0].mxu0
        %v2769 = vadd.f32 0.0, %v2768
        %v2770 = vpop.f32.mrb[0].mxu0
        %v2771 = vadd.f32 0.0, %v2770
        %2772 = vmatprep.mubr.bf16.mxu0 0
        %2773 = vmatmul.mubr.bf16.gmra.mrb[0].mxu0 %v2342
        %v2774 = vpop.f32.mrb[0].mxu0
        %v2775 = vadd.f32 0.0, %v2774
        %v2776 = vpop.f32.mrb[0].mxu0
        %v2777 = vadd.f32 0.0, %v2776
        %v2778 = vpop.f32.mrb[0].mxu0
        %v2779 = vadd.f32 0.0, %v2778
        %v2780 = vpop.f32.mrb[0].mxu0
        %v2781 = vadd.f32 0.0, %v2780
        %2782 = vmatprep.mubr.bf16.mxu0 0
        %2783 = vmatmul.mubr.bf16.gmra.mrb[0].mxu0 %v2345
        %v2784 = vpop.f32.mrb[0].mxu0
        %v2785 = vadd.f32 0.0, %v2784
        %v2786 = vpop.f32.mrb[0].mxu0
        %v2787 = vadd.f32 0.0, %v2786
        %v2788 = vpop.f32.mrb[0].mxu0
        %v2789 = vadd.f32 0.0, %v2788
        %v2790 = vpop.f32.mrb[0].mxu0
        %v2791 = vadd.f32 0.0, %v2790
        %2792 = vmatprep.mubr.bf16.mxu0 0
        %2793 = vmatmul.mubr.bf16.gmra.mrb[0].mxu0 %v2348
        %v2794 = vpop.f32.mrb[0].mxu0
        %v2795 = vadd.f32 0.0, %v2794
        %v2796 = vpop.f32.mrb[0].mxu0
        %v2797 = vadd.f32 0.0, %v2796
        %v2798 = vpop.f32.mrb[0].mxu0
        %v2799 = vadd.f32 0.0, %v2798
        %v2800 = vpop.f32.mrb[0].mxu0
        %v2801 = vadd.f32 0.0, %v2800
        %2802 = vmatprep.mubr.bf16.mxu0 0
        %2803 = vmatmul.mubr.bf16.gmra.mrb[0].mxu0 %v2351
        %v2804 = vpop.f32.mrb[0].mxu0
        %v2805 = vadd.f32 0.0, %v2804
        %v2806 = vpop.f32.mrb[0].mxu0
        %v2807 = vadd.f32 0.0, %v2806
        %v2808 = vpop.f32.mrb[0].mxu0
        %v2809 = vadd.f32 0.0, %v2808
        %v2810 = vpop.f32.mrb[0].mxu0
        %v2811 = vadd.f32 0.0, %v2810
        %2812 = vmatprep.mubr.bf16.mxu0 0
        %2813 = vmatmul.mubr.bf16.gmra.mrb[0].mxu0 %v2354
        %v2814 = vpop.f32.mrb[0].mxu0
        %v2815 = vadd.f32 0.0, %v2814
        %v2816 = vpop.f32.mrb[0].mxu0
        %v2817 = vadd.f32 0.0, %v2816
        %v2818 = vpop.f32.mrb[0].mxu0
        %v2819 = vpop.f32.mrb[0].mxu0
        %2820 = vdwg.mxu0
        %2821 = vmatprep.subr.bf16.mxu0 %v2379
        %2822 = vmatpush1.bf16.msra.mxu0 %v2376
        %2823 = vmatprep.subr.bf16.mxu0 0
        %2824 = vmatpush1.bf16.msra.mxu0 0
        %2825 = vmatprep.subr.bf16.mxu0 0
        %2826 = vmatpush1.bf16.msra.mxu0 0
        %2827 = vmatprep.subr.bf16.mxu0 0
        %2828 = vmatpush1.bf16.msra.mxu0 0
        %2829 = vmatprep.subr.bf16.mxu0 0
        %2830 = vmatpush1.bf16.msra.mxu0 0
        %2831 = vmatprep.subr.bf16.mxu0 0
        %2832 = vmatpush1.bf16.msra.mxu0 0
        %2833 = vmatprep.subr.bf16.mxu0 0
        %2834 = vmatpush1.bf16.msra.mxu0 0
        %2835 = vmatprep.subr.bf16.mxu0 0
        %2836 = vmatpush1.bf16.msra.mxu0 0
        %2837 = vmatprep.subr.bf16.mxu0 0
        %2838 = vmatpush1.bf16.msra.mxu0 0
        %2839 = vmatprep.subr.bf16.mxu0 0
        %2840 = vmatpush1.bf16.msra.mxu0 0
        %2841 = vmatprep.subr.bf16.mxu0 0
        %2842 = vmatpush1.bf16.msra.mxu0 0
        %2843 = vmatprep.subr.bf16.mxu0 0
        %2844 = vmatpush1.bf16.msra.mxu0 0
        %2845 = vmatprep.subr.bf16.mxu0 0
        %2846 = vmatpush1.bf16.msra.mxu0 0
        %2847 = vmatprep.subr.bf16.mxu0 0
        %2848 = vmatpush1.bf16.msra.mxu0 0
        %2849 = vmatprep.subr.bf16.mxu0 0
        %2850 = vmatpush1.bf16.msra.mxu0 0
        %2851 = vmatprep.subr.bf16.mxu0 0
        %2852 = vmatpush1.bf16.msra.mxu0 0
        %2853 = vmatprep.mubr.bf16.mxu0 0
        %2854 = vmatmul.mubr.bf16.gmra.mrb[0].mxu0 %v2321
        %v2855 = vpop.f32.mrb[0].mxu0
        %v2856 = vpop.f32.mrb[0].mxu0
        %v2857 = vpop.f32.mrb[0].mxu0
        %v2858 = vpop.f32.mrb[0].mxu0
        %2859 = vmatprep.mubr.bf16.mxu0 0
        %2860 = vmatmul.mubr.bf16.gmra.mrb[0].mxu0 %v2324
        %v2861 = vpop.f32.mrb[0].mxu0
        %v2862 = vadd.f32 0.0, %v2861
        %v2863 = vpop.f32.mrb[0].mxu0
        %v2864 = vadd.f32 0.0, %v2863
        %v2865 = vpop.f32.mrb[0].mxu0
        %v2866 = vadd.f32 0.0, %v2865
        %v2867 = vpop.f32.mrb[0].mxu0
        %v2868 = vadd.f32 0.0, %v2867
        %2869 = vmatprep.mubr.bf16.mxu0 0
        %2870 = vmatmul.mubr.bf16.gmra.mrb[0].mxu0 %v2327
        %v2871 = vpop.f32.mrb[0].mxu0
        %v2872 = vadd.f32 0.0, %v2871
        %v2873 = vpop.f32.mrb[0].mxu0
        %v2874 = vadd.f32 0.0, %v2873
        %v2875 = vpop.f32.mrb[0].mxu0
        %v2876 = vadd.f32 0.0, %v2875
        %v2877 = vpop.f32.mrb[0].mxu0
        %v2878 = vadd.f32 0.0, %v2877
        %2879 = vmatprep.mubr.bf16.mxu0 0
        %2880 = vmatmul.mubr.bf16.gmra.mrb[0].mxu0 %v2330
        %v2881 = vpop.f32.mrb[0].mxu0
        %v2882 = vadd.f32 0.0, %v2881
        %v2883 = vpop.f32.mrb[0].mxu0
        %v2884 = vadd.f32 0.0, %v2883
        %v2885 = vpop.f32.mrb[0].mxu0
        %v2886 = vadd.f32 0.0, %v2885
        %v2887 = vpop.f32.mrb[0].mxu0
        %v2888 = vadd.f32 0.0, %v2887
        %2889 = vmatprep.mubr.bf16.mxu0 0
        %2890 = vmatmul.mubr.bf16.gmra.mrb[0].mxu0 %v2333
        %v2891 = vpop.f32.mrb[0].mxu0
        %v2892 = vadd.f32 0.0, %v2891
        %v2893 = vpop.f32.mrb[0].mxu0
        %v2894 = vadd.f32 0.0, %v2893
        %v2895 = vpop.f32.mrb[0].mxu0
        %v2896 = vadd.f32 0.0, %v2895
        %v2897 = vpop.f32.mrb[0].mxu0
        %v2898 = vadd.f32 0.0, %v2897
        %2899 = vmatprep.mubr.bf16.mxu0 0
        %2900 = vmatmul.mubr.bf16.gmra.mrb[0].mxu0 %v2336
        %v2901 = vpop.f32.mrb[0].mxu0
        %v2902 = vadd.f32 0.0, %v2901
        %v2903 = vpop.f32.mrb[0].mxu0
        %v2904 = vadd.f32 0.0, %v2903
        %v2905 = vpop.f32.mrb[0].mxu0
        %v2906 = vadd.f32 0.0, %v2905
        %v2907 = vpop.f32.mrb[0].mxu0
        %v2908 = vadd.f32 0.0, %v2907
        %2909 = vmatprep.mubr.bf16.mxu0 0
        %2910 = vmatmul.mubr.bf16.gmra.mrb[0].mxu0 %v2339
        %v2911 = vpop.f32.mrb[0].mxu0
        %v2912 = vadd.f32 0.0, %v2911
        %v2913 = vpop.f32.mrb[0].mxu0
        %v2914 = vadd.f32 0.0, %v2913
        %v2915 = vpop.f32.mrb[0].mxu0
        %v2916 = vadd.f32 0.0, %v2915
        %v2917 = vpop.f32.mrb[0].mxu0
        %v2918 = vadd.f32 0.0, %v2917
        %2919 = vmatprep.mubr.bf16.mxu0 0
        %2920 = vmatmul.mubr.bf16.gmra.mrb[0].mxu0 %v2342
        %v2921 = vpop.f32.mrb[0].mxu0
        %v2922 = vadd.f32 0.0, %v2921
        %v2923 = vpop.f32.mrb[0].mxu0
        %v2924 = vadd.f32 0.0, %v2923
        %v2925 = vpop.f32.mrb[0].mxu0
        %v2926 = vadd.f32 0.0, %v2925
        %v2927 = vpop.f32.mrb[0].mxu0
        %v2928 = vadd.f32 0.0, %v2927
        %2929 = vmatprep.mubr.bf16.mxu0 0
        %2930 = vmatmul.mubr.bf16.gmra.mrb[0].mxu0 %v2345
        %v2931 = vpop.f32.mrb[0].mxu0
        %v2932 = vadd.f32 0.0, %v2931
        %v2933 = vpop.f32.mrb[0].mxu0
        %v2934 = vadd.f32 0.0, %v2933
        %v2935 = vpop.f32.mrb[0].mxu0
        %v2936 = vadd.f32 0.0, %v2935
        %v2937 = vpop.f32.mrb[0].mxu0
        %v2938 = vadd.f32 0.0, %v2937
        %2939 = vmatprep.mubr.bf16.mxu0 0
        %2940 = vmatmul.mubr.bf16.gmra.mrb[0].mxu0 %v2348
        %v2941 = vpop.f32.mrb[0].mxu0
        %v2942 = vadd.f32 0.0, %v2941
        %v2943 = vpop.f32.mrb[0].mxu0
        %v2944 = vadd.f32 0.0, %v2943
        %v2945 = vpop.f32.mrb[0].mxu0
        %v2946 = vadd.f32 0.0, %v2945
        %v2947 = vpop.f32.mrb[0].mxu0
        %v2948 = vadd.f32 0.0, %v2947
        %2949 = vmatprep.mubr.bf16.mxu0 0
        %2950 = vmatmul.mubr.bf16.gmra.mrb[0].mxu0 %v2351
        %v2951 = vpop.f32.mrb[0].mxu0
        %v2952 = vadd.f32 0.0, %v2951
        %v2953 = vpop.f32.mrb[0].mxu0
        %v2954 = vadd.f32 0.0, %v2953
        %v2955 = vpop.f32.mrb[0].mxu0
        %v2956 = vadd.f32 0.0, %v2955
        %v2957 = vpop.f32.mrb[0].mxu0
        %v2958 = vadd.f32 0.0, %v2957
        %2959 = vmatprep.mubr.bf16.mxu0 0
        %2960 = vmatmul.mubr.bf16.gmra.mrb[0].mxu0 %v2354
        %v2961 = vpop.f32.mrb[0].mxu0
        %v2962 = vadd.f32 0.0, %v2961
        %v2963 = vpop.f32.mrb[0].mxu0
        %v2964 = vadd.f32 0.0, %v2963
        %v2965 = vpop.f32.mrb[0].mxu0
        %v2966 = vpop.f32.mrb[0].mxu0
        %2967 = vdwg.mxu0
        %2968 = vmatprep.subr.bf16.mxu0 0
        %2969 = vmatpush1.bf16.msra.mxu0 %v2382
        %2970 = vmatprep.subr.bf16.mxu0 0
        %2971 = vmatpush1.bf16.msra.mxu0 0
        %2972 = vmatprep.subr.bf16.mxu0 0
        %2973 = vmatpush1.bf16.msra.mxu0 0
        %2974 = vmatprep.subr.bf16.mxu0 0
        %2975 = vmatpush1.bf16.msra.mxu0 0
        %2976 = vmatprep.subr.bf16.mxu0 0
        %2977 = vmatpush1.bf16.msra.mxu0 0
        %2978 = vmatprep.subr.bf16.mxu0 0
        %2979 = vmatpush1.bf16.msra.mxu0 0
        %2980 = vmatprep.subr.bf16.mxu0 0
        %2981 = vmatpush1.bf16.msra.mxu0 0
        %2982 = vmatprep.subr.bf16.mxu0 0
        %2983 = vmatpush1.bf16.msra.mxu0 0
        %2984 = vmatprep.subr.bf16.mxu0 0
        %2985 = vmatpush1.bf16.msra.mxu0 0
        %2986 = vmatprep.subr.bf16.mxu0 0
        %2987 = vmatpush1.bf16.msra.mxu0 0
        %2988 = vmatprep.subr.bf16.mxu0 0
        %2989 = vmatpush1.bf16.msra.mxu0 0
        %2990 = vmatprep.subr.bf16.mxu0 0
        %2991 = vmatpush1.bf16.msra.mxu0 0
        %2992 = vmatprep.subr.bf16.mxu0 0
        %2993 = vmatpush1.bf16.msra.mxu0 0
        %2994 = vmatprep.subr.bf16.mxu0 0
        %2995 = vmatpush1.bf16.msra.mxu0 0
        %2996 = vmatprep.subr.bf16.mxu0 0
        %2997 = vmatpush1.bf16.msra.mxu0 0
        %2998 = vmatprep.subr.bf16.mxu0 0
        %2999 = vmatpush1.bf16.msra.mxu0 0
        %3000 = vmatprep.mubr.bf16.mxu0 0
        %3001 = vmatmul.mubr.bf16.gmra.mrb[0].mxu0 %v2321
        %v3002 = vpop.f32.mrb[0].mxu0
        %v3003 = vpop.f32.mrb[0].mxu0
        %v3004 = vpop.f32.mrb[0].mxu0
        %v3005 = vpop.f32.mrb[0].mxu0
        %3006 = vmatprep.mubr.bf16.mxu0 0
        %3007 = vmatmul.mubr.bf16.gmra.mrb[0].mxu0 %v2324
        %v3008 = vpop.f32.mrb[0].mxu0
        %v3009 = vpop.f32.mrb[0].mxu0
        %v3010 = vpop.f32.mrb[0].mxu0
        %v3011 = vpop.f32.mrb[0].mxu0
        %3012 = vmatprep.mubr.bf16.mxu0 0
        %3013 = vmatmul.mubr.bf16.gmra.mrb[0].mxu0 %v2327
        %v3014 = vpop.f32.mrb[0].mxu0
        %v3015 = vadd.f32 0.0, %v3014
        %v3016 = vpop.f32.mrb[0].mxu0
        %v3017 = vpop.f32.mrb[0].mxu0
        %v3018 = vadd.f32 0.0, %v3017
        %v3019 = vpop.f32.mrb[0].mxu0
        %3020 = vmatprep.mubr.bf16.mxu0 0
        %3021 = vmatmul.mubr.bf16.gmra.mrb[0].mxu0 %v2330
        %v3022 = vpop.f32.mrb[0].mxu0
        %v3023 = vadd.f32 0.0, %v3022
        %v3024 = vpop.f32.mrb[0].mxu0
        %v3025 = vpop.f32.mrb[0].mxu0
        %v3026 = vadd.f32 0.0, %v3025
        %v3027 = vpop.f32.mrb[0].mxu0
        %3028 = vmatprep.mubr.bf16.mxu0 0
        %3029 = vmatmul.mubr.bf16.gmra.mrb[0].mxu0 %v2333
        %v3030 = vpop.f32.mrb[0].mxu0
        %v3031 = vadd.f32 0.0, %v3030
        %v3032 = vpop.f32.mrb[0].mxu0
        %v3033 = vpop.f32.mrb[0].mxu0
        %v3034 = vadd.f32 0.0, %v3033
        %v3035 = vpop.f32.mrb[0].mxu0
        %3036 = vmatprep.mubr.bf16.mxu0 0
        %3037 = vmatmul.mubr.bf16.gmra.mrb[0].mxu0 %v2336
        %v3038 = vpop.f32.mrb[0].mxu0
        %v3039 = vadd.f32 0.0, %v3038
        %v3040 = vpop.f32.mrb[0].mxu0
        %v3041 = vpop.f32.mrb[0].mxu0
        %v3042 = vadd.f32 0.0, %v3041
        %v3043 = vpop.f32.mrb[0].mxu0
        %3044 = vmatprep.mubr.bf16.mxu0 0
        %3045 = vmatmul.mubr.bf16.gmra.mrb[0].mxu0 %v2339
        %v3046 = vpop.f32.mrb[0].mxu0
        %v3047 = vadd.f32 0.0, %v3046
        %v3048 = vpop.f32.mrb[0].mxu0
        %v3049 = vpop.f32.mrb[0].mxu0
        %v3050 = vadd.f32 0.0, %v3049
        %v3051 = vpop.f32.mrb[0].mxu0
        %3052 = vmatprep.mubr.bf16.mxu0 0
        %3053 = vmatmul.mubr.bf16.gmra.mrb[0].mxu0 %v2342
        %v3054 = vpop.f32.mrb[0].mxu0
        %v3055 = vadd.f32 0.0, %v3054
        %v3056 = vpop.f32.mrb[0].mxu0
        %v3057 = vpop.f32.mrb[0].mxu0
        %v3058 = vadd.f32 0.0, %v3057
        %v3059 = vpop.f32.mrb[0].mxu0
        %3060 = vmatprep.mubr.bf16.mxu0 0
        %3061 = vmatmul.mubr.bf16.gmra.mrb[0].mxu0 %v2345
        %v3062 = vpop.f32.mrb[0].mxu0
        %v3063 = vadd.f32 0.0, %v3062
        %v3064 = vpop.f32.mrb[0].mxu0
        %v3065 = vpop.f32.mrb[0].mxu0
        %v3066 = vadd.f32 0.0, %v3065
        %v3067 = vpop.f32.mrb[0].mxu0
        %3068 = vmatprep.mubr.bf16.mxu0 0
        %3069 = vmatmul.mubr.bf16.gmra.mrb[0].mxu0 %v2348
        %v3070 = vpop.f32.mrb[0].mxu0
        %v3071 = vadd.f32 0.0, %v3070
        %v3072 = vpop.f32.mrb[0].mxu0
        %v3073 = vpop.f32.mrb[0].mxu0
        %v3074 = vadd.f32 0.0, %v3073
        %v3075 = vpop.f32.mrb[0].mxu0
        %3076 = vmatprep.mubr.bf16.mxu0 0
        %3077 = vmatmul.mubr.bf16.gmra.mrb[0].mxu0 %v2351
        %v3078 = vpop.f32.mrb[0].mxu0
        %v3079 = vadd.f32 0.0, %v3078
        %v3080 = vpop.f32.mrb[0].mxu0
        %v3081 = vpop.f32.mrb[0].mxu0
        %v3082 = vadd.f32 0.0, %v3081
        %v3083 = vpop.f32.mrb[0].mxu0
        %3084 = vmatprep.mubr.bf16.mxu0 0
        %3085 = vmatmul.mubr.bf16.gmra.mrb[0].mxu0 %v2354
        %v3086 = vpop.f32.mrb[0].mxu0
        %v3087 = vadd.f32 0.0, %v3086
        %v3088 = vpop.f32.mrb[0].mxu0
        %v3089 = vpop.f32.mrb[0].mxu0
        %v3090 = vpop.f32.mrb[0].mxu0
        %3091 = vdwg.mxu0
        %v3275 = vcombine.low %v2419, %v2421
        %v3276 = vcombine.high %v2419, %v2421
        %v3277 = vcombine.low %v2564, %v2566
        %v3278 = vcombine.high %v2564, %v2566
        %v3280 = vunpack.c.l.s4 1983009808
        %v3281 = vunpack.c.0.s8 %v3280
        %v3282 = vlaneseq
        %v3283 = vshrl.u32 %v3282, 7
        %v3284 = vsub.s32 %v3281, %v3283
        %v3285 = vrot.slane %v3275, %v3284
        %v3287 = vunpack.c.l.s4 1983009808
        %v3288 = vunpack.c.0.s8 %v3287
        %v3289 = vlaneseq
        %v3290 = vshrl.u32 %v3289, 7
        %v3291 = vsub.s32 %v3288, %v3290
        %v3292 = vrot.slane %v3276, %v3291
        %v3294 = vunpack.c.l.s4 1983009808
        %v3295 = vunpack.c.0.s8 %v3294
        %v3296 = vlaneseq
        %v3297 = vshrl.u32 %v3296, 7
        %v3298 = vsub.s32 %v3295, %v3297
        %v3299 = vrot.slane %v3277, %v3298
        %v3301 = vunpack.c.l.s4 1983009808
        %v3302 = vunpack.c.0.s8 %v3301
        %v3303 = vlaneseq
        %v3304 = vshrl.u32 %v3303, 7
        %v3305 = vsub.s32 %v3302, %v3304
        %v3306 = vrot.slane %v3278, %v3305
        %v3307 = vcombine.low %v3285, %v3299
        %v3308 = vcombine.high %v3285, %v3299
        %v3309 = vcombine.low %v3292, %v3306
        %v3310 = vcombine.high %v3292, %v3306
        %v3311 = vcombine.low %v2423, %v2425
        %v3312 = vcombine.high %v2423, %v2425
        %v3313 = vcombine.low %v2568, %v2570
        %v3314 = vcombine.high %v2568, %v2570
        %v3316 = vunpack.c.l.s4 1983009808
        %v3317 = vunpack.c.0.s8 %v3316
        %v3318 = vlaneseq
        %v3319 = vshrl.u32 %v3318, 7
        %v3320 = vsub.s32 %v3317, %v3319
        %v3321 = vrot.slane %v3311, %v3320
        %v3323 = vunpack.c.l.s4 1983009808
        %v3324 = vunpack.c.0.s8 %v3323
        %v3325 = vlaneseq
        %v3326 = vshrl.u32 %v3325, 7
        %v3327 = vsub.s32 %v3324, %v3326
        %v3328 = vrot.slane %v3312, %v3327
        %v3330 = vunpack.c.l.s4 1983009808
        %v3331 = vunpack.c.0.s8 %v3330
        %v3332 = vlaneseq
        %v3333 = vshrl.u32 %v3332, 7
        %v3334 = vsub.s32 %v3331, %v3333
        %v3335 = vrot.slane %v3313, %v3334
        %v3337 = vunpack.c.l.s4 1983009808
        %v3338 = vunpack.c.0.s8 %v3337
        %v3339 = vlaneseq
        %v3340 = vshrl.u32 %v3339, 7
        %v3341 = vsub.s32 %v3338, %v3340
        %v3342 = vrot.slane %v3314, %v3341
        %v3343 = vcombine.low %v3321, %v3335
        %v3344 = vcombine.high %v3321, %v3335
        %v3345 = vcombine.low %v3328, %v3342
        %v3346 = vcombine.high %v3328, %v3342
        %v3347 = vcombine.low %v2429, %v2431
        %v3348 = vcombine.high %v2429, %v2431
        %v3349 = vcombine.low %v2574, %v2576
        %v3350 = vcombine.high %v2574, %v2576
        %v3352 = vunpack.c.l.s4 1983009808
        %v3353 = vunpack.c.0.s8 %v3352
        %v3354 = vlaneseq
        %v3355 = vshrl.u32 %v3354, 7
        %v3356 = vsub.s32 %v3353, %v3355
        %v3357 = vrot.slane %v3347, %v3356
        %v3359 = vunpack.c.l.s4 1983009808
        %v3360 = vunpack.c.0.s8 %v3359
        %v3361 = vlaneseq
        %v3362 = vshrl.u32 %v3361, 7
        %v3363 = vsub.s32 %v3360, %v3362
        %v3364 = vrot.slane %v3348, %v3363
        %v3366 = vunpack.c.l.s4 1983009808
        %v3367 = vunpack.c.0.s8 %v3366
        %v3368 = vlaneseq
        %v3369 = vshrl.u32 %v3368, 7
        %v3370 = vsub.s32 %v3367, %v3369
        %v3371 = vrot.slane %v3349, %v3370
        %v3373 = vunpack.c.l.s4 1983009808
        %v3374 = vunpack.c.0.s8 %v3373
        %v3375 = vlaneseq
        %v3376 = vshrl.u32 %v3375, 7
        %v3377 = vsub.s32 %v3374, %v3376
        %v3378 = vrot.slane %v3350, %v3377
        %v3379 = vcombine.low %v3357, %v3371
        %v3380 = vcombine.high %v3357, %v3371
        %v3381 = vcombine.low %v3364, %v3378
        %v3382 = vcombine.high %v3364, %v3378
        %v3383 = vcombine.low %v2715, %v2717
        %v3384 = vcombine.high %v2715, %v2717
        %v3385 = vcombine.low %v2862, %v2864
        %v3386 = vcombine.high %v2862, %v2864
        %v3388 = vunpack.c.l.s4 1983009808
        %v3389 = vunpack.c.0.s8 %v3388
        %v3390 = vlaneseq
        %v3391 = vshrl.u32 %v3390, 7
        %v3392 = vsub.s32 %v3389, %v3391
        %v3393 = vrot.slane %v3383, %v3392
        %v3395 = vunpack.c.l.s4 1983009808
        %v3396 = vunpack.c.0.s8 %v3395
        %v3397 = vlaneseq
        %v3398 = vshrl.u32 %v3397, 7
        %v3399 = vsub.s32 %v3396, %v3398
        %v3400 = vrot.slane %v3384, %v3399
        %v3402 = vunpack.c.l.s4 1983009808
        %v3403 = vunpack.c.0.s8 %v3402
        %v3404 = vlaneseq
        %v3405 = vshrl.u32 %v3404, 7
        %v3406 = vsub.s32 %v3403, %v3405
        %v3407 = vrot.slane %v3385, %v3406
        %v3409 = vunpack.c.l.s4 1983009808
        %v3410 = vunpack.c.0.s8 %v3409
        %v3411 = vlaneseq
        %v3412 = vshrl.u32 %v3411, 7
        %v3413 = vsub.s32 %v3410, %v3412
        %v3414 = vrot.slane %v3386, %v3413
        %v3415 = vcombine.high %v3393, %v3407
        %v3416 = vcombine.low %v3400, %v3414
        %v3417 = vcombine.high %v3400, %v3414
        %v3418 = vcombine.low %v2433, %v2435
        %v3419 = vcombine.high %v2433, %v2435
        %v3420 = vcombine.low %v2578, %v2580
        %v3421 = vcombine.high %v2578, %v2580
        %v3423 = vunpack.c.l.s4 1983009808
        %v3424 = vunpack.c.0.s8 %v3423
        %v3425 = vlaneseq
        %v3426 = vshrl.u32 %v3425, 7
        %v3427 = vsub.s32 %v3424, %v3426
        %v3428 = vrot.slane %v3418, %v3427
        %v3430 = vunpack.c.l.s4 1983009808
        %v3431 = vunpack.c.0.s8 %v3430
        %v3432 = vlaneseq
        %v3433 = vshrl.u32 %v3432, 7
        %v3434 = vsub.s32 %v3431, %v3433
        %v3435 = vrot.slane %v3419, %v3434
        %v3437 = vunpack.c.l.s4 1983009808
        %v3438 = vunpack.c.0.s8 %v3437
        %v3439 = vlaneseq
        %v3440 = vshrl.u32 %v3439, 7
        %v3441 = vsub.s32 %v3438, %v3440
        %v3442 = vrot.slane %v3420, %v3441
        %v3444 = vunpack.c.l.s4 1983009808
        %v3445 = vunpack.c.0.s8 %v3444
        %v3446 = vlaneseq
        %v3447 = vshrl.u32 %v3446, 7
        %v3448 = vsub.s32 %v3445, %v3447
        %v3449 = vrot.slane %v3421, %v3448
        %v3450 = vcombine.low %v3428, %v3442
        %v3451 = vcombine.high %v3428, %v3442
        %v3452 = vcombine.low %v3435, %v3449
        %v3453 = vcombine.high %v3435, %v3449
        %v3454 = vcombine.low %v2719, %v2721
        %v3455 = vcombine.high %v2719, %v2721
        %v3456 = vcombine.low %v2866, %v2868
        %v3457 = vcombine.high %v2866, %v2868
        %v3459 = vunpack.c.l.s4 1983009808
        %v3460 = vunpack.c.0.s8 %v3459
        %v3461 = vlaneseq
        %v3462 = vshrl.u32 %v3461, 7
        %v3463 = vsub.s32 %v3460, %v3462
        %v3464 = vrot.slane %v3454, %v3463
        %v3466 = vunpack.c.l.s4 1983009808
        %v3467 = vunpack.c.0.s8 %v3466
        %v3468 = vlaneseq
        %v3469 = vshrl.u32 %v3468, 7
        %v3470 = vsub.s32 %v3467, %v3469
        %v3471 = vrot.slane %v3455, %v3470
        %v3473 = vunpack.c.l.s4 1983009808
        %v3474 = vunpack.c.0.s8 %v3473
        %v3475 = vlaneseq
        %v3476 = vshrl.u32 %v3475, 7
        %v3477 = vsub.s32 %v3474, %v3476
        %v3478 = vrot.slane %v3456, %v3477
        %v3480 = vunpack.c.l.s4 1983009808
        %v3481 = vunpack.c.0.s8 %v3480
        %v3482 = vlaneseq
        %v3483 = vshrl.u32 %v3482, 7
        %v3484 = vsub.s32 %v3481, %v3483
        %v3485 = vrot.slane %v3457, %v3484
        %v3486 = vcombine.low %v3464, %v3478
        %v3487 = vcombine.high %v3464, %v3478
        %v3488 = vcombine.low %v3471, %v3485
        %v3489 = vcombine.high %v3471, %v3485
        %v3490 = vcombine.low %v2439, %v2441
        %v3491 = vcombine.high %v2439, %v2441
        %v3492 = vcombine.low %v2584, %v2586
        %v3493 = vcombine.high %v2584, %v2586
        %v3495 = vunpack.c.l.s4 1983009808
        %v3496 = vunpack.c.0.s8 %v3495
        %v3497 = vlaneseq
        %v3498 = vshrl.u32 %v3497, 7
        %v3499 = vsub.s32 %v3496, %v3498
        %v3500 = vrot.slane %v3490, %v3499
        %v3502 = vunpack.c.l.s4 1983009808
        %v3503 = vunpack.c.0.s8 %v3502
        %v3504 = vlaneseq
        %v3505 = vshrl.u32 %v3504, 7
        %v3506 = vsub.s32 %v3503, %v3505
        %v3507 = vrot.slane %v3491, %v3506
        %v3509 = vunpack.c.l.s4 1983009808
        %v3510 = vunpack.c.0.s8 %v3509
        %v3511 = vlaneseq
        %v3512 = vshrl.u32 %v3511, 7
        %v3513 = vsub.s32 %v3510, %v3512
        %v3514 = vrot.slane %v3492, %v3513
        %v3516 = vunpack.c.l.s4 1983009808
        %v3517 = vunpack.c.0.s8 %v3516
        %v3518 = vlaneseq
        %v3519 = vshrl.u32 %v3518, 7
        %v3520 = vsub.s32 %v3517, %v3519
        %v3521 = vrot.slane %v3493, %v3520
        %v3522 = vcombine.low %v3500, %v3514
        %v3523 = vcombine.high %v3500, %v3514
        %v3524 = vcombine.low %v3507, %v3521
        %v3525 = vcombine.high %v3507, %v3521
        %v3526 = vcombine.low %v2725, %v2727
        %v3527 = vcombine.high %v2725, %v2727
        %v3528 = vcombine.low %v2872, %v2874
        %v3529 = vcombine.high %v2872, %v2874
        %v3531 = vunpack.c.l.s4 1983009808
        %v3532 = vunpack.c.0.s8 %v3531
        %v3533 = vlaneseq
        %v3534 = vshrl.u32 %v3533, 7
        %v3535 = vsub.s32 %v3532, %v3534
        %v3536 = vrot.slane %v3526, %v3535
        %v3538 = vunpack.c.l.s4 1983009808
        %v3539 = vunpack.c.0.s8 %v3538
        %v3540 = vlaneseq
        %v3541 = vshrl.u32 %v3540, 7
        %v3542 = vsub.s32 %v3539, %v3541
        %v3543 = vrot.slane %v3527, %v3542
        %v3545 = vunpack.c.l.s4 1983009808
        %v3546 = vunpack.c.0.s8 %v3545
        %v3547 = vlaneseq
        %v3548 = vshrl.u32 %v3547, 7
        %v3549 = vsub.s32 %v3546, %v3548
        %v3550 = vrot.slane %v3528, %v3549
        %v3552 = vunpack.c.l.s4 1983009808
        %v3553 = vunpack.c.0.s8 %v3552
        %v3554 = vlaneseq
        %v3555 = vshrl.u32 %v3554, 7
        %v3556 = vsub.s32 %v3553, %v3555
        %v3557 = vrot.slane %v3529, %v3556
        %v3558 = vcombine.low %v3536, %v3550
        %v3559 = vcombine.high %v3536, %v3550
        %v3560 = vcombine.low %v3543, %v3557
        %v3561 = vcombine.high %v3543, %v3557
        %v3562 = vcombine.high %v3015, %v3015
        %v3564 = vunpack.c.l.s4 1983009808
        %v3565 = vunpack.c.0.s8 %v3564
        %v3566 = vlaneseq
        %v3567 = vshrl.u32 %v3566, 7
        %v3568 = vsub.s32 %v3565, %v3567
        %v3569 = vrot.slane %v3562, %v3568
        %v3570 = vcombine.high %v3569, %v3569
        %v3571 = vcombine.low %v2443, %v2445
        %v3572 = vcombine.high %v2443, %v2445
        %v3573 = vcombine.low %v2588, %v2590
        %v3574 = vcombine.high %v2588, %v2590
        %v3576 = vunpack.c.l.s4 1983009808
        %v3577 = vunpack.c.0.s8 %v3576
        %v3578 = vlaneseq
        %v3579 = vshrl.u32 %v3578, 7
        %v3580 = vsub.s32 %v3577, %v3579
        %v3581 = vrot.slane %v3571, %v3580
        %v3583 = vunpack.c.l.s4 1983009808
        %v3584 = vunpack.c.0.s8 %v3583
        %v3585 = vlaneseq
        %v3586 = vshrl.u32 %v3585, 7
        %v3587 = vsub.s32 %v3584, %v3586
        %v3588 = vrot.slane %v3572, %v3587
        %v3590 = vunpack.c.l.s4 1983009808
        %v3591 = vunpack.c.0.s8 %v3590
        %v3592 = vlaneseq
        %v3593 = vshrl.u32 %v3592, 7
        %v3594 = vsub.s32 %v3591, %v3593
        %v3595 = vrot.slane %v3573, %v3594
        %v3597 = vunpack.c.l.s4 1983009808
        %v3598 = vunpack.c.0.s8 %v3597
        %v3599 = vlaneseq
        %v3600 = vshrl.u32 %v3599, 7
        %v3601 = vsub.s32 %v3598, %v3600
        %v3602 = vrot.slane %v3574, %v3601
        %v3603 = vcombine.low %v3581, %v3595
        %v3604 = vcombine.high %v3581, %v3595
        %v3605 = vcombine.low %v3588, %v3602
        %v3606 = vcombine.high %v3588, %v3602
        %v3607 = vcombine.low %v2729, %v2731
        %v3608 = vcombine.high %v2729, %v2731
        %v3609 = vcombine.low %v2876, %v2878
        %v3610 = vcombine.high %v2876, %v2878
        %v3612 = vunpack.c.l.s4 1983009808
        %v3613 = vunpack.c.0.s8 %v3612
        %v3614 = vlaneseq
        %v3615 = vshrl.u32 %v3614, 7
        %v3616 = vsub.s32 %v3613, %v3615
        %v3617 = vrot.slane %v3607, %v3616
        %v3619 = vunpack.c.l.s4 1983009808
        %v3620 = vunpack.c.0.s8 %v3619
        %v3621 = vlaneseq
        %v3622 = vshrl.u32 %v3621, 7
        %v3623 = vsub.s32 %v3620, %v3622
        %v3624 = vrot.slane %v3608, %v3623
        %v3626 = vunpack.c.l.s4 1983009808
        %v3627 = vunpack.c.0.s8 %v3626
        %v3628 = vlaneseq
        %v3629 = vshrl.u32 %v3628, 7
        %v3630 = vsub.s32 %v3627, %v3629
        %v3631 = vrot.slane %v3609, %v3630
        %v3633 = vunpack.c.l.s4 1983009808
        %v3634 = vunpack.c.0.s8 %v3633
        %v3635 = vlaneseq
        %v3636 = vshrl.u32 %v3635, 7
        %v3637 = vsub.s32 %v3634, %v3636
        %v3638 = vrot.slane %v3610, %v3637
        %v3639 = vcombine.low %v3617, %v3631
        %v3640 = vcombine.high %v3617, %v3631
        %v3641 = vcombine.low %v3624, %v3638
        %v3642 = vcombine.high %v3624, %v3638
        %v3643 = vcombine.high %v3018, %v3018
        %v3645 = vunpack.c.l.s4 1983009808
        %v3646 = vunpack.c.0.s8 %v3645
        %v3647 = vlaneseq
        %v3648 = vshrl.u32 %v3647, 7
        %v3649 = vsub.s32 %v3646, %v3648
        %v3650 = vrot.slane %v3018, %v3649
        %v3652 = vunpack.c.l.s4 1983009808
        %v3653 = vunpack.c.0.s8 %v3652
        %v3654 = vlaneseq
        %v3655 = vshrl.u32 %v3654, 7
        %v3656 = vsub.s32 %v3653, %v3655
        %v3657 = vrot.slane %v3643, %v3656
        %v3658 = vcombine.high %v3650, %v3650
        %v3659 = vcombine.high %v3657, %v3657
        %v3660 = vcombine.low %v2449, %v2451
        %v3661 = vcombine.high %v2449, %v2451
        %v3662 = vcombine.low %v2594, %v2596
        %v3663 = vcombine.high %v2594, %v2596
        %v3665 = vunpack.c.l.s4 1983009808
        %v3666 = vunpack.c.0.s8 %v3665
        %v3667 = vlaneseq
        %v3668 = vshrl.u32 %v3667, 7
        %v3669 = vsub.s32 %v3666, %v3668
        %v3670 = vrot.slane %v3660, %v3669
        %v3672 = vunpack.c.l.s4 1983009808
        %v3673 = vunpack.c.0.s8 %v3672
        %v3674 = vlaneseq
        %v3675 = vshrl.u32 %v3674, 7
        %v3676 = vsub.s32 %v3673, %v3675
        %v3677 = vrot.slane %v3661, %v3676
        %v3679 = vunpack.c.l.s4 1983009808
        %v3680 = vunpack.c.0.s8 %v3679
        %v3681 = vlaneseq
        %v3682 = vshrl.u32 %v3681, 7
        %v3683 = vsub.s32 %v3680, %v3682
        %v3684 = vrot.slane %v3662, %v3683
        %v3686 = vunpack.c.l.s4 1983009808
        %v3687 = vunpack.c.0.s8 %v3686
        %v3688 = vlaneseq
        %v3689 = vshrl.u32 %v3688, 7
        %v3690 = vsub.s32 %v3687, %v3689
        %v3691 = vrot.slane %v3663, %v3690
        %v3692 = vcombine.low %v3670, %v3684
        %v3693 = vcombine.high %v3670, %v3684
        %v3694 = vcombine.low %v3677, %v3691
        %v3695 = vcombine.high %v3677, %v3691
        %v3696 = vcombine.low %v2735, %v2737
        %v3697 = vcombine.high %v2735, %v2737
        %v3698 = vcombine.low %v2882, %v2884
        %v3699 = vcombine.high %v2882, %v2884
        %v3701 = vunpack.c.l.s4 1983009808
        %v3702 = vunpack.c.0.s8 %v3701
        %v3703 = vlaneseq
        %v3704 = vshrl.u32 %v3703, 7
        %v3705 = vsub.s32 %v3702, %v3704
        %v3706 = vrot.slane %v3696, %v3705
        %v3708 = vunpack.c.l.s4 1983009808
        %v3709 = vunpack.c.0.s8 %v3708
        %v3710 = vlaneseq
        %v3711 = vshrl.u32 %v3710, 7
        %v3712 = vsub.s32 %v3709, %v3711
        %v3713 = vrot.slane %v3697, %v3712
        %v3715 = vunpack.c.l.s4 1983009808
        %v3716 = vunpack.c.0.s8 %v3715
        %v3717 = vlaneseq
        %v3718 = vshrl.u32 %v3717, 7
        %v3719 = vsub.s32 %v3716, %v3718
        %v3720 = vrot.slane %v3698, %v3719
        %v3722 = vunpack.c.l.s4 1983009808
        %v3723 = vunpack.c.0.s8 %v3722
        %v3724 = vlaneseq
        %v3725 = vshrl.u32 %v3724, 7
        %v3726 = vsub.s32 %v3723, %v3725
        %v3727 = vrot.slane %v3699, %v3726
        %v3728 = vcombine.low %v3706, %v3720
        %v3729 = vcombine.high %v3706, %v3720
        %v3730 = vcombine.low %v3713, %v3727
        %v3731 = vcombine.high %v3713, %v3727
        %v3732 = vcombine.high %v3023, %v3023
        %v3734 = vunpack.c.l.s4 1983009808
        %v3735 = vunpack.c.0.s8 %v3734
        %v3736 = vlaneseq
        %v3737 = vshrl.u32 %v3736, 7
        %v3738 = vsub.s32 %v3735, %v3737
        %v3739 = vrot.slane %v3023, %v3738
        %v3741 = vunpack.c.l.s4 1983009808
        %v3742 = vunpack.c.0.s8 %v3741
        %v3743 = vlaneseq
        %v3744 = vshrl.u32 %v3743, 7
        %v3745 = vsub.s32 %v3742, %v3744
        %v3746 = vrot.slane %v3732, %v3745
        %v3747 = vcombine.high %v3739, %v3739
        %v3748 = vcombine.low %v2453, %v2455
        %v3749 = vcombine.high %v2453, %v2455
        %v3750 = vcombine.low %v2598, %v2600
        %v3751 = vcombine.high %v2598, %v2600
        %v3753 = vunpack.c.l.s4 1983009808
        %v3754 = vunpack.c.0.s8 %v3753
        %v3755 = vlaneseq
        %v3756 = vshrl.u32 %v3755, 7
        %v3757 = vsub.s32 %v3754, %v3756
        %v3758 = vrot.slane %v3748, %v3757
        %v3760 = vunpack.c.l.s4 1983009808
        %v3761 = vunpack.c.0.s8 %v3760
        %v3762 = vlaneseq
        %v3763 = vshrl.u32 %v3762, 7
        %v3764 = vsub.s32 %v3761, %v3763
        %v3765 = vrot.slane %v3749, %v3764
        %v3767 = vunpack.c.l.s4 1983009808
        %v3768 = vunpack.c.0.s8 %v3767
        %v3769 = vlaneseq
        %v3770 = vshrl.u32 %v3769, 7
        %v3771 = vsub.s32 %v3768, %v3770
        %v3772 = vrot.slane %v3750, %v3771
        %v3774 = vunpack.c.l.s4 1983009808
        %v3775 = vunpack.c.0.s8 %v3774
        %v3776 = vlaneseq
        %v3777 = vshrl.u32 %v3776, 7
        %v3778 = vsub.s32 %v3775, %v3777
        %v3779 = vrot.slane %v3751, %v3778
        %v3780 = vcombine.low %v3758, %v3772
        %v3781 = vcombine.high %v3758, %v3772
        %v3782 = vcombine.low %v3765, %v3779
        %v3783 = vcombine.high %v3765, %v3779
        %v3784 = vcombine.low %v2739, %v2741
        %v3785 = vcombine.high %v2739, %v2741
        %v3786 = vcombine.low %v2886, %v2888
        %v3787 = vcombine.high %v2886, %v2888
        %v3789 = vunpack.c.l.s4 1983009808
        %v3790 = vunpack.c.0.s8 %v3789
        %v3791 = vlaneseq
        %v3792 = vshrl.u32 %v3791, 7
        %v3793 = vsub.s32 %v3790, %v3792
        %v3794 = vrot.slane %v3784, %v3793
        %v3796 = vunpack.c.l.s4 1983009808
        %v3797 = vunpack.c.0.s8 %v3796
        %v3798 = vlaneseq
        %v3799 = vshrl.u32 %v3798, 7
        %v3800 = vsub.s32 %v3797, %v3799
        %v3801 = vrot.slane %v3785, %v3800
        %v3803 = vunpack.c.l.s4 1983009808
        %v3804 = vunpack.c.0.s8 %v3803
        %v3805 = vlaneseq
        %v3806 = vshrl.u32 %v3805, 7
        %v3807 = vsub.s32 %v3804, %v3806
        %v3808 = vrot.slane %v3786, %v3807
        %v3810 = vunpack.c.l.s4 1983009808
        %v3811 = vunpack.c.0.s8 %v3810
        %v3812 = vlaneseq
        %v3813 = vshrl.u32 %v3812, 7
        %v3814 = vsub.s32 %v3811, %v3813
        %v3815 = vrot.slane %v3787, %v3814
        %v3816 = vcombine.low %v3794, %v3808
        %v3817 = vcombine.high %v3794, %v3808
        %v3818 = vcombine.low %v3801, %v3815
        %v3819 = vcombine.high %v3801, %v3815
        %v3820 = vcombine.high %v3026, %v3026
        %v3822 = vunpack.c.l.s4 1983009808
        %v3823 = vunpack.c.0.s8 %v3822
        %v3824 = vlaneseq
        %v3825 = vshrl.u32 %v3824, 7
        %v3826 = vsub.s32 %v3823, %v3825
        %v3827 = vrot.slane %v3026, %v3826
        %v3829 = vunpack.c.l.s4 1983009808
        %v3830 = vunpack.c.0.s8 %v3829
        %v3831 = vlaneseq
        %v3832 = vshrl.u32 %v3831, 7
        %v3833 = vsub.s32 %v3830, %v3832
        %v3834 = vrot.slane %v3820, %v3833
        %v3835 = vcombine.high %v3827, %v3827
        %v3836 = vcombine.high %v3834, %v3834
        %v3837 = vcombine.low %v2459, %v2461
        %v3838 = vcombine.high %v2459, %v2461
        %v3839 = vcombine.low %v2604, %v2606
        %v3840 = vcombine.high %v2604, %v2606
        %v3842 = vunpack.c.l.s4 1983009808
        %v3843 = vunpack.c.0.s8 %v3842
        %v3844 = vlaneseq
        %v3845 = vshrl.u32 %v3844, 7
        %v3846 = vsub.s32 %v3843, %v3845
        %v3847 = vrot.slane %v3837, %v3846
        %v3849 = vunpack.c.l.s4 1983009808
        %v3850 = vunpack.c.0.s8 %v3849
        %v3851 = vlaneseq
        %v3852 = vshrl.u32 %v3851, 7
        %v3853 = vsub.s32 %v3850, %v3852
        %v3854 = vrot.slane %v3838, %v3853
        %v3856 = vunpack.c.l.s4 1983009808
        %v3857 = vunpack.c.0.s8 %v3856
        %v3858 = vlaneseq
        %v3859 = vshrl.u32 %v3858, 7
        %v3860 = vsub.s32 %v3857, %v3859
        %v3861 = vrot.slane %v3839, %v3860
        %v3863 = vunpack.c.l.s4 1983009808
        %v3864 = vunpack.c.0.s8 %v3863
        %v3865 = vlaneseq
        %v3866 = vshrl.u32 %v3865, 7
        %v3867 = vsub.s32 %v3864, %v3866
        %v3868 = vrot.slane %v3840, %v3867
        %v3869 = vcombine.low %v3847, %v3861
        %v3870 = vcombine.high %v3847, %v3861
        %v3871 = vcombine.low %v3854, %v3868
        %v3872 = vcombine.high %v3854, %v3868
        %v3873 = vcombine.low %v2745, %v2747
        %v3874 = vcombine.high %v2745, %v2747
        %v3875 = vcombine.low %v2892, %v2894
        %v3876 = vcombine.high %v2892, %v2894
        %v3878 = vunpack.c.l.s4 1983009808
        %v3879 = vunpack.c.0.s8 %v3878
        %v3880 = vlaneseq
        %v3881 = vshrl.u32 %v3880, 7
        %v3882 = vsub.s32 %v3879, %v3881
        %v3883 = vrot.slane %v3873, %v3882
        %v3885 = vunpack.c.l.s4 1983009808
        %v3886 = vunpack.c.0.s8 %v3885
        %v3887 = vlaneseq
        %v3888 = vshrl.u32 %v3887, 7
        %v3889 = vsub.s32 %v3886, %v3888
        %v3890 = vrot.slane %v3874, %v3889
        %v3892 = vunpack.c.l.s4 1983009808
        %v3893 = vunpack.c.0.s8 %v3892
        %v3894 = vlaneseq
        %v3895 = vshrl.u32 %v3894, 7
        %v3896 = vsub.s32 %v3893, %v3895
        %v3897 = vrot.slane %v3875, %v3896
        %v3899 = vunpack.c.l.s4 1983009808
        %v3900 = vunpack.c.0.s8 %v3899
        %v3901 = vlaneseq
        %v3902 = vshrl.u32 %v3901, 7
        %v3903 = vsub.s32 %v3900, %v3902
        %v3904 = vrot.slane %v3876, %v3903
        %v3905 = vcombine.low %v3883, %v3897
        %v3906 = vcombine.high %v3883, %v3897
        %v3907 = vcombine.low %v3890, %v3904
        %v3908 = vcombine.high %v3890, %v3904
        %v3909 = vcombine.high %v3031, %v3031
        %v3911 = vunpack.c.l.s4 1983009808
        %v3912 = vunpack.c.0.s8 %v3911
        %v3913 = vlaneseq
        %v3914 = vshrl.u32 %v3913, 7
        %v3915 = vsub.s32 %v3912, %v3914
        %v3916 = vrot.slane %v3031, %v3915
        %v3918 = vunpack.c.l.s4 1983009808
        %v3919 = vunpack.c.0.s8 %v3918
        %v3920 = vlaneseq
        %v3921 = vshrl.u32 %v3920, 7
        %v3922 = vsub.s32 %v3919, %v3921
        %v3923 = vrot.slane %v3909, %v3922
        %v3924 = vcombine.high %v3916, %v3916
        %v3925 = vcombine.high %v3923, %v3923
        %v3926 = vcombine.low %v2463, %v2465
        %v3927 = vcombine.high %v2463, %v2465
        %v3928 = vcombine.low %v2608, %v2610
        %v3929 = vcombine.high %v2608, %v2610
        %v3931 = vunpack.c.l.s4 1983009808
        %v3932 = vunpack.c.0.s8 %v3931
        %v3933 = vlaneseq
        %v3934 = vshrl.u32 %v3933, 7
        %v3935 = vsub.s32 %v3932, %v3934
        %v3936 = vrot.slane %v3926, %v3935
        %v3938 = vunpack.c.l.s4 1983009808
        %v3939 = vunpack.c.0.s8 %v3938
        %v3940 = vlaneseq
        %v3941 = vshrl.u32 %v3940, 7
        %v3942 = vsub.s32 %v3939, %v3941
        %v3943 = vrot.slane %v3927, %v3942
        %v3945 = vunpack.c.l.s4 1983009808
        %v3946 = vunpack.c.0.s8 %v3945
        %v3947 = vlaneseq
        %v3948 = vshrl.u32 %v3947, 7
        %v3949 = vsub.s32 %v3946, %v3948
        %v3950 = vrot.slane %v3928, %v3949
        %v3952 = vunpack.c.l.s4 1983009808
        %v3953 = vunpack.c.0.s8 %v3952
        %v3954 = vlaneseq
        %v3955 = vshrl.u32 %v3954, 7
        %v3956 = vsub.s32 %v3953, %v3955
        %v3957 = vrot.slane %v3929, %v3956
        %v3958 = vcombine.low %v3936, %v3950
        %v3959 = vcombine.high %v3936, %v3950
        %v3960 = vcombine.low %v3943, %v3957
        %v3961 = vcombine.high %v3943, %v3957
        %v3962 = vcombine.low %v2749, %v2751
        %v3963 = vcombine.high %v2749, %v2751
        %v3964 = vcombine.low %v2896, %v2898
        %v3965 = vcombine.high %v2896, %v2898
        %v3967 = vunpack.c.l.s4 1983009808
        %v3968 = vunpack.c.0.s8 %v3967
        %v3969 = vlaneseq
        %v3970 = vshrl.u32 %v3969, 7
        %v3971 = vsub.s32 %v3968, %v3970
        %v3972 = vrot.slane %v3962, %v3971
        %v3974 = vunpack.c.l.s4 1983009808
        %v3975 = vunpack.c.0.s8 %v3974
        %v3976 = vlaneseq
        %v3977 = vshrl.u32 %v3976, 7
        %v3978 = vsub.s32 %v3975, %v3977
        %v3979 = vrot.slane %v3963, %v3978
        %v3981 = vunpack.c.l.s4 1983009808
        %v3982 = vunpack.c.0.s8 %v3981
        %v3983 = vlaneseq
        %v3984 = vshrl.u32 %v3983, 7
        %v3985 = vsub.s32 %v3982, %v3984
        %v3986 = vrot.slane %v3964, %v3985
        %v3988 = vunpack.c.l.s4 1983009808
        %v3989 = vunpack.c.0.s8 %v3988
        %v3990 = vlaneseq
        %v3991 = vshrl.u32 %v3990, 7
        %v3992 = vsub.s32 %v3989, %v3991
        %v3993 = vrot.slane %v3965, %v3992
        %v3994 = vcombine.low %v3972, %v3986
        %v3995 = vcombine.high %v3972, %v3986
        %v3996 = vcombine.low %v3979, %v3993
        %v3997 = vcombine.high %v3979, %v3993
        %v3998 = vcombine.high %v3034, %v3034
        %v4000 = vunpack.c.l.s4 1983009808
        %v4001 = vunpack.c.0.s8 %v4000
        %v4002 = vlaneseq
        %v4003 = vshrl.u32 %v4002, 7
        %v4004 = vsub.s32 %v4001, %v4003
        %v4005 = vrot.slane %v3034, %v4004
        %v4007 = vunpack.c.l.s4 1983009808
        %v4008 = vunpack.c.0.s8 %v4007
        %v4009 = vlaneseq
        %v4010 = vshrl.u32 %v4009, 7
        %v4011 = vsub.s32 %v4008, %v4010
        %v4012 = vrot.slane %v3998, %v4011
        %v4013 = vcombine.high %v4005, %v4005
        %v4014 = vcombine.high %v4012, %v4012
        %v4015 = vcombine.low %v2469, %v2471
        %v4016 = vcombine.high %v2469, %v2471
        %v4017 = vcombine.low %v2614, %v2616
        %v4018 = vcombine.high %v2614, %v2616
        %v4020 = vunpack.c.l.s4 1983009808
        %v4021 = vunpack.c.0.s8 %v4020
        %v4022 = vlaneseq
        %v4023 = vshrl.u32 %v4022, 7
        %v4024 = vsub.s32 %v4021, %v4023
        %v4025 = vrot.slane %v4015, %v4024
        %v4027 = vunpack.c.l.s4 1983009808
        %v4028 = vunpack.c.0.s8 %v4027
        %v4029 = vlaneseq
        %v4030 = vshrl.u32 %v4029, 7
        %v4031 = vsub.s32 %v4028, %v4030
        %v4032 = vrot.slane %v4016, %v4031
        %v4034 = vunpack.c.l.s4 1983009808
        %v4035 = vunpack.c.0.s8 %v4034
        %v4036 = vlaneseq
        %v4037 = vshrl.u32 %v4036, 7
        %v4038 = vsub.s32 %v4035, %v4037
        %v4039 = vrot.slane %v4017, %v4038
        %v4041 = vunpack.c.l.s4 1983009808
        %v4042 = vunpack.c.0.s8 %v4041
        %v4043 = vlaneseq
        %v4044 = vshrl.u32 %v4043, 7
        %v4045 = vsub.s32 %v4042, %v4044
        %v4046 = vrot.slane %v4018, %v4045
        %v4047 = vcombine.low %v4025, %v4039
        %v4048 = vcombine.high %v4025, %v4039
        %v4049 = vcombine.low %v4032, %v4046
        %v4050 = vcombine.high %v4032, %v4046
        %v4051 = vcombine.low %v2755, %v2757
        %v4052 = vcombine.high %v2755, %v2757
        %v4053 = vcombine.low %v2902, %v2904
        %v4054 = vcombine.high %v2902, %v2904
        %v4056 = vunpack.c.l.s4 1983009808
        %v4057 = vunpack.c.0.s8 %v4056
        %v4058 = vlaneseq
        %v4059 = vshrl.u32 %v4058, 7
        %v4060 = vsub.s32 %v4057, %v4059
        %v4061 = vrot.slane %v4051, %v4060
        %v4063 = vunpack.c.l.s4 1983009808
        %v4064 = vunpack.c.0.s8 %v4063
        %v4065 = vlaneseq
        %v4066 = vshrl.u32 %v4065, 7
        %v4067 = vsub.s32 %v4064, %v4066
        %v4068 = vrot.slane %v4052, %v4067
        %v4070 = vunpack.c.l.s4 1983009808
        %v4071 = vunpack.c.0.s8 %v4070
        %v4072 = vlaneseq
        %v4073 = vshrl.u32 %v4072, 7
        %v4074 = vsub.s32 %v4071, %v4073
        %v4075 = vrot.slane %v4053, %v4074
        %v4077 = vunpack.c.l.s4 1983009808
        %v4078 = vunpack.c.0.s8 %v4077
        %v4079 = vlaneseq
        %v4080 = vshrl.u32 %v4079, 7
        %v4081 = vsub.s32 %v4078, %v4080
        %v4082 = vrot.slane %v4054, %v4081
        %v4083 = vcombine.low %v4061, %v4075
        %v4084 = vcombine.high %v4061, %v4075
        %v4085 = vcombine.low %v4068, %v4082
        %v4086 = vcombine.high %v4068, %v4082
        %v4087 = vcombine.high %v3039, %v3039
        %v4089 = vunpack.c.l.s4 1983009808
        %v4090 = vunpack.c.0.s8 %v4089
        %v4091 = vlaneseq
        %v4092 = vshrl.u32 %v4091, 7
        %v4093 = vsub.s32 %v4090, %v4092
        %v4094 = vrot.slane %v3039, %v4093
        %v4096 = vunpack.c.l.s4 1983009808
        %v4097 = vunpack.c.0.s8 %v4096
        %v4098 = vlaneseq
        %v4099 = vshrl.u32 %v4098, 7
        %v4100 = vsub.s32 %v4097, %v4099
        %v4101 = vrot.slane %v4087, %v4100
        %v4102 = vcombine.high %v4094, %v4094
        %v4103 = vcombine.high %v4101, %v4101
        %v4104 = vcombine.low %v2473, %v2475
        %v4105 = vcombine.high %v2473, %v2475
        %v4106 = vcombine.low %v2618, %v2620
        %v4107 = vcombine.high %v2618, %v2620
        %v4109 = vunpack.c.l.s4 1983009808
        %v4110 = vunpack.c.0.s8 %v4109
        %v4111 = vlaneseq
        %v4112 = vshrl.u32 %v4111, 7
        %v4113 = vsub.s32 %v4110, %v4112
        %v4114 = vrot.slane %v4104, %v4113
        %v4116 = vunpack.c.l.s4 1983009808
        %v4117 = vunpack.c.0.s8 %v4116
        %v4118 = vlaneseq
        %v4119 = vshrl.u32 %v4118, 7
        %v4120 = vsub.s32 %v4117, %v4119
        %v4121 = vrot.slane %v4105, %v4120
        %v4123 = vunpack.c.l.s4 1983009808
        %v4124 = vunpack.c.0.s8 %v4123
        %v4125 = vlaneseq
        %v4126 = vshrl.u32 %v4125, 7
        %v4127 = vsub.s32 %v4124, %v4126
        %v4128 = vrot.slane %v4106, %v4127
        %v4130 = vunpack.c.l.s4 1983009808
        %v4131 = vunpack.c.0.s8 %v4130
        %v4132 = vlaneseq
        %v4133 = vshrl.u32 %v4132, 7
        %v4134 = vsub.s32 %v4131, %v4133
        %v4135 = vrot.slane %v4107, %v4134
        %v4136 = vcombine.low %v4114, %v4128
        %v4137 = vcombine.high %v4114, %v4128
        %v4138 = vcombine.low %v4121, %v4135
        %v4139 = vcombine.high %v4121, %v4135
        %v4140 = vcombine.low %v2759, %v2761
        %v4141 = vcombine.high %v2759, %v2761
        %v4142 = vcombine.low %v2906, %v2908
        %v4143 = vcombine.high %v2906, %v2908
        %v4145 = vunpack.c.l.s4 1983009808
        %v4146 = vunpack.c.0.s8 %v4145
        %v4147 = vlaneseq
        %v4148 = vshrl.u32 %v4147, 7
        %v4149 = vsub.s32 %v4146, %v4148
        %v4150 = vrot.slane %v4140, %v4149
        %v4152 = vunpack.c.l.s4 1983009808
        %v4153 = vunpack.c.0.s8 %v4152
        %v4154 = vlaneseq
        %v4155 = vshrl.u32 %v4154, 7
        %v4156 = vsub.s32 %v4153, %v4155
        %v4157 = vrot.slane %v4141, %v4156
        %v4159 = vunpack.c.l.s4 1983009808
        %v4160 = vunpack.c.0.s8 %v4159
        %v4161 = vlaneseq
        %v4162 = vshrl.u32 %v4161, 7
        %v4163 = vsub.s32 %v4160, %v4162
        %v4164 = vrot.slane %v4142, %v4163
        %v4166 = vunpack.c.l.s4 1983009808
        %v4167 = vunpack.c.0.s8 %v4166
        %v4168 = vlaneseq
        %v4169 = vshrl.u32 %v4168, 7
        %v4170 = vsub.s32 %v4167, %v4169
        %v4171 = vrot.slane %v4143, %v4170
        %v4172 = vcombine.low %v4150, %v4164
        %v4173 = vcombine.high %v4150, %v4164
        %v4174 = vcombine.low %v4157, %v4171
        %v4175 = vcombine.high %v4157, %v4171
        %v4176 = vcombine.high %v3042, %v3042
        %v4178 = vunpack.c.l.s4 1983009808
        %v4179 = vunpack.c.0.s8 %v4178
        %v4180 = vlaneseq
        %v4181 = vshrl.u32 %v4180, 7
        %v4182 = vsub.s32 %v4179, %v4181
        %v4183 = vrot.slane %v3042, %v4182
        %v4185 = vunpack.c.l.s4 1983009808
        %v4186 = vunpack.c.0.s8 %v4185
        %v4187 = vlaneseq
        %v4188 = vshrl.u32 %v4187, 7
        %v4189 = vsub.s32 %v4186, %v4188
        %v4190 = vrot.slane %v4176, %v4189
        %v4191 = vcombine.high %v4190, %v4190
        %v4192 = vcombine.low %v2479, %v2481
        %v4193 = vcombine.high %v2479, %v2481
        %v4194 = vcombine.low %v2624, %v2626
        %v4195 = vcombine.high %v2624, %v2626
        %v4197 = vunpack.c.l.s4 1983009808
        %v4198 = vunpack.c.0.s8 %v4197
        %v4199 = vlaneseq
        %v4200 = vshrl.u32 %v4199, 7
        %v4201 = vsub.s32 %v4198, %v4200
        %v4202 = vrot.slane %v4192, %v4201
        %v4204 = vunpack.c.l.s4 1983009808
        %v4205 = vunpack.c.0.s8 %v4204
        %v4206 = vlaneseq
        %v4207 = vshrl.u32 %v4206, 7
        %v4208 = vsub.s32 %v4205, %v4207
        %v4209 = vrot.slane %v4193, %v4208
        %v4211 = vunpack.c.l.s4 1983009808
        %v4212 = vunpack.c.0.s8 %v4211
        %v4213 = vlaneseq
        %v4214 = vshrl.u32 %v4213, 7
        %v4215 = vsub.s32 %v4212, %v4214
        %v4216 = vrot.slane %v4194, %v4215
        %v4218 = vunpack.c.l.s4 1983009808
        %v4219 = vunpack.c.0.s8 %v4218
        %v4220 = vlaneseq
        %v4221 = vshrl.u32 %v4220, 7
        %v4222 = vsub.s32 %v4219, %v4221
        %v4223 = vrot.slane %v4195, %v4222
        %v4224 = vcombine.low %v4202, %v4216
        %v4225 = vcombine.high %v4202, %v4216
        %v4226 = vcombine.low %v4209, %v4223
        %v4227 = vcombine.high %v4209, %v4223
        %v4228 = vcombine.low %v2765, %v2767
        %v4229 = vcombine.high %v2765, %v2767
        %v4230 = vcombine.low %v2912, %v2914
        %v4231 = vcombine.high %v2912, %v2914
        %v4233 = vunpack.c.l.s4 1983009808
        %v4234 = vunpack.c.0.s8 %v4233
        %v4235 = vlaneseq
        %v4236 = vshrl.u32 %v4235, 7
        %v4237 = vsub.s32 %v4234, %v4236
        %v4238 = vrot.slane %v4228, %v4237
        %v4240 = vunpack.c.l.s4 1983009808
        %v4241 = vunpack.c.0.s8 %v4240
        %v4242 = vlaneseq
        %v4243 = vshrl.u32 %v4242, 7
        %v4244 = vsub.s32 %v4241, %v4243
        %v4245 = vrot.slane %v4229, %v4244
        %v4247 = vunpack.c.l.s4 1983009808
        %v4248 = vunpack.c.0.s8 %v4247
        %v4249 = vlaneseq
        %v4250 = vshrl.u32 %v4249, 7
        %v4251 = vsub.s32 %v4248, %v4250
        %v4252 = vrot.slane %v4230, %v4251
        %v4254 = vunpack.c.l.s4 1983009808
        %v4255 = vunpack.c.0.s8 %v4254
        %v4256 = vlaneseq
        %v4257 = vshrl.u32 %v4256, 7
        %v4258 = vsub.s32 %v4255, %v4257
        %v4259 = vrot.slane %v4231, %v4258
        %v4260 = vcombine.low %v4238, %v4252
        %v4261 = vcombine.high %v4238, %v4252
        %v4262 = vcombine.low %v4245, %v4259
        %v4263 = vcombine.high %v4245, %v4259
        %v4264 = vcombine.high %v3047, %v3047
        %v4266 = vunpack.c.l.s4 1983009808
        %v4267 = vunpack.c.0.s8 %v4266
        %v4268 = vlaneseq
        %v4269 = vshrl.u32 %v4268, 7
        %v4270 = vsub.s32 %v4267, %v4269
        %v4271 = vrot.slane %v3047, %v4270
        %v4273 = vunpack.c.l.s4 1983009808
        %v4274 = vunpack.c.0.s8 %v4273
        %v4275 = vlaneseq
        %v4276 = vshrl.u32 %v4275, 7
        %v4277 = vsub.s32 %v4274, %v4276
        %v4278 = vrot.slane %v4264, %v4277
        %v4279 = vcombine.high %v4271, %v4271
        %v4280 = vcombine.high %v4278, %v4278
        %v4281 = vcombine.low %v2483, %v2485
        %v4282 = vcombine.high %v2483, %v2485
        %v4283 = vcombine.low %v2628, %v2630
        %v4284 = vcombine.high %v2628, %v2630
        %v4286 = vunpack.c.l.s4 1983009808
        %v4287 = vunpack.c.0.s8 %v4286
        %v4288 = vlaneseq
        %v4289 = vshrl.u32 %v4288, 7
        %v4290 = vsub.s32 %v4287, %v4289
        %v4291 = vrot.slane %v4281, %v4290
        %v4293 = vunpack.c.l.s4 1983009808
        %v4294 = vunpack.c.0.s8 %v4293
        %v4295 = vlaneseq
        %v4296 = vshrl.u32 %v4295, 7
        %v4297 = vsub.s32 %v4294, %v4296
        %v4298 = vrot.slane %v4282, %v4297
        %v4300 = vunpack.c.l.s4 1983009808
        %v4301 = vunpack.c.0.s8 %v4300
        %v4302 = vlaneseq
        %v4303 = vshrl.u32 %v4302, 7
        %v4304 = vsub.s32 %v4301, %v4303
        %v4305 = vrot.slane %v4283, %v4304
        %v4307 = vunpack.c.l.s4 1983009808
        %v4308 = vunpack.c.0.s8 %v4307
        %v4309 = vlaneseq
        %v4310 = vshrl.u32 %v4309, 7
        %v4311 = vsub.s32 %v4308, %v4310
        %v4312 = vrot.slane %v4284, %v4311
        %v4313 = vcombine.low %v4291, %v4305
        %v4314 = vcombine.high %v4291, %v4305
        %v4315 = vcombine.low %v4298, %v4312
        %v4316 = vcombine.high %v4298, %v4312
        %v4317 = vcombine.low %v2769, %v2771
        %v4318 = vcombine.high %v2769, %v2771
        %v4319 = vcombine.low %v2916, %v2918
        %v4320 = vcombine.high %v2916, %v2918
        %v4322 = vunpack.c.l.s4 1983009808
        %v4323 = vunpack.c.0.s8 %v4322
        %v4324 = vlaneseq
        %v4325 = vshrl.u32 %v4324, 7
        %v4326 = vsub.s32 %v4323, %v4325
        %v4327 = vrot.slane %v4317, %v4326
        %v4329 = vunpack.c.l.s4 1983009808
        %v4330 = vunpack.c.0.s8 %v4329
        %v4331 = vlaneseq
        %v4332 = vshrl.u32 %v4331, 7
        %v4333 = vsub.s32 %v4330, %v4332
        %v4334 = vrot.slane %v4318, %v4333
        %v4336 = vunpack.c.l.s4 1983009808
        %v4337 = vunpack.c.0.s8 %v4336
        %v4338 = vlaneseq
        %v4339 = vshrl.u32 %v4338, 7
        %v4340 = vsub.s32 %v4337, %v4339
        %v4341 = vrot.slane %v4319, %v4340
        %v4343 = vunpack.c.l.s4 1983009808
        %v4344 = vunpack.c.0.s8 %v4343
        %v4345 = vlaneseq
        %v4346 = vshrl.u32 %v4345, 7
        %v4347 = vsub.s32 %v4344, %v4346
        %v4348 = vrot.slane %v4320, %v4347
        %v4349 = vcombine.low %v4327, %v4341
        %v4350 = vcombine.high %v4327, %v4341
        %v4351 = vcombine.low %v4334, %v4348
        %v4352 = vcombine.high %v4334, %v4348
        %v4353 = vcombine.high %v3050, %v3050
        %v4355 = vunpack.c.l.s4 1983009808
        %v4356 = vunpack.c.0.s8 %v4355
        %v4357 = vlaneseq
        %v4358 = vshrl.u32 %v4357, 7
        %v4359 = vsub.s32 %v4356, %v4358
        %v4360 = vrot.slane %v3050, %v4359
        %v4362 = vunpack.c.l.s4 1983009808
        %v4363 = vunpack.c.0.s8 %v4362
        %v4364 = vlaneseq
        %v4365 = vshrl.u32 %v4364, 7
        %v4366 = vsub.s32 %v4363, %v4365
        %v4367 = vrot.slane %v4353, %v4366
        %v4368 = vcombine.high %v4360, %v4360
        %v4369 = vcombine.high %v4367, %v4367
        %v4370 = vcombine.low %v2489, %v2491
        %v4371 = vcombine.high %v2489, %v2491
        %v4372 = vcombine.low %v2634, %v2636
        %v4373 = vcombine.high %v2634, %v2636
        %v4375 = vunpack.c.l.s4 1983009808
        %v4376 = vunpack.c.0.s8 %v4375
        %v4377 = vlaneseq
        %v4378 = vshrl.u32 %v4377, 7
        %v4379 = vsub.s32 %v4376, %v4378
        %v4380 = vrot.slane %v4370, %v4379
        %v4382 = vunpack.c.l.s4 1983009808
        %v4383 = vunpack.c.0.s8 %v4382
        %v4384 = vlaneseq
        %v4385 = vshrl.u32 %v4384, 7
        %v4386 = vsub.s32 %v4383, %v4385
        %v4387 = vrot.slane %v4371, %v4386
        %v4389 = vunpack.c.l.s4 1983009808
        %v4390 = vunpack.c.0.s8 %v4389
        %v4391 = vlaneseq
        %v4392 = vshrl.u32 %v4391, 7
        %v4393 = vsub.s32 %v4390, %v4392
        %v4394 = vrot.slane %v4372, %v4393
        %v4396 = vunpack.c.l.s4 1983009808
        %v4397 = vunpack.c.0.s8 %v4396
        %v4398 = vlaneseq
        %v4399 = vshrl.u32 %v4398, 7
        %v4400 = vsub.s32 %v4397, %v4399
        %v4401 = vrot.slane %v4373, %v4400
        %v4402 = vcombine.low %v4380, %v4394
        %v4403 = vcombine.high %v4380, %v4394
        %v4404 = vcombine.low %v4387, %v4401
        %v4405 = vcombine.high %v4387, %v4401
        %v4406 = vcombine.low %v2775, %v2777
        %v4407 = vcombine.high %v2775, %v2777
        %v4408 = vcombine.low %v2922, %v2924
        %v4409 = vcombine.high %v2922, %v2924
        %v4411 = vunpack.c.l.s4 1983009808
        %v4412 = vunpack.c.0.s8 %v4411
        %v4413 = vlaneseq
        %v4414 = vshrl.u32 %v4413, 7
        %v4415 = vsub.s32 %v4412, %v4414
        %v4416 = vrot.slane %v4406, %v4415
        %v4418 = vunpack.c.l.s4 1983009808
        %v4419 = vunpack.c.0.s8 %v4418
        %v4420 = vlaneseq
        %v4421 = vshrl.u32 %v4420, 7
        %v4422 = vsub.s32 %v4419, %v4421
        %v4423 = vrot.slane %v4407, %v4422
        %v4425 = vunpack.c.l.s4 1983009808
        %v4426 = vunpack.c.0.s8 %v4425
        %v4427 = vlaneseq
        %v4428 = vshrl.u32 %v4427, 7
        %v4429 = vsub.s32 %v4426, %v4428
        %v4430 = vrot.slane %v4408, %v4429
        %v4432 = vunpack.c.l.s4 1983009808
        %v4433 = vunpack.c.0.s8 %v4432
        %v4434 = vlaneseq
        %v4435 = vshrl.u32 %v4434, 7
        %v4436 = vsub.s32 %v4433, %v4435
        %v4437 = vrot.slane %v4409, %v4436
        %v4438 = vcombine.low %v4416, %v4430
        %v4439 = vcombine.high %v4416, %v4430
        %v4440 = vcombine.low %v4423, %v4437
        %v4441 = vcombine.high %v4423, %v4437
        %v4442 = vcombine.high %v3055, %v3055
        %v4444 = vunpack.c.l.s4 1983009808
        %v4445 = vunpack.c.0.s8 %v4444
        %v4446 = vlaneseq
        %v4447 = vshrl.u32 %v4446, 7
        %v4448 = vsub.s32 %v4445, %v4447
        %v4449 = vrot.slane %v3055, %v4448
        %v4451 = vunpack.c.l.s4 1983009808
        %v4452 = vunpack.c.0.s8 %v4451
        %v4453 = vlaneseq
        %v4454 = vshrl.u32 %v4453, 7
        %v4455 = vsub.s32 %v4452, %v4454
        %v4456 = vrot.slane %v4442, %v4455
        %v4457 = vcombine.high %v4449, %v4449
        %v4458 = vcombine.high %v4456, %v4456
        %v4459 = vcombine.low %v2493, %v2495
        %v4460 = vcombine.high %v2493, %v2495
        %v4461 = vcombine.low %v2638, %v2640
        %v4462 = vcombine.high %v2638, %v2640
        %v4464 = vunpack.c.l.s4 1983009808
        %v4465 = vunpack.c.0.s8 %v4464
        %v4466 = vlaneseq
        %v4467 = vshrl.u32 %v4466, 7
        %v4468 = vsub.s32 %v4465, %v4467
        %v4469 = vrot.slane %v4459, %v4468
        %v4471 = vunpack.c.l.s4 1983009808
        %v4472 = vunpack.c.0.s8 %v4471
        %v4473 = vlaneseq
        %v4474 = vshrl.u32 %v4473, 7
        %v4475 = vsub.s32 %v4472, %v4474
        %v4476 = vrot.slane %v4460, %v4475
        %v4478 = vunpack.c.l.s4 1983009808
        %v4479 = vunpack.c.0.s8 %v4478
        %v4480 = vlaneseq
        %v4481 = vshrl.u32 %v4480, 7
        %v4482 = vsub.s32 %v4479, %v4481
        %v4483 = vrot.slane %v4461, %v4482
        %v4485 = vunpack.c.l.s4 1983009808
        %v4486 = vunpack.c.0.s8 %v4485
        %v4487 = vlaneseq
        %v4488 = vshrl.u32 %v4487, 7
        %v4489 = vsub.s32 %v4486, %v4488
        %v4490 = vrot.slane %v4462, %v4489
        %v4491 = vcombine.low %v4469, %v4483
        %v4492 = vcombine.high %v4469, %v4483
        %v4493 = vcombine.low %v4476, %v4490
        %v4494 = vcombine.high %v4476, %v4490
        %v4495 = vcombine.low %v2779, %v2781
        %v4496 = vcombine.high %v2779, %v2781
        %v4497 = vcombine.low %v2926, %v2928
        %v4498 = vcombine.high %v2926, %v2928
        %v4500 = vunpack.c.l.s4 1983009808
        %v4501 = vunpack.c.0.s8 %v4500
        %v4502 = vlaneseq
        %v4503 = vshrl.u32 %v4502, 7
        %v4504 = vsub.s32 %v4501, %v4503
        %v4505 = vrot.slane %v4495, %v4504
        %v4507 = vunpack.c.l.s4 1983009808
        %v4508 = vunpack.c.0.s8 %v4507
        %v4509 = vlaneseq
        %v4510 = vshrl.u32 %v4509, 7
        %v4511 = vsub.s32 %v4508, %v4510
        %v4512 = vrot.slane %v4496, %v4511
        %v4514 = vunpack.c.l.s4 1983009808
        %v4515 = vunpack.c.0.s8 %v4514
        %v4516 = vlaneseq
        %v4517 = vshrl.u32 %v4516, 7
        %v4518 = vsub.s32 %v4515, %v4517
        %v4519 = vrot.slane %v4497, %v4518
        %v4521 = vunpack.c.l.s4 1983009808
        %v4522 = vunpack.c.0.s8 %v4521
        %v4523 = vlaneseq
        %v4524 = vshrl.u32 %v4523, 7
        %v4525 = vsub.s32 %v4522, %v4524
        %v4526 = vrot.slane %v4498, %v4525
        %v4527 = vcombine.low %v4505, %v4519
        %v4528 = vcombine.high %v4505, %v4519
        %v4529 = vcombine.low %v4512, %v4526
        %v4530 = vcombine.high %v4512, %v4526
        %v4531 = vcombine.high %v3058, %v3058
        %v4533 = vunpack.c.l.s4 1983009808
        %v4534 = vunpack.c.0.s8 %v4533
        %v4535 = vlaneseq
        %v4536 = vshrl.u32 %v4535, 7
        %v4537 = vsub.s32 %v4534, %v4536
        %v4538 = vrot.slane %v3058, %v4537
        %v4540 = vunpack.c.l.s4 1983009808
        %v4541 = vunpack.c.0.s8 %v4540
        %v4542 = vlaneseq
        %v4543 = vshrl.u32 %v4542, 7
        %v4544 = vsub.s32 %v4541, %v4543
        %v4545 = vrot.slane %v4531, %v4544
        %v4546 = vcombine.high %v4538, %v4538
        %v4547 = vcombine.low %v2499, %v2501
        %v4548 = vcombine.high %v2499, %v2501
        %v4549 = vcombine.low %v2644, %v2646
        %v4550 = vcombine.high %v2644, %v2646
        %v4552 = vunpack.c.l.s4 1983009808
        %v4553 = vunpack.c.0.s8 %v4552
        %v4554 = vlaneseq
        %v4555 = vshrl.u32 %v4554, 7
        %v4556 = vsub.s32 %v4553, %v4555
        %v4557 = vrot.slane %v4547, %v4556
        %v4559 = vunpack.c.l.s4 1983009808
        %v4560 = vunpack.c.0.s8 %v4559
        %v4561 = vlaneseq
        %v4562 = vshrl.u32 %v4561, 7
        %v4563 = vsub.s32 %v4560, %v4562
        %v4564 = vrot.slane %v4548, %v4563
        %v4566 = vunpack.c.l.s4 1983009808
        %v4567 = vunpack.c.0.s8 %v4566
        %v4568 = vlaneseq
        %v4569 = vshrl.u32 %v4568, 7
        %v4570 = vsub.s32 %v4567, %v4569
        %v4571 = vrot.slane %v4549, %v4570
        %v4573 = vunpack.c.l.s4 1983009808
        %v4574 = vunpack.c.0.s8 %v4573
        %v4575 = vlaneseq
        %v4576 = vshrl.u32 %v4575, 7
        %v4577 = vsub.s32 %v4574, %v4576
        %v4578 = vrot.slane %v4550, %v4577
        %v4579 = vcombine.low %v4557, %v4571
        %v4580 = vcombine.high %v4557, %v4571
        %v4581 = vcombine.low %v4564, %v4578
        %v4582 = vcombine.high %v4564, %v4578
        %v4583 = vcombine.low %v2785, %v2787
        %v4584 = vcombine.high %v2785, %v2787
        %v4585 = vcombine.low %v2932, %v2934
        %v4586 = vcombine.high %v2932, %v2934
        %v4588 = vunpack.c.l.s4 1983009808
        %v4589 = vunpack.c.0.s8 %v4588
        %v4590 = vlaneseq
        %v4591 = vshrl.u32 %v4590, 7
        %v4592 = vsub.s32 %v4589, %v4591
        %v4593 = vrot.slane %v4583, %v4592
        %v4595 = vunpack.c.l.s4 1983009808
        %v4596 = vunpack.c.0.s8 %v4595
        %v4597 = vlaneseq
        %v4598 = vshrl.u32 %v4597, 7
        %v4599 = vsub.s32 %v4596, %v4598
        %v4600 = vrot.slane %v4584, %v4599
        %v4602 = vunpack.c.l.s4 1983009808
        %v4603 = vunpack.c.0.s8 %v4602
        %v4604 = vlaneseq
        %v4605 = vshrl.u32 %v4604, 7
        %v4606 = vsub.s32 %v4603, %v4605
        %v4607 = vrot.slane %v4585, %v4606
        %v4609 = vunpack.c.l.s4 1983009808
        %v4610 = vunpack.c.0.s8 %v4609
        %v4611 = vlaneseq
        %v4612 = vshrl.u32 %v4611, 7
        %v4613 = vsub.s32 %v4610, %v4612
        %v4614 = vrot.slane %v4586, %v4613
        %v4615 = vcombine.low %v4593, %v4607
        %v4616 = vcombine.high %v4593, %v4607
        %v4617 = vcombine.low %v4600, %v4614
        %v4618 = vcombine.high %v4600, %v4614
        %v4619 = vcombine.high %v3063, %v3063
        %v4621 = vunpack.c.l.s4 1983009808
        %v4622 = vunpack.c.0.s8 %v4621
        %v4623 = vlaneseq
        %v4624 = vshrl.u32 %v4623, 7
        %v4625 = vsub.s32 %v4622, %v4624
        %v4626 = vrot.slane %v3063, %v4625
        %v4628 = vunpack.c.l.s4 1983009808
        %v4629 = vunpack.c.0.s8 %v4628
        %v4630 = vlaneseq
        %v4631 = vshrl.u32 %v4630, 7
        %v4632 = vsub.s32 %v4629, %v4631
        %v4633 = vrot.slane %v4619, %v4632
        %v4634 = vcombine.high %v4626, %v4626
        %v4635 = vcombine.high %v4633, %v4633
        %v4636 = vcombine.low %v2503, %v2505
        %v4637 = vcombine.high %v2503, %v2505
        %v4638 = vcombine.low %v2648, %v2650
        %v4639 = vcombine.high %v2648, %v2650
        %v4641 = vunpack.c.l.s4 1983009808
        %v4642 = vunpack.c.0.s8 %v4641
        %v4643 = vlaneseq
        %v4644 = vshrl.u32 %v4643, 7
        %v4645 = vsub.s32 %v4642, %v4644
        %v4646 = vrot.slane %v4636, %v4645
        %v4648 = vunpack.c.l.s4 1983009808
        %v4649 = vunpack.c.0.s8 %v4648
        %v4650 = vlaneseq
        %v4651 = vshrl.u32 %v4650, 7
        %v4652 = vsub.s32 %v4649, %v4651
        %v4653 = vrot.slane %v4637, %v4652
        %v4655 = vunpack.c.l.s4 1983009808
        %v4656 = vunpack.c.0.s8 %v4655
        %v4657 = vlaneseq
        %v4658 = vshrl.u32 %v4657, 7
        %v4659 = vsub.s32 %v4656, %v4658
        %v4660 = vrot.slane %v4638, %v4659
        %v4662 = vunpack.c.l.s4 1983009808
        %v4663 = vunpack.c.0.s8 %v4662
        %v4664 = vlaneseq
        %v4665 = vshrl.u32 %v4664, 7
        %v4666 = vsub.s32 %v4663, %v4665
        %v4667 = vrot.slane %v4639, %v4666
        %v4668 = vcombine.low %v4646, %v4660
        %v4669 = vcombine.high %v4646, %v4660
        %v4670 = vcombine.low %v4653, %v4667
        %v4671 = vcombine.high %v4653, %v4667
        %v4672 = vcombine.low %v2789, %v2791
        %v4673 = vcombine.high %v2789, %v2791
        %v4674 = vcombine.low %v2936, %v2938
        %v4675 = vcombine.high %v2936, %v2938
        %v4677 = vunpack.c.l.s4 1983009808
        %v4678 = vunpack.c.0.s8 %v4677
        %v4679 = vlaneseq
        %v4680 = vshrl.u32 %v4679, 7
        %v4681 = vsub.s32 %v4678, %v4680
        %v4682 = vrot.slane %v4672, %v4681
        %v4684 = vunpack.c.l.s4 1983009808
        %v4685 = vunpack.c.0.s8 %v4684
        %v4686 = vlaneseq
        %v4687 = vshrl.u32 %v4686, 7
        %v4688 = vsub.s32 %v4685, %v4687
        %v4689 = vrot.slane %v4673, %v4688
        %v4691 = vunpack.c.l.s4 1983009808
        %v4692 = vunpack.c.0.s8 %v4691
        %v4693 = vlaneseq
        %v4694 = vshrl.u32 %v4693, 7
        %v4695 = vsub.s32 %v4692, %v4694
        %v4696 = vrot.slane %v4674, %v4695
        %v4698 = vunpack.c.l.s4 1983009808
        %v4699 = vunpack.c.0.s8 %v4698
        %v4700 = vlaneseq
        %v4701 = vshrl.u32 %v4700, 7
        %v4702 = vsub.s32 %v4699, %v4701
        %v4703 = vrot.slane %v4675, %v4702
        %v4704 = vcombine.low %v4682, %v4696
        %v4705 = vcombine.high %v4682, %v4696
        %v4706 = vcombine.low %v4689, %v4703
        %v4707 = vcombine.high %v4689, %v4703
        %v4708 = vcombine.high %v3066, %v3066
        %v4710 = vunpack.c.l.s4 1983009808
        %v4711 = vunpack.c.0.s8 %v4710
        %v4712 = vlaneseq
        %v4713 = vshrl.u32 %v4712, 7
        %v4714 = vsub.s32 %v4711, %v4713
        %v4715 = vrot.slane %v3066, %v4714
        %v4717 = vunpack.c.l.s4 1983009808
        %v4718 = vunpack.c.0.s8 %v4717
        %v4719 = vlaneseq
        %v4720 = vshrl.u32 %v4719, 7
        %v4721 = vsub.s32 %v4718, %v4720
        %v4722 = vrot.slane %v4708, %v4721
        %v4723 = vcombine.high %v4715, %v4715
        %v4724 = vcombine.high %v4722, %v4722
        %v4725 = vcombine.low %v2509, %v2511
        %v4726 = vcombine.high %v2509, %v2511
        %v4727 = vcombine.low %v2654, %v2656
        %v4728 = vcombine.high %v2654, %v2656
        %v4730 = vunpack.c.l.s4 1983009808
        %v4731 = vunpack.c.0.s8 %v4730
        %v4732 = vlaneseq
        %v4733 = vshrl.u32 %v4732, 7
        %v4734 = vsub.s32 %v4731, %v4733
        %v4735 = vrot.slane %v4725, %v4734
        %v4737 = vunpack.c.l.s4 1983009808
        %v4738 = vunpack.c.0.s8 %v4737
        %v4739 = vlaneseq
        %v4740 = vshrl.u32 %v4739, 7
        %v4741 = vsub.s32 %v4738, %v4740
        %v4742 = vrot.slane %v4726, %v4741
        %v4744 = vunpack.c.l.s4 1983009808
        %v4745 = vunpack.c.0.s8 %v4744
        %v4746 = vlaneseq
        %v4747 = vshrl.u32 %v4746, 7
        %v4748 = vsub.s32 %v4745, %v4747
        %v4749 = vrot.slane %v4727, %v4748
        %v4751 = vunpack.c.l.s4 1983009808
        %v4752 = vunpack.c.0.s8 %v4751
        %v4753 = vlaneseq
        %v4754 = vshrl.u32 %v4753, 7
        %v4755 = vsub.s32 %v4752, %v4754
        %v4756 = vrot.slane %v4728, %v4755
        %v4757 = vcombine.low %v4735, %v4749
        %v4758 = vcombine.high %v4735, %v4749
        %v4759 = vcombine.low %v4742, %v4756
        %v4760 = vcombine.high %v4742, %v4756
        %v4761 = vcombine.low %v2795, %v2797
        %v4762 = vcombine.high %v2795, %v2797
        %v4763 = vcombine.low %v2942, %v2944
        %v4764 = vcombine.high %v2942, %v2944
        %v4766 = vunpack.c.l.s4 1983009808
        %v4767 = vunpack.c.0.s8 %v4766
        %v4768 = vlaneseq
        %v4769 = vshrl.u32 %v4768, 7
        %v4770 = vsub.s32 %v4767, %v4769
        %v4771 = vrot.slane %v4761, %v4770
        %v4773 = vunpack.c.l.s4 1983009808
        %v4774 = vunpack.c.0.s8 %v4773
        %v4775 = vlaneseq
        %v4776 = vshrl.u32 %v4775, 7
        %v4777 = vsub.s32 %v4774, %v4776
        %v4778 = vrot.slane %v4762, %v4777
        %v4780 = vunpack.c.l.s4 1983009808
        %v4781 = vunpack.c.0.s8 %v4780
        %v4782 = vlaneseq
        %v4783 = vshrl.u32 %v4782, 7
        %v4784 = vsub.s32 %v4781, %v4783
        %v4785 = vrot.slane %v4763, %v4784
        %v4787 = vunpack.c.l.s4 1983009808
        %v4788 = vunpack.c.0.s8 %v4787
        %v4789 = vlaneseq
        %v4790 = vshrl.u32 %v4789, 7
        %v4791 = vsub.s32 %v4788, %v4790
        %v4792 = vrot.slane %v4764, %v4791
        %v4793 = vcombine.low %v4771, %v4785
        %v4794 = vcombine.high %v4771, %v4785
        %v4795 = vcombine.low %v4778, %v4792
        %v4796 = vcombine.high %v4778, %v4792
        %v4797 = vcombine.high %v3071, %v3071
        %v4799 = vunpack.c.l.s4 1983009808
        %v4800 = vunpack.c.0.s8 %v4799
        %v4801 = vlaneseq
        %v4802 = vshrl.u32 %v4801, 7
        %v4803 = vsub.s32 %v4800, %v4802
        %v4804 = vrot.slane %v3071, %v4803
        %v4806 = vunpack.c.l.s4 1983009808
        %v4807 = vunpack.c.0.s8 %v4806
        %v4808 = vlaneseq
        %v4809 = vshrl.u32 %v4808, 7
        %v4810 = vsub.s32 %v4807, %v4809
        %v4811 = vrot.slane %v4797, %v4810
        %v4812 = vcombine.high %v4804, %v4804
        %v4813 = vcombine.high %v4811, %v4811
        %v4814 = vcombine.low %v2513, %v2515
        %v4815 = vcombine.high %v2513, %v2515
        %v4816 = vcombine.low %v2658, %v2660
        %v4817 = vcombine.high %v2658, %v2660
        %v4819 = vunpack.c.l.s4 1983009808
        %v4820 = vunpack.c.0.s8 %v4819
        %v4821 = vlaneseq
        %v4822 = vshrl.u32 %v4821, 7
        %v4823 = vsub.s32 %v4820, %v4822
        %v4824 = vrot.slane %v4814, %v4823
        %v4826 = vunpack.c.l.s4 1983009808
        %v4827 = vunpack.c.0.s8 %v4826
        %v4828 = vlaneseq
        %v4829 = vshrl.u32 %v4828, 7
        %v4830 = vsub.s32 %v4827, %v4829
        %v4831 = vrot.slane %v4815, %v4830
        %v4833 = vunpack.c.l.s4 1983009808
        %v4834 = vunpack.c.0.s8 %v4833
        %v4835 = vlaneseq
        %v4836 = vshrl.u32 %v4835, 7
        %v4837 = vsub.s32 %v4834, %v4836
        %v4838 = vrot.slane %v4816, %v4837
        %v4840 = vunpack.c.l.s4 1983009808
        %v4841 = vunpack.c.0.s8 %v4840
        %v4842 = vlaneseq
        %v4843 = vshrl.u32 %v4842, 7
        %v4844 = vsub.s32 %v4841, %v4843
        %v4845 = vrot.slane %v4817, %v4844
        %v4846 = vcombine.low %v4824, %v4838
        %v4847 = vcombine.high %v4824, %v4838
        %v4848 = vcombine.low %v4831, %v4845
        %v4849 = vcombine.high %v4831, %v4845
        %v4850 = vcombine.low %v2799, %v2801
        %v4851 = vcombine.high %v2799, %v2801
        %v4852 = vcombine.low %v2946, %v2948
        %v4853 = vcombine.high %v2946, %v2948
        %v4855 = vunpack.c.l.s4 1983009808
        %v4856 = vunpack.c.0.s8 %v4855
        %v4857 = vlaneseq
        %v4858 = vshrl.u32 %v4857, 7
        %v4859 = vsub.s32 %v4856, %v4858
        %v4860 = vrot.slane %v4850, %v4859
        %v4862 = vunpack.c.l.s4 1983009808
        %v4863 = vunpack.c.0.s8 %v4862
        %v4864 = vlaneseq
        %v4865 = vshrl.u32 %v4864, 7
        %v4866 = vsub.s32 %v4863, %v4865
        %v4867 = vrot.slane %v4851, %v4866
        %v4869 = vunpack.c.l.s4 1983009808
        %v4870 = vunpack.c.0.s8 %v4869
        %v4871 = vlaneseq
        %v4872 = vshrl.u32 %v4871, 7
        %v4873 = vsub.s32 %v4870, %v4872
        %v4874 = vrot.slane %v4852, %v4873
        %v4876 = vunpack.c.l.s4 1983009808
        %v4877 = vunpack.c.0.s8 %v4876
        %v4878 = vlaneseq
        %v4879 = vshrl.u32 %v4878, 7
        %v4880 = vsub.s32 %v4877, %v4879
        %v4881 = vrot.slane %v4853, %v4880
        %v4882 = vcombine.low %v4860, %v4874
        %v4883 = vcombine.high %v4860, %v4874
        %v4884 = vcombine.low %v4867, %v4881
        %v4885 = vcombine.high %v4867, %v4881
        %v4886 = vcombine.high %v3074, %v3074
        %v4888 = vunpack.c.l.s4 1983009808
        %v4889 = vunpack.c.0.s8 %v4888
        %v4890 = vlaneseq
        %v4891 = vshrl.u32 %v4890, 7
        %v4892 = vsub.s32 %v4889, %v4891
        %v4893 = vrot.slane %v3074, %v4892
        %v4895 = vunpack.c.l.s4 1983009808
        %v4896 = vunpack.c.0.s8 %v4895
        %v4897 = vlaneseq
        %v4898 = vshrl.u32 %v4897, 7
        %v4899 = vsub.s32 %v4896, %v4898
        %v4900 = vrot.slane %v4886, %v4899
        %v4901 = vcombine.high %v4893, %v4893
        %v4902 = vcombine.high %v4900, %v4900
        %v4903 = vcombine.low %v2805, %v2807
        %v4904 = vcombine.high %v2805, %v2807
        %v4905 = vcombine.low %v2952, %v2954
        %v4906 = vcombine.high %v2952, %v2954
        %v4908 = vunpack.c.l.s4 1983009808
        %v4909 = vunpack.c.0.s8 %v4908
        %v4910 = vlaneseq
        %v4911 = vshrl.u32 %v4910, 7
        %v4912 = vsub.s32 %v4909, %v4911
        %v4913 = vrot.slane %v4903, %v4912
        %v4915 = vunpack.c.l.s4 1983009808
        %v4916 = vunpack.c.0.s8 %v4915
        %v4917 = vlaneseq
        %v4918 = vshrl.u32 %v4917, 7
        %v4919 = vsub.s32 %v4916, %v4918
        %v4920 = vrot.slane %v4904, %v4919
        %v4922 = vunpack.c.l.s4 1983009808
        %v4923 = vunpack.c.0.s8 %v4922
        %v4924 = vlaneseq
        %v4925 = vshrl.u32 %v4924, 7
        %v4926 = vsub.s32 %v4923, %v4925
        %v4927 = vrot.slane %v4905, %v4926
        %v4929 = vunpack.c.l.s4 1983009808
        %v4930 = vunpack.c.0.s8 %v4929
        %v4931 = vlaneseq
        %v4932 = vshrl.u32 %v4931, 7
        %v4933 = vsub.s32 %v4930, %v4932
        %v4934 = vrot.slane %v4906, %v4933
        %v4935 = vcombine.low %v4913, %v4927
        %v4936 = vcombine.high %v4913, %v4927
        %v4937 = vcombine.low %v4920, %v4934
        %v4938 = vcombine.high %v4920, %v4934
        %v4939 = vcombine.high %v3079, %v3079
        %v4941 = vunpack.c.l.s4 1983009808
        %v4942 = vunpack.c.0.s8 %v4941
        %v4943 = vlaneseq
        %v4944 = vshrl.u32 %v4943, 7
        %v4945 = vsub.s32 %v4942, %v4944
        %v4946 = vrot.slane %v3079, %v4945
        %v4948 = vunpack.c.l.s4 1983009808
        %v4949 = vunpack.c.0.s8 %v4948
        %v4950 = vlaneseq
        %v4951 = vshrl.u32 %v4950, 7
        %v4952 = vsub.s32 %v4949, %v4951
        %v4953 = vrot.slane %v4939, %v4952
        %v4954 = vcombine.high %v4953, %v4953
        %v4955 = vcombine.low %v2809, %v2811
        %v4956 = vcombine.high %v2809, %v2811
        %v4957 = vcombine.low %v2956, %v2958
        %v4958 = vcombine.high %v2956, %v2958
        %v4960 = vunpack.c.l.s4 1983009808
        %v4961 = vunpack.c.0.s8 %v4960
        %v4962 = vlaneseq
        %v4963 = vshrl.u32 %v4962, 7
        %v4964 = vsub.s32 %v4961, %v4963
        %v4965 = vrot.slane %v4955, %v4964
        %v4967 = vunpack.c.l.s4 1983009808
        %v4968 = vunpack.c.0.s8 %v4967
        %v4969 = vlaneseq
        %v4970 = vshrl.u32 %v4969, 7
        %v4971 = vsub.s32 %v4968, %v4970
        %v4972 = vrot.slane %v4956, %v4971
        %v4974 = vunpack.c.l.s4 1983009808
        %v4975 = vunpack.c.0.s8 %v4974
        %v4976 = vlaneseq
        %v4977 = vshrl.u32 %v4976, 7
        %v4978 = vsub.s32 %v4975, %v4977
        %v4979 = vrot.slane %v4957, %v4978
        %v4981 = vunpack.c.l.s4 1983009808
        %v4982 = vunpack.c.0.s8 %v4981
        %v4983 = vlaneseq
        %v4984 = vshrl.u32 %v4983, 7
        %v4985 = vsub.s32 %v4982, %v4984
        %v4986 = vrot.slane %v4958, %v4985
        %v4987 = vcombine.low %v4965, %v4979
        %v4988 = vcombine.high %v4965, %v4979
        %v4989 = vcombine.low %v4972, %v4986
        %v4990 = vcombine.high %v4972, %v4986
        %v4991 = vcombine.high %v3082, %v3082
        %v4993 = vunpack.c.l.s4 1983009808
        %v4994 = vunpack.c.0.s8 %v4993
        %v4995 = vlaneseq
        %v4996 = vshrl.u32 %v4995, 7
        %v4997 = vsub.s32 %v4994, %v4996
        %v4998 = vrot.slane %v3082, %v4997
        %v5000 = vunpack.c.l.s4 1983009808
        %v5001 = vunpack.c.0.s8 %v5000
        %v5002 = vlaneseq
        %v5003 = vshrl.u32 %v5002, 7
        %v5004 = vsub.s32 %v5001, %v5003
        %v5005 = vrot.slane %v4991, %v5004
        %v5006 = vcombine.high %v4998, %v4998
        %v5007 = vcombine.high %v5005, %v5005
        %v5008 = vcombine.low %v2815, %v2817
        %v5009 = vcombine.low %v2962, %v2964
        %v5011 = vunpack.c.l.s4 1983009808
        %v5012 = vunpack.c.0.s8 %v5011
        %v5013 = vlaneseq
        %v5014 = vshrl.u32 %v5013, 7
        %v5015 = vsub.s32 %v5012, %v5014
        %v5016 = vrot.slane %v5008, %v5015
        %v5018 = vunpack.c.l.s4 1983009808
        %v5019 = vunpack.c.0.s8 %v5018
        %v5020 = vlaneseq
        %v5021 = vshrl.u32 %v5020, 7
        %v5022 = vsub.s32 %v5019, %v5021
        %v5023 = vrot.slane %v5009, %v5022
        %v5024 = vcombine.low %v5016, %v5023
        %v5025 = vcombine.high %v5016, %v5023
        %v5027 = vunpack.c.l.s4 1983009808
        %v5028 = vunpack.c.0.s8 %v5027
        %v5029 = vlaneseq
        %v5030 = vshrl.u32 %v5029, 7
        %v5031 = vsub.s32 %v5028, %v5030
        %v5032 = vrot.slane %v3087, %v5031
        %v5033 = vcombine.high %v5032, %v5032
        %vm5162 = vcmask 1040384
        %vm5163 = vcmask 1042434
        %vm5164 = vmor %vm5162, %vm5163
        %vm5165 = vcmask 1044484
        %vm5166 = vmor %vm5164, %vm5165
        %vm5167 = vcmask 1046534
        %vm5168 = vmor %vm5166, %vm5167
        %v5169 = vrot.slane %v3307, 7
        %v5170 = vrot.slane %v5169, 2
        %v5171 = vrot.slane %v3308, 7
        %v5172 = vsel %vm5168, %v5170, %v5171
        %v5173 = vrot.slane %v5171, 2
        %v5174 = vrot.slane %v3309, 7
        %v5175 = vsel %vm5168, %v5173, %v5174
        %v5176 = vrot.slane %v5174, 2
        %v5177 = vrot.slane %v3310, 7
        %v5178 = vsel %vm5168, %v5176, %v5177
        %v5179 = vrot.slane %v5177, 2
        %v5180 = vrot.slane %v3343, 7
        %v5181 = vsel %vm5168, %v5179, %v5180
        %v5182 = vrot.slane %v5180, 2
        %v5183 = vrot.slane %v3344, 7
        %v5184 = vsel %vm5168, %v5182, %v5183
        %v5185 = vrot.slane %v5183, 2
        %v5186 = vrot.slane %v3345, 7
        %v5187 = vsel %vm5168, %v5185, %v5186
        %v5188 = vrot.slane %v5186, 2
        %v5189 = vrot.slane %v3346, 7
        %v5190 = vsel %vm5168, %v5188, %v5189
        %v5191 = vrot.slane %v5189, 2
        %v5192 = vrot.slane %v3379, 7
        %v5193 = vsel %vm5168, %v5191, %v5192
        %v5194 = vrot.slane %v3380, 7
        %v5195 = vrot.slane %v5194, 2
        %v5196 = vrot.slane %v3381, 7
        %v5197 = vsel %vm5168, %v5195, %v5196
        %v5198 = vrot.slane %v5196, 2
        %v5199 = vrot.slane %v3382, 7
        %v5200 = vsel %vm5168, %v5198, %v5199
        %v5201 = vrot.slane %v5199, 2
        %v5202 = vrot.slane %v3450, 7
        %v5203 = vsel %vm5168, %v5201, %v5202
        %v5204 = vrot.slane %v5202, 2
        %v5205 = vrot.slane %v3451, 7
        %v5206 = vsel %vm5168, %v5204, %v5205
        %v5207 = vrot.slane %v5205, 2
        %v5208 = vrot.slane %v3452, 7
        %v5209 = vsel %vm5168, %v5207, %v5208
        %v5210 = vrot.slane %v5208, 2
        %v5211 = vrot.slane %v3453, 7
        %v5212 = vsel %vm5168, %v5210, %v5211
        %v5213 = vrot.slane %v5211, 2
        %v5214 = vrot.slane %v3522, 7
        %v5215 = vsel %vm5168, %v5213, %v5214
        %v5216 = vrot.slane %v5214, 2
        %v5217 = vrot.slane %v3523, 7
        %v5218 = vsel %vm5168, %v5216, %v5217
        %v5219 = vrot.slane %v3524, 7
        %v5220 = vrot.slane %v5219, 2
        %v5221 = vrot.slane %v3525, 7
        %v5222 = vsel %vm5168, %v5220, %v5221
        %v5223 = vrot.slane %v5221, 2
        %v5224 = vrot.slane %v3603, 7
        %v5225 = vsel %vm5168, %v5223, %v5224
        %v5226 = vrot.slane %v5224, 2
        %v5227 = vrot.slane %v3604, 7
        %v5228 = vsel %vm5168, %v5226, %v5227
        %v5229 = vrot.slane %v5227, 2
        %v5230 = vrot.slane %v3605, 7
        %v5231 = vsel %vm5168, %v5229, %v5230
        %v5232 = vrot.slane %v5230, 2
        %v5233 = vrot.slane %v3606, 7
        %v5234 = vsel %vm5168, %v5232, %v5233
        %v5235 = vrot.slane %v5233, 2
        %v5236 = vrot.slane %v3692, 7
        %v5237 = vsel %vm5168, %v5235, %v5236
        %v5238 = vrot.slane %v5236, 2
        %v5239 = vrot.slane %v3693, 7
        %v5240 = vsel %vm5168, %v5238, %v5239
        %v5241 = vrot.slane %v5239, 2
        %v5242 = vrot.slane %v3694, 7
        %v5243 = vsel %vm5168, %v5241, %v5242
        %v5244 = vrot.slane %v3695, 7
        %v5245 = vrot.slane %v5244, 2
        %v5246 = vrot.slane %v3780, 7
        %v5247 = vsel %vm5168, %v5245, %v5246
        %v5248 = vrot.slane %v5246, 2
        %v5249 = vrot.slane %v3781, 7
        %v5250 = vsel %vm5168, %v5248, %v5249
        %v5251 = vrot.slane %v5249, 2
        %v5252 = vrot.slane %v3782, 7
        %v5253 = vsel %vm5168, %v5251, %v5252
        %v5254 = vrot.slane %v5252, 2
        %v5255 = vrot.slane %v3783, 7
        %v5256 = vsel %vm5168, %v5254, %v5255
        %v5257 = vrot.slane %v5255, 2
        %v5258 = vrot.slane %v3869, 7
        %v5259 = vsel %vm5168, %v5257, %v5258
        %v5260 = vrot.slane %v5258, 2
        %v5261 = vrot.slane %v3870, 7
        %v5262 = vsel %vm5168, %v5260, %v5261
        %v5263 = vrot.slane %v5261, 2
        %v5264 = vrot.slane %v3871, 7
        %v5265 = vsel %vm5168, %v5263, %v5264
        %v5266 = vrot.slane %v5264, 2
        %v5267 = vrot.slane %v3872, 7
        %v5268 = vsel %vm5168, %v5266, %v5267
        %v5269 = vrot.slane %v3958, 7
        %v5270 = vrot.slane %v5269, 2
        %v5271 = vrot.slane %v3959, 7
        %v5272 = vsel %vm5168, %v5270, %v5271
        %v5273 = vrot.slane %v5271, 2
        %v5274 = vrot.slane %v3960, 7
        %v5275 = vsel %vm5168, %v5273, %v5274
        %v5276 = vrot.slane %v5274, 2
        %v5277 = vrot.slane %v3961, 7
        %v5278 = vsel %vm5168, %v5276, %v5277
        %v5279 = vrot.slane %v5277, 2
        %v5280 = vrot.slane %v4047, 7
        %v5281 = vsel %vm5168, %v5279, %v5280
        %v5282 = vrot.slane %v5280, 2
        %v5283 = vrot.slane %v4048, 7
        %v5284 = vsel %vm5168, %v5282, %v5283
        %v5285 = vrot.slane %v5283, 2
        %v5286 = vrot.slane %v4049, 7
        %v5287 = vsel %vm5168, %v5285, %v5286
        %v5288 = vrot.slane %v5286, 2
        %v5289 = vrot.slane %v4050, 7
        %v5290 = vsel %vm5168, %v5288, %v5289
        %v5291 = vrot.slane %v5289, 2
        %v5292 = vrot.slane %v4136, 7
        %v5293 = vsel %vm5168, %v5291, %v5292
        %v5294 = vrot.slane %v4137, 7
        %v5295 = vrot.slane %v5294, 2
        %v5296 = vrot.slane %v4138, 7
        %v5297 = vsel %vm5168, %v5295, %v5296
        %v5298 = vrot.slane %v5296, 2
        %v5299 = vrot.slane %v4139, 7
        %v5300 = vsel %vm5168, %v5298, %v5299
        %v5301 = vrot.slane %v5299, 2
        %v5302 = vrot.slane %v4224, 7
        %v5303 = vsel %vm5168, %v5301, %v5302
        %v5304 = vrot.slane %v5302, 2
        %v5305 = vrot.slane %v4225, 7
        %v5306 = vsel %vm5168, %v5304, %v5305
        %v5307 = vrot.slane %v5305, 2
        %v5308 = vrot.slane %v4226, 7
        %v5309 = vsel %vm5168, %v5307, %v5308
        %v5310 = vrot.slane %v5308, 2
        %v5311 = vrot.slane %v4227, 7
        %v5312 = vsel %vm5168, %v5310, %v5311
        %v5313 = vrot.slane %v5311, 2
        %v5314 = vrot.slane %v4313, 7
        %v5315 = vsel %vm5168, %v5313, %v5314
        %v5316 = vrot.slane %v5314, 2
        %v5317 = vrot.slane %v4314, 7
        %v5318 = vsel %vm5168, %v5316, %v5317
        %v5319 = vrot.slane %v4315, 7
        %v5320 = vrot.slane %v5319, 2
        %v5321 = vrot.slane %v4316, 7
        %v5322 = vsel %vm5168, %v5320, %v5321
        %v5323 = vrot.slane %v5321, 2
        %v5324 = vrot.slane %v4402, 7
        %v5325 = vsel %vm5168, %v5323, %v5324
        %v5326 = vrot.slane %v5324, 2
        %v5327 = vrot.slane %v4403, 7
        %v5328 = vsel %vm5168, %v5326, %v5327
        %v5329 = vrot.slane %v5327, 2
        %v5330 = vrot.slane %v4404, 7
        %v5331 = vsel %vm5168, %v5329, %v5330
        %v5332 = vrot.slane %v5330, 2
        %v5333 = vrot.slane %v4405, 7
        %v5334 = vsel %vm5168, %v5332, %v5333
        %v5335 = vrot.slane %v5333, 2
        %v5336 = vrot.slane %v4491, 7
        %v5337 = vsel %vm5168, %v5335, %v5336
        %v5338 = vrot.slane %v5336, 2
        %v5339 = vrot.slane %v4492, 7
        %v5340 = vsel %vm5168, %v5338, %v5339
        %v5341 = vrot.slane %v5339, 2
        %v5342 = vrot.slane %v4493, 7
        %v5343 = vsel %vm5168, %v5341, %v5342
        %v5344 = vrot.slane %v4494, 7
        %v5345 = vrot.slane %v5344, 2
        %v5346 = vrot.slane %v4579, 7
        %v5347 = vsel %vm5168, %v5345, %v5346
        %v5348 = vrot.slane %v5346, 2
        %v5349 = vrot.slane %v4580, 7
        %v5350 = vsel %vm5168, %v5348, %v5349
        %v5351 = vrot.slane %v5349, 2
        %v5352 = vrot.slane %v4581, 7
        %v5353 = vsel %vm5168, %v5351, %v5352
        %v5354 = vrot.slane %v5352, 2
        %v5355 = vrot.slane %v4582, 7
        %v5356 = vsel %vm5168, %v5354, %v5355
        %v5357 = vrot.slane %v5355, 2
        %v5358 = vrot.slane %v4668, 7
        %v5359 = vsel %vm5168, %v5357, %v5358
        %v5360 = vrot.slane %v5358, 2
        %v5361 = vrot.slane %v4669, 7
        %v5362 = vsel %vm5168, %v5360, %v5361
        %v5363 = vrot.slane %v5361, 2
        %v5364 = vrot.slane %v4670, 7
        %v5365 = vsel %vm5168, %v5363, %v5364
        %v5366 = vrot.slane %v5364, 2
        %v5367 = vrot.slane %v4671, 7
        %v5368 = vsel %vm5168, %v5366, %v5367
        %v5369 = vrot.slane %v5172, 2
        %v5370 = vrot.slane %v5175, 2
        %v5371 = vrot.slane %v5178, 2
        %v5372 = vrot.slane %v5181, 2
        %v5373 = vrot.slane %v5184, 2
        %v5374 = vrot.slane %v5187, 2
        %v5375 = vrot.slane %v5190, 2
        %v5376 = vrot.slane %v5193, 2
        %v5377 = vrot.slane %v5197, 2
        %v5378 = vrot.slane %v5200, 2
        %v5379 = vrot.slane %v5203, 2
        %v5380 = vrot.slane %v5206, 2
        %v5381 = vrot.slane %v5209, 2
        %v5382 = vrot.slane %v5212, 2
        %v5383 = vrot.slane %v5215, 2
        %v5384 = vrot.slane %v5218, 2
        %v5385 = vrot.slane %v5222, 2
        %v5386 = vrot.slane %v5225, 2
        %v5387 = vrot.slane %v5228, 2
        %v5388 = vrot.slane %v5231, 2
        %v5389 = vrot.slane %v5234, 2
        %v5390 = vrot.slane %v5237, 2
        %v5391 = vrot.slane %v5240, 2
        %v5392 = vrot.slane %v5243, 2
        %v5393 = vrot.slane %v5247, 2
        %v5394 = vrot.slane %v5250, 2
        %v5395 = vrot.slane %v5253, 2
        %v5396 = vrot.slane %v5256, 2
        %v5397 = vrot.slane %v5259, 2
        %v5398 = vrot.slane %v5262, 2
        %v5399 = vrot.slane %v5265, 2
        %v5400 = vrot.slane %v5268, 2
        %v5401 = vrot.slane %v5272, 2
        %v5402 = vrot.slane %v5275, 2
        %v5403 = vrot.slane %v5278, 2
        %v5404 = vrot.slane %v5281, 2
        %v5405 = vrot.slane %v5284, 2
        %v5406 = vrot.slane %v5287, 2
        %v5407 = vrot.slane %v5290, 2
        %v5408 = vrot.slane %v5293, 2
        %v5409 = vrot.slane %v5297, 2
        %v5410 = vrot.slane %v5300, 2
        %v5411 = vrot.slane %v5303, 2
        %v5412 = vrot.slane %v5306, 2
        %v5413 = vrot.slane %v5309, 2
        %v5414 = vrot.slane %v5312, 2
        %v5415 = vrot.slane %v5315, 2
        %v5416 = vrot.slane %v5318, 2
        %v5417 = vrot.slane %v5322, 2
        %v5418 = vrot.slane %v5325, 2
        %v5419 = vrot.slane %v5328, 2
        %v5420 = vrot.slane %v5331, 2
        %v5421 = vrot.slane %v5334, 2
        %v5422 = vrot.slane %v5337, 2
        %v5423 = vrot.slane %v5340, 2
        %v5424 = vrot.slane %v5343, 2
        %v5425 = vrot.slane %v5347, 2
        %v5426 = vrot.slane %v5350, 2
        %v5427 = vrot.slane %v5353, 2
        %v5428 = vrot.slane %v5356, 2
        %v5429 = vrot.slane %v5359, 2
        %v5430 = vrot.slane %v5362, 2
        %v5431 = vrot.slane %v5365, 2
        %v5432 = vrot.slane %v5368, 2
        %v5497 = vadd.f32 %v3307, %v5369
        %v5498 = vadd.f32 %v3308, %v5370
        %v5499 = vadd.f32 %v3309, %v5371
        %v5500 = vadd.f32 %v3310, %v5372
        %v5501 = vadd.f32 %v3343, %v5373
        %v5502 = vadd.f32 %v3344, %v5374
        %v5503 = vadd.f32 %v3345, %v5375
        %v5504 = vadd.f32 %v3346, %v5376
        %v5505 = vadd.f32 %v3380, %v5377
        %v5506 = vadd.f32 %v3381, %v5378
        %v5507 = vadd.f32 %v3382, %v5379
        %v5508 = vadd.f32 %v3450, %v5380
        %v5509 = vadd.f32 %v3451, %v5381
        %v5510 = vadd.f32 %v3452, %v5382
        %v5511 = vadd.f32 %v3453, %v5383
        %v5512 = vadd.f32 %v3522, %v5384
        %v5513 = vadd.f32 %v3524, %v5385
        %v5514 = vadd.f32 %v3525, %v5386
        %v5515 = vadd.f32 %v3603, %v5387
        %v5516 = vadd.f32 %v3604, %v5388
        %v5517 = vadd.f32 %v3605, %v5389
        %v5518 = vadd.f32 %v3606, %v5390
        %v5519 = vadd.f32 %v3692, %v5391
        %v5520 = vadd.f32 %v3693, %v5392
        %v5521 = vadd.f32 %v3695, %v5393
        %v5522 = vadd.f32 %v3780, %v5394
        %v5523 = vadd.f32 %v3781, %v5395
        %v5524 = vadd.f32 %v3782, %v5396
        %v5525 = vadd.f32 %v3783, %v5397
        %v5526 = vadd.f32 %v3869, %v5398
        %v5527 = vadd.f32 %v3870, %v5399
        %v5528 = vadd.f32 %v3871, %v5400
        %v5529 = vadd.f32 %v3958, %v5401
        %v5530 = vadd.f32 %v3959, %v5402
        %v5531 = vadd.f32 %v3960, %v5403
        %v5532 = vadd.f32 %v3961, %v5404
        %v5533 = vadd.f32 %v4047, %v5405
        %v5534 = vadd.f32 %v4048, %v5406
        %v5535 = vadd.f32 %v4049, %v5407
        %v5536 = vadd.f32 %v4050, %v5408
        %v5537 = vadd.f32 %v4137, %v5409
        %v5538 = vadd.f32 %v4138, %v5410
        %v5539 = vadd.f32 %v4139, %v5411
        %v5540 = vadd.f32 %v4224, %v5412
        %v5541 = vadd.f32 %v4225, %v5413
        %v5542 = vadd.f32 %v4226, %v5414
        %v5543 = vadd.f32 %v4227, %v5415
        %v5544 = vadd.f32 %v4313, %v5416
        %v5545 = vadd.f32 %v4315, %v5417
        %v5546 = vadd.f32 %v4316, %v5418
        %v5547 = vadd.f32 %v4402, %v5419
        %v5548 = vadd.f32 %v4403, %v5420
        %v5549 = vadd.f32 %v4404, %v5421
        %v5550 = vadd.f32 %v4405, %v5422
        %v5551 = vadd.f32 %v4491, %v5423
        %v5552 = vadd.f32 %v4492, %v5424
        %v5553 = vadd.f32 %v4494, %v5425
        %v5554 = vadd.f32 %v4579, %v5426
        %v5555 = vadd.f32 %v4580, %v5427
        %v5556 = vadd.f32 %v4581, %v5428
        %v5557 = vadd.f32 %v4582, %v5429
        %v5558 = vadd.f32 %v4668, %v5430
        %v5559 = vadd.f32 %v4669, %v5431
        %v5560 = vadd.f32 %v4670, %v5432
        %v5561 = vrot.slane %v3308, 4
        %v5562 = vrot.slane %v3309, 4
        %v5563 = vrot.slane %v3310, 4
        %v5564 = vrot.slane %v3343, 4
        %v5565 = vrot.slane %v3344, 4
        %v5566 = vrot.slane %v3345, 4
        %v5567 = vrot.slane %v3346, 4
        %v5568 = vrot.slane %v3379, 4
        %v5569 = vrot.slane %v3381, 4
        %v5570 = vrot.slane %v3382, 4
        %v5571 = vrot.slane %v3450, 4
        %v5572 = vrot.slane %v3451, 4
        %v5573 = vrot.slane %v3452, 4
        %v5574 = vrot.slane %v3453, 4
        %v5575 = vrot.slane %v3522, 4
        %v5576 = vrot.slane %v3523, 4
        %v5577 = vrot.slane %v3525, 4
        %v5578 = vrot.slane %v3603, 4
        %v5579 = vrot.slane %v3604, 4
        %v5580 = vrot.slane %v3605, 4
        %v5581 = vrot.slane %v3606, 4
        %v5582 = vrot.slane %v3692, 4
        %v5583 = vrot.slane %v3693, 4
        %v5584 = vrot.slane %v3694, 4
        %v5585 = vrot.slane %v3780, 4
        %v5586 = vrot.slane %v3781, 4
        %v5587 = vrot.slane %v3782, 4
        %v5588 = vrot.slane %v3783, 4
        %v5589 = vrot.slane %v3869, 4
        %v5590 = vrot.slane %v3870, 4
        %v5591 = vrot.slane %v3871, 4
        %v5592 = vrot.slane %v3872, 4
        %v5593 = vrot.slane %v3959, 4
        %v5594 = vrot.slane %v3960, 4
        %v5595 = vrot.slane %v3961, 4
        %v5596 = vrot.slane %v4047, 4
        %v5597 = vrot.slane %v4048, 4
        %v5598 = vrot.slane %v4049, 4
        %v5599 = vrot.slane %v4050, 4
        %v5600 = vrot.slane %v4136, 4
        %v5601 = vrot.slane %v4138, 4
        %v5602 = vrot.slane %v4139, 4
        %v5603 = vrot.slane %v4224, 4
        %v5604 = vrot.slane %v4225, 4
        %v5605 = vrot.slane %v4226, 4
        %v5606 = vrot.slane %v4227, 4
        %v5607 = vrot.slane %v4313, 4
        %v5608 = vrot.slane %v4314, 4
        %v5609 = vrot.slane %v4316, 4
        %v5610 = vrot.slane %v4402, 4
        %v5611 = vrot.slane %v4403, 4
        %v5612 = vrot.slane %v4404, 4
        %v5613 = vrot.slane %v4405, 4
        %v5614 = vrot.slane %v4491, 4
        %v5615 = vrot.slane %v4492, 4
        %v5616 = vrot.slane %v4493, 4
        %v5617 = vrot.slane %v4579, 4
        %v5618 = vrot.slane %v4580, 4
        %v5619 = vrot.slane %v4581, 4
        %v5620 = vrot.slane %v4582, 4
        %v5621 = vrot.slane %v4668, 4
        %v5622 = vrot.slane %v4669, 4
        %v5623 = vrot.slane %v4670, 4
        %v5624 = vrot.slane %v4671, 4
        %v5689 = vadd.f32 %v5497, %v5561
        %v5690 = vadd.f32 %v5498, %v5562
        %v5691 = vadd.f32 %v5499, %v5563
        %v5692 = vadd.f32 %v5500, %v5564
        %v5693 = vadd.f32 %v5501, %v5565
        %v5694 = vadd.f32 %v5502, %v5566
        %v5695 = vadd.f32 %v5503, %v5567
        %v5696 = vadd.f32 %v5504, %v5568
        %v5697 = vadd.f32 %v5505, %v5569
        %v5698 = vadd.f32 %v5506, %v5570
        %v5699 = vadd.f32 %v5507, %v5571
        %v5700 = vadd.f32 %v5508, %v5572
        %v5701 = vadd.f32 %v5509, %v5573
        %v5702 = vadd.f32 %v5510, %v5574
        %v5703 = vadd.f32 %v5511, %v5575
        %v5704 = vadd.f32 %v5512, %v5576
        %v5705 = vadd.f32 %v5513, %v5577
        %v5706 = vadd.f32 %v5514, %v5578
        %v5707 = vadd.f32 %v5515, %v5579
        %v5708 = vadd.f32 %v5516, %v5580
        %v5709 = vadd.f32 %v5517, %v5581
        %v5710 = vadd.f32 %v5518, %v5582
        %v5711 = vadd.f32 %v5519, %v5583
        %v5712 = vadd.f32 %v5520, %v5584
        %v5713 = vadd.f32 %v5521, %v5585
        %v5714 = vadd.f32 %v5522, %v5586
        %v5715 = vadd.f32 %v5523, %v5587
        %v5716 = vadd.f32 %v5524, %v5588
        %v5717 = vadd.f32 %v5525, %v5589
        %v5718 = vadd.f32 %v5526, %v5590
        %v5719 = vadd.f32 %v5527, %v5591
        %v5720 = vadd.f32 %v5528, %v5592
        %v5721 = vadd.f32 %v5529, %v5593
        %v5722 = vadd.f32 %v5530, %v5594
        %v5723 = vadd.f32 %v5531, %v5595
        %v5724 = vadd.f32 %v5532, %v5596
        %v5725 = vadd.f32 %v5533, %v5597
        %v5726 = vadd.f32 %v5534, %v5598
        %v5727 = vadd.f32 %v5535, %v5599
        %v5728 = vadd.f32 %v5536, %v5600
        %v5729 = vadd.f32 %v5537, %v5601
        %v5730 = vadd.f32 %v5538, %v5602
        %v5731 = vadd.f32 %v5539, %v5603
        %v5732 = vadd.f32 %v5540, %v5604
        %v5733 = vadd.f32 %v5541, %v5605
        %v5734 = vadd.f32 %v5542, %v5606
        %v5735 = vadd.f32 %v5543, %v5607
        %v5736 = vadd.f32 %v5544, %v5608
        %v5737 = vadd.f32 %v5545, %v5609
        %v5738 = vadd.f32 %v5546, %v5610
        %v5739 = vadd.f32 %v5547, %v5611
        %v5740 = vadd.f32 %v5548, %v5612
        %v5741 = vadd.f32 %v5549, %v5613
        %v5742 = vadd.f32 %v5550, %v5614
        %v5743 = vadd.f32 %v5551, %v5615
        %v5744 = vadd.f32 %v5552, %v5616
        %v5745 = vadd.f32 %v5553, %v5617
        %v5746 = vadd.f32 %v5554, %v5618
        %v5747 = vadd.f32 %v5555, %v5619
        %v5748 = vadd.f32 %v5556, %v5620
        %v5749 = vadd.f32 %v5557, %v5621
        %v5750 = vadd.f32 %v5558, %v5622
        %v5751 = vadd.f32 %v5559, %v5623
        %v5752 = vadd.f32 %v5560, %v5624
        %v5753 = vrot.slane %v3380, 6
        %v5754 = vrot.slane %v3381, 6
        %v5755 = vrot.slane %v3382, 6
        %v5756 = vrot.slane %v3450, 6
        %v5757 = vrot.slane %v3451, 6
        %v5758 = vrot.slane %v3452, 6
        %v5759 = vrot.slane %v3453, 6
        %v5760 = vrot.slane %v3522, 6
        %v5761 = vrot.slane %v3524, 6
        %v5762 = vrot.slane %v3525, 6
        %v5763 = vrot.slane %v3603, 6
        %v5764 = vrot.slane %v3604, 6
        %v5765 = vrot.slane %v3605, 6
        %v5766 = vrot.slane %v3606, 6
        %v5767 = vrot.slane %v3692, 6
        %v5768 = vrot.slane %v3693, 6
        %v5769 = vrot.slane %v3695, 6
        %v5770 = vrot.slane %v3780, 6
        %v5771 = vrot.slane %v3781, 6
        %v5772 = vrot.slane %v3782, 6
        %v5773 = vrot.slane %v3783, 6
        %v5774 = vrot.slane %v3869, 6
        %v5775 = vrot.slane %v3870, 6
        %v5776 = vrot.slane %v3871, 6
        %v5777 = vrot.slane %v3958, 6
        %v5778 = vrot.slane %v3959, 6
        %v5779 = vrot.slane %v3960, 6
        %v5780 = vrot.slane %v3961, 6
        %v5781 = vrot.slane %v4047, 6
        %v5782 = vrot.slane %v4048, 6
        %v5783 = vrot.slane %v4049, 6
        %v5784 = vrot.slane %v4050, 6
        %v5785 = vrot.slane %v4137, 6
        %v5786 = vrot.slane %v4138, 6
        %v5787 = vrot.slane %v4139, 6
        %v5788 = vrot.slane %v4224, 6
        %v5789 = vrot.slane %v4225, 6
        %v5790 = vrot.slane %v4226, 6
        %v5791 = vrot.slane %v4227, 6
        %v5792 = vrot.slane %v4313, 6
        %v5793 = vrot.slane %v4315, 6
        %v5794 = vrot.slane %v4316, 6
        %v5795 = vrot.slane %v4402, 6
        %v5796 = vrot.slane %v4403, 6
        %v5797 = vrot.slane %v4404, 6
        %v5798 = vrot.slane %v4405, 6
        %v5799 = vrot.slane %v4491, 6
        %v5800 = vrot.slane %v4492, 6
        %v5801 = vrot.slane %v4494, 6
        %v5802 = vrot.slane %v4579, 6
        %v5803 = vrot.slane %v4580, 6
        %v5804 = vrot.slane %v4581, 6
        %v5805 = vrot.slane %v4582, 6
        %v5806 = vrot.slane %v4668, 6
        %v5807 = vrot.slane %v4669, 6
        %v5808 = vrot.slane %v4670, 6
        %v5809 = vrot.slane %v4757, 6
        %v5810 = vrot.slane %v4758, 6
        %v5811 = vrot.slane %v4759, 6
        %v5812 = vrot.slane %v4760, 6
        %v5813 = vrot.slane %v4846, 6
        %v5814 = vrot.slane %v4847, 6
        %v5815 = vrot.slane %v4848, 6
        %v5816 = vrot.slane %v4849, 6
        %v5881 = vadd.f32 %v5689, %v5753
        %v5882 = vadd.f32 %v5690, %v5754
        %v5883 = vadd.f32 %v5691, %v5755
        %v5884 = vadd.f32 %v5692, %v5756
        %v5885 = vadd.f32 %v5693, %v5757
        %v5886 = vadd.f32 %v5694, %v5758
        %v5887 = vadd.f32 %v5695, %v5759
        %v5888 = vadd.f32 %v5696, %v5760
        %v5889 = vadd.f32 %v5697, %v5761
        %v5890 = vadd.f32 %v5698, %v5762
        %v5891 = vadd.f32 %v5699, %v5763
        %v5892 = vadd.f32 %v5700, %v5764
        %v5893 = vadd.f32 %v5701, %v5765
        %v5894 = vadd.f32 %v5702, %v5766
        %v5895 = vadd.f32 %v5703, %v5767
        %v5896 = vadd.f32 %v5704, %v5768
        %v5897 = vadd.f32 %v5705, %v5769
        %v5898 = vadd.f32 %v5706, %v5770
        %v5899 = vadd.f32 %v5707, %v5771
        %v5900 = vadd.f32 %v5708, %v5772
        %v5901 = vadd.f32 %v5709, %v5773
        %v5902 = vadd.f32 %v5710, %v5774
        %v5903 = vadd.f32 %v5711, %v5775
        %v5904 = vadd.f32 %v5712, %v5776
        %v5905 = vadd.f32 %v5713, %v5777
        %v5906 = vadd.f32 %v5714, %v5778
        %v5907 = vadd.f32 %v5715, %v5779
        %v5908 = vadd.f32 %v5716, %v5780
        %v5909 = vadd.f32 %v5717, %v5781
        %v5910 = vadd.f32 %v5718, %v5782
        %v5911 = vadd.f32 %v5719, %v5783
        %v5912 = vadd.f32 %v5720, %v5784
        %v5913 = vadd.f32 %v5721, %v5785
        %v5914 = vadd.f32 %v5722, %v5786
        %v5915 = vadd.f32 %v5723, %v5787
        %v5916 = vadd.f32 %v5724, %v5788
        %v5917 = vadd.f32 %v5725, %v5789
        %v5918 = vadd.f32 %v5726, %v5790
        %v5919 = vadd.f32 %v5727, %v5791
        %v5920 = vadd.f32 %v5728, %v5792
        %v5921 = vadd.f32 %v5729, %v5793
        %v5922 = vadd.f32 %v5730, %v5794
        %v5923 = vadd.f32 %v5731, %v5795
        %v5924 = vadd.f32 %v5732, %v5796
        %v5925 = vadd.f32 %v5733, %v5797
        %v5926 = vadd.f32 %v5734, %v5798
        %v5927 = vadd.f32 %v5735, %v5799
        %v5928 = vadd.f32 %v5736, %v5800
        %v5929 = vadd.f32 %v5737, %v5801
        %v5930 = vadd.f32 %v5738, %v5802
        %v5931 = vadd.f32 %v5739, %v5803
        %v5932 = vadd.f32 %v5740, %v5804
        %v5933 = vadd.f32 %v5741, %v5805
        %v5934 = vadd.f32 %v5742, %v5806
        %v5935 = vadd.f32 %v5743, %v5807
        %v5936 = vadd.f32 %v5744, %v5808
        %v5937 = vadd.f32 %v5745, %v5809
        %v5938 = vadd.f32 %v5746, %v5810
        %v5939 = vadd.f32 %v5747, %v5811
        %v5940 = vadd.f32 %v5748, %v5812
        %v5941 = vadd.f32 %v5749, %v5813
        %v5942 = vadd.f32 %v5750, %v5814
        %v5943 = vadd.f32 %v5751, %v5815
        %v5944 = vadd.f32 %v5752, %v5816
        %v5945 = vrot.slane %v3415, 7
        %v5946 = vrot.slane %v5945, 2
        %v5947 = vrot.slane %v3416, 7
        %v5948 = vsel %vm5168, %v5946, %v5947
        %v5949 = vrot.slane %v5947, 2
        %v5950 = vrot.slane %v3417, 7
        %v5951 = vsel %vm5168, %v5949, %v5950
        %v5952 = vrot.slane %v5950, 2
        %v5953 = vrot.slane %v3486, 7
        %v5954 = vsel %vm5168, %v5952, %v5953
        %v5955 = vrot.slane %v5953, 2
        %v5956 = vrot.slane %v3487, 7
        %v5957 = vsel %vm5168, %v5955, %v5956
        %v5958 = vrot.slane %v5956, 2
        %v5959 = vrot.slane %v3488, 7
        %v5960 = vsel %vm5168, %v5958, %v5959
        %v5961 = vrot.slane %v5959, 2
        %v5962 = vrot.slane %v3489, 7
        %v5963 = vsel %vm5168, %v5961, %v5962
        %v5964 = vrot.slane %v5962, 2
        %v5965 = vrot.slane %v3558, 7
        %v5966 = vsel %vm5168, %v5964, %v5965
        %v5967 = vrot.slane %v5965, 2
        %v5968 = vrot.slane %v3559, 7
        %v5969 = vsel %vm5168, %v5967, %v5968
        %v5970 = vrot.slane %v3560, 7
        %v5971 = vrot.slane %v5970, 2
        %v5972 = vrot.slane %v3561, 7
        %v5973 = vsel %vm5168, %v5971, %v5972
        %v5974 = vrot.slane %v5972, 2
        %v5975 = vrot.slane %v3639, 7
        %v5976 = vsel %vm5168, %v5974, %v5975
        %v5977 = vrot.slane %v5975, 2
        %v5978 = vrot.slane %v3640, 7
        %v5979 = vsel %vm5168, %v5977, %v5978
        %v5980 = vrot.slane %v5978, 2
        %v5981 = vrot.slane %v3641, 7
        %v5982 = vsel %vm5168, %v5980, %v5981
        %v5983 = vrot.slane %v5981, 2
        %v5984 = vrot.slane %v3642, 7
        %v5985 = vsel %vm5168, %v5983, %v5984
        %v5986 = vrot.slane %v5984, 2
        %v5987 = vrot.slane %v3728, 7
        %v5988 = vsel %vm5168, %v5986, %v5987
        %v5989 = vrot.slane %v5987, 2
        %v5990 = vrot.slane %v3729, 7
        %v5991 = vsel %vm5168, %v5989, %v5990
        %v5992 = vrot.slane %v5990, 2
        %v5993 = vrot.slane %v3730, 7
        %v5994 = vsel %vm5168, %v5992, %v5993
        %v5995 = vrot.slane %v3731, 7
        %v5996 = vrot.slane %v5995, 2
        %v5997 = vrot.slane %v3816, 7
        %v5998 = vsel %vm5168, %v5996, %v5997
        %v5999 = vrot.slane %v5997, 2
        %v6000 = vrot.slane %v3817, 7
        %v6001 = vsel %vm5168, %v5999, %v6000
        %v6002 = vrot.slane %v6000, 2
        %v6003 = vrot.slane %v3818, 7
        %v6004 = vsel %vm5168, %v6002, %v6003
        %v6005 = vrot.slane %v6003, 2
        %v6006 = vrot.slane %v3819, 7
        %v6007 = vsel %vm5168, %v6005, %v6006
        %v6008 = vrot.slane %v6006, 2
        %v6009 = vrot.slane %v3905, 7
        %v6010 = vsel %vm5168, %v6008, %v6009
        %v6011 = vrot.slane %v6009, 2
        %v6012 = vrot.slane %v3906, 7
        %v6013 = vsel %vm5168, %v6011, %v6012
        %v6014 = vrot.slane %v6012, 2
        %v6015 = vrot.slane %v3907, 7
        %v6016 = vsel %vm5168, %v6014, %v6015
        %v6017 = vrot.slane %v6015, 2
        %v6018 = vrot.slane %v3908, 7
        %v6019 = vsel %vm5168, %v6017, %v6018
        %v6020 = vrot.slane %v3994, 7
        %v6021 = vrot.slane %v6020, 2
        %v6022 = vrot.slane %v3995, 7
        %v6023 = vsel %vm5168, %v6021, %v6022
        %v6024 = vrot.slane %v6022, 2
        %v6025 = vrot.slane %v3996, 7
        %v6026 = vsel %vm5168, %v6024, %v6025
        %v6027 = vrot.slane %v6025, 2
        %v6028 = vrot.slane %v3997, 7
        %v6029 = vsel %vm5168, %v6027, %v6028
        %v6030 = vrot.slane %v6028, 2
        %v6031 = vrot.slane %v4083, 7
        %v6032 = vsel %vm5168, %v6030, %v6031
        %v6033 = vrot.slane %v6031, 2
        %v6034 = vrot.slane %v4084, 7
        %v6035 = vsel %vm5168, %v6033, %v6034
        %v6036 = vrot.slane %v6034, 2
        %v6037 = vrot.slane %v4085, 7
        %v6038 = vsel %vm5168, %v6036, %v6037
        %v6039 = vrot.slane %v6037, 2
        %v6040 = vrot.slane %v4086, 7
        %v6041 = vsel %vm5168, %v6039, %v6040
        %v6042 = vrot.slane %v6040, 2
        %v6043 = vrot.slane %v4172, 7
        %v6044 = vsel %vm5168, %v6042, %v6043
        %v6045 = vrot.slane %v4173, 7
        %v6046 = vrot.slane %v6045, 2
        %v6047 = vrot.slane %v4174, 7
        %v6048 = vsel %vm5168, %v6046, %v6047
        %v6049 = vrot.slane %v6047, 2
        %v6050 = vrot.slane %v4175, 7
        %v6051 = vsel %vm5168, %v6049, %v6050
        %v6052 = vrot.slane %v6050, 2
        %v6053 = vrot.slane %v4260, 7
        %v6054 = vsel %vm5168, %v6052, %v6053
        %v6055 = vrot.slane %v6053, 2
        %v6056 = vrot.slane %v4261, 7
        %v6057 = vsel %vm5168, %v6055, %v6056
        %v6058 = vrot.slane %v6056, 2
        %v6059 = vrot.slane %v4262, 7
        %v6060 = vsel %vm5168, %v6058, %v6059
        %v6061 = vrot.slane %v6059, 2
        %v6062 = vrot.slane %v4263, 7
        %v6063 = vsel %vm5168, %v6061, %v6062
        %v6064 = vrot.slane %v6062, 2
        %v6065 = vrot.slane %v4349, 7
        %v6066 = vsel %vm5168, %v6064, %v6065
        %v6067 = vrot.slane %v6065, 2
        %v6068 = vrot.slane %v4350, 7
        %v6069 = vsel %vm5168, %v6067, %v6068
        %v6070 = vrot.slane %v4351, 7
        %v6071 = vrot.slane %v6070, 2
        %v6072 = vrot.slane %v4352, 7
        %v6073 = vsel %vm5168, %v6071, %v6072
        %v6074 = vrot.slane %v6072, 2
        %v6075 = vrot.slane %v4438, 7
        %v6076 = vsel %vm5168, %v6074, %v6075
        %v6077 = vrot.slane %v6075, 2
        %v6078 = vrot.slane %v4439, 7
        %v6079 = vsel %vm5168, %v6077, %v6078
        %v6080 = vrot.slane %v6078, 2
        %v6081 = vrot.slane %v4440, 7
        %v6082 = vsel %vm5168, %v6080, %v6081
        %v6083 = vrot.slane %v6081, 2
        %v6084 = vrot.slane %v4441, 7
        %v6085 = vsel %vm5168, %v6083, %v6084
        %v6086 = vrot.slane %v6084, 2
        %v6087 = vrot.slane %v4527, 7
        %v6088 = vsel %vm5168, %v6086, %v6087
        %v6089 = vrot.slane %v6087, 2
        %v6090 = vrot.slane %v4528, 7
        %v6091 = vsel %vm5168, %v6089, %v6090
        %v6092 = vrot.slane %v6090, 2
        %v6093 = vrot.slane %v4529, 7
        %v6094 = vsel %vm5168, %v6092, %v6093
        %v6095 = vrot.slane %v4530, 7
        %v6096 = vrot.slane %v6095, 2
        %v6097 = vrot.slane %v4615, 7
        %v6098 = vsel %vm5168, %v6096, %v6097
        %v6099 = vrot.slane %v6097, 2
        %v6100 = vrot.slane %v4616, 7
        %v6101 = vsel %vm5168, %v6099, %v6100
        %v6102 = vrot.slane %v6100, 2
        %v6103 = vrot.slane %v4617, 7
        %v6104 = vsel %vm5168, %v6102, %v6103
        %v6105 = vrot.slane %v6103, 2
        %v6106 = vrot.slane %v4618, 7
        %v6107 = vsel %vm5168, %v6105, %v6106
        %v6108 = vrot.slane %v6106, 2
        %v6109 = vrot.slane %v4704, 7
        %v6110 = vsel %vm5168, %v6108, %v6109
        %v6111 = vrot.slane %v6109, 2
        %v6112 = vrot.slane %v4705, 7
        %v6113 = vsel %vm5168, %v6111, %v6112
        %v6114 = vrot.slane %v6112, 2
        %v6115 = vrot.slane %v4706, 7
        %v6116 = vsel %vm5168, %v6114, %v6115
        %v6117 = vrot.slane %v6115, 2
        %v6118 = vrot.slane %v4707, 7
        %v6119 = vsel %vm5168, %v6117, %v6118
        %v6120 = vrot.slane %v4793, 7
        %v6121 = vrot.slane %v6120, 2
        %v6122 = vrot.slane %v4794, 7
        %v6123 = vsel %vm5168, %v6121, %v6122
        %v6124 = vrot.slane %v6122, 2
        %v6125 = vrot.slane %v4795, 7
        %v6126 = vsel %vm5168, %v6124, %v6125
        %v6127 = vrot.slane %v6125, 2
        %v6128 = vrot.slane %v4796, 7
        %v6129 = vsel %vm5168, %v6127, %v6128
        %v6130 = vrot.slane %v6128, 2
        %v6131 = vrot.slane %v4882, 7
        %v6132 = vsel %vm5168, %v6130, %v6131
        %v6133 = vrot.slane %v6131, 2
        %v6134 = vrot.slane %v4883, 7
        %v6135 = vsel %vm5168, %v6133, %v6134
        %v6136 = vrot.slane %v6134, 2
        %v6137 = vrot.slane %v4884, 7
        %v6138 = vsel %vm5168, %v6136, %v6137
        %v6139 = vrot.slane %v6137, 2
        %v6140 = vrot.slane %v4885, 7
        %v6141 = vsel %vm5168, %v6139, %v6140
        %v6142 = vrot.slane %v6140, 2
        %v6143 = vrot.slane %v4935, 7
        %v6144 = vsel %vm5168, %v6142, %v6143
        %v6209 = vadd.f32 %v5881, %v5948
        %v6210 = vadd.f32 %v5882, %v5951
        %v6211 = vadd.f32 %v5883, %v5954
        %v6212 = vadd.f32 %v5884, %v5957
        %v6213 = vadd.f32 %v5885, %v5960
        %v6214 = vadd.f32 %v5886, %v5963
        %v6215 = vadd.f32 %v5887, %v5966
        %v6216 = vadd.f32 %v5888, %v5969
        %v6217 = vadd.f32 %v5889, %v5973
        %v6218 = vadd.f32 %v5890, %v5976
        %v6219 = vadd.f32 %v5891, %v5979
        %v6220 = vadd.f32 %v5892, %v5982
        %v6221 = vadd.f32 %v5893, %v5985
        %v6222 = vadd.f32 %v5894, %v5988
        %v6223 = vadd.f32 %v5895, %v5991
        %v6224 = vadd.f32 %v5896, %v5994
        %v6225 = vadd.f32 %v5897, %v5998
        %v6226 = vadd.f32 %v5898, %v6001
        %v6227 = vadd.f32 %v5899, %v6004
        %v6228 = vadd.f32 %v5900, %v6007
        %v6229 = vadd.f32 %v5901, %v6010
        %v6230 = vadd.f32 %v5902, %v6013
        %v6231 = vadd.f32 %v5903, %v6016
        %v6232 = vadd.f32 %v5904, %v6019
        %v6233 = vadd.f32 %v5905, %v6023
        %v6234 = vadd.f32 %v5906, %v6026
        %v6235 = vadd.f32 %v5907, %v6029
        %v6236 = vadd.f32 %v5908, %v6032
        %v6237 = vadd.f32 %v5909, %v6035
        %v6238 = vadd.f32 %v5910, %v6038
        %v6239 = vadd.f32 %v5911, %v6041
        %v6240 = vadd.f32 %v5912, %v6044
        %v6241 = vadd.f32 %v5913, %v6048
        %v6242 = vadd.f32 %v5914, %v6051
        %v6243 = vadd.f32 %v5915, %v6054
        %v6244 = vadd.f32 %v5916, %v6057
        %v6245 = vadd.f32 %v5917, %v6060
        %v6246 = vadd.f32 %v5918, %v6063
        %v6247 = vadd.f32 %v5919, %v6066
        %v6248 = vadd.f32 %v5920, %v6069
        %v6249 = vadd.f32 %v5921, %v6073
        %v6250 = vadd.f32 %v5922, %v6076
        %v6251 = vadd.f32 %v5923, %v6079
        %v6252 = vadd.f32 %v5924, %v6082
        %v6253 = vadd.f32 %v5925, %v6085
        %v6254 = vadd.f32 %v5926, %v6088
        %v6255 = vadd.f32 %v5927, %v6091
        %v6256 = vadd.f32 %v5928, %v6094
        %v6257 = vadd.f32 %v5929, %v6098
        %v6258 = vadd.f32 %v5930, %v6101
        %v6259 = vadd.f32 %v5931, %v6104
        %v6260 = vadd.f32 %v5932, %v6107
        %v6261 = vadd.f32 %v5933, %v6110
        %v6262 = vadd.f32 %v5934, %v6113
        %v6263 = vadd.f32 %v5935, %v6116
        %v6264 = vadd.f32 %v5936, %v6119
        %v6265 = vadd.f32 %v5937, %v6123
        %v6266 = vadd.f32 %v5938, %v6126
        %v6267 = vadd.f32 %v5939, %v6129
        %v6268 = vadd.f32 %v5940, %v6132
        %v6269 = vadd.f32 %v5941, %v6135
        %v6270 = vadd.f32 %v5942, %v6138
        %v6271 = vadd.f32 %v5943, %v6141
        %v6272 = vadd.f32 %v5944, %v6144
        %v6273 = vrot.slane %v3416, 2
        %v6274 = vrot.slane %v3417, 2
        %v6275 = vrot.slane %v3486, 2
        %v6276 = vrot.slane %v3487, 2
        %v6277 = vrot.slane %v3488, 2
        %v6278 = vrot.slane %v3489, 2
        %v6279 = vrot.slane %v3558, 2
        %v6280 = vrot.slane %v3559, 2
        %v6281 = vrot.slane %v3561, 2
        %v6282 = vrot.slane %v3639, 2
        %v6283 = vrot.slane %v3640, 2
        %v6284 = vrot.slane %v3641, 2
        %v6285 = vrot.slane %v3642, 2
        %v6286 = vrot.slane %v3728, 2
        %v6287 = vrot.slane %v3729, 2
        %v6288 = vrot.slane %v3730, 2
        %v6289 = vrot.slane %v3816, 2
        %v6290 = vrot.slane %v3817, 2
        %v6291 = vrot.slane %v3818, 2
        %v6292 = vrot.slane %v3819, 2
        %v6293 = vrot.slane %v3905, 2
        %v6294 = vrot.slane %v3906, 2
        %v6295 = vrot.slane %v3907, 2
        %v6296 = vrot.slane %v3908, 2
        %v6297 = vrot.slane %v3995, 2
        %v6298 = vrot.slane %v3996, 2
        %v6299 = vrot.slane %v3997, 2
        %v6300 = vrot.slane %v4083, 2
        %v6301 = vrot.slane %v4084, 2
        %v6302 = vrot.slane %v4085, 2
        %v6303 = vrot.slane %v4086, 2
        %v6304 = vrot.slane %v4172, 2
        %v6305 = vrot.slane %v4174, 2
        %v6306 = vrot.slane %v4175, 2
        %v6307 = vrot.slane %v4260, 2
        %v6308 = vrot.slane %v4261, 2
        %v6309 = vrot.slane %v4262, 2
        %v6310 = vrot.slane %v4263, 2
        %v6311 = vrot.slane %v4349, 2
        %v6312 = vrot.slane %v4350, 2
        %v6313 = vrot.slane %v4352, 2
        %v6314 = vrot.slane %v4438, 2
        %v6315 = vrot.slane %v4439, 2
        %v6316 = vrot.slane %v4440, 2
        %v6317 = vrot.slane %v4441, 2
        %v6318 = vrot.slane %v4527, 2
        %v6319 = vrot.slane %v4528, 2
        %v6320 = vrot.slane %v4529, 2
        %v6321 = vrot.slane %v4615, 2
        %v6322 = vrot.slane %v4616, 2
        %v6323 = vrot.slane %v4617, 2
        %v6324 = vrot.slane %v4618, 2
        %v6325 = vrot.slane %v4704, 2
        %v6326 = vrot.slane %v4705, 2
        %v6327 = vrot.slane %v4706, 2
        %v6328 = vrot.slane %v4707, 2
        %v6329 = vrot.slane %v4794, 2
        %v6330 = vrot.slane %v4795, 2
        %v6331 = vrot.slane %v4796, 2
        %v6332 = vrot.slane %v4882, 2
        %v6333 = vrot.slane %v4883, 2
        %v6334 = vrot.slane %v4884, 2
        %v6335 = vrot.slane %v4885, 2
        %v6336 = vrot.slane %v4935, 2
        %v6401 = vadd.f32 %v6209, %v6273
        %v6402 = vadd.f32 %v6210, %v6274
        %v6403 = vadd.f32 %v6211, %v6275
        %v6404 = vadd.f32 %v6212, %v6276
        %v6405 = vadd.f32 %v6213, %v6277
        %v6406 = vadd.f32 %v6214, %v6278
        %v6407 = vadd.f32 %v6215, %v6279
        %v6408 = vadd.f32 %v6216, %v6280
        %v6409 = vadd.f32 %v6217, %v6281
        %v6410 = vadd.f32 %v6218, %v6282
        %v6411 = vadd.f32 %v6219, %v6283
        %v6412 = vadd.f32 %v6220, %v6284
        %v6413 = vadd.f32 %v6221, %v6285
        %v6414 = vadd.f32 %v6222, %v6286
        %v6415 = vadd.f32 %v6223, %v6287
        %v6416 = vadd.f32 %v6224, %v6288
        %v6417 = vadd.f32 %v6225, %v6289
        %v6418 = vadd.f32 %v6226, %v6290
        %v6419 = vadd.f32 %v6227, %v6291
        %v6420 = vadd.f32 %v6228, %v6292
        %v6421 = vadd.f32 %v6229, %v6293
        %v6422 = vadd.f32 %v6230, %v6294
        %v6423 = vadd.f32 %v6231, %v6295
        %v6424 = vadd.f32 %v6232, %v6296
        %v6425 = vadd.f32 %v6233, %v6297
        %v6426 = vadd.f32 %v6234, %v6298
        %v6427 = vadd.f32 %v6235, %v6299
        %v6428 = vadd.f32 %v6236, %v6300
        %v6429 = vadd.f32 %v6237, %v6301
        %v6430 = vadd.f32 %v6238, %v6302
        %v6431 = vadd.f32 %v6239, %v6303
        %v6432 = vadd.f32 %v6240, %v6304
        %v6433 = vadd.f32 %v6241, %v6305
        %v6434 = vadd.f32 %v6242, %v6306
        %v6435 = vadd.f32 %v6243, %v6307
        %v6436 = vadd.f32 %v6244, %v6308
        %v6437 = vadd.f32 %v6245, %v6309
        %v6438 = vadd.f32 %v6246, %v6310
        %v6439 = vadd.f32 %v6247, %v6311
        %v6440 = vadd.f32 %v6248, %v6312
        %v6441 = vadd.f32 %v6249, %v6313
        %v6442 = vadd.f32 %v6250, %v6314
        %v6443 = vadd.f32 %v6251, %v6315
        %v6444 = vadd.f32 %v6252, %v6316
        %v6445 = vadd.f32 %v6253, %v6317
        %v6446 = vadd.f32 %v6254, %v6318
        %v6447 = vadd.f32 %v6255, %v6319
        %v6448 = vadd.f32 %v6256, %v6320
        %v6449 = vadd.f32 %v6257, %v6321
        %v6450 = vadd.f32 %v6258, %v6322
        %v6451 = vadd.f32 %v6259, %v6323
        %v6452 = vadd.f32 %v6260, %v6324
        %v6453 = vadd.f32 %v6261, %v6325
        %v6454 = vadd.f32 %v6262, %v6326
        %v6455 = vadd.f32 %v6263, %v6327
        %v6456 = vadd.f32 %v6264, %v6328
        %v6457 = vadd.f32 %v6265, %v6329
        %v6458 = vadd.f32 %v6266, %v6330
        %v6459 = vadd.f32 %v6267, %v6331
        %v6460 = vadd.f32 %v6268, %v6332
        %v6461 = vadd.f32 %v6269, %v6333
        %v6462 = vadd.f32 %v6270, %v6334
        %v6463 = vadd.f32 %v6271, %v6335
        %v6464 = vadd.f32 %v6272, %v6336
        %v6465 = vrot.slane %v3560, 4
        %v6466 = vrot.slane %v3561, 4
        %v6467 = vrot.slane %v3639, 4
        %v6468 = vrot.slane %v3640, 4
        %v6469 = vrot.slane %v3641, 4
        %v6470 = vrot.slane %v3642, 4
        %v6471 = vrot.slane %v3728, 4
        %v6472 = vrot.slane %v3729, 4
        %v6473 = vrot.slane %v3731, 4
        %v6474 = vrot.slane %v3816, 4
        %v6475 = vrot.slane %v3817, 4
        %v6476 = vrot.slane %v3818, 4
        %v6477 = vrot.slane %v3819, 4
        %v6478 = vrot.slane %v3905, 4
        %v6479 = vrot.slane %v3906, 4
        %v6480 = vrot.slane %v3907, 4
        %v6481 = vrot.slane %v3994, 4
        %v6482 = vrot.slane %v3995, 4
        %v6483 = vrot.slane %v3996, 4
        %v6484 = vrot.slane %v3997, 4
        %v6485 = vrot.slane %v4083, 4
        %v6486 = vrot.slane %v4084, 4
        %v6487 = vrot.slane %v4085, 4
        %v6488 = vrot.slane %v4086, 4
        %v6489 = vrot.slane %v4173, 4
        %v6490 = vrot.slane %v4174, 4
        %v6491 = vrot.slane %v4175, 4
        %v6492 = vrot.slane %v4260, 4
        %v6493 = vrot.slane %v4261, 4
        %v6494 = vrot.slane %v4262, 4
        %v6495 = vrot.slane %v4263, 4
        %v6496 = vrot.slane %v4349, 4
        %v6497 = vrot.slane %v4351, 4
        %v6498 = vrot.slane %v4352, 4
        %v6499 = vrot.slane %v4438, 4
        %v6500 = vrot.slane %v4439, 4
        %v6501 = vrot.slane %v4440, 4
        %v6502 = vrot.slane %v4441, 4
        %v6503 = vrot.slane %v4527, 4
        %v6504 = vrot.slane %v4528, 4
        %v6505 = vrot.slane %v4530, 4
        %v6506 = vrot.slane %v4615, 4
        %v6507 = vrot.slane %v4616, 4
        %v6508 = vrot.slane %v4617, 4
        %v6509 = vrot.slane %v4618, 4
        %v6510 = vrot.slane %v4704, 4
        %v6511 = vrot.slane %v4705, 4
        %v6512 = vrot.slane %v4706, 4
        %v6513 = vrot.slane %v4793, 4
        %v6514 = vrot.slane %v4794, 4
        %v6515 = vrot.slane %v4795, 4
        %v6516 = vrot.slane %v4796, 4
        %v6517 = vrot.slane %v4882, 4
        %v6518 = vrot.slane %v4883, 4
        %v6519 = vrot.slane %v4884, 4
        %v6520 = vrot.slane %v4885, 4
        %v6521 = vrot.slane %v4936, 4
        %v6522 = vrot.slane %v4937, 4
        %v6523 = vrot.slane %v4938, 4
        %v6524 = vrot.slane %v4987, 4
        %v6525 = vrot.slane %v4988, 4
        %v6526 = vrot.slane %v4989, 4
        %v6527 = vrot.slane %v4990, 4
        %v6528 = vrot.slane %v5024, 4
        %v6593 = vadd.f32 %v6401, %v6465
        %v6594 = vadd.f32 %v6402, %v6466
        %v6595 = vadd.f32 %v6403, %v6467
        %v6596 = vadd.f32 %v6404, %v6468
        %v6597 = vadd.f32 %v6405, %v6469
        %v6598 = vadd.f32 %v6406, %v6470
        %v6599 = vadd.f32 %v6407, %v6471
        %v6600 = vadd.f32 %v6408, %v6472
        %v6601 = vadd.f32 %v6409, %v6473
        %v6602 = vadd.f32 %v6410, %v6474
        %v6603 = vadd.f32 %v6411, %v6475
        %v6604 = vadd.f32 %v6412, %v6476
        %v6605 = vadd.f32 %v6413, %v6477
        %v6606 = vadd.f32 %v6414, %v6478
        %v6607 = vadd.f32 %v6415, %v6479
        %v6608 = vadd.f32 %v6416, %v6480
        %v6609 = vadd.f32 %v6417, %v6481
        %v6610 = vadd.f32 %v6418, %v6482
        %v6611 = vadd.f32 %v6419, %v6483
        %v6612 = vadd.f32 %v6420, %v6484
        %v6613 = vadd.f32 %v6421, %v6485
        %v6614 = vadd.f32 %v6422, %v6486
        %v6615 = vadd.f32 %v6423, %v6487
        %v6616 = vadd.f32 %v6424, %v6488
        %v6617 = vadd.f32 %v6425, %v6489
        %v6618 = vadd.f32 %v6426, %v6490
        %v6619 = vadd.f32 %v6427, %v6491
        %v6620 = vadd.f32 %v6428, %v6492
        %v6621 = vadd.f32 %v6429, %v6493
        %v6622 = vadd.f32 %v6430, %v6494
        %v6623 = vadd.f32 %v6431, %v6495
        %v6624 = vadd.f32 %v6432, %v6496
        %v6625 = vadd.f32 %v6433, %v6497
        %v6626 = vadd.f32 %v6434, %v6498
        %v6627 = vadd.f32 %v6435, %v6499
        %v6628 = vadd.f32 %v6436, %v6500
        %v6629 = vadd.f32 %v6437, %v6501
        %v6630 = vadd.f32 %v6438, %v6502
        %v6631 = vadd.f32 %v6439, %v6503
        %v6632 = vadd.f32 %v6440, %v6504
        %v6633 = vadd.f32 %v6441, %v6505
        %v6634 = vadd.f32 %v6442, %v6506
        %v6635 = vadd.f32 %v6443, %v6507
        %v6636 = vadd.f32 %v6444, %v6508
        %v6637 = vadd.f32 %v6445, %v6509
        %v6638 = vadd.f32 %v6446, %v6510
        %v6639 = vadd.f32 %v6447, %v6511
        %v6640 = vadd.f32 %v6448, %v6512
        %v6641 = vadd.f32 %v6449, %v6513
        %v6642 = vadd.f32 %v6450, %v6514
        %v6643 = vadd.f32 %v6451, %v6515
        %v6644 = vadd.f32 %v6452, %v6516
        %v6645 = vadd.f32 %v6453, %v6517
        %v6646 = vadd.f32 %v6454, %v6518
        %v6647 = vadd.f32 %v6455, %v6519
        %v6648 = vadd.f32 %v6456, %v6520
        %v6649 = vadd.f32 %v6457, %v6521
        %v6650 = vadd.f32 %v6458, %v6522
        %v6651 = vadd.f32 %v6459, %v6523
        %v6652 = vadd.f32 %v6460, %v6524
        %v6653 = vadd.f32 %v6461, %v6525
        %v6654 = vadd.f32 %v6462, %v6526
        %v6655 = vadd.f32 %v6463, %v6527
        %v6656 = vadd.f32 %v6464, %v6528
        %v6657 = vrot.slane %v4936, 7
        %v6658 = vrot.slane %v6657, 2
        %v6659 = vrot.slane %v4937, 7
        %v6660 = vsel %vm5168, %v6658, %v6659
        %v6661 = vrot.slane %v6659, 2
        %v6662 = vrot.slane %v4938, 7
        %v6663 = vsel %vm5168, %v6661, %v6662
        %v6664 = vrot.slane %v6662, 2
        %v6665 = vrot.slane %v4987, 7
        %v6666 = vsel %vm5168, %v6664, %v6665
        %v6667 = vrot.slane %v6665, 2
        %v6668 = vrot.slane %v4988, 7
        %v6669 = vsel %vm5168, %v6667, %v6668
        %v6670 = vrot.slane %v6668, 2
        %v6671 = vrot.slane %v4989, 7
        %v6672 = vsel %vm5168, %v6670, %v6671
        %v6673 = vrot.slane %v6671, 2
        %v6674 = vrot.slane %v4990, 7
        %v6675 = vsel %vm5168, %v6673, %v6674
        %v6676 = vrot.slane %v6674, 2
        %v6677 = vrot.slane %v5024, 7
        %v6678 = vsel %vm5168, %v6676, %v6677
        %v6679 = vrot.slane %v6677, 2
        %v6680 = vrot.slane %v5025, 7
        %v6681 = vsel %vm5168, %v6679, %v6680
        %v6682 = vrot.slane %v5973, 6
        %v6683 = vrot.slane %v5976, 6
        %v6684 = vrot.slane %v5979, 6
        %v6685 = vrot.slane %v5982, 6
        %v6686 = vrot.slane %v5985, 6
        %v6687 = vrot.slane %v5988, 6
        %v6688 = vrot.slane %v5991, 6
        %v6689 = vrot.slane %v5994, 6
        %v6690 = vrot.slane %v5998, 6
        %v6691 = vrot.slane %v6001, 6
        %v6692 = vrot.slane %v6004, 6
        %v6693 = vrot.slane %v6007, 6
        %v6694 = vrot.slane %v6010, 6
        %v6695 = vrot.slane %v6013, 6
        %v6696 = vrot.slane %v6016, 6
        %v6697 = vrot.slane %v6019, 6
        %v6698 = vrot.slane %v6023, 6
        %v6699 = vrot.slane %v6026, 6
        %v6700 = vrot.slane %v6029, 6
        %v6701 = vrot.slane %v6032, 6
        %v6702 = vrot.slane %v6035, 6
        %v6703 = vrot.slane %v6038, 6
        %v6704 = vrot.slane %v6041, 6
        %v6705 = vrot.slane %v6044, 6
        %v6706 = vrot.slane %v6048, 6
        %v6707 = vrot.slane %v6051, 6
        %v6708 = vrot.slane %v6054, 6
        %v6709 = vrot.slane %v6057, 6
        %v6710 = vrot.slane %v6060, 6
        %v6711 = vrot.slane %v6063, 6
        %v6712 = vrot.slane %v6066, 6
        %v6713 = vrot.slane %v6069, 6
        %v6714 = vrot.slane %v6073, 6
        %v6715 = vrot.slane %v6076, 6
        %v6716 = vrot.slane %v6079, 6
        %v6717 = vrot.slane %v6082, 6
        %v6718 = vrot.slane %v6085, 6
        %v6719 = vrot.slane %v6088, 6
        %v6720 = vrot.slane %v6091, 6
        %v6721 = vrot.slane %v6094, 6
        %v6722 = vrot.slane %v6098, 6
        %v6723 = vrot.slane %v6101, 6
        %v6724 = vrot.slane %v6104, 6
        %v6725 = vrot.slane %v6107, 6
        %v6726 = vrot.slane %v6110, 6
        %v6727 = vrot.slane %v6113, 6
        %v6728 = vrot.slane %v6116, 6
        %v6729 = vrot.slane %v6119, 6
        %v6730 = vrot.slane %v6123, 6
        %v6731 = vrot.slane %v6126, 6
        %v6732 = vrot.slane %v6129, 6
        %v6733 = vrot.slane %v6132, 6
        %v6734 = vrot.slane %v6135, 6
        %v6735 = vrot.slane %v6138, 6
        %v6736 = vrot.slane %v6141, 6
        %v6737 = vrot.slane %v6144, 6
        %v6738 = vrot.slane %v6660, 6
        %v6739 = vrot.slane %v6663, 6
        %v6740 = vrot.slane %v6666, 6
        %v6741 = vrot.slane %v6669, 6
        %v6742 = vrot.slane %v6672, 6
        %v6743 = vrot.slane %v6675, 6
        %v6744 = vrot.slane %v6678, 6
        %v6745 = vrot.slane %v6681, 6
        %v6810 = vadd.f32 %v6593, %v6682
        %v6811 = vadd.f32 %v6594, %v6683
        %v6812 = vadd.f32 %v6595, %v6684
        %v6813 = vadd.f32 %v6596, %v6685
        %v6814 = vadd.f32 %v6597, %v6686
        %v6815 = vadd.f32 %v6598, %v6687
        %v6816 = vadd.f32 %v6599, %v6688
        %v6817 = vadd.f32 %v6600, %v6689
        %v6818 = vadd.f32 %v6601, %v6690
        %v6819 = vadd.f32 %v6602, %v6691
        %v6820 = vadd.f32 %v6603, %v6692
        %v6821 = vadd.f32 %v6604, %v6693
        %v6822 = vadd.f32 %v6605, %v6694
        %v6823 = vadd.f32 %v6606, %v6695
        %v6824 = vadd.f32 %v6607, %v6696
        %v6825 = vadd.f32 %v6608, %v6697
        %v6826 = vadd.f32 %v6609, %v6698
        %v6827 = vadd.f32 %v6610, %v6699
        %v6828 = vadd.f32 %v6611, %v6700
        %v6829 = vadd.f32 %v6612, %v6701
        %v6830 = vadd.f32 %v6613, %v6702
        %v6831 = vadd.f32 %v6614, %v6703
        %v6832 = vadd.f32 %v6615, %v6704
        %v6833 = vadd.f32 %v6616, %v6705
        %v6834 = vadd.f32 %v6617, %v6706
        %v6835 = vadd.f32 %v6618, %v6707
        %v6836 = vadd.f32 %v6619, %v6708
        %v6837 = vadd.f32 %v6620, %v6709
        %v6838 = vadd.f32 %v6621, %v6710
        %v6839 = vadd.f32 %v6622, %v6711
        %v6840 = vadd.f32 %v6623, %v6712
        %v6841 = vadd.f32 %v6624, %v6713
        %v6842 = vadd.f32 %v6625, %v6714
        %v6843 = vadd.f32 %v6626, %v6715
        %v6844 = vadd.f32 %v6627, %v6716
        %v6845 = vadd.f32 %v6628, %v6717
        %v6846 = vadd.f32 %v6629, %v6718
        %v6847 = vadd.f32 %v6630, %v6719
        %v6848 = vadd.f32 %v6631, %v6720
        %v6849 = vadd.f32 %v6632, %v6721
        %v6850 = vadd.f32 %v6633, %v6722
        %v6851 = vadd.f32 %v6634, %v6723
        %v6852 = vadd.f32 %v6635, %v6724
        %v6853 = vadd.f32 %v6636, %v6725
        %v6854 = vadd.f32 %v6637, %v6726
        %v6855 = vadd.f32 %v6638, %v6727
        %v6856 = vadd.f32 %v6639, %v6728
        %v6857 = vadd.f32 %v6640, %v6729
        %v6858 = vadd.f32 %v6641, %v6730
        %v6859 = vadd.f32 %v6642, %v6731
        %v6860 = vadd.f32 %v6643, %v6732
        %v6861 = vadd.f32 %v6644, %v6733
        %v6862 = vadd.f32 %v6645, %v6734
        %v6863 = vadd.f32 %v6646, %v6735
        %v6864 = vadd.f32 %v6647, %v6736
        %v6865 = vadd.f32 %v6648, %v6737
        %v6866 = vadd.f32 %v6649, %v6738
        %v6867 = vadd.f32 %v6650, %v6739
        %v6868 = vadd.f32 %v6651, %v6740
        %v6869 = vadd.f32 %v6652, %v6741
        %v6870 = vadd.f32 %v6653, %v6742
        %v6871 = vadd.f32 %v6654, %v6743
        %v6872 = vadd.f32 %v6655, %v6744
        %v6873 = vadd.f32 %v6656, %v6745
        %v6874 = vadd.f32 %v6810, %v3570
        %v6875 = vadd.f32 %v6811, %v3650
        %v6876 = vadd.f32 %v6812, %v3658
        %v6877 = vadd.f32 %v6813, %v3657
        %v6878 = vadd.f32 %v6814, %v3659
        %v6879 = vadd.f32 %v6815, %v3739
        %v6880 = vadd.f32 %v6816, %v3747
        %v6881 = vadd.f32 %v6817, %v3746
        %v6882 = vadd.f32 %v6818, %v3827
        %v6883 = vadd.f32 %v6819, %v3835
        %v6884 = vadd.f32 %v6820, %v3834
        %v6885 = vadd.f32 %v6821, %v3836
        %v6886 = vadd.f32 %v6822, %v3916
        %v6887 = vadd.f32 %v6823, %v3924
        %v6888 = vadd.f32 %v6824, %v3923
        %v6889 = vadd.f32 %v6825, %v3925
        %v6890 = vadd.f32 %v6826, %v4013
        %v6891 = vadd.f32 %v6827, %v4012
        %v6892 = vadd.f32 %v6828, %v4014
        %v6893 = vadd.f32 %v6829, %v4094
        %v6894 = vadd.f32 %v6830, %v4102
        %v6895 = vadd.f32 %v6831, %v4101
        %v6896 = vadd.f32 %v6832, %v4103
        %v6897 = vadd.f32 %v6833, %v4183
        %v6898 = vadd.f32 %v6834, %v4190
        %v6899 = vadd.f32 %v6835, %v4191
        %v6900 = vadd.f32 %v6836, %v4271
        %v6901 = vadd.f32 %v6837, %v4279
        %v6902 = vadd.f32 %v6838, %v4278
        %v6903 = vadd.f32 %v6839, %v4280
        %v6904 = vadd.f32 %v6840, %v4360
        %v6905 = vadd.f32 %v6841, %v4368
        %v6906 = vadd.f32 %v6842, %v4369
        %v6907 = vadd.f32 %v6843, %v4449
        %v6908 = vadd.f32 %v6844, %v4457
        %v6909 = vadd.f32 %v6845, %v4456
        %v6910 = vadd.f32 %v6846, %v4458
        %v6911 = vadd.f32 %v6847, %v4538
        %v6912 = vadd.f32 %v6848, %v4546
        %v6913 = vadd.f32 %v6849, %v4545
        %v6914 = vadd.f32 %v6850, %v4626
        %v6915 = vadd.f32 %v6851, %v4634
        %v6916 = vadd.f32 %v6852, %v4633
        %v6917 = vadd.f32 %v6853, %v4635
        %v6918 = vadd.f32 %v6854, %v4715
        %v6919 = vadd.f32 %v6855, %v4723
        %v6920 = vadd.f32 %v6856, %v4722
        %v6921 = vadd.f32 %v6857, %v4724
        %v6922 = vadd.f32 %v6858, %v4812
        %v6923 = vadd.f32 %v6859, %v4811
        %v6924 = vadd.f32 %v6860, %v4813
        %v6925 = vadd.f32 %v6861, %v4893
        %v6926 = vadd.f32 %v6862, %v4901
        %v6927 = vadd.f32 %v6863, %v4900
        %v6928 = vadd.f32 %v6864, %v4902
        %v6929 = vadd.f32 %v6865, %v4946
        %v6930 = vadd.f32 %v6866, %v4953
        %v6931 = vadd.f32 %v6867, %v4954
        %v6932 = vadd.f32 %v6868, %v4998
        %v6933 = vadd.f32 %v6869, %v5006
        %v6934 = vadd.f32 %v6870, %v5005
        %v6935 = vadd.f32 %v6871, %v5007
        %v6936 = vadd.f32 %v6872, %v5032
        %v6937 = vadd.f32 %v6873, %v5033
        %s6938 = smul.u32 %s1034, 16
        %s6939 = scalar_lea.vmem %s337, %s6938
        %v6940 = vld [vmem:[%s6939] sm:$0xff]
        %v6941 = vld [vmem:[%s6939 + $0x8] sm:$0xff]
        %v6942 = vld [vmem:[%s6939 + $0x10] sm:$0xff]
        %v6943 = vld [vmem:[%s6939 + $0x18] sm:$0xff]
        %v6944 = vld [vmem:[%s6939 + $0x20] sm:$0xff]
        %v6945 = vld [vmem:[%s6939 + $0x28] sm:$0xff]
        %v6946 = vld [vmem:[%s6939 + $0x30] sm:$0xff]
        %v6947 = vld [vmem:[%s6939 + $0x38] sm:$0xff]
        %v6948 = vld [vmem:[%s6939 + $0x40] sm:$0xff]
        %v6949 = vld [vmem:[%s6939 + $0x48] sm:$0xff]
        %v6950 = vld [vmem:[%s6939 + $0x50] sm:$0xff]
        %v6951 = vld [vmem:[%s6939 + $0x58] sm:$0xff]
        %v6952 = vld [vmem:[%s6939 + $0x60] sm:$0xff]
        %v6953 = vld [vmem:[%s6939 + $0x68] sm:$0xff]
        %v6954 = vld [vmem:[%s6939 + $0x70] sm:$0xff]
        %v6955 = vld [vmem:[%s6939 + $0x78] sm:$0xff]
        %v6956 = vld [vmem:[%s5] sm:$0x1]
        %v6958 = vlaneseq
        %v6959 = vshrl.u32 %v6958, 7
        %v6960 = vsub.s32 0, %v6959
        %v6961 = vrot.slane %v6956, %v6960
        %v6962 = vcombine.high %v6961, %v6961
        %v6964 = vunpack.c.l.s4 1983009808
        %v6965 = vunpack.c.0.s8 %v6964
        %v6966 = vlaneseq
        %v6967 = vshrl.u32 %v6966, 7
        %v6968 = vsub.s32 %v6965, %v6967
        %v6969 = vrot.slane %v6961, %v6968
        %v6971 = vunpack.c.l.s4 1983009808
        %v6972 = vunpack.c.0.s8 %v6971
        %v6973 = vlaneseq
        %v6974 = vshrl.u32 %v6973, 7
        %v6975 = vsub.s32 %v6972, %v6974
        %v6976 = vrot.slane %v6962, %v6975
        %v6977 = vcombine.high %v6969, %v6969
        %v6978 = vcombine.high %v6976, %v6976
        %v6983 = vadd.f32 %v6874, %v6969
        %v6984 = vadd.f32 %v6875, %v6977
        %v6985 = vadd.f32 %v6876, %v6976
        %v6986 = vadd.f32 %v6877, %v6978
        %v6987 = vadd.f32 %v6878, %v6969
        %v6988 = vadd.f32 %v6879, %v6977
        %v6989 = vadd.f32 %v6880, %v6976
        %v6990 = vadd.f32 %v6881, %v6978
        %v6991 = vadd.f32 %v6882, %v6969
        %v6992 = vadd.f32 %v6883, %v6977
        %v6993 = vadd.f32 %v6884, %v6976
        %v6994 = vadd.f32 %v6885, %v6978
        %v6995 = vadd.f32 %v6886, %v6969
        %v6996 = vadd.f32 %v6887, %v6977
        %v6997 = vadd.f32 %v6888, %v6976
        %v6998 = vadd.f32 %v6889, %v6978
        %v6999 = vadd.f32 %v6890, %v6969
        %v7000 = vadd.f32 %v6891, %v6977
        %v7001 = vadd.f32 %v6892, %v6976
        %v7002 = vadd.f32 %v6893, %v6978
        %v7003 = vadd.f32 %v6894, %v6969
        %v7004 = vadd.f32 %v6895, %v6977
        %v7005 = vadd.f32 %v6896, %v6976
        %v7006 = vadd.f32 %v6897, %v6978
        %v7007 = vadd.f32 %v6898, %v6969
        %v7008 = vadd.f32 %v6899, %v6977
        %v7009 = vadd.f32 %v6900, %v6976
        %v7010 = vadd.f32 %v6901, %v6978
        %v7011 = vadd.f32 %v6902, %v6969
        %v7012 = vadd.f32 %v6903, %v6977
        %v7013 = vadd.f32 %v6904, %v6976
        %v7014 = vadd.f32 %v6905, %v6978
        %v7015 = vadd.f32 %v6906, %v6969
        %v7016 = vadd.f32 %v6907, %v6977
        %v7017 = vadd.f32 %v6908, %v6976
        %v7018 = vadd.f32 %v6909, %v6978
        %v7019 = vadd.f32 %v6910, %v6969
        %v7020 = vadd.f32 %v6911, %v6977
        %v7021 = vadd.f32 %v6912, %v6976
        %v7022 = vadd.f32 %v6913, %v6978
        %v7023 = vadd.f32 %v6914, %v6969
        %v7024 = vadd.f32 %v6915, %v6977
        %v7025 = vadd.f32 %v6916, %v6976
        %v7026 = vadd.f32 %v6917, %v6978
        %v7027 = vadd.f32 %v6918, %v6969
        %v7028 = vadd.f32 %v6919, %v6977
        %v7029 = vadd.f32 %v6920, %v6976
        %v7030 = vadd.f32 %v6921, %v6978
        %v7031 = vadd.f32 %v6922, %v6969
        %v7032 = vadd.f32 %v6923, %v6977
        %v7033 = vadd.f32 %v6924, %v6976
        %v7034 = vadd.f32 %v6925, %v6978
        %v7035 = vadd.f32 %v6926, %v6969
        %v7036 = vadd.f32 %v6927, %v6977
        %v7037 = vadd.f32 %v6928, %v6976
        %v7038 = vadd.f32 %v6929, %v6978
        %v7039 = vadd.f32 %v6930, %v6969
        %v7040 = vadd.f32 %v6931, %v6977
        %v7041 = vadd.f32 %v6932, %v6976
        %v7042 = vadd.f32 %v6933, %v6978
        %v7043 = vadd.f32 %v6934, %v6969
        %v7044 = vadd.f32 %v6935, %v6977
        %v7045 = vadd.f32 %v6936, %v6976
        %v7046 = vadd.f32 %v6937, %v6978
        %v7047 = vmax.f32 %v6983, 0.0
        %v7048 = vmax.f32 %v6984, 0.0
        %v7049 = vmax.f32 %v6985, 0.0
        %v7050 = vmax.f32 %v6986, 0.0
        %v7051 = vmax.f32 %v6987, 0.0
        %v7052 = vmax.f32 %v6988, 0.0
        %v7053 = vmax.f32 %v6989, 0.0
        %v7054 = vmax.f32 %v6990, 0.0
        %v7055 = vmax.f32 %v6991, 0.0
        %v7056 = vmax.f32 %v6992, 0.0
        %v7057 = vmax.f32 %v6993, 0.0
        %v7058 = vmax.f32 %v6994, 0.0
        %v7059 = vmax.f32 %v6995, 0.0
        %v7060 = vmax.f32 %v6996, 0.0
        %v7061 = vmax.f32 %v6997, 0.0
        %v7062 = vmax.f32 %v6998, 0.0
        %v7063 = vmax.f32 %v6999, 0.0
        %v7064 = vmax.f32 %v7000, 0.0
        %v7065 = vmax.f32 %v7001, 0.0
        %v7066 = vmax.f32 %v7002, 0.0
        %v7067 = vmax.f32 %v7003, 0.0
        %v7068 = vmax.f32 %v7004, 0.0
        %v7069 = vmax.f32 %v7005, 0.0
        %v7070 = vmax.f32 %v7006, 0.0
        %v7071 = vmax.f32 %v7007, 0.0
        %v7072 = vmax.f32 %v7008, 0.0
        %v7073 = vmax.f32 %v7009, 0.0
        %v7074 = vmax.f32 %v7010, 0.0
        %v7075 = vmax.f32 %v7011, 0.0
        %v7076 = vmax.f32 %v7012, 0.0
        %v7077 = vmax.f32 %v7013, 0.0
        %v7078 = vmax.f32 %v7014, 0.0
        %v7079 = vmax.f32 %v7015, 0.0
        %v7080 = vmax.f32 %v7016, 0.0
        %v7081 = vmax.f32 %v7017, 0.0
        %v7082 = vmax.f32 %v7018, 0.0
        %v7083 = vmax.f32 %v7019, 0.0
        %v7084 = vmax.f32 %v7020, 0.0
        %v7085 = vmax.f32 %v7021, 0.0
        %v7086 = vmax.f32 %v7022, 0.0
        %v7087 = vmax.f32 %v7023, 0.0
        %v7088 = vmax.f32 %v7024, 0.0
        %v7089 = vmax.f32 %v7025, 0.0
        %v7090 = vmax.f32 %v7026, 0.0
        %v7091 = vmax.f32 %v7027, 0.0
        %v7092 = vmax.f32 %v7028, 0.0
        %v7093 = vmax.f32 %v7029, 0.0
        %v7094 = vmax.f32 %v7030, 0.0
        %v7095 = vmax.f32 %v7031, 0.0
        %v7096 = vmax.f32 %v7032, 0.0
        %v7097 = vmax.f32 %v7033, 0.0
        %v7098 = vmax.f32 %v7034, 0.0
        %v7099 = vmax.f32 %v7035, 0.0
        %v7100 = vmax.f32 %v7036, 0.0
        %v7101 = vmax.f32 %v7037, 0.0
        %v7102 = vmax.f32 %v7038, 0.0
        %v7103 = vmax.f32 %v7039, 0.0
        %v7104 = vmax.f32 %v7040, 0.0
        %v7105 = vmax.f32 %v7041, 0.0
        %v7106 = vmax.f32 %v7042, 0.0
        %v7107 = vmax.f32 %v7043, 0.0
        %v7108 = vmax.f32 %v7044, 0.0
        %v7109 = vmax.f32 %v7045, 0.0
        %v7110 = vmax.f32 %v7046, 0.0
        %7112 = vset.pattern.permute.xlu0 0
        %7113 = vperm.xlu0 %7112, %v6940
        %v7114 = vpop.permute.xlu0 %7113
        %7116 = vset.pattern.permute.xlu0 0
        %7117 = vperm.xlu0 %7116, %v6941
        %v7118 = vpop.permute.xlu0 %7117
        %7120 = vset.pattern.permute.xlu0 0
        %7121 = vperm.xlu0 %7120, %v6942
        %v7122 = vpop.permute.xlu0 %7121
        %7124 = vset.pattern.permute.xlu0 0
        %7125 = vperm.xlu0 %7124, %v6943
        %v7126 = vpop.permute.xlu0 %7125
        %7128 = vset.pattern.permute.xlu0 0
        %7129 = vperm.xlu0 %7128, %v6944
        %v7130 = vpop.permute.xlu0 %7129
        %7132 = vset.pattern.permute.xlu0 0
        %7133 = vperm.xlu0 %7132, %v6945
        %v7134 = vpop.permute.xlu0 %7133
        %7136 = vset.pattern.permute.xlu0 0
        %7137 = vperm.xlu0 %7136, %v6946
        %v7138 = vpop.permute.xlu0 %7137
        %7140 = vset.pattern.permute.xlu0 0
        %7141 = vperm.xlu0 %7140, %v6947
        %v7142 = vpop.permute.xlu0 %7141
        %7144 = vset.pattern.permute.xlu0 0
        %7145 = vperm.xlu0 %7144, %v6948
        %v7146 = vpop.permute.xlu0 %7145
        %7148 = vset.pattern.permute.xlu0 0
        %7149 = vperm.xlu0 %7148, %v6949
        %v7150 = vpop.permute.xlu0 %7149
        %7152 = vset.pattern.permute.xlu0 0
        %7153 = vperm.xlu0 %7152, %v6950
        %v7154 = vpop.permute.xlu0 %7153
        %7156 = vset.pattern.permute.xlu0 0
        %7157 = vperm.xlu0 %7156, %v6951
        %v7158 = vpop.permute.xlu0 %7157
        %7160 = vset.pattern.permute.xlu0 0
        %7161 = vperm.xlu0 %7160, %v6952
        %v7162 = vpop.permute.xlu0 %7161
        %7164 = vset.pattern.permute.xlu0 0
        %7165 = vperm.xlu0 %7164, %v6953
        %v7166 = vpop.permute.xlu0 %7165
        %7168 = vset.pattern.permute.xlu0 0
        %7169 = vperm.xlu0 %7168, %v6954
        %v7170 = vpop.permute.xlu0 %7169
        %7172 = vset.pattern.permute.xlu0 0
        %7173 = vperm.xlu0 %7172, %v6955
        %v7174 = vpop.permute.xlu0 %7173
        %v7176 = vunpack.c.l.s4 269488144
        %v7177 = vunpack.c.0.s8 %v7176
        %v7178 = vlaneseq
        %v7179 = vshrl.u32 %v7178, 7
        %v7180 = vsub.s32 %v7177, %v7179
        %v7181 = vrot.slane %v7114, %v7180
        %v7183 = vunpack.c.l.s4 842150450
        %v7184 = vunpack.c.0.s8 %v7183
        %v7185 = vlaneseq
        %v7186 = vshrl.u32 %v7185, 7
        %v7187 = vsub.s32 %v7184, %v7186
        %v7188 = vrot.slane %v7114, %v7187
        %v7190 = vunpack.c.l.s4 1414812756
        %v7191 = vunpack.c.0.s8 %v7190
        %v7192 = vlaneseq
        %v7193 = vshrl.u32 %v7192, 7
        %v7194 = vsub.s32 %v7191, %v7193
        %v7195 = vrot.slane %v7114, %v7194
        %v7197 = vunpack.c.l.s4 1987475062
        %v7198 = vunpack.c.0.s8 %v7197
        %v7199 = vlaneseq
        %v7200 = vshrl.u32 %v7199, 7
        %v7201 = vsub.s32 %v7198, %v7200
        %v7202 = vrot.slane %v7114, %v7201
        %v7204 = vunpack.c.l.s4 269488144
        %v7205 = vunpack.c.0.s8 %v7204
        %v7206 = vlaneseq
        %v7207 = vshrl.u32 %v7206, 7
        %v7208 = vsub.s32 %v7205, %v7207
        %v7209 = vrot.slane %v7118, %v7208
        %v7211 = vunpack.c.l.s4 842150450
        %v7212 = vunpack.c.0.s8 %v7211
        %v7213 = vlaneseq
        %v7214 = vshrl.u32 %v7213, 7
        %v7215 = vsub.s32 %v7212, %v7214
        %v7216 = vrot.slane %v7118, %v7215
        %v7218 = vunpack.c.l.s4 1414812756
        %v7219 = vunpack.c.0.s8 %v7218
        %v7220 = vlaneseq
        %v7221 = vshrl.u32 %v7220, 7
        %v7222 = vsub.s32 %v7219, %v7221
        %v7223 = vrot.slane %v7118, %v7222
        %v7225 = vunpack.c.l.s4 1987475062
        %v7226 = vunpack.c.0.s8 %v7225
        %v7227 = vlaneseq
        %v7228 = vshrl.u32 %v7227, 7
        %v7229 = vsub.s32 %v7226, %v7228
        %v7230 = vrot.slane %v7118, %v7229
        %v7232 = vunpack.c.l.s4 269488144
        %v7233 = vunpack.c.0.s8 %v7232
        %v7234 = vlaneseq
        %v7235 = vshrl.u32 %v7234, 7
        %v7236 = vsub.s32 %v7233, %v7235
        %v7237 = vrot.slane %v7122, %v7236
        %v7239 = vunpack.c.l.s4 842150450
        %v7240 = vunpack.c.0.s8 %v7239
        %v7241 = vlaneseq
        %v7242 = vshrl.u32 %v7241, 7
        %v7243 = vsub.s32 %v7240, %v7242
        %v7244 = vrot.slane %v7122, %v7243
        %v7246 = vunpack.c.l.s4 1414812756
        %v7247 = vunpack.c.0.s8 %v7246
        %v7248 = vlaneseq
        %v7249 = vshrl.u32 %v7248, 7
        %v7250 = vsub.s32 %v7247, %v7249
        %v7251 = vrot.slane %v7122, %v7250
        %v7253 = vunpack.c.l.s4 1987475062
        %v7254 = vunpack.c.0.s8 %v7253
        %v7255 = vlaneseq
        %v7256 = vshrl.u32 %v7255, 7
        %v7257 = vsub.s32 %v7254, %v7256
        %v7258 = vrot.slane %v7122, %v7257
        %v7260 = vunpack.c.l.s4 269488144
        %v7261 = vunpack.c.0.s8 %v7260
        %v7262 = vlaneseq
        %v7263 = vshrl.u32 %v7262, 7
        %v7264 = vsub.s32 %v7261, %v7263
        %v7265 = vrot.slane %v7126, %v7264
        %v7267 = vunpack.c.l.s4 842150450
        %v7268 = vunpack.c.0.s8 %v7267
        %v7269 = vlaneseq
        %v7270 = vshrl.u32 %v7269, 7
        %v7271 = vsub.s32 %v7268, %v7270
        %v7272 = vrot.slane %v7126, %v7271
        %v7274 = vunpack.c.l.s4 1414812756
        %v7275 = vunpack.c.0.s8 %v7274
        %v7276 = vlaneseq
        %v7277 = vshrl.u32 %v7276, 7
        %v7278 = vsub.s32 %v7275, %v7277
        %v7279 = vrot.slane %v7126, %v7278
        %v7281 = vunpack.c.l.s4 1987475062
        %v7282 = vunpack.c.0.s8 %v7281
        %v7283 = vlaneseq
        %v7284 = vshrl.u32 %v7283, 7
        %v7285 = vsub.s32 %v7282, %v7284
        %v7286 = vrot.slane %v7126, %v7285
        %v7288 = vunpack.c.l.s4 269488144
        %v7289 = vunpack.c.0.s8 %v7288
        %v7290 = vlaneseq
        %v7291 = vshrl.u32 %v7290, 7
        %v7292 = vsub.s32 %v7289, %v7291
        %v7293 = vrot.slane %v7130, %v7292
        %v7295 = vunpack.c.l.s4 842150450
        %v7296 = vunpack.c.0.s8 %v7295
        %v7297 = vlaneseq
        %v7298 = vshrl.u32 %v7297, 7
        %v7299 = vsub.s32 %v7296, %v7298
        %v7300 = vrot.slane %v7130, %v7299
        %v7302 = vunpack.c.l.s4 1414812756
        %v7303 = vunpack.c.0.s8 %v7302
        %v7304 = vlaneseq
        %v7305 = vshrl.u32 %v7304, 7
        %v7306 = vsub.s32 %v7303, %v7305
        %v7307 = vrot.slane %v7130, %v7306
        %v7309 = vunpack.c.l.s4 1987475062
        %v7310 = vunpack.c.0.s8 %v7309
        %v7311 = vlaneseq
        %v7312 = vshrl.u32 %v7311, 7
        %v7313 = vsub.s32 %v7310, %v7312
        %v7314 = vrot.slane %v7130, %v7313
        %v7316 = vunpack.c.l.s4 269488144
        %v7317 = vunpack.c.0.s8 %v7316
        %v7318 = vlaneseq
        %v7319 = vshrl.u32 %v7318, 7
        %v7320 = vsub.s32 %v7317, %v7319
        %v7321 = vrot.slane %v7134, %v7320
        %v7323 = vunpack.c.l.s4 842150450
        %v7324 = vunpack.c.0.s8 %v7323
        %v7325 = vlaneseq
        %v7326 = vshrl.u32 %v7325, 7
        %v7327 = vsub.s32 %v7324, %v7326
        %v7328 = vrot.slane %v7134, %v7327
        %v7330 = vunpack.c.l.s4 1414812756
        %v7331 = vunpack.c.0.s8 %v7330
        %v7332 = vlaneseq
        %v7333 = vshrl.u32 %v7332, 7
        %v7334 = vsub.s32 %v7331, %v7333
        %v7335 = vrot.slane %v7134, %v7334
        %v7337 = vunpack.c.l.s4 1987475062
        %v7338 = vunpack.c.0.s8 %v7337
        %v7339 = vlaneseq
        %v7340 = vshrl.u32 %v7339, 7
        %v7341 = vsub.s32 %v7338, %v7340
        %v7342 = vrot.slane %v7134, %v7341
        %v7344 = vunpack.c.l.s4 269488144
        %v7345 = vunpack.c.0.s8 %v7344
        %v7346 = vlaneseq
        %v7347 = vshrl.u32 %v7346, 7
        %v7348 = vsub.s32 %v7345, %v7347
        %v7349 = vrot.slane %v7138, %v7348
        %v7351 = vunpack.c.l.s4 842150450
        %v7352 = vunpack.c.0.s8 %v7351
        %v7353 = vlaneseq
        %v7354 = vshrl.u32 %v7353, 7
        %v7355 = vsub.s32 %v7352, %v7354
        %v7356 = vrot.slane %v7138, %v7355
        %v7358 = vunpack.c.l.s4 1414812756
        %v7359 = vunpack.c.0.s8 %v7358
        %v7360 = vlaneseq
        %v7361 = vshrl.u32 %v7360, 7
        %v7362 = vsub.s32 %v7359, %v7361
        %v7363 = vrot.slane %v7138, %v7362
        %v7365 = vunpack.c.l.s4 1987475062
        %v7366 = vunpack.c.0.s8 %v7365
        %v7367 = vlaneseq
        %v7368 = vshrl.u32 %v7367, 7
        %v7369 = vsub.s32 %v7366, %v7368
        %v7370 = vrot.slane %v7138, %v7369
        %v7372 = vunpack.c.l.s4 269488144
        %v7373 = vunpack.c.0.s8 %v7372
        %v7374 = vlaneseq
        %v7375 = vshrl.u32 %v7374, 7
        %v7376 = vsub.s32 %v7373, %v7375
        %v7377 = vrot.slane %v7142, %v7376
        %v7379 = vunpack.c.l.s4 842150450
        %v7380 = vunpack.c.0.s8 %v7379
        %v7381 = vlaneseq
        %v7382 = vshrl.u32 %v7381, 7
        %v7383 = vsub.s32 %v7380, %v7382
        %v7384 = vrot.slane %v7142, %v7383
        %v7386 = vunpack.c.l.s4 1414812756
        %v7387 = vunpack.c.0.s8 %v7386
        %v7388 = vlaneseq
        %v7389 = vshrl.u32 %v7388, 7
        %v7390 = vsub.s32 %v7387, %v7389
        %v7391 = vrot.slane %v7142, %v7390
        %v7393 = vunpack.c.l.s4 1987475062
        %v7394 = vunpack.c.0.s8 %v7393
        %v7395 = vlaneseq
        %v7396 = vshrl.u32 %v7395, 7
        %v7397 = vsub.s32 %v7394, %v7396
        %v7398 = vrot.slane %v7142, %v7397
        %v7400 = vunpack.c.l.s4 269488144
        %v7401 = vunpack.c.0.s8 %v7400
        %v7402 = vlaneseq
        %v7403 = vshrl.u32 %v7402, 7
        %v7404 = vsub.s32 %v7401, %v7403
        %v7405 = vrot.slane %v7146, %v7404
        %v7407 = vunpack.c.l.s4 842150450
        %v7408 = vunpack.c.0.s8 %v7407
        %v7409 = vlaneseq
        %v7410 = vshrl.u32 %v7409, 7
        %v7411 = vsub.s32 %v7408, %v7410
        %v7412 = vrot.slane %v7146, %v7411
        %v7414 = vunpack.c.l.s4 1414812756
        %v7415 = vunpack.c.0.s8 %v7414
        %v7416 = vlaneseq
        %v7417 = vshrl.u32 %v7416, 7
        %v7418 = vsub.s32 %v7415, %v7417
        %v7419 = vrot.slane %v7146, %v7418
        %v7421 = vunpack.c.l.s4 1987475062
        %v7422 = vunpack.c.0.s8 %v7421
        %v7423 = vlaneseq
        %v7424 = vshrl.u32 %v7423, 7
        %v7425 = vsub.s32 %v7422, %v7424
        %v7426 = vrot.slane %v7146, %v7425
        %v7428 = vunpack.c.l.s4 269488144
        %v7429 = vunpack.c.0.s8 %v7428
        %v7430 = vlaneseq
        %v7431 = vshrl.u32 %v7430, 7
        %v7432 = vsub.s32 %v7429, %v7431
        %v7433 = vrot.slane %v7150, %v7432
        %v7435 = vunpack.c.l.s4 842150450
        %v7436 = vunpack.c.0.s8 %v7435
        %v7437 = vlaneseq
        %v7438 = vshrl.u32 %v7437, 7
        %v7439 = vsub.s32 %v7436, %v7438
        %v7440 = vrot.slane %v7150, %v7439
        %v7442 = vunpack.c.l.s4 1414812756
        %v7443 = vunpack.c.0.s8 %v7442
        %v7444 = vlaneseq
        %v7445 = vshrl.u32 %v7444, 7
        %v7446 = vsub.s32 %v7443, %v7445
        %v7447 = vrot.slane %v7150, %v7446
        %v7449 = vunpack.c.l.s4 1987475062
        %v7450 = vunpack.c.0.s8 %v7449
        %v7451 = vlaneseq
        %v7452 = vshrl.u32 %v7451, 7
        %v7453 = vsub.s32 %v7450, %v7452
        %v7454 = vrot.slane %v7150, %v7453
        %v7456 = vunpack.c.l.s4 269488144
        %v7457 = vunpack.c.0.s8 %v7456
        %v7458 = vlaneseq
        %v7459 = vshrl.u32 %v7458, 7
        %v7460 = vsub.s32 %v7457, %v7459
        %v7461 = vrot.slane %v7154, %v7460
        %v7463 = vunpack.c.l.s4 842150450
        %v7464 = vunpack.c.0.s8 %v7463
        %v7465 = vlaneseq
        %v7466 = vshrl.u32 %v7465, 7
        %v7467 = vsub.s32 %v7464, %v7466
        %v7468 = vrot.slane %v7154, %v7467
        %v7470 = vunpack.c.l.s4 1414812756
        %v7471 = vunpack.c.0.s8 %v7470
        %v7472 = vlaneseq
        %v7473 = vshrl.u32 %v7472, 7
        %v7474 = vsub.s32 %v7471, %v7473
        %v7475 = vrot.slane %v7154, %v7474
        %v7477 = vunpack.c.l.s4 1987475062
        %v7478 = vunpack.c.0.s8 %v7477
        %v7479 = vlaneseq
        %v7480 = vshrl.u32 %v7479, 7
        %v7481 = vsub.s32 %v7478, %v7480
        %v7482 = vrot.slane %v7154, %v7481
        %v7484 = vunpack.c.l.s4 269488144
        %v7485 = vunpack.c.0.s8 %v7484
        %v7486 = vlaneseq
        %v7487 = vshrl.u32 %v7486, 7
        %v7488 = vsub.s32 %v7485, %v7487
        %v7489 = vrot.slane %v7158, %v7488
        %v7491 = vunpack.c.l.s4 842150450
        %v7492 = vunpack.c.0.s8 %v7491
        %v7493 = vlaneseq
        %v7494 = vshrl.u32 %v7493, 7
        %v7495 = vsub.s32 %v7492, %v7494
        %v7496 = vrot.slane %v7158, %v7495
        %v7498 = vunpack.c.l.s4 1414812756
        %v7499 = vunpack.c.0.s8 %v7498
        %v7500 = vlaneseq
        %v7501 = vshrl.u32 %v7500, 7
        %v7502 = vsub.s32 %v7499, %v7501
        %v7503 = vrot.slane %v7158, %v7502
        %v7505 = vunpack.c.l.s4 1987475062
        %v7506 = vunpack.c.0.s8 %v7505
        %v7507 = vlaneseq
        %v7508 = vshrl.u32 %v7507, 7
        %v7509 = vsub.s32 %v7506, %v7508
        %v7510 = vrot.slane %v7158, %v7509
        %v7512 = vunpack.c.l.s4 269488144
        %v7513 = vunpack.c.0.s8 %v7512
        %v7514 = vlaneseq
        %v7515 = vshrl.u32 %v7514, 7
        %v7516 = vsub.s32 %v7513, %v7515
        %v7517 = vrot.slane %v7162, %v7516
        %v7519 = vunpack.c.l.s4 842150450
        %v7520 = vunpack.c.0.s8 %v7519
        %v7521 = vlaneseq
        %v7522 = vshrl.u32 %v7521, 7
        %v7523 = vsub.s32 %v7520, %v7522
        %v7524 = vrot.slane %v7162, %v7523
        %v7526 = vunpack.c.l.s4 1414812756
        %v7527 = vunpack.c.0.s8 %v7526
        %v7528 = vlaneseq
        %v7529 = vshrl.u32 %v7528, 7
        %v7530 = vsub.s32 %v7527, %v7529
        %v7531 = vrot.slane %v7162, %v7530
        %v7533 = vunpack.c.l.s4 1987475062
        %v7534 = vunpack.c.0.s8 %v7533
        %v7535 = vlaneseq
        %v7536 = vshrl.u32 %v7535, 7
        %v7537 = vsub.s32 %v7534, %v7536
        %v7538 = vrot.slane %v7162, %v7537
        %v7540 = vunpack.c.l.s4 269488144
        %v7541 = vunpack.c.0.s8 %v7540
        %v7542 = vlaneseq
        %v7543 = vshrl.u32 %v7542, 7
        %v7544 = vsub.s32 %v7541, %v7543
        %v7545 = vrot.slane %v7166, %v7544
        %v7547 = vunpack.c.l.s4 842150450
        %v7548 = vunpack.c.0.s8 %v7547
        %v7549 = vlaneseq
        %v7550 = vshrl.u32 %v7549, 7
        %v7551 = vsub.s32 %v7548, %v7550
        %v7552 = vrot.slane %v7166, %v7551
        %v7554 = vunpack.c.l.s4 1414812756
        %v7555 = vunpack.c.0.s8 %v7554
        %v7556 = vlaneseq
        %v7557 = vshrl.u32 %v7556, 7
        %v7558 = vsub.s32 %v7555, %v7557
        %v7559 = vrot.slane %v7166, %v7558
        %v7561 = vunpack.c.l.s4 1987475062
        %v7562 = vunpack.c.0.s8 %v7561
        %v7563 = vlaneseq
        %v7564 = vshrl.u32 %v7563, 7
        %v7565 = vsub.s32 %v7562, %v7564
        %v7566 = vrot.slane %v7166, %v7565
        %v7568 = vunpack.c.l.s4 269488144
        %v7569 = vunpack.c.0.s8 %v7568
        %v7570 = vlaneseq
        %v7571 = vshrl.u32 %v7570, 7
        %v7572 = vsub.s32 %v7569, %v7571
        %v7573 = vrot.slane %v7170, %v7572
        %v7575 = vunpack.c.l.s4 842150450
        %v7576 = vunpack.c.0.s8 %v7575
        %v7577 = vlaneseq
        %v7578 = vshrl.u32 %v7577, 7
        %v7579 = vsub.s32 %v7576, %v7578
        %v7580 = vrot.slane %v7170, %v7579
        %v7582 = vunpack.c.l.s4 1414812756
        %v7583 = vunpack.c.0.s8 %v7582
        %v7584 = vlaneseq
        %v7585 = vshrl.u32 %v7584, 7
        %v7586 = vsub.s32 %v7583, %v7585
        %v7587 = vrot.slane %v7170, %v7586
        %v7589 = vunpack.c.l.s4 1987475062
        %v7590 = vunpack.c.0.s8 %v7589
        %v7591 = vlaneseq
        %v7592 = vshrl.u32 %v7591, 7
        %v7593 = vsub.s32 %v7590, %v7592
        %v7594 = vrot.slane %v7170, %v7593
        %v7596 = vunpack.c.l.s4 269488144
        %v7597 = vunpack.c.0.s8 %v7596
        %v7598 = vlaneseq
        %v7599 = vshrl.u32 %v7598, 7
        %v7600 = vsub.s32 %v7597, %v7599
        %v7601 = vrot.slane %v7174, %v7600
        %v7603 = vunpack.c.l.s4 842150450
        %v7604 = vunpack.c.0.s8 %v7603
        %v7605 = vlaneseq
        %v7606 = vshrl.u32 %v7605, 7
        %v7607 = vsub.s32 %v7604, %v7606
        %v7608 = vrot.slane %v7174, %v7607
        %v7610 = vunpack.c.l.s4 1414812756
        %v7611 = vunpack.c.0.s8 %v7610
        %v7612 = vlaneseq
        %v7613 = vshrl.u32 %v7612, 7
        %v7614 = vsub.s32 %v7611, %v7613
        %v7615 = vrot.slane %v7174, %v7614
        %v7617 = vunpack.c.l.s4 1987475062
        %v7618 = vunpack.c.0.s8 %v7617
        %v7619 = vlaneseq
        %v7620 = vshrl.u32 %v7619, 7
        %v7621 = vsub.s32 %v7618, %v7620
        %v7622 = vrot.slane %v7174, %v7621
        %v7687 = vmul.f32 %v7047, %v7181
        %v7688 = vmul.f32 %v7048, %v7188
        %v7689 = vmul.f32 %v7049, %v7195
        %v7690 = vmul.f32 %v7050, %v7202
        %v7691 = vmul.f32 %v7051, %v7209
        %v7692 = vmul.f32 %v7052, %v7216
        %v7693 = vmul.f32 %v7053, %v7223
        %v7694 = vmul.f32 %v7054, %v7230
        %v7695 = vmul.f32 %v7055, %v7237
        %v7696 = vmul.f32 %v7056, %v7244
        %v7697 = vmul.f32 %v7057, %v7251
        %v7698 = vmul.f32 %v7058, %v7258
        %v7699 = vmul.f32 %v7059, %v7265
        %v7700 = vmul.f32 %v7060, %v7272
        %v7701 = vmul.f32 %v7061, %v7279
        %v7702 = vmul.f32 %v7062, %v7286
        %v7703 = vmul.f32 %v7063, %v7293
        %v7704 = vmul.f32 %v7064, %v7300
        %v7705 = vmul.f32 %v7065, %v7307
        %v7706 = vmul.f32 %v7066, %v7314
        %v7707 = vmul.f32 %v7067, %v7321
        %v7708 = vmul.f32 %v7068, %v7328
        %v7709 = vmul.f32 %v7069, %v7335
        %v7710 = vmul.f32 %v7070, %v7342
        %v7711 = vmul.f32 %v7071, %v7349
        %v7712 = vmul.f32 %v7072, %v7356
        %v7713 = vmul.f32 %v7073, %v7363
        %v7714 = vmul.f32 %v7074, %v7370
        %v7715 = vmul.f32 %v7075, %v7377
        %v7716 = vmul.f32 %v7076, %v7384
        %v7717 = vmul.f32 %v7077, %v7391
        %v7718 = vmul.f32 %v7078, %v7398
        %v7719 = vmul.f32 %v7079, %v7405
        %v7720 = vmul.f32 %v7080, %v7412
        %v7721 = vmul.f32 %v7081, %v7419
        %v7722 = vmul.f32 %v7082, %v7426
        %v7723 = vmul.f32 %v7083, %v7433
        %v7724 = vmul.f32 %v7084, %v7440
        %v7725 = vmul.f32 %v7085, %v7447
        %v7726 = vmul.f32 %v7086, %v7454
        %v7727 = vmul.f32 %v7087, %v7461
        %v7728 = vmul.f32 %v7088, %v7468
        %v7729 = vmul.f32 %v7089, %v7475
        %v7730 = vmul.f32 %v7090, %v7482
        %v7731 = vmul.f32 %v7091, %v7489
        %v7732 = vmul.f32 %v7092, %v7496
        %v7733 = vmul.f32 %v7093, %v7503
        %v7734 = vmul.f32 %v7094, %v7510
        %v7735 = vmul.f32 %v7095, %v7517
        %v7736 = vmul.f32 %v7096, %v7524
        %v7737 = vmul.f32 %v7097, %v7531
        %v7738 = vmul.f32 %v7098, %v7538
        %v7739 = vmul.f32 %v7099, %v7545
        %v7740 = vmul.f32 %v7100, %v7552
        %v7741 = vmul.f32 %v7101, %v7559
        %v7742 = vmul.f32 %v7102, %v7566
        %v7743 = vmul.f32 %v7103, %v7573
        %v7744 = vmul.f32 %v7104, %v7580
        %v7745 = vmul.f32 %v7105, %v7587
        %v7746 = vmul.f32 %v7106, %v7594
        %v7747 = vmul.f32 %v7107, %v7601
        %v7748 = vmul.f32 %v7108, %v7608
        %v7749 = vmul.f32 %v7109, %v7615
        %v7750 = vmul.f32 %v7110, %v7622
        %v7815 = vcombine.low %v7687, %v7688
        %v7816 = vcombine.low %v7689, %v7690
        %v7818 = vunpack.c.l.s4 1983009808
        %v7819 = vunpack.c.0.s8 %v7818
        %v7820 = vlaneseq
        %v7821 = vshrl.u32 %v7820, 7
        %v7822 = vsub.s32 %v7819, %v7821
        %v7823 = vrot.slane %v7815, %v7822
        %v7825 = vunpack.c.l.s4 1983009808
        %v7826 = vunpack.c.0.s8 %v7825
        %v7827 = vlaneseq
        %v7828 = vshrl.u32 %v7827, 7
        %v7829 = vsub.s32 %v7826, %v7828
        %v7830 = vrot.slane %v7816, %v7829
        %v7831 = vcombine.low %v7823, %v7830
        %v7832 = vcombine.low %v7691, %v7692
        %v7833 = vcombine.low %v7693, %v7694
        %v7835 = vunpack.c.l.s4 1983009808
        %v7836 = vunpack.c.0.s8 %v7835
        %v7837 = vlaneseq
        %v7838 = vshrl.u32 %v7837, 7
        %v7839 = vsub.s32 %v7836, %v7838
        %v7840 = vrot.slane %v7832, %v7839
        %v7842 = vunpack.c.l.s4 1983009808
        %v7843 = vunpack.c.0.s8 %v7842
        %v7844 = vlaneseq
        %v7845 = vshrl.u32 %v7844, 7
        %v7846 = vsub.s32 %v7843, %v7845
        %v7847 = vrot.slane %v7833, %v7846
        %v7848 = vcombine.low %v7840, %v7847
        %v7849 = vcombine.low %v7695, %v7696
        %v7850 = vcombine.low %v7697, %v7698
        %v7852 = vunpack.c.l.s4 1983009808
        %v7853 = vunpack.c.0.s8 %v7852
        %v7854 = vlaneseq
        %v7855 = vshrl.u32 %v7854, 7
        %v7856 = vsub.s32 %v7853, %v7855
        %v7857 = vrot.slane %v7849, %v7856
        %v7859 = vunpack.c.l.s4 1983009808
        %v7860 = vunpack.c.0.s8 %v7859
        %v7861 = vlaneseq
        %v7862 = vshrl.u32 %v7861, 7
        %v7863 = vsub.s32 %v7860, %v7862
        %v7864 = vrot.slane %v7850, %v7863
        %v7865 = vcombine.low %v7857, %v7864
        %v7866 = vcombine.low %v7699, %v7700
        %v7867 = vcombine.low %v7701, %v7702
        %v7869 = vunpack.c.l.s4 1983009808
        %v7870 = vunpack.c.0.s8 %v7869
        %v7871 = vlaneseq
        %v7872 = vshrl.u32 %v7871, 7
        %v7873 = vsub.s32 %v7870, %v7872
        %v7874 = vrot.slane %v7866, %v7873
        %v7876 = vunpack.c.l.s4 1983009808
        %v7877 = vunpack.c.0.s8 %v7876
        %v7878 = vlaneseq
        %v7879 = vshrl.u32 %v7878, 7
        %v7880 = vsub.s32 %v7877, %v7879
        %v7881 = vrot.slane %v7867, %v7880
        %v7882 = vcombine.low %v7874, %v7881
        %v7883 = vcombine.low %v7703, %v7704
        %v7884 = vcombine.low %v7705, %v7706
        %v7886 = vunpack.c.l.s4 1983009808
        %v7887 = vunpack.c.0.s8 %v7886
        %v7888 = vlaneseq
        %v7889 = vshrl.u32 %v7888, 7
        %v7890 = vsub.s32 %v7887, %v7889
        %v7891 = vrot.slane %v7883, %v7890
        %v7893 = vunpack.c.l.s4 1983009808
        %v7894 = vunpack.c.0.s8 %v7893
        %v7895 = vlaneseq
        %v7896 = vshrl.u32 %v7895, 7
        %v7897 = vsub.s32 %v7894, %v7896
        %v7898 = vrot.slane %v7884, %v7897
        %v7899 = vcombine.low %v7891, %v7898
        %v7900 = vcombine.low %v7707, %v7708
        %v7901 = vcombine.low %v7709, %v7710
        %v7903 = vunpack.c.l.s4 1983009808
        %v7904 = vunpack.c.0.s8 %v7903
        %v7905 = vlaneseq
        %v7906 = vshrl.u32 %v7905, 7
        %v7907 = vsub.s32 %v7904, %v7906
        %v7908 = vrot.slane %v7900, %v7907
        %v7910 = vunpack.c.l.s4 1983009808
        %v7911 = vunpack.c.0.s8 %v7910
        %v7912 = vlaneseq
        %v7913 = vshrl.u32 %v7912, 7
        %v7914 = vsub.s32 %v7911, %v7913
        %v7915 = vrot.slane %v7901, %v7914
        %v7916 = vcombine.low %v7908, %v7915
        %v7917 = vcombine.low %v7711, %v7712
        %v7918 = vcombine.low %v7713, %v7714
        %v7920 = vunpack.c.l.s4 1983009808
        %v7921 = vunpack.c.0.s8 %v7920
        %v7922 = vlaneseq
        %v7923 = vshrl.u32 %v7922, 7
        %v7924 = vsub.s32 %v7921, %v7923
        %v7925 = vrot.slane %v7917, %v7924
        %v7927 = vunpack.c.l.s4 1983009808
        %v7928 = vunpack.c.0.s8 %v7927
        %v7929 = vlaneseq
        %v7930 = vshrl.u32 %v7929, 7
        %v7931 = vsub.s32 %v7928, %v7930
        %v7932 = vrot.slane %v7918, %v7931
        %v7933 = vcombine.low %v7925, %v7932
        %v7934 = vcombine.low %v7715, %v7716
        %v7935 = vcombine.low %v7717, %v7718
        %v7937 = vunpack.c.l.s4 1983009808
        %v7938 = vunpack.c.0.s8 %v7937
        %v7939 = vlaneseq
        %v7940 = vshrl.u32 %v7939, 7
        %v7941 = vsub.s32 %v7938, %v7940
        %v7942 = vrot.slane %v7934, %v7941
        %v7944 = vunpack.c.l.s4 1983009808
        %v7945 = vunpack.c.0.s8 %v7944
        %v7946 = vlaneseq
        %v7947 = vshrl.u32 %v7946, 7
        %v7948 = vsub.s32 %v7945, %v7947
        %v7949 = vrot.slane %v7935, %v7948
        %v7950 = vcombine.low %v7942, %v7949
        %v7951 = vcombine.low %v7719, %v7720
        %v7952 = vcombine.low %v7721, %v7722
        %v7954 = vunpack.c.l.s4 1983009808
        %v7955 = vunpack.c.0.s8 %v7954
        %v7956 = vlaneseq
        %v7957 = vshrl.u32 %v7956, 7
        %v7958 = vsub.s32 %v7955, %v7957
        %v7959 = vrot.slane %v7951, %v7958
        %v7961 = vunpack.c.l.s4 1983009808
        %v7962 = vunpack.c.0.s8 %v7961
        %v7963 = vlaneseq
        %v7964 = vshrl.u32 %v7963, 7
        %v7965 = vsub.s32 %v7962, %v7964
        %v7966 = vrot.slane %v7952, %v7965
        %v7967 = vcombine.low %v7959, %v7966
        %v7968 = vcombine.low %v7723, %v7724
        %v7969 = vcombine.low %v7725, %v7726
        %v7971 = vunpack.c.l.s4 1983009808
        %v7972 = vunpack.c.0.s8 %v7971
        %v7973 = vlaneseq
        %v7974 = vshrl.u32 %v7973, 7
        %v7975 = vsub.s32 %v7972, %v7974
        %v7976 = vrot.slane %v7968, %v7975
        %v7978 = vunpack.c.l.s4 1983009808
        %v7979 = vunpack.c.0.s8 %v7978
        %v7980 = vlaneseq
        %v7981 = vshrl.u32 %v7980, 7
        %v7982 = vsub.s32 %v7979, %v7981
        %v7983 = vrot.slane %v7969, %v7982
        %v7984 = vcombine.low %v7976, %v7983
        %v7985 = vcombine.low %v7727, %v7728
        %v7986 = vcombine.low %v7729, %v7730
        %v7988 = vunpack.c.l.s4 1983009808
        %v7989 = vunpack.c.0.s8 %v7988
        %v7990 = vlaneseq
        %v7991 = vshrl.u32 %v7990, 7
        %v7992 = vsub.s32 %v7989, %v7991
        %v7993 = vrot.slane %v7985, %v7992
        %v7995 = vunpack.c.l.s4 1983009808
        %v7996 = vunpack.c.0.s8 %v7995
        %v7997 = vlaneseq
        %v7998 = vshrl.u32 %v7997, 7
        %v7999 = vsub.s32 %v7996, %v7998
        %v8000 = vrot.slane %v7986, %v7999
        %v8001 = vcombine.low %v7993, %v8000
        %v8002 = vcombine.low %v7731, %v7732
        %v8003 = vcombine.low %v7733, %v7734
        %v8005 = vunpack.c.l.s4 1983009808
        %v8006 = vunpack.c.0.s8 %v8005
        %v8007 = vlaneseq
        %v8008 = vshrl.u32 %v8007, 7
        %v8009 = vsub.s32 %v8006, %v8008
        %v8010 = vrot.slane %v8002, %v8009
        %v8012 = vunpack.c.l.s4 1983009808
        %v8013 = vunpack.c.0.s8 %v8012
        %v8014 = vlaneseq
        %v8015 = vshrl.u32 %v8014, 7
        %v8016 = vsub.s32 %v8013, %v8015
        %v8017 = vrot.slane %v8003, %v8016
        %v8018 = vcombine.low %v8010, %v8017
        %v8019 = vcombine.low %v7735, %v7736
        %v8020 = vcombine.low %v7737, %v7738
        %v8022 = vunpack.c.l.s4 1983009808
        %v8023 = vunpack.c.0.s8 %v8022
        %v8024 = vlaneseq
        %v8025 = vshrl.u32 %v8024, 7
        %v8026 = vsub.s32 %v8023, %v8025
        %v8027 = vrot.slane %v8019, %v8026
        %v8029 = vunpack.c.l.s4 1983009808
        %v8030 = vunpack.c.0.s8 %v8029
        %v8031 = vlaneseq
        %v8032 = vshrl.u32 %v8031, 7
        %v8033 = vsub.s32 %v8030, %v8032
        %v8034 = vrot.slane %v8020, %v8033
        %v8035 = vcombine.low %v8027, %v8034
        %v8036 = vcombine.low %v7739, %v7740
        %v8037 = vcombine.low %v7741, %v7742
        %v8039 = vunpack.c.l.s4 1983009808
        %v8040 = vunpack.c.0.s8 %v8039
        %v8041 = vlaneseq
        %v8042 = vshrl.u32 %v8041, 7
        %v8043 = vsub.s32 %v8040, %v8042
        %v8044 = vrot.slane %v8036, %v8043
        %v8046 = vunpack.c.l.s4 1983009808
        %v8047 = vunpack.c.0.s8 %v8046
        %v8048 = vlaneseq
        %v8049 = vshrl.u32 %v8048, 7
        %v8050 = vsub.s32 %v8047, %v8049
        %v8051 = vrot.slane %v8037, %v8050
        %v8052 = vcombine.low %v8044, %v8051
        %v8053 = vcombine.low %v7743, %v7744
        %v8054 = vcombine.low %v7745, %v7746
        %v8056 = vunpack.c.l.s4 1983009808
        %v8057 = vunpack.c.0.s8 %v8056
        %v8058 = vlaneseq
        %v8059 = vshrl.u32 %v8058, 7
        %v8060 = vsub.s32 %v8057, %v8059
        %v8061 = vrot.slane %v8053, %v8060
        %v8063 = vunpack.c.l.s4 1983009808
        %v8064 = vunpack.c.0.s8 %v8063
        %v8065 = vlaneseq
        %v8066 = vshrl.u32 %v8065, 7
        %v8067 = vsub.s32 %v8064, %v8066
        %v8068 = vrot.slane %v8054, %v8067
        %v8069 = vcombine.low %v8061, %v8068
        %v8070 = vcombine.low %v7747, %v7748
        %v8071 = vcombine.low %v7749, %v7750
        %v8073 = vunpack.c.l.s4 1983009808
        %v8074 = vunpack.c.0.s8 %v8073
        %v8075 = vlaneseq
        %v8076 = vshrl.u32 %v8075, 7
        %v8077 = vsub.s32 %v8074, %v8076
        %v8078 = vrot.slane %v8070, %v8077
        %v8080 = vunpack.c.l.s4 1983009808
        %v8081 = vunpack.c.0.s8 %v8080
        %v8082 = vlaneseq
        %v8083 = vshrl.u32 %v8082, 7
        %v8084 = vsub.s32 %v8081, %v8083
        %v8085 = vrot.slane %v8071, %v8084
        %v8086 = vcombine.low %v8078, %v8085
        %v8103 = vpack.c.bf16 %v7848, %v7831
        %v8104 = vpack.c.bf16 %v7882, %v7865
        %v8105 = vpack.c.bf16 %v7916, %v7899
        %v8106 = vpack.c.bf16 %v7950, %v7933
        %v8107 = vpack.c.bf16 %v7984, %v7967
        %v8108 = vpack.c.bf16 %v8018, %v8001
        %v8109 = vpack.c.bf16 %v8052, %v8035
        %v8110 = vpack.c.bf16 %v8086, %v8069
        %v8111 = vld [vmem:[%s6] sm:$0xf]
        %v8112 = vld [vmem:[%s6 + $0x4] sm:$0xf]
        %v8113 = vld [vmem:[%s6 + $0x8] sm:$0xf]
        %v8114 = vld [vmem:[%s6 + $0xc] sm:$0xf]
        %v8115 = vld [vmem:[%s6 + $0x10] sm:$0xf]
        %v8116 = vld [vmem:[%s6 + $0x14] sm:$0xf]
        %v8117 = vld [vmem:[%s6 + $0x18] sm:$0xf]
        %v8118 = vld [vmem:[%s6 + $0x1c] sm:$0xf]
        %v8119 = vld [vmem:[%s6 + $0x20] sm:$0xf]
        %v8120 = vld [vmem:[%s6 + $0x24] sm:$0xf]
        %v8121 = vld [vmem:[%s6 + $0x28] sm:$0xf]
        %v8122 = vld [vmem:[%s6 + $0x2c] sm:$0xf]
        %v8123 = vld [vmem:[%s6 + $0x30] sm:$0xf]
        %v8124 = vld [vmem:[%s6 + $0x34] sm:$0xf]
        %v8125 = vld [vmem:[%s6 + $0x38] sm:$0xf]
        %v8126 = vld [vmem:[%s6 + $0x3c] sm:$0xf]
        %v8127 = vld [vmem:[%s7] sm:$0x1]
        %v8129 = vlaneseq
        %v8130 = vshrl.u32 %v8129, 7
        %v8131 = vsub.s32 0, %v8130
        %v8132 = vrot.slane %v8127, %v8131
        %v8150 = vunpack.c.l.b16 %v8111
        %v8151 = vunpack.c.l.b16 %v8112
        %v8152 = vunpack.c.l.b16 %v8113
        %v8153 = vunpack.c.l.b16 %v8114
        %v8154 = vunpack.c.l.b16 %v8115
        %v8155 = vunpack.c.l.b16 %v8116
        %v8156 = vunpack.c.l.b16 %v8117
        %v8157 = vunpack.c.l.b16 %v8118
        %v8158 = vunpack.c.l.b16 %v8119
        %v8159 = vunpack.c.l.b16 %v8120
        %v8160 = vunpack.c.l.b16 %v8121
        %v8161 = vunpack.c.l.b16 %v8122
        %v8162 = vunpack.c.l.b16 %v8123
        %v8163 = vunpack.c.l.b16 %v8124
        %v8164 = vunpack.c.l.b16 %v8125
        %v8165 = vunpack.c.l.b16 %v8126
        %v8166 = vpack.c.b16 %v8151, %v8150
        %v8167 = vpack.c.b16 %v8153, %v8152
        %v8168 = vpack.c.b16 %v8155, %v8154
        %v8169 = vpack.c.b16 %v8157, %v8156
        %v8170 = vpack.c.b16 %v8159, %v8158
        %v8171 = vpack.c.b16 %v8161, %v8160
        %v8172 = vpack.c.b16 %v8163, %v8162
        %v8173 = vpack.c.b16 %v8165, %v8164
        %8182 = vmatprep.subr.bf16.mxu0 0
        %8183 = vmatpush1.bf16.msra.mxu0 %v8166
        %8184 = vmatprep.subr.bf16.mxu0 0
        %8185 = vmatpush1.bf16.msra.mxu0 %v8167
        %8186 = vmatprep.subr.bf16.mxu0 0
        %8187 = vmatpush1.bf16.msra.mxu0 %v8168
        %8188 = vmatprep.subr.bf16.mxu0 0
        %8189 = vmatpush1.bf16.msra.mxu0 %v8169
        %8190 = vmatprep.subr.bf16.mxu0 0
        %8191 = vmatpush1.bf16.msra.mxu0 %v8170
        %8192 = vmatprep.subr.bf16.mxu0 0
        %8193 = vmatpush1.bf16.msra.mxu0 %v8171
        %8194 = vmatprep.subr.bf16.mxu0 0
        %8195 = vmatpush1.bf16.msra.mxu0 %v8172
        %8196 = vmatprep.subr.bf16.mxu0 0
        %8197 = vmatpush1.bf16.msra.mxu0 %v8173
        %8198 = vmatprep.subr.bf16.mxu0 0
        %8199 = vmatpush1.bf16.msra.mxu0 0
        %8200 = vmatprep.subr.bf16.mxu0 0
        %8201 = vmatpush1.bf16.msra.mxu0 0
        %8202 = vmatprep.subr.bf16.mxu0 0
        %8203 = vmatpush1.bf16.msra.mxu0 0
        %8204 = vmatprep.subr.bf16.mxu0 0
        %8205 = vmatpush1.bf16.msra.mxu0 0
        %8206 = vmatprep.subr.bf16.mxu0 0
        %8207 = vmatpush1.bf16.msra.mxu0 0
        %8208 = vmatprep.subr.bf16.mxu0 0
        %8209 = vmatpush1.bf16.msra.mxu0 0
        %8210 = vmatprep.subr.bf16.mxu0 0
        %8211 = vmatpush1.bf16.msra.mxu0 0
        %8212 = vmatprep.subr.bf16.mxu0 0
        %8213 = vmatpush1.bf16.msra.mxu0 0
        %8214 = vmatprep.mubr.bf16.mxu0 0
        %8215 = vmatmul.mubr.bf16.gmra.mrb[0].mxu0 %v8103
        %v8216 = vpop.f32.mrb[0].mxu0
        %v8217 = vadd.f32 %v8132, %v8216
        %v8218 = vpop.f32.mrb[0].mxu0
        %v8219 = vpop.f32.mrb[0].mxu0
        %v8220 = vadd.f32 %v8132, %v8219
        %v8221 = vpop.f32.mrb[0].mxu0
        %8222 = vmatprep.mubr.bf16.mxu0 0
        %8223 = vmatmul.mubr.bf16.gmra.mrb[0].mxu0 %v8104
        %v8224 = vpop.f32.mrb[0].mxu0
        %v8225 = vadd.f32 %v8132, %v8224
        %v8226 = vpop.f32.mrb[0].mxu0
        %v8227 = vpop.f32.mrb[0].mxu0
        %v8228 = vadd.f32 %v8132, %v8227
        %v8229 = vpop.f32.mrb[0].mxu0
        %8230 = vmatprep.mubr.bf16.mxu0 0
        %8231 = vmatmul.mubr.bf16.gmra.mrb[0].mxu0 %v8105
        %v8232 = vpop.f32.mrb[0].mxu0
        %v8233 = vadd.f32 %v8132, %v8232
        %v8234 = vpop.f32.mrb[0].mxu0
        %v8235 = vpop.f32.mrb[0].mxu0
        %v8236 = vadd.f32 %v8132, %v8235
        %v8237 = vpop.f32.mrb[0].mxu0
        %8238 = vmatprep.mubr.bf16.mxu0 0
        %8239 = vmatmul.mubr.bf16.gmra.mrb[0].mxu0 %v8106
        %v8240 = vpop.f32.mrb[0].mxu0
        %v8241 = vadd.f32 %v8132, %v8240
        %v8242 = vpop.f32.mrb[0].mxu0
        %v8243 = vpop.f32.mrb[0].mxu0
        %v8244 = vadd.f32 %v8132, %v8243
        %v8245 = vpop.f32.mrb[0].mxu0
        %8246 = vmatprep.mubr.bf16.mxu0 0
        %8247 = vmatmul.mubr.bf16.gmra.mrb[0].mxu0 %v8107
        %v8248 = vpop.f32.mrb[0].mxu0
        %v8249 = vadd.f32 %v8132, %v8248
        %v8250 = vpop.f32.mrb[0].mxu0
        %v8251 = vpop.f32.mrb[0].mxu0
        %v8252 = vadd.f32 %v8132, %v8251
        %v8253 = vpop.f32.mrb[0].mxu0
        %8254 = vmatprep.mubr.bf16.mxu0 0
        %8255 = vmatmul.mubr.bf16.gmra.mrb[0].mxu0 %v8108
        %v8256 = vpop.f32.mrb[0].mxu0
        %v8257 = vadd.f32 %v8132, %v8256
        %v8258 = vpop.f32.mrb[0].mxu0
        %v8259 = vpop.f32.mrb[0].mxu0
        %v8260 = vadd.f32 %v8132, %v8259
        %v8261 = vpop.f32.mrb[0].mxu0
        %8262 = vmatprep.mubr.bf16.mxu0 0
        %8263 = vmatmul.mubr.bf16.gmra.mrb[0].mxu0 %v8109
        %v8264 = vpop.f32.mrb[0].mxu0
        %v8265 = vadd.f32 %v8132, %v8264
        %v8266 = vpop.f32.mrb[0].mxu0
        %v8267 = vpop.f32.mrb[0].mxu0
        %v8268 = vadd.f32 %v8132, %v8267
        %v8269 = vpop.f32.mrb[0].mxu0
        %8270 = vmatprep.mubr.bf16.mxu0 0
        %8271 = vmatmul.mubr.bf16.gmra.mrb[0].mxu0 %v8110
        %v8272 = vpop.f32.mrb[0].mxu0
        %v8273 = vadd.f32 %v8132, %v8272
        %v8274 = vpop.f32.mrb[0].mxu0
        %v8275 = vpop.f32.mrb[0].mxu0
        %v8276 = vadd.f32 %v8132, %v8275
        %v8277 = vpop.f32.mrb[0].mxu0
        %8278 = vdwg.mxu0
        %s8279 = smul.u32 %s1034, 2
        %s8280 = smul.addr %s8279, 4
        %s8281 = scalar_lea.vmem %s332, %s8280
        %v8282 = vld [vmem:[%s8281] sm:$0xf]
        %v8283 = vld [vmem:[%s8281 + $0x4] sm:$0xf]
        %v8284 = vld [vmem:[%s8281 + $0x8] sm:$0xf]
        %v8285 = vld [vmem:[%s8281 + $0xc] sm:$0xf]
        %v8286 = vld [vmem:[%s8281 + $0x10] sm:$0xf]
        %v8287 = vld [vmem:[%s8281 + $0x14] sm:$0xf]
        %v8288 = vld [vmem:[%s8281 + $0x18] sm:$0xf]
        %v8289 = vld [vmem:[%s8281 + $0x1c] sm:$0xf]
        %v8290 = vld [vmem:[%s8281 + $0x20] sm:$0xf]
        %v8291 = vld [vmem:[%s8281 + $0x24] sm:$0xf]
        %v8292 = vld [vmem:[%s8281 + $0x28] sm:$0xf]
        %v8293 = vld [vmem:[%s8281 + $0x2c] sm:$0xf]
        %v8294 = vld [vmem:[%s8281 + $0x30] sm:$0xf]
        %v8295 = vld [vmem:[%s8281 + $0x34] sm:$0xf]
        %v8296 = vld [vmem:[%s8281 + $0x38] sm:$0xf]
        %v8297 = vld [vmem:[%s8281 + $0x3c] sm:$0xf]
        %v8298 = vunpack.c.l.bf16 %v8282
        %v8299 = vunpack.c.l.bf16 %v8283
        %v8300 = vunpack.c.l.bf16 %v8284
        %v8301 = vunpack.c.l.bf16 %v8285
        %v8302 = vunpack.c.l.bf16 %v8286
        %v8303 = vunpack.c.l.bf16 %v8287
        %v8304 = vunpack.c.l.bf16 %v8288
        %v8305 = vunpack.c.l.bf16 %v8289
        %v8306 = vunpack.c.l.bf16 %v8290
        %v8307 = vunpack.c.l.bf16 %v8291
        %v8308 = vunpack.c.l.bf16 %v8292
        %v8309 = vunpack.c.l.bf16 %v8293
        %v8310 = vunpack.c.l.bf16 %v8294
        %v8311 = vunpack.c.l.bf16 %v8295
        %v8312 = vunpack.c.l.bf16 %v8296
        %v8313 = vunpack.c.l.bf16 %v8297
        %v8314 = vadd.f32 %v8217, %v8298
        %v8315 = vadd.f32 %v8220, %v8299
        %v8316 = vadd.f32 %v8225, %v8300
        %v8317 = vadd.f32 %v8228, %v8301
        %v8318 = vadd.f32 %v8233, %v8302
        %v8319 = vadd.f32 %v8236, %v8303
        %v8320 = vadd.f32 %v8241, %v8304
        %v8321 = vadd.f32 %v8244, %v8305
        %v8322 = vadd.f32 %v8249, %v8306
        %v8323 = vadd.f32 %v8252, %v8307
        %v8324 = vadd.f32 %v8257, %v8308
        %v8325 = vadd.f32 %v8260, %v8309
        %v8326 = vadd.f32 %v8265, %v8310
        %v8327 = vadd.f32 %v8268, %v8311
        %v8328 = vadd.f32 %v8273, %v8312
        %v8329 = vadd.f32 %v8276, %v8313
        %v8330 = vmax.f32 %v8314, 0.0
        %v8331 = vmax.f32 %v8315, 0.0
        %v8332 = vmax.f32 %v8316, 0.0
        %v8333 = vmax.f32 %v8317, 0.0
        %v8334 = vmax.f32 %v8318, 0.0
        %v8335 = vmax.f32 %v8319, 0.0
        %v8336 = vmax.f32 %v8320, 0.0
        %v8337 = vmax.f32 %v8321, 0.0
        %v8338 = vmax.f32 %v8322, 0.0
        %v8339 = vmax.f32 %v8323, 0.0
        %v8340 = vmax.f32 %v8324, 0.0
        %v8341 = vmax.f32 %v8325, 0.0
        %v8342 = vmax.f32 %v8326, 0.0
        %v8343 = vmax.f32 %v8327, 0.0
        %v8344 = vmax.f32 %v8328, 0.0
        %v8345 = vmax.f32 %v8329, 0.0
        %v8346 = vpack.c.bf16 %v8331, %v8330
        %v8347 = vpack.c.bf16 %v8333, %v8332
        %v8348 = vpack.c.bf16 %v8335, %v8334
        %v8349 = vpack.c.bf16 %v8337, %v8336
        %v8350 = vpack.c.bf16 %v8339, %v8338
        %v8351 = vpack.c.bf16 %v8341, %v8340
        %v8352 = vpack.c.bf16 %v8343, %v8342
        %v8353 = vpack.c.bf16 %v8345, %v8344
        %v8362 = vunpack.c.l.b16 %v8346
        %v8363 = vunpack.c.h.b16 %v8346
        %v8364 = vunpack.c.l.b16 %v8347
        %v8365 = vunpack.c.h.b16 %v8347
        %v8366 = vunpack.c.l.b16 %v8348
        %v8367 = vunpack.c.h.b16 %v8348
        %v8368 = vunpack.c.l.b16 %v8349
        %v8369 = vunpack.c.h.b16 %v8349
        %v8370 = vunpack.c.l.b16 %v8350
        %v8371 = vunpack.c.h.b16 %v8350
        %v8372 = vunpack.c.l.b16 %v8351
        %v8373 = vunpack.c.h.b16 %v8351
        %v8374 = vunpack.c.l.b16 %v8352
        %v8375 = vunpack.c.h.b16 %v8352
        %v8376 = vunpack.c.l.b16 %v8353
        %v8377 = vunpack.c.h.b16 %v8353
        %v8378 = vpack.c.b16 %v8362, %v8362
        %v8379 = vpack.c.b16 %v8363, %v8363
        %v8380 = vpack.c.b16 %v8364, %v8364
        %v8381 = vpack.c.b16 %v8365, %v8365
        %v8382 = vpack.c.b16 %v8366, %v8366
        %v8383 = vpack.c.b16 %v8367, %v8367
        %v8384 = vpack.c.b16 %v8368, %v8368
        %v8385 = vpack.c.b16 %v8369, %v8369
        %v8386 = vpack.c.b16 %v8370, %v8370
        %v8387 = vpack.c.b16 %v8371, %v8371
        %v8388 = vpack.c.b16 %v8372, %v8372
        %v8389 = vpack.c.b16 %v8373, %v8373
        %v8390 = vpack.c.b16 %v8374, %v8374
        %v8391 = vpack.c.b16 %v8375, %v8375
        %v8392 = vpack.c.b16 %v8376, %v8376
        %v8393 = vpack.c.b16 %v8377, %v8377
        %vm8410 = vcmask 257024
        %8411 = vst.msk [vmem:[%s327] sm:$0xf] %vm8410, %v8378
        %8412 = vst.msk [vmem:[%s327 + $0x4] sm:$0xf] %vm8410, %v8379
        %8413 = vst.msk [vmem:[%s327 + $0x8] sm:$0xf] %vm8410, %v8380
        %8414 = vst.msk [vmem:[%s327 + $0xc] sm:$0xf] %vm8410, %v8381
        %8415 = vst.msk [vmem:[%s327 + $0x10] sm:$0xf] %vm8410, %v8382
        %8416 = vst.msk [vmem:[%s327 + $0x14] sm:$0xf] %vm8410, %v8383
        %8417 = vst.msk [vmem:[%s327 + $0x18] sm:$0xf] %vm8410, %v8384
        %8418 = vst.msk [vmem:[%s327 + $0x1c] sm:$0xf] %vm8410, %v8385
        %8419 = vst.msk [vmem:[%s327 + $0x20] sm:$0xf] %vm8410, %v8386
        %8420 = vst.msk [vmem:[%s327 + $0x24] sm:$0xf] %vm8410, %v8387
        %8421 = vst.msk [vmem:[%s327 + $0x28] sm:$0xf] %vm8410, %v8388
        %8422 = vst.msk [vmem:[%s327 + $0x2c] sm:$0xf] %vm8410, %v8389
        %8423 = vst.msk [vmem:[%s327 + $0x30] sm:$0xf] %vm8410, %v8390
        %8424 = vst.msk [vmem:[%s327 + $0x34] sm:$0xf] %vm8410, %v8391
        %8425 = vst.msk [vmem:[%s327 + $0x38] sm:$0xf] %vm8410, %v8392
        %8426 = vst.msk [vmem:[%s327 + $0x3c] sm:$0xf] %vm8410, %v8393
        %s8427 = sand.u32 %s222, 1
        %s8428 = scalar_lea.sflag [#allocation4], %s8427
        %s8429 = sand.u32 %s222, 1
        %s8430 = smul.addr %s8429, 64
        %s8431 = scalar_lea.vmem [#allocation3], %s8430
        // Predicated region
        $region57: #{tpu_custom_call.1} parent=51 // pred_check
          %p8432 = pneg %p232
        $region58: #{tpu_custom_call.1} parent=51 // pred_check_branch
          %8434 = sbr.rel (%p8432) target = $region60
        $region59: #{tpu_custom_call.1} parent=51 // pred_region
          %s8435 = smul.u32 8, %s27
          %s8437 = ssub.s32 1024, 1024
          %8438 = vsyncadd %s8428, %s8437
          %s8439 = smul.addr %s8435, 2
          %s8440 = smul.addr %s26, 32
          %s8441 = sadd.s32 %s8439, %s8440
          %s8442 = smul.addr %s8441, 64
          %s8443 = scalar_lea.hbm %s8, %s8442
          %s8444 = sshll.u32 %s8431, 4
          %s8445 = int_to_ptr.vmem [resolvable:$true] %s8444
          %8450 = dma.vmem_to_hbm [thread:$0]  %s8445, 1024, %s8443, %s8428, 64, 64, 4
        $region60: #{tpu_custom_call.1} parent=51 // pred_fallthru
          _
      $region52: #{tpu_custom_call.1} parent=5 // pred_fallthru
        _
      %p8451 = scmp.le.s32.totalorder 2, %s17
      // Predicated region
      $region61: #{tpu_custom_call.1} parent=5 // pred_check
        %p8452 = pneg %p8451
      $region62: #{tpu_custom_call.1} parent=5 // pred_check_branch
        %8454 = sbr.rel (%p8452) target = $region64
      $region63: #{tpu_custom_call.1} parent=5 // pred_region
        %s8455 = ssub.s32 %s17, 2
        // Predicated region
        $region65: #{tpu_custom_call.1} parent=63 // pred_check
          %p8456 = pneg %p238
        $region66: #{tpu_custom_call.1} parent=63 // pred_check_branch
          %8458 = sbr.rel (%p8456) target = $region68
        $region67: #{tpu_custom_call.1} parent=63 // pred_region
          %s8459 = sand.u32 %s223, 1
          %s8460 = scalar_lea.sflag [#allocation4], %s8459
          %s8461 = sand.u32 %s223, 1
          %s8462 = smul.addr %s8461, 64
          %s8463 = scalar_lea.vmem [#allocation3], %s8462
          %8464 = dma.done %s8460, 1024
        $region68: #{tpu_custom_call.1} parent=63 // pred_fallthru
          _
      $region64: #{tpu_custom_call.1} parent=5 // pred_fallthru
        _
    $region6: #{tpu_custom_call.1} parent=1 // loop_footer
      %s21 = sadd.s32 1, %s17
    $region7: #{tpu_custom_call.1} parent=1 // loop_footer_branch
      %16 = sbr.rel target = $region3
    $region8: #{tpu_custom_call.1} parent=1 // loop_exit
      _
    %8465 = vsyncpa [#allocation4], 1
    %s8466 = scalar_lea.sflag [#allocation4], 1
    %8467 = vsyncpa %s8466, 1

</llo_original>
